<compile_context>
chip_gen: v7x
topology: tpu7x:2x2x1
jax: 0.10.0
libtpu: 0.0.40
codegen_flags: <defaults>
</compile_context>

<pallas_src>
import math
from functools import partial

import numpy as np
import jax
import jax.numpy as jnp
from jax.experimental import pallas as pl
from jax.experimental.pallas import tpu as pltpu


# ----------------------------------------------------------------------------
# Model configuration (small, shape-consistent stand-in for the real UNet sizes)
# ----------------------------------------------------------------------------
DEPTH = 5
WF = 2                      # small version of wf=5
SIZES = [20, 12, 8, 6]      # small version of [220, 106, 49, 20]
FINAL_SIZE = 24             # small version of 224
BOTTLENECK_C = 64           # small version of 512
BOTTLENECK_HW = 4
LAST_CH = 1
BATCH = 2
BN_EPS = 1e-5


# ----------------------------------------------------------------------------
# In-kernel helpers
# ----------------------------------------------------------------------------

def _bn(slab, mask, g, aff, eps):
    """Single-pass training-mode BatchNorm on a (rows, OW*C) slab.

    mask: (rows, 1) validity mask (None => all rows valid).
    g:    (OW*C, OW*C) = kron(ones(OW,OW), I_C) / count  -- channel pool + 1/count.
    aff:  (3, OW*C) rows = [conv_bias_tiled, gamma_tiled, beta_tiled].
    """
    if mask is None:
        s = jnp.sum(slab, axis=0, keepdims=True)
        sq = jnp.sum(slab * slab, axis=0, keepdims=True)
    else:
        s = jnp.sum(slab * mask, axis=0, keepdims=True)
        sq = jnp.sum(slab * slab * mask, axis=0, keepdims=True)
    # Pack [sum; sumsq] into a (2, L) matrix without a concat (sublane broadcast+select).
    sel = jax.lax.broadcasted_iota(jnp.int32, (2, 1), 0) == 0
    stats = jnp.where(sel, s, sq)                                        # (2, L)
    pooled = jnp.dot(stats, g, preferred_element_type=jnp.float32)       # [mean; E[x^2]]
    mean = pooled[0:1]
    var = jnp.maximum(pooled[1:2] - mean * mean, 0.0)
    scale = aff[1:2] * jax.lax.rsqrt(var + eps)                          # gamma*rsqrt(var+eps)
    shift = aff[2:3] - mean * scale                                      # beta - mean*scale
    return slab * scale + shift


# ----------------------------------------------------------------------------
# Single fused decoder kernel: 4 x (bilinear up -> 1x1 conv+ReLU -> BN -> concat ->
# 3x3 conv+ReLU -> BN -> 3x3 conv+ReLU -> BN)  followed by  (bilinear up -> 1x1 -> sigmoid)
# ----------------------------------------------------------------------------

def _decoder_kernel(*refs, N, stages, eps):
    o_ref = refs[-1]
    it = iter(refs[:-1])

    x = next(it)[...]                                   # bottleneck slab (N*h, w*Cp)

    for (fe, co, cb) in stages:
        br = next(it)[...]                              # (N*fe, fe*cb)
        mh = next(it)[...]                              # (N*fe, rows_in)  per-sample H-resize
        mww1 = next(it)[...]                            # (h*Cp, fe*co)    kron(Mw^T, W_1x1)
        aff_up = next(it)[...]                          # (3, fe*co)
        g_up = next(it)[...]                            # (fe*co, fe*co) / count
        w1a = next(it)[...]                             # (3, fe*co,  (fe-2)*co) banded
        w1b = next(it)[...]                             # (3, fe*cb,  (fe-2)*co) banded
        aff1 = next(it)[...]
        g1 = next(it)[...]
        m1 = next(it)[...]                              # (N*fe-2, 1) row validity
        w2 = next(it)[...]                              # (3, (fe-2)*co, (fe-4)*co) banded
        aff2 = next(it)[...]
        g2 = next(it)[...]
        m2 = next(it)[...]                              # (N*fe-4, 1)

        # --- up: H-resize, then fused (W-resize + 1x1 conv) + bias + ReLU + BN ------
        y = jnp.dot(mh, x, preferred_element_type=jnp.float32)            # (N*fe, h*Cp)
        up = jnp.dot(y, mww1, preferred_element_type=jnp.float32) + aff_up[0:1]
        up = jnp.maximum(up, 0.0)
        up = _bn(up, None, g_up, aff_up, eps)                             # (N*fe, fe*co)

        # --- conv1 (3x3 valid) on concat([up, bridge]) == conv_a(up) + conv_b(bridge)
        #     3 kh taps, kw folded into the banded weights; full row-band dots only.
        r1 = N * fe - 2
        a1 = (jnp.dot(up[0:r1], w1a[0], preferred_element_type=jnp.float32)
              + jnp.dot(br[0:r1], w1b[0], preferred_element_type=jnp.float32))
        for kh in (1, 2):
            a1 = a1 + jnp.dot(up[kh:kh + r1], w1a[kh], preferred_element_type=jnp.float32)
            a1 = a1 + jnp.dot(br[kh:kh + r1], w1b[kh], preferred_element_type=jnp.float32)
        a1 = jnp.maximum(a1 + aff1[0:1], 0.0)
        a1 = _bn(a1, m1, g1, aff1, eps)                                   # (N*fe-2, (fe-2)*co)

        # --- conv2 (3x3 valid) + ReLU + BN -----------------------------------------
        r2 = N * fe - 4
        a2 = jnp.dot(a1[0:r2], w2[0], preferred_element_type=jnp.float32)
        for kh in (1, 2):
            a2 = a2 + jnp.dot(a1[kh:kh + r2], w2[kh], preferred_element_type=jnp.float32)
        a2 = jnp.maximum(a2 + aff2[0:1], 0.0)
        x = _bn(a2, m2, g2, aff2, eps)                                    # (N*fe-4, (fe-4)*co)

    # --- head: bilinear up -> 1x1 conv -> sigmoid -----------------------------------
    mh_l = next(it)[...]
    mww_l = next(it)[...]
    b_l = next(it)[...]
    y = jnp.dot(mh_l, x, preferred_element_type=jnp.float32)
    o_ref[...] = jax.nn.sigmoid(jnp.dot(y, mww_l, preferred_element_type=jnp.float32) + b_l)


# ----------------------------------------------------------------------------
# pallas_call wrapper (single launch)
# ----------------------------------------------------------------------------

def _full_spec(shape):
    zeros = (0,) * len(shape)
    return pl.BlockSpec(shape, lambda i, _z=zeros: _z)


def decoder_forward(prepared, blocks, bottleneck):
    N = bottleneck.shape[0]
    x0 = bottleneck.reshape(N * bottleneck.shape[1], -1)      # (N*h, w*Cp) slab

    operands = [x0]
    stages_meta = []
    for idx, sp in enumerate(prepared["stages"]):
        br = blocks[-idx - 1]
        fe, cb = br.shape[1], br.shape[3]
        co = sp["aff_up"].shape[1] // fe
        operands += [br.reshape(N * fe, fe * cb),
                     sp["mh"], sp["mww1"], sp["aff_up"], sp["g_up"],
                     sp["w1a"], sp["w1b"], sp["aff1"], sp["g1"], sp["m1"],
                     sp["w2"], sp["aff2"], sp["g2"], sp["m2"]]
        stages_meta.append((fe, co, cb))

    lp = prepared["last"]
    operands += [lp["mh"], lp["mww"], lp["b"]]
    out_rows = lp["mh"].shape[0]                 # N * FINAL_SIZE
    out_lanes = lp["mww"].shape[1]               # FINAL_SIZE * LAST_CH

    out = pl.pallas_call(
        partial(_decoder_kernel, N=N, stages=tuple(stages_meta), eps=BN_EPS),
        out_shape=jax.ShapeDtypeStruct((out_rows, out_lanes), jnp.float32),
        grid=(1,),
        in_specs=[_full_spec(op.shape) for op in operands],
        out_specs=_full_spec((out_rows, out_lanes)),
        compiler_params=pltpu.CompilerParams(dimension_semantics=("arbitrary",)),
    )(*operands)

    final = out_lanes // LAST_CH
    return out.reshape(N, final, final, LAST_CH)


# ----------------------------------------------------------------------------
# One-time parameter preparation (all banded / tiled / resize constants hoisted here)
# ----------------------------------------------------------------------------

def _bilinear_matrix(out_size, in_size):
    """PyTorch bilinear interpolation (align_corners=False) as a dense (out, in) matrix."""
    m = np.zeros((out_size, in_size), np.float32)
    scale = in_size / out_size
    for o in range(out_size):
        src = max((o + 0.5) * scale - 0.5, 0.0)
        i0 = min(int(math.floor(src)), in_size - 1)
        i1 = min(i0 + 1, in_size - 1)
        frac = src - i0
        m[o, i0] += 1.0 - frac
        m[o, i1] += frac
    return m


def _mh_big(fe, h, n, stride_in, rows_in):
    """Per-sample H-resize block matrix: (n*fe, rows_in); zero columns wipe garbage rows."""
    mh = _bilinear_matrix(fe, h)
    big = np.zeros((n * fe, rows_in), np.float32)
    for s in range(n):
        big[s * fe:(s + 1) * fe, s * stride_in: s * stride_in + h] = mh
    return jnp.asarray(big), mh


def _banded_conv_w(w_hwio, w_in, ow):
    """(3,3,Cin,Cout) HWIO -> (3, w_in*Cin, ow*Cout) kw-folded banded weights."""
    bands = []
    for kh in range(3):
        b = None
        for kw in range(3):
            sel = np.eye(w_in, ow, k=-kw, dtype=np.float32)     # sel[ow+kw, ow] = 1
            term = jnp.kron(jnp.asarray(sel), w_hwio[kh, kw])
            b = term if b is None else b + term
        bands.append(b)
    return jnp.stack(bands, axis=0)


def _affine_pack(bias, gamma, beta, ow):
    """Pack [bias, gamma, beta] each tiled over ow -> (3, ow*C)."""
    return jnp.stack([jnp.tile(bias, ow), jnp.tile(gamma, ow), jnp.tile(beta, ow)], axis=0)


def _bn_pool_matrix(ow, c, count):
    """(ow*C, ow*C) = kron(ones(ow,ow), I_C)/count: per-channel mean over ow, tiled back."""
    return jnp.asarray(np.kron(np.ones((ow, ow), np.float32),
                               np.eye(c, dtype=np.float32)) / float(count))


def _row_mask(n, stride, valid, rows):
    """(rows, 1) 0/1 mask: rows s*stride + [0, valid) are valid for each sample s."""
    m = np.zeros((rows, 1), np.float32)
    for s in range(n):
        m[s * stride: s * stride + valid, 0] = 1.0
    return jnp.asarray(m)


def init_params(key):
    """Raw parameters with PyTorch-matching init (normal(0, sqrt(2/n)), BN gamma=1 beta=0)."""
    raw = {"up_path": []}
    prev = BOTTLENECK_C
    for i in reversed(range(DEPTH - 1)):        # i = 3, 2, 1, 0
        out = 2 ** (WF + i)
        key, k1, k2, k3 = jax.random.split(key, 4)
        blk = {
            "fe": SIZES[i],
            "up_w": jax.random.normal(k1, (prev, out), jnp.float32) * math.sqrt(2.0 / out),
            "up_b": jnp.zeros((out,), jnp.float32),
            "up_bn_g": jnp.ones((out,), jnp.float32),
            "up_bn_b": jnp.zeros((out,), jnp.float32),
            "c1_w": jax.random.normal(k2, (3, 3, prev, out), jnp.float32) * math.sqrt(2.0 / (9 * out)),
            "c1_b": jnp.zeros((out,), jnp.float32),
            "bn1_g": jnp.ones((out,), jnp.float32),
            "bn1_b": jnp.zeros((out,), jnp.float32),
            "c2_w": jax.random.normal(k3, (3, 3, out, out), jnp.float32) * math.sqrt(2.0 / (9 * out)),
            "c2_b": jnp.zeros((out,), jnp.float32),
            "bn2_g": jnp.ones((out,), jnp.float32),
            "bn2_b": jnp.zeros((out,), jnp.float32),
        }
        raw["up_path"].append(blk)
        prev = out
    key, kl = jax.random.split(key)
    raw["last_w"] = jax.random.normal(kl, (prev, LAST_CH), jnp.float32) * math.sqrt(2.0 / LAST_CH)
    raw["last_b"] = jnp.zeros((LAST_CH,), jnp.float32)
    return raw


def prepare_params(raw, n=BATCH):
    """Build all fused / tiled / banded constants exactly once (host-side, pre-jit)."""
    prepared = {"stages": []}
    h = BOTTLENECK_HW                 # input spatial size to the next up
    stride_in = BOTTLENECK_HW         # row stride per sample of the input slab
    rows_in = n * BOTTLENECK_HW       # total rows of the input slab
    prev = BOTTLENECK_C
    for blk in raw["up_path"]:
        fe = blk["fe"]
        co = blk["up_w"].shape[1]
        cb = prev - co                # bridge channels (concat restores prev)
        oh1 = ow1 = fe - 2
        oh2 = ow2 = fe - 4
        mh_big, mh_small = _mh_big(fe, h, n, stride_in, rows_in)
        sp = {
            "mh": mh_big,
            # fused W-resize + 1x1 conv: (h*Cp, fe*Co)
            "mww1": jnp.kron(jnp.asarray(mh_small.T), blk["up_w"]),
            "aff_up": _affine_pack(blk["up_b"], blk["up_bn_g"], blk["up_bn_b"], fe),
            "g_up": _bn_pool_matrix(fe, co, n * fe * fe),
            # conv1 split across the concat: first Co input channels come from `up`
            # (torch.cat([up, bridge], 1)), the remaining Cb from `bridge`.
            "w1a": _banded_conv_w(blk["c1_w"][:, :, :co, :], fe, ow1),
            "w1b": _banded_conv_w(blk["c1_w"][:, :, co:, :], fe, ow1),
            "aff1": _affine_pack(blk["c1_b"], blk["bn1_g"], blk["bn1_b"], ow1),
            "g1": _bn_pool_matrix(ow1, co, n * oh1 * ow1),
            "m1": _row_mask(n, fe, oh1, n * fe - 2),
            "w2": _banded_conv_w(blk["c2_w"], ow1, ow2),
            "aff2": _affine_pack(blk["c2_b"], blk["bn2_g"], blk["bn2_b"], ow2),
            "g2": _bn_pool_matrix(ow2, co, n * oh2 * ow2),
            "m2": _row_mask(n, fe, oh2, n * fe - 4),
        }
        prepared["stages"].append(sp)
        h = oh2
        stride_in = fe
        rows_in = n * fe - 4
        prev = co
    mh_big_l, mh_small_l = _mh_big(FINAL_SIZE, h, n, stride_in, rows_in)
    prepared["last"] = {
        "mh": mh_big_l,
        "mww": jnp.kron(jnp.asarray(mh_small_l.T), raw["last_w"]),
        "b": jnp.tile(raw["last_b"], FINAL_SIZE).reshape(1, FINAL_SIZE * LAST_CH),
    }
    return prepared


# ----------------------------------------------------------------------------
# Main
# ----------------------------------------------------------------------------

if __name__ == "__main__":
    key = jax.random.PRNGKey(0)
    key, kp, kx, kb0, kb1, kb2, kb3 = jax.random.split(key, 7)

    raw = init_params(kp)
    params = prepare_params(raw, n=BATCH)    # one-time: banded / tiled / resize constants

    # bottleneck: (N, 4, 4, 64)   NHWC
    bottleneck = jax.random.normal(kx, (BATCH, BOTTLENECK_HW, BOTTLENECK_HW, BOTTLENECK_C),
                                   jnp.float32)
    # encoder skip connections ("blocks"), shallowest first
    blocks = [
        jax.random.normal(kb0, (BATCH, SIZES[0], SIZES[0], 2 ** (WF + 0)), jnp.float32),  # (2,20,20,4)
        jax.random.normal(kb1, (BATCH, SIZES[1], SIZES[1], 2 ** (WF + 1)), jnp.float32),  # (2,12,12,8)
        jax.random.normal(kb2, (BATCH, SIZES[2], SIZES[2], 2 ** (WF + 2)), jnp.float32),  # (2,8,8,16)
        jax.random.normal(kb3, (BATCH, SIZES[3], SIZES[3], 2 ** (WF + 3)), jnp.float32),  # (2,6,6,32)
    ]

    fwd = jax.jit(decoder_forward)
    mask = jax.block_until_ready(fwd(params, blocks, bottleneck))

    assert mask.shape == (BATCH, FINAL_SIZE, FINAL_SIZE, LAST_CH), mask.shape
    assert bool(jnp.all(jnp.isfinite(mask)))
    assert bool(jnp.all((mask >= 0.0) & (mask <= 1.0)))   # sigmoid output range
    print("KERNEL_OK")
</pallas_src>

<mosaic_0001>
module attributes {stable_mosaic.version = 11 : i64} {
  func.func @_decoder_kernel(%arg0: i32, %arg1: memref<8x256xf32, #tpu.memory_space<vmem>>, %arg2: memref<12x192xf32, #tpu.memory_space<vmem>>, %arg3: memref<12x8xf32, #tpu.memory_space<vmem>>, %arg4: memref<256x192xf32, #tpu.memory_space<vmem>>, %arg5: memref<3x192xf32, #tpu.memory_space<vmem>>, %arg6: memref<192x192xf32, #tpu.memory_space<vmem>>, %arg7: memref<3x192x128xf32, #tpu.memory_space<vmem>>, %arg8: memref<3x192x128xf32, #tpu.memory_space<vmem>>, %arg9: memref<3x128xf32, #tpu.memory_space<vmem>>, %arg10: memref<128x128xf32, #tpu.memory_space<vmem>>, %arg11: memref<10x1xf32, #tpu.memory_space<vmem>>, %arg12: memref<3x128x64xf32, #tpu.memory_space<vmem>>, %arg13: memref<3x64xf32, #tpu.memory_space<vmem>>, %arg14: memref<64x64xf32, #tpu.memory_space<vmem>>, %arg15: memref<8x1xf32, #tpu.memory_space<vmem>>, %arg16: memref<16x128xf32, #tpu.memory_space<vmem>>, %arg17: memref<16x8xf32, #tpu.memory_space<vmem>>, %arg18: memref<64x128xf32, #tpu.memory_space<vmem>>, %arg19: memref<3x128xf32, #tpu.memory_space<vmem>>, %arg20: memref<128x128xf32, #tpu.memory_space<vmem>>, %arg21: memref<3x128x96xf32, #tpu.memory_space<vmem>>, %arg22: memref<3x128x96xf32, #tpu.memory_space<vmem>>, %arg23: memref<3x96xf32, #tpu.memory_space<vmem>>, %arg24: memref<96x96xf32, #tpu.memory_space<vmem>>, %arg25: memref<14x1xf32, #tpu.memory_space<vmem>>, %arg26: memref<3x96x64xf32, #tpu.memory_space<vmem>>, %arg27: memref<3x64xf32, #tpu.memory_space<vmem>>, %arg28: memref<64x64xf32, #tpu.memory_space<vmem>>, %arg29: memref<12x1xf32, #tpu.memory_space<vmem>>, %arg30: memref<24x96xf32, #tpu.memory_space<vmem>>, %arg31: memref<24x12xf32, #tpu.memory_space<vmem>>, %arg32: memref<64x96xf32, #tpu.memory_space<vmem>>, %arg33: memref<3x96xf32, #tpu.memory_space<vmem>>, %arg34: memref<96x96xf32, #tpu.memory_space<vmem>>, %arg35: memref<3x96x80xf32, #tpu.memory_space<vmem>>, %arg36: memref<3x96x80xf32, #tpu.memory_space<vmem>>, %arg37: memref<3x80xf32, #tpu.memory_space<vmem>>, %arg38: memref<80x80xf32, #tpu.memory_space<vmem>>, %arg39: memref<22x1xf32, #tpu.memory_space<vmem>>, %arg40: memref<3x80x64xf32, #tpu.memory_space<vmem>>, %arg41: memref<3x64xf32, #tpu.memory_space<vmem>>, %arg42: memref<64x64xf32, #tpu.memory_space<vmem>>, %arg43: memref<20x1xf32, #tpu.memory_space<vmem>>, %arg44: memref<40x80xf32, #tpu.memory_space<vmem>>, %arg45: memref<40x20xf32, #tpu.memory_space<vmem>>, %arg46: memref<64x80xf32, #tpu.memory_space<vmem>>, %arg47: memref<3x80xf32, #tpu.memory_space<vmem>>, %arg48: memref<80x80xf32, #tpu.memory_space<vmem>>, %arg49: memref<3x80x72xf32, #tpu.memory_space<vmem>>, %arg50: memref<3x80x72xf32, #tpu.memory_space<vmem>>, %arg51: memref<3x72xf32, #tpu.memory_space<vmem>>, %arg52: memref<72x72xf32, #tpu.memory_space<vmem>>, %arg53: memref<38x1xf32, #tpu.memory_space<vmem>>, %arg54: memref<3x72x64xf32, #tpu.memory_space<vmem>>, %arg55: memref<3x64xf32, #tpu.memory_space<vmem>>, %arg56: memref<64x64xf32, #tpu.memory_space<vmem>>, %arg57: memref<36x1xf32, #tpu.memory_space<vmem>>, %arg58: memref<48x36xf32, #tpu.memory_space<vmem>>, %arg59: memref<64x24xf32, #tpu.memory_space<vmem>>, %arg60: memref<1x24xf32, #tpu.memory_space<vmem>>, %arg61: memref<48x24xf32, #tpu.memory_space<vmem>>) attributes {dimension_semantics = [#tpu.dimension_semantics<arbitrary>], iteration_bounds = array<i64: 1>, scalar_prefetch = 0 : i64, scratch_operands = 0 : i64, tpu.core_type = #tpu.core_type<tc>, window_params = [{pipeline_mode = #tpu.pipeline_mode<synchronous>, transform_indices = @transform_0, window_bounds = array<i64: 8, 256>}, {pipeline_mode = #tpu.pipeline_mode<synchronous>, transform_indices = @transform_1, window_bounds = array<i64: 12, 192>}, {pipeline_mode = #tpu.pipeline_mode<synchronous>, transform_indices = @transform_2, window_bounds = array<i64: 12, 8>}, {pipeline_mode = #tpu.pipeline_mode<synchronous>, transform_indices = @transform_3, window_bounds = array<i64: 256, 192>}, {pipeline_mode = #tpu.pipeline_mode<synchronous>, transform_indices = @transform_4, window_bounds = array<i64: 3, 192>}, {pipeline_mode = #tpu.pipeline_mode<synchronous>, transform_indices = @transform_5, window_bounds = array<i64: 192, 192>}, {pipeline_mode = #tpu.pipeline_mode<synchronous>, transform_indices = @transform_6, window_bounds = array<i64: 3, 192, 128>}, {pipeline_mode = #tpu.pipeline_mode<synchronous>, transform_indices = @transform_7, window_bounds = array<i64: 3, 192, 128>}, {pipeline_mode = #tpu.pipeline_mode<synchronous>, transform_indices = @transform_8, window_bounds = array<i64: 3, 128>}, {pipeline_mode = #tpu.pipeline_mode<synchronous>, transform_indices = @transform_9, window_bounds = array<i64: 128, 128>}, {pipeline_mode = #tpu.pipeline_mode<synchronous>, transform_indices = @transform_10, window_bounds = array<i64: 10, 1>}, {pipeline_mode = #tpu.pipeline_mode<synchronous>, transform_indices = @transform_11, window_bounds = array<i64: 3, 128, 64>}, {pipeline_mode = #tpu.pipeline_mode<synchronous>, transform_indices = @transform_12, window_bounds = array<i64: 3, 64>}, {pipeline_mode = #tpu.pipeline_mode<synchronous>, transform_indices = @transform_13, window_bounds = array<i64: 64, 64>}, {pipeline_mode = #tpu.pipeline_mode<synchronous>, transform_indices = @transform_14, window_bounds = array<i64: 8, 1>}, {pipeline_mode = #tpu.pipeline_mode<synchronous>, transform_indices = @transform_15, window_bounds = array<i64: 16, 128>}, {pipeline_mode = #tpu.pipeline_mode<synchronous>, transform_indices = @transform_16, window_bounds = array<i64: 16, 8>}, {pipeline_mode = #tpu.pipeline_mode<synchronous>, transform_indices = @transform_17, window_bounds = array<i64: 64, 128>}, {pipeline_mode = #tpu.pipeline_mode<synchronous>, transform_indices = @transform_18, window_bounds = array<i64: 3, 128>}, {pipeline_mode = #tpu.pipeline_mode<synchronous>, transform_indices = @transform_19, window_bounds = array<i64: 128, 128>}, {pipeline_mode = #tpu.pipeline_mode<synchronous>, transform_indices = @transform_20, window_bounds = array<i64: 3, 128, 96>}, {pipeline_mode = #tpu.pipeline_mode<synchronous>, transform_indices = @transform_21, window_bounds = array<i64: 3, 128, 96>}, {pipeline_mode = #tpu.pipeline_mode<synchronous>, transform_indices = @transform_22, window_bounds = array<i64: 3, 96>}, {pipeline_mode = #tpu.pipeline_mode<synchronous>, transform_indices = @transform_23, window_bounds = array<i64: 96, 96>}, {pipeline_mode = #tpu.pipeline_mode<synchronous>, transform_indices = @transform_24, window_bounds = array<i64: 14, 1>}, {pipeline_mode = #tpu.pipeline_mode<synchronous>, transform_indices = @transform_25, window_bounds = array<i64: 3, 96, 64>}, {pipeline_mode = #tpu.pipeline_mode<synchronous>, transform_indices = @transform_26, window_bounds = array<i64: 3, 64>}, {pipeline_mode = #tpu.pipeline_mode<synchronous>, transform_indices = @transform_27, window_bounds = array<i64: 64, 64>}, {pipeline_mode = #tpu.pipeline_mode<synchronous>, transform_indices = @transform_28, window_bounds = array<i64: 12, 1>}, {pipeline_mode = #tpu.pipeline_mode<synchronous>, transform_indices = @transform_29, window_bounds = array<i64: 24, 96>}, {pipeline_mode = #tpu.pipeline_mode<synchronous>, transform_indices = @transform_30, window_bounds = array<i64: 24, 12>}, {pipeline_mode = #tpu.pipeline_mode<synchronous>, transform_indices = @transform_31, window_bounds = array<i64: 64, 96>}, {pipeline_mode = #tpu.pipeline_mode<synchronous>, transform_indices = @transform_32, window_bounds = array<i64: 3, 96>}, {pipeline_mode = #tpu.pipeline_mode<synchronous>, transform_indices = @transform_33, window_bounds = array<i64: 96, 96>}, {pipeline_mode = #tpu.pipeline_mode<synchronous>, transform_indices = @transform_34, window_bounds = array<i64: 3, 96, 80>}, {pipeline_mode = #tpu.pipeline_mode<synchronous>, transform_indices = @transform_35, window_bounds = array<i64: 3, 96, 80>}, {pipeline_mode = #tpu.pipeline_mode<synchronous>, transform_indices = @transform_36, window_bounds = array<i64: 3, 80>}, {pipeline_mode = #tpu.pipeline_mode<synchronous>, transform_indices = @transform_37, window_bounds = array<i64: 80, 80>}, {pipeline_mode = #tpu.pipeline_mode<synchronous>, transform_indices = @transform_38, window_bounds = array<i64: 22, 1>}, {pipeline_mode = #tpu.pipeline_mode<synchronous>, transform_indices = @transform_39, window_bounds = array<i64: 3, 80, 64>}, {pipeline_mode = #tpu.pipeline_mode<synchronous>, transform_indices = @transform_40, window_bounds = array<i64: 3, 64>}, {pipeline_mode = #tpu.pipeline_mode<synchronous>, transform_indices = @transform_41, window_bounds = array<i64: 64, 64>}, {pipeline_mode = #tpu.pipeline_mode<synchronous>, transform_indices = @transform_42, window_bounds = array<i64: 20, 1>}, {pipeline_mode = #tpu.pipeline_mode<synchronous>, transform_indices = @transform_43, window_bounds = array<i64: 40, 80>}, {pipeline_mode = #tpu.pipeline_mode<synchronous>, transform_indices = @transform_44, window_bounds = array<i64: 40, 20>}, {pipeline_mode = #tpu.pipeline_mode<synchronous>, transform_indices = @transform_45, window_bounds = array<i64: 64, 80>}, {pipeline_mode = #tpu.pipeline_mode<synchronous>, transform_indices = @transform_46, window_bounds = array<i64: 3, 80>}, {pipeline_mode = #tpu.pipeline_mode<synchronous>, transform_indices = @transform_47, window_bounds = array<i64: 80, 80>}, {pipeline_mode = #tpu.pipeline_mode<synchronous>, transform_indices = @transform_48, window_bounds = array<i64: 3, 80, 72>}, {pipeline_mode = #tpu.pipeline_mode<synchronous>, transform_indices = @transform_49, window_bounds = array<i64: 3, 80, 72>}, {pipeline_mode = #tpu.pipeline_mode<synchronous>, transform_indices = @transform_50, window_bounds = array<i64: 3, 72>}, {pipeline_mode = #tpu.pipeline_mode<synchronous>, transform_indices = @transform_51, window_bounds = array<i64: 72, 72>}, {pipeline_mode = #tpu.pipeline_mode<synchronous>, transform_indices = @transform_52, window_bounds = array<i64: 38, 1>}, {pipeline_mode = #tpu.pipeline_mode<synchronous>, transform_indices = @transform_53, window_bounds = array<i64: 3, 72, 64>}, {pipeline_mode = #tpu.pipeline_mode<synchronous>, transform_indices = @transform_54, window_bounds = array<i64: 3, 64>}, {pipeline_mode = #tpu.pipeline_mode<synchronous>, transform_indices = @transform_55, window_bounds = array<i64: 64, 64>}, {pipeline_mode = #tpu.pipeline_mode<synchronous>, transform_indices = @transform_56, window_bounds = array<i64: 36, 1>}, {pipeline_mode = #tpu.pipeline_mode<synchronous>, transform_indices = @transform_57, window_bounds = array<i64: 48, 36>}, {pipeline_mode = #tpu.pipeline_mode<synchronous>, transform_indices = @transform_58, window_bounds = array<i64: 64, 24>}, {pipeline_mode = #tpu.pipeline_mode<synchronous>, transform_indices = @transform_59, window_bounds = array<i64: 1, 24>}, {pipeline_mode = #tpu.pipeline_mode<synchronous>, transform_indices = @transform_60, window_bounds = array<i64: 48, 24>}]} {
    %c0 = arith.constant 0 : index
    %c0_0 = arith.constant 0 : index
    %0 = vector.load %arg1[%c0, %c0_0] : memref<8x256xf32, #tpu.memory_space<vmem>>, vector<8x256xf32>
    %c0_1 = arith.constant 0 : index
    %c0_2 = arith.constant 0 : index
    %1 = vector.load %arg2[%c0_1, %c0_2] : memref<12x192xf32, #tpu.memory_space<vmem>>, vector<12x192xf32>
    %c0_3 = arith.constant 0 : index
    %c0_4 = arith.constant 0 : index
    %2 = vector.load %arg3[%c0_3, %c0_4] : memref<12x8xf32, #tpu.memory_space<vmem>>, vector<12x8xf32>
    %c0_5 = arith.constant 0 : index
    %c0_6 = arith.constant 0 : index
    %3 = vector.load %arg4[%c0_5, %c0_6] : memref<256x192xf32, #tpu.memory_space<vmem>>, vector<256x192xf32>
    %c0_7 = arith.constant 0 : index
    %c0_8 = arith.constant 0 : index
    %4 = vector.load %arg5[%c0_7, %c0_8] : memref<3x192xf32, #tpu.memory_space<vmem>>, vector<3x192xf32>
    %c0_9 = arith.constant 0 : index
    %c0_10 = arith.constant 0 : index
    %5 = vector.load %arg6[%c0_9, %c0_10] : memref<192x192xf32, #tpu.memory_space<vmem>>, vector<192x192xf32>
    %c0_11 = arith.constant 0 : index
    %c0_12 = arith.constant 0 : index
    %c0_13 = arith.constant 0 : index
    %6 = vector.load %arg7[%c0_11, %c0_12, %c0_13] : memref<3x192x128xf32, #tpu.memory_space<vmem>>, vector<3x192x128xf32>
    %c0_14 = arith.constant 0 : index
    %c0_15 = arith.constant 0 : index
    %c0_16 = arith.constant 0 : index
    %7 = vector.load %arg8[%c0_14, %c0_15, %c0_16] : memref<3x192x128xf32, #tpu.memory_space<vmem>>, vector<3x192x128xf32>
    %c0_17 = arith.constant 0 : index
    %c0_18 = arith.constant 0 : index
    %8 = vector.load %arg9[%c0_17, %c0_18] : memref<3x128xf32, #tpu.memory_space<vmem>>, vector<3x128xf32>
    %c0_19 = arith.constant 0 : index
    %c0_20 = arith.constant 0 : index
    %9 = vector.load %arg10[%c0_19, %c0_20] : memref<128x128xf32, #tpu.memory_space<vmem>>, vector<128x128xf32>
    %c0_21 = arith.constant 0 : index
    %c0_22 = arith.constant 0 : index
    %10 = vector.load %arg11[%c0_21, %c0_22] : memref<10x1xf32, #tpu.memory_space<vmem>>, vector<10x1xf32>
    %c0_23 = arith.constant 0 : index
    %c0_24 = arith.constant 0 : index
    %c0_25 = arith.constant 0 : index
    %11 = vector.load %arg12[%c0_23, %c0_24, %c0_25] : memref<3x128x64xf32, #tpu.memory_space<vmem>>, vector<3x128x64xf32>
    %c0_26 = arith.constant 0 : index
    %c0_27 = arith.constant 0 : index
    %12 = vector.load %arg13[%c0_26, %c0_27] : memref<3x64xf32, #tpu.memory_space<vmem>>, vector<3x64xf32>
    %c0_28 = arith.constant 0 : index
    %c0_29 = arith.constant 0 : index
    %13 = vector.load %arg14[%c0_28, %c0_29] : memref<64x64xf32, #tpu.memory_space<vmem>>, vector<64x64xf32>
    %c0_30 = arith.constant 0 : index
    %c0_31 = arith.constant 0 : index
    %14 = vector.load %arg15[%c0_30, %c0_31] : memref<8x1xf32, #tpu.memory_space<vmem>>, vector<8x1xf32>
    %cst = arith.constant dense<0.000000e+00> : vector<12x256xf32>
    %15 = tpu.matmul %2, %0, %cst {dimension_numbers = #tpu.dot_dimension_numbers<[1], [0], [0], [1], [0, 0, 1, 1], [], []>} : vector<12x8xf32>, vector<8x256xf32>, vector<12x256xf32> -> vector<12x256xf32>
    %cst_32 = arith.constant dense<0.000000e+00> : vector<12x192xf32>
    %16 = tpu.matmul %15, %3, %cst_32 {dimension_numbers = #tpu.dot_dimension_numbers<[1], [0], [0], [1], [0, 0, 1, 1], [], []>} : vector<12x256xf32>, vector<256x192xf32>, vector<12x192xf32> -> vector<12x192xf32>
    %17 = vector.extract_strided_slice %4 {offsets = [0, 0], sizes = [1, 192], strides = [1, 1]} : vector<3x192xf32> to vector<1x192xf32>
    %18 = vector.broadcast %17 : vector<1x192xf32> to vector<12x192xf32>
    %19 = arith.addf %16, %18 : vector<12x192xf32>
    %cst_33 = arith.constant 0.000000e+00 : f32
    %20 = vector.broadcast %cst_33 : f32 to vector<12x192xf32>
    %21 = arith.maximumf %19, %20 : vector<12x192xf32>
    %cst_34 = arith.constant dense<0.000000e+00> : vector<192xf32>
    %22 = vector.multi_reduction <add>, %21, %cst_34 [0] : vector<12x192xf32> to vector<192xf32>
    %23 = vector.shape_cast %22 : vector<192xf32> to vector<1x192xf32>
    %24 = arith.mulf %21, %21 : vector<12x192xf32>
    %cst_35 = arith.constant dense<0.000000e+00> : vector<192xf32>
    %25 = vector.multi_reduction <add>, %24, %cst_35 [0] : vector<12x192xf32> to vector<192xf32>
    %26 = vector.shape_cast %25 : vector<192xf32> to vector<1x192xf32>
    %27 = tpu.iota {dimensions = array<i32: 0>} : vector<2x1xi32>
    %c0_i32 = arith.constant 0 : i32
    %28 = vector.broadcast %c0_i32 : i32 to vector<2x1xi32>
    %29 = arith.cmpi eq, %27, %28 : vector<2x1xi32>
    %30 = vector.shape_cast %29 : vector<2x1xi1> to vector<2x1xi1>
    %31 = vector.broadcast %30 : vector<2x1xi1> to vector<2x192xi1>
    %32 = vector.shape_cast %23 : vector<1x192xf32> to vector<1x192xf32>
    %33 = vector.broadcast %32 : vector<1x192xf32> to vector<2x192xf32>
    %34 = vector.shape_cast %26 : vector<1x192xf32> to vector<1x192xf32>
    %35 = vector.broadcast %34 : vector<1x192xf32> to vector<2x192xf32>
    %36 = arith.select %31, %33, %35 : vector<2x192xi1>, vector<2x192xf32>
    %cst_36 = arith.constant dense<0.000000e+00> : vector<2x192xf32>
    %37 = tpu.matmul %36, %5, %cst_36 {dimension_numbers = #tpu.dot_dimension_numbers<[1], [0], [0], [1], [0, 0, 1, 1], [], []>} : vector<2x192xf32>, vector<192x192xf32>, vector<2x192xf32> -> vector<2x192xf32>
    %38 = vector.extract_strided_slice %37 {offsets = [0, 0], sizes = [1, 192], strides = [1, 1]} : vector<2x192xf32> to vector<1x192xf32>
    %39 = vector.extract_strided_slice %37 {offsets = [1, 0], sizes = [1, 192], strides = [1, 1]} : vector<2x192xf32> to vector<1x192xf32>
    %40 = arith.mulf %38, %38 : vector<1x192xf32>
    %41 = arith.subf %39, %40 : vector<1x192xf32>
    %cst_37 = arith.constant 0.000000e+00 : f32
    %42 = vector.broadcast %cst_37 : f32 to vector<1x192xf32>
    %43 = arith.maximumf %41, %42 : vector<1x192xf32>
    %44 = vector.extract_strided_slice %4 {offsets = [1, 0], sizes = [1, 192], strides = [1, 1]} : vector<3x192xf32> to vector<1x192xf32>
    %cst_38 = arith.constant 9.99999974E-6 : f32
    %45 = vector.broadcast %cst_38 : f32 to vector<1x192xf32>
    %46 = arith.addf %43, %45 : vector<1x192xf32>
    %47 = math.rsqrt %46 : vector<1x192xf32>
    %48 = arith.mulf %44, %47 : vector<1x192xf32>
    %49 = vector.extract_strided_slice %4 {offsets = [2, 0], sizes = [1, 192], strides = [1, 1]} : vector<3x192xf32> to vector<1x192xf32>
    %50 = arith.mulf %38, %48 : vector<1x192xf32>
    %51 = arith.subf %49, %50 : vector<1x192xf32>
    %52 = vector.broadcast %48 : vector<1x192xf32> to vector<12x192xf32>
    %53 = arith.mulf %21, %52 : vector<12x192xf32>
    %54 = vector.broadcast %51 : vector<1x192xf32> to vector<12x192xf32>
    %55 = arith.addf %53, %54 : vector<12x192xf32>
    %56 = vector.extract_strided_slice %55 {offsets = [0, 0], sizes = [10, 192], strides = [1, 1]} : vector<12x192xf32> to vector<10x192xf32>
    %57 = vector.extract_strided_slice %6 {offsets = [0, 0, 0], sizes = [1, 192, 128], strides = [1, 1, 1]} : vector<3x192x128xf32> to vector<1x192x128xf32>
    %58 = vector.shape_cast %57 : vector<1x192x128xf32> to vector<192x128xf32>
    %cst_39 = arith.constant dense<0.000000e+00> : vector<10x128xf32>
    %59 = tpu.matmul %56, %58, %cst_39 {dimension_numbers = #tpu.dot_dimension_numbers<[1], [0], [0], [1], [0, 0, 1, 1], [], []>} : vector<10x192xf32>, vector<192x128xf32>, vector<10x128xf32> -> vector<10x128xf32>
    %60 = vector.extract_strided_slice %1 {offsets = [0, 0], sizes = [10, 192], strides = [1, 1]} : vector<12x192xf32> to vector<10x192xf32>
    %61 = vector.extract_strided_slice %7 {offsets = [0, 0, 0], sizes = [1, 192, 128], strides = [1, 1, 1]} : vector<3x192x128xf32> to vector<1x192x128xf32>
    %62 = vector.shape_cast %61 : vector<1x192x128xf32> to vector<192x128xf32>
    %cst_40 = arith.constant dense<0.000000e+00> : vector<10x128xf32>
    %63 = tpu.matmul %60, %62, %cst_40 {dimension_numbers = #tpu.dot_dimension_numbers<[1], [0], [0], [1], [0, 0, 1, 1], [], []>} : vector<10x192xf32>, vector<192x128xf32>, vector<10x128xf32> -> vector<10x128xf32>
    %64 = arith.addf %59, %63 : vector<10x128xf32>
    %65 = vector.extract_strided_slice %55 {offsets = [1, 0], sizes = [10, 192], strides = [1, 1]} : vector<12x192xf32> to vector<10x192xf32>
    %66 = vector.extract_strided_slice %6 {offsets = [1, 0, 0], sizes = [1, 192, 128], strides = [1, 1, 1]} : vector<3x192x128xf32> to vector<1x192x128xf32>
    %67 = vector.shape_cast %66 : vector<1x192x128xf32> to vector<192x128xf32>
    %cst_41 = arith.constant dense<0.000000e+00> : vector<10x128xf32>
    %68 = tpu.matmul %65, %67, %cst_41 {dimension_numbers = #tpu.dot_dimension_numbers<[1], [0], [0], [1], [0, 0, 1, 1], [], []>} : vector<10x192xf32>, vector<192x128xf32>, vector<10x128xf32> -> vector<10x128xf32>
    %69 = arith.addf %64, %68 : vector<10x128xf32>
    %70 = vector.extract_strided_slice %1 {offsets = [1, 0], sizes = [10, 192], strides = [1, 1]} : vector<12x192xf32> to vector<10x192xf32>
    %71 = vector.extract_strided_slice %7 {offsets = [1, 0, 0], sizes = [1, 192, 128], strides = [1, 1, 1]} : vector<3x192x128xf32> to vector<1x192x128xf32>
    %72 = vector.shape_cast %71 : vector<1x192x128xf32> to vector<192x128xf32>
    %cst_42 = arith.constant dense<0.000000e+00> : vector<10x128xf32>
    %73 = tpu.matmul %70, %72, %cst_42 {dimension_numbers = #tpu.dot_dimension_numbers<[1], [0], [0], [1], [0, 0, 1, 1], [], []>} : vector<10x192xf32>, vector<192x128xf32>, vector<10x128xf32> -> vector<10x128xf32>
    %74 = arith.addf %69, %73 : vector<10x128xf32>
    %75 = vector.extract_strided_slice %55 {offsets = [2, 0], sizes = [10, 192], strides = [1, 1]} : vector<12x192xf32> to vector<10x192xf32>
    %76 = vector.extract_strided_slice %6 {offsets = [2, 0, 0], sizes = [1, 192, 128], strides = [1, 1, 1]} : vector<3x192x128xf32> to vector<1x192x128xf32>
    %77 = vector.shape_cast %76 : vector<1x192x128xf32> to vector<192x128xf32>
    %cst_43 = arith.constant dense<0.000000e+00> : vector<10x128xf32>
    %78 = tpu.matmul %75, %77, %cst_43 {dimension_numbers = #tpu.dot_dimension_numbers<[1], [0], [0], [1], [0, 0, 1, 1], [], []>} : vector<10x192xf32>, vector<192x128xf32>, vector<10x128xf32> -> vector<10x128xf32>
    %79 = arith.addf %74, %78 : vector<10x128xf32>
    %80 = vector.extract_strided_slice %1 {offsets = [2, 0], sizes = [10, 192], strides = [1, 1]} : vector<12x192xf32> to vector<10x192xf32>
    %81 = vector.extract_strided_slice %7 {offsets = [2, 0, 0], sizes = [1, 192, 128], strides = [1, 1, 1]} : vector<3x192x128xf32> to vector<1x192x128xf32>
    %82 = vector.shape_cast %81 : vector<1x192x128xf32> to vector<192x128xf32>
    %cst_44 = arith.constant dense<0.000000e+00> : vector<10x128xf32>
    %83 = tpu.matmul %80, %82, %cst_44 {dimension_numbers = #tpu.dot_dimension_numbers<[1], [0], [0], [1], [0, 0, 1, 1], [], []>} : vector<10x192xf32>, vector<192x128xf32>, vector<10x128xf32> -> vector<10x128xf32>
    %84 = arith.addf %79, %83 : vector<10x128xf32>
    %85 = vector.extract_strided_slice %8 {offsets = [0, 0], sizes = [1, 128], strides = [1, 1]} : vector<3x128xf32> to vector<1x128xf32>
    %86 = vector.broadcast %85 : vector<1x128xf32> to vector<10x128xf32>
    %87 = arith.addf %84, %86 : vector<10x128xf32>
    %cst_45 = arith.constant 0.000000e+00 : f32
    %88 = vector.broadcast %cst_45 : f32 to vector<10x128xf32>
    %89 = arith.maximumf %87, %88 : vector<10x128xf32>
    %90 = vector.broadcast %10 : vector<10x1xf32> to vector<10x128xf32>
    %91 = arith.mulf %89, %90 : vector<10x128xf32>
    %cst_46 = arith.constant dense<0.000000e+00> : vector<128xf32>
    %92 = vector.multi_reduction <add>, %91, %cst_46 [0] : vector<10x128xf32> to vector<128xf32>
    %93 = vector.shape_cast %92 : vector<128xf32> to vector<1x128xf32>
    %94 = arith.mulf %89, %89 : vector<10x128xf32>
    %95 = vector.broadcast %10 : vector<10x1xf32> to vector<10x128xf32>
    %96 = arith.mulf %94, %95 : vector<10x128xf32>
    %cst_47 = arith.constant dense<0.000000e+00> : vector<128xf32>
    %97 = vector.multi_reduction <add>, %96, %cst_47 [0] : vector<10x128xf32> to vector<128xf32>
    %98 = vector.shape_cast %97 : vector<128xf32> to vector<1x128xf32>
    %99 = tpu.iota {dimensions = array<i32: 0>} : vector<2x1xi32>
    %c0_i32_48 = arith.constant 0 : i32
    %100 = vector.broadcast %c0_i32_48 : i32 to vector<2x1xi32>
    %101 = arith.cmpi eq, %99, %100 : vector<2x1xi32>
    %102 = vector.shape_cast %101 : vector<2x1xi1> to vector<2x1xi1>
    %103 = vector.broadcast %102 : vector<2x1xi1> to vector<2x128xi1>
    %104 = vector.shape_cast %93 : vector<1x128xf32> to vector<1x128xf32>
    %105 = vector.broadcast %104 : vector<1x128xf32> to vector<2x128xf32>
    %106 = vector.shape_cast %98 : vector<1x128xf32> to vector<1x128xf32>
    %107 = vector.broadcast %106 : vector<1x128xf32> to vector<2x128xf32>
    %108 = arith.select %103, %105, %107 : vector<2x128xi1>, vector<2x128xf32>
    %cst_49 = arith.constant dense<0.000000e+00> : vector<2x128xf32>
    %109 = tpu.matmul %108, %9, %cst_49 {dimension_numbers = #tpu.dot_dimension_numbers<[1], [0], [0], [1], [0, 0, 1, 1], [], []>} : vector<2x128xf32>, vector<128x128xf32>, vector<2x128xf32> -> vector<2x128xf32>
    %110 = vector.extract_strided_slice %109 {offsets = [0, 0], sizes = [1, 128], strides = [1, 1]} : vector<2x128xf32> to vector<1x128xf32>
    %111 = vector.extract_strided_slice %109 {offsets = [1, 0], sizes = [1, 128], strides = [1, 1]} : vector<2x128xf32> to vector<1x128xf32>
    %112 = arith.mulf %110, %110 : vector<1x128xf32>
    %113 = arith.subf %111, %112 : vector<1x128xf32>
    %cst_50 = arith.constant 0.000000e+00 : f32
    %114 = vector.broadcast %cst_50 : f32 to vector<1x128xf32>
    %115 = arith.maximumf %113, %114 : vector<1x128xf32>
    %116 = vector.extract_strided_slice %8 {offsets = [1, 0], sizes = [1, 128], strides = [1, 1]} : vector<3x128xf32> to vector<1x128xf32>
    %cst_51 = arith.constant 9.99999974E-6 : f32
    %117 = vector.broadcast %cst_51 : f32 to vector<1x128xf32>
    %118 = arith.addf %115, %117 : vector<1x128xf32>
    %119 = math.rsqrt %118 : vector<1x128xf32>
    %120 = arith.mulf %116, %119 : vector<1x128xf32>
    %121 = vector.extract_strided_slice %8 {offsets = [2, 0], sizes = [1, 128], strides = [1, 1]} : vector<3x128xf32> to vector<1x128xf32>
    %122 = arith.mulf %110, %120 : vector<1x128xf32>
    %123 = arith.subf %121, %122 : vector<1x128xf32>
    %124 = vector.broadcast %120 : vector<1x128xf32> to vector<10x128xf32>
    %125 = arith.mulf %89, %124 : vector<10x128xf32>
    %126 = vector.broadcast %123 : vector<1x128xf32> to vector<10x128xf32>
    %127 = arith.addf %125, %126 : vector<10x128xf32>
    %128 = vector.extract_strided_slice %127 {offsets = [0, 0], sizes = [8, 128], strides = [1, 1]} : vector<10x128xf32> to vector<8x128xf32>
    %129 = vector.extract_strided_slice %11 {offsets = [0, 0, 0], sizes = [1, 128, 64], strides = [1, 1, 1]} : vector<3x128x64xf32> to vector<1x128x64xf32>
    %130 = vector.shape_cast %129 : vector<1x128x64xf32> to vector<128x64xf32>
    %cst_52 = arith.constant dense<0.000000e+00> : vector<8x64xf32>
    %131 = tpu.matmul %128, %130, %cst_52 {dimension_numbers = #tpu.dot_dimension_numbers<[1], [0], [0], [1], [0, 0, 1, 1], [], []>} : vector<8x128xf32>, vector<128x64xf32>, vector<8x64xf32> -> vector<8x64xf32>
    %132 = vector.extract_strided_slice %127 {offsets = [1, 0], sizes = [8, 128], strides = [1, 1]} : vector<10x128xf32> to vector<8x128xf32>
    %133 = vector.extract_strided_slice %11 {offsets = [1, 0, 0], sizes = [1, 128, 64], strides = [1, 1, 1]} : vector<3x128x64xf32> to vector<1x128x64xf32>
    %134 = vector.shape_cast %133 : vector<1x128x64xf32> to vector<128x64xf32>
    %cst_53 = arith.constant dense<0.000000e+00> : vector<8x64xf32>
    %135 = tpu.matmul %132, %134, %cst_53 {dimension_numbers = #tpu.dot_dimension_numbers<[1], [0], [0], [1], [0, 0, 1, 1], [], []>} : vector<8x128xf32>, vector<128x64xf32>, vector<8x64xf32> -> vector<8x64xf32>
    %136 = arith.addf %131, %135 : vector<8x64xf32>
    %137 = vector.extract_strided_slice %127 {offsets = [2, 0], sizes = [8, 128], strides = [1, 1]} : vector<10x128xf32> to vector<8x128xf32>
    %138 = vector.extract_strided_slice %11 {offsets = [2, 0, 0], sizes = [1, 128, 64], strides = [1, 1, 1]} : vector<3x128x64xf32> to vector<1x128x64xf32>
    %139 = vector.shape_cast %138 : vector<1x128x64xf32> to vector<128x64xf32>
    %cst_54 = arith.constant dense<0.000000e+00> : vector<8x64xf32>
    %140 = tpu.matmul %137, %139, %cst_54 {dimension_numbers = #tpu.dot_dimension_numbers<[1], [0], [0], [1], [0, 0, 1, 1], [], []>} : vector<8x128xf32>, vector<128x64xf32>, vector<8x64xf32> -> vector<8x64xf32>
    %141 = arith.addf %136, %140 : vector<8x64xf32>
    %142 = vector.extract_strided_slice %12 {offsets = [0, 0], sizes = [1, 64], strides = [1, 1]} : vector<3x64xf32> to vector<1x64xf32>
    %143 = vector.broadcast %142 : vector<1x64xf32> to vector<8x64xf32>
    %144 = arith.addf %141, %143 : vector<8x64xf32>
    %cst_55 = arith.constant 0.000000e+00 : f32
    %145 = vector.broadcast %cst_55 : f32 to vector<8x64xf32>
    %146 = arith.maximumf %144, %145 : vector<8x64xf32>
    %147 = vector.broadcast %14 : vector<8x1xf32> to vector<8x64xf32>
    %148 = arith.mulf %146, %147 : vector<8x64xf32>
    %cst_56 = arith.constant dense<0.000000e+00> : vector<64xf32>
    %149 = vector.multi_reduction <add>, %148, %cst_56 [0] : vector<8x64xf32> to vector<64xf32>
    %150 = vector.shape_cast %149 : vector<64xf32> to vector<1x64xf32>
    %151 = arith.mulf %146, %146 : vector<8x64xf32>
    %152 = vector.broadcast %14 : vector<8x1xf32> to vector<8x64xf32>
    %153 = arith.mulf %151, %152 : vector<8x64xf32>
    %cst_57 = arith.constant dense<0.000000e+00> : vector<64xf32>
    %154 = vector.multi_reduction <add>, %153, %cst_57 [0] : vector<8x64xf32> to vector<64xf32>
    %155 = vector.shape_cast %154 : vector<64xf32> to vector<1x64xf32>
    %156 = tpu.iota {dimensions = array<i32: 0>} : vector<2x1xi32>
    %c0_i32_58 = arith.constant 0 : i32
    %157 = vector.broadcast %c0_i32_58 : i32 to vector<2x1xi32>
    %158 = arith.cmpi eq, %156, %157 : vector<2x1xi32>
    %159 = vector.shape_cast %158 : vector<2x1xi1> to vector<2x1xi1>
    %160 = vector.broadcast %159 : vector<2x1xi1> to vector<2x64xi1>
    %161 = vector.shape_cast %150 : vector<1x64xf32> to vector<1x64xf32>
    %162 = vector.broadcast %161 : vector<1x64xf32> to vector<2x64xf32>
    %163 = vector.shape_cast %155 : vector<1x64xf32> to vector<1x64xf32>
    %164 = vector.broadcast %163 : vector<1x64xf32> to vector<2x64xf32>
    %165 = arith.select %160, %162, %164 : vector<2x64xi1>, vector<2x64xf32>
    %cst_59 = arith.constant dense<0.000000e+00> : vector<2x64xf32>
    %166 = tpu.matmul %165, %13, %cst_59 {dimension_numbers = #tpu.dot_dimension_numbers<[1], [0], [0], [1], [0, 0, 1, 1], [], []>} : vector<2x64xf32>, vector<64x64xf32>, vector<2x64xf32> -> vector<2x64xf32>
    %167 = vector.extract_strided_slice %166 {offsets = [0, 0], sizes = [1, 64], strides = [1, 1]} : vector<2x64xf32> to vector<1x64xf32>
    %168 = vector.extract_strided_slice %166 {offsets = [1, 0], sizes = [1, 64], strides = [1, 1]} : vector<2x64xf32> to vector<1x64xf32>
    %169 = arith.mulf %167, %167 : vector<1x64xf32>
    %170 = arith.subf %168, %169 : vector<1x64xf32>
    %cst_60 = arith.constant 0.000000e+00 : f32
    %171 = vector.broadcast %cst_60 : f32 to vector<1x64xf32>
    %172 = arith.maximumf %170, %171 : vector<1x64xf32>
    %173 = vector.extract_strided_slice %12 {offsets = [1, 0], sizes = [1, 64], strides = [1, 1]} : vector<3x64xf32> to vector<1x64xf32>
    %cst_61 = arith.constant 9.99999974E-6 : f32
    %174 = vector.broadcast %cst_61 : f32 to vector<1x64xf32>
    %175 = arith.addf %172, %174 : vector<1x64xf32>
    %176 = math.rsqrt %175 : vector<1x64xf32>
    %177 = arith.mulf %173, %176 : vector<1x64xf32>
    %178 = vector.extract_strided_slice %12 {offsets = [2, 0], sizes = [1, 64], strides = [1, 1]} : vector<3x64xf32> to vector<1x64xf32>
    %179 = arith.mulf %167, %177 : vector<1x64xf32>
    %180 = arith.subf %178, %179 : vector<1x64xf32>
    %181 = vector.broadcast %177 : vector<1x64xf32> to vector<8x64xf32>
    %182 = arith.mulf %146, %181 : vector<8x64xf32>
    %183 = vector.broadcast %180 : vector<1x64xf32> to vector<8x64xf32>
    %184 = arith.addf %182, %183 : vector<8x64xf32>
    %c0_62 = arith.constant 0 : index
    %c0_63 = arith.constant 0 : index
    %185 = vector.load %arg16[%c0_62, %c0_63] : memref<16x128xf32, #tpu.memory_space<vmem>>, vector<16x128xf32>
    %c0_64 = arith.constant 0 : index
    %c0_65 = arith.constant 0 : index
    %186 = vector.load %arg17[%c0_64, %c0_65] : memref<16x8xf32, #tpu.memory_space<vmem>>, vector<16x8xf32>
    %c0_66 = arith.constant 0 : index
    %c0_67 = arith.constant 0 : index
    %187 = vector.load %arg18[%c0_66, %c0_67] : memref<64x128xf32, #tpu.memory_space<vmem>>, vector<64x128xf32>
    %c0_68 = arith.constant 0 : index
    %c0_69 = arith.constant 0 : index
    %188 = vector.load %arg19[%c0_68, %c0_69] : memref<3x128xf32, #tpu.memory_space<vmem>>, vector<3x128xf32>
    %c0_70 = arith.constant 0 : index
    %c0_71 = arith.constant 0 : index
    %189 = vector.load %arg20[%c0_70, %c0_71] : memref<128x128xf32, #tpu.memory_space<vmem>>, vector<128x128xf32>
    %c0_72 = arith.constant 0 : index
    %c0_73 = arith.constant 0 : index
    %c0_74 = arith.constant 0 : index
    %190 = vector.load %arg21[%c0_72, %c0_73, %c0_74] : memref<3x128x96xf32, #tpu.memory_space<vmem>>, vector<3x128x96xf32>
    %c0_75 = arith.constant 0 : index
    %c0_76 = arith.constant 0 : index
    %c0_77 = arith.constant 0 : index
    %191 = vector.load %arg22[%c0_75, %c0_76, %c0_77] : memref<3x128x96xf32, #tpu.memory_space<vmem>>, vector<3x128x96xf32>
    %c0_78 = arith.constant 0 : index
    %c0_79 = arith.constant 0 : index
    %192 = vector.load %arg23[%c0_78, %c0_79] : memref<3x96xf32, #tpu.memory_space<vmem>>, vector<3x96xf32>
    %c0_80 = arith.constant 0 : index
    %c0_81 = arith.constant 0 : index
    %193 = vector.load %arg24[%c0_80, %c0_81] : memref<96x96xf32, #tpu.memory_space<vmem>>, vector<96x96xf32>
    %c0_82 = arith.constant 0 : index
    %c0_83 = arith.constant 0 : index
    %194 = vector.load %arg25[%c0_82, %c0_83] : memref<14x1xf32, #tpu.memory_space<vmem>>, vector<14x1xf32>
    %c0_84 = arith.constant 0 : index
    %c0_85 = arith.constant 0 : index
    %c0_86 = arith.constant 0 : index
    %195 = vector.load %arg26[%c0_84, %c0_85, %c0_86] : memref<3x96x64xf32, #tpu.memory_space<vmem>>, vector<3x96x64xf32>
    %c0_87 = arith.constant 0 : index
    %c0_88 = arith.constant 0 : index
    %196 = vector.load %arg27[%c0_87, %c0_88] : memref<3x64xf32, #tpu.memory_space<vmem>>, vector<3x64xf32>
    %c0_89 = arith.constant 0 : index
    %c0_90 = arith.constant 0 : index
    %197 = vector.load %arg28[%c0_89, %c0_90] : memref<64x64xf32, #tpu.memory_space<vmem>>, vector<64x64xf32>
    %c0_91 = arith.constant 0 : index
    %c0_92 = arith.constant 0 : index
    %198 = vector.load %arg29[%c0_91, %c0_92] : memref<12x1xf32, #tpu.memory_space<vmem>>, vector<12x1xf32>
    %cst_93 = arith.constant dense<0.000000e+00> : vector<16x64xf32>
    %199 = tpu.matmul %186, %184, %cst_93 {dimension_numbers = #tpu.dot_dimension_numbers<[1], [0], [0], [1], [0, 0, 1, 1], [], []>} : vector<16x8xf32>, vector<8x64xf32>, vector<16x64xf32> -> vector<16x64xf32>
    %cst_94 = arith.constant dense<0.000000e+00> : vector<16x128xf32>
    %200 = tpu.matmul %199, %187, %cst_94 {dimension_numbers = #tpu.dot_dimension_numbers<[1], [0], [0], [1], [0, 0, 1, 1], [], []>} : vector<16x64xf32>, vector<64x128xf32>, vector<16x128xf32> -> vector<16x128xf32>
    %201 = vector.extract_strided_slice %188 {offsets = [0, 0], sizes = [1, 128], strides = [1, 1]} : vector<3x128xf32> to vector<1x128xf32>
    %202 = vector.broadcast %201 : vector<1x128xf32> to vector<16x128xf32>
    %203 = arith.addf %200, %202 : vector<16x128xf32>
    %cst_95 = arith.constant 0.000000e+00 : f32
    %204 = vector.broadcast %cst_95 : f32 to vector<16x128xf32>
    %205 = arith.maximumf %203, %204 : vector<16x128xf32>
    %cst_96 = arith.constant dense<0.000000e+00> : vector<128xf32>
    %206 = vector.multi_reduction <add>, %205, %cst_96 [0] : vector<16x128xf32> to vector<128xf32>
    %207 = vector.shape_cast %206 : vector<128xf32> to vector<1x128xf32>
    %208 = arith.mulf %205, %205 : vector<16x128xf32>
    %cst_97 = arith.constant dense<0.000000e+00> : vector<128xf32>
    %209 = vector.multi_reduction <add>, %208, %cst_97 [0] : vector<16x128xf32> to vector<128xf32>
    %210 = vector.shape_cast %209 : vector<128xf32> to vector<1x128xf32>
    %211 = tpu.iota {dimensions = array<i32: 0>} : vector<2x1xi32>
    %c0_i32_98 = arith.constant 0 : i32
    %212 = vector.broadcast %c0_i32_98 : i32 to vector<2x1xi32>
    %213 = arith.cmpi eq, %211, %212 : vector<2x1xi32>
    %214 = vector.shape_cast %213 : vector<2x1xi1> to vector<2x1xi1>
    %215 = vector.broadcast %214 : vector<2x1xi1> to vector<2x128xi1>
    %216 = vector.shape_cast %207 : vector<1x128xf32> to vector<1x128xf32>
    %217 = vector.broadcast %216 : vector<1x128xf32> to vector<2x128xf32>
    %218 = vector.shape_cast %210 : vector<1x128xf32> to vector<1x128xf32>
    %219 = vector.broadcast %218 : vector<1x128xf32> to vector<2x128xf32>
    %220 = arith.select %215, %217, %219 : vector<2x128xi1>, vector<2x128xf32>
    %cst_99 = arith.constant dense<0.000000e+00> : vector<2x128xf32>
    %221 = tpu.matmul %220, %189, %cst_99 {dimension_numbers = #tpu.dot_dimension_numbers<[1], [0], [0], [1], [0, 0, 1, 1], [], []>} : vector<2x128xf32>, vector<128x128xf32>, vector<2x128xf32> -> vector<2x128xf32>
    %222 = vector.extract_strided_slice %221 {offsets = [0, 0], sizes = [1, 128], strides = [1, 1]} : vector<2x128xf32> to vector<1x128xf32>
    %223 = vector.extract_strided_slice %221 {offsets = [1, 0], sizes = [1, 128], strides = [1, 1]} : vector<2x128xf32> to vector<1x128xf32>
    %224 = arith.mulf %222, %222 : vector<1x128xf32>
    %225 = arith.subf %223, %224 : vector<1x128xf32>
    %cst_100 = arith.constant 0.000000e+00 : f32
    %226 = vector.broadcast %cst_100 : f32 to vector<1x128xf32>
    %227 = arith.maximumf %225, %226 : vector<1x128xf32>
    %228 = vector.extract_strided_slice %188 {offsets = [1, 0], sizes = [1, 128], strides = [1, 1]} : vector<3x128xf32> to vector<1x128xf32>
    %cst_101 = arith.constant 9.99999974E-6 : f32
    %229 = vector.broadcast %cst_101 : f32 to vector<1x128xf32>
    %230 = arith.addf %227, %229 : vector<1x128xf32>
    %231 = math.rsqrt %230 : vector<1x128xf32>
    %232 = arith.mulf %228, %231 : vector<1x128xf32>
    %233 = vector.extract_strided_slice %188 {offsets = [2, 0], sizes = [1, 128], strides = [1, 1]} : vector<3x128xf32> to vector<1x128xf32>
    %234 = arith.mulf %222, %232 : vector<1x128xf32>
    %235 = arith.subf %233, %234 : vector<1x128xf32>
    %236 = vector.broadcast %232 : vector<1x128xf32> to vector<16x128xf32>
    %237 = arith.mulf %205, %236 : vector<16x128xf32>
    %238 = vector.broadcast %235 : vector<1x128xf32> to vector<16x128xf32>
    %239 = arith.addf %237, %238 : vector<16x128xf32>
    %240 = vector.extract_strided_slice %239 {offsets = [0, 0], sizes = [14, 128], strides = [1, 1]} : vector<16x128xf32> to vector<14x128xf32>
    %241 = vector.extract_strided_slice %190 {offsets = [0, 0, 0], sizes = [1, 128, 96], strides = [1, 1, 1]} : vector<3x128x96xf32> to vector<1x128x96xf32>
    %242 = vector.shape_cast %241 : vector<1x128x96xf32> to vector<128x96xf32>
    %cst_102 = arith.constant dense<0.000000e+00> : vector<14x96xf32>
    %243 = tpu.matmul %240, %242, %cst_102 {dimension_numbers = #tpu.dot_dimension_numbers<[1], [0], [0], [1], [0, 0, 1, 1], [], []>} : vector<14x128xf32>, vector<128x96xf32>, vector<14x96xf32> -> vector<14x96xf32>
    %244 = vector.extract_strided_slice %185 {offsets = [0, 0], sizes = [14, 128], strides = [1, 1]} : vector<16x128xf32> to vector<14x128xf32>
    %245 = vector.extract_strided_slice %191 {offsets = [0, 0, 0], sizes = [1, 128, 96], strides = [1, 1, 1]} : vector<3x128x96xf32> to vector<1x128x96xf32>
    %246 = vector.shape_cast %245 : vector<1x128x96xf32> to vector<128x96xf32>
    %cst_103 = arith.constant dense<0.000000e+00> : vector<14x96xf32>
    %247 = tpu.matmul %244, %246, %cst_103 {dimension_numbers = #tpu.dot_dimension_numbers<[1], [0], [0], [1], [0, 0, 1, 1], [], []>} : vector<14x128xf32>, vector<128x96xf32>, vector<14x96xf32> -> vector<14x96xf32>
    %248 = arith.addf %243, %247 : vector<14x96xf32>
    %249 = vector.extract_strided_slice %239 {offsets = [1, 0], sizes = [14, 128], strides = [1, 1]} : vector<16x128xf32> to vector<14x128xf32>
    %250 = vector.extract_strided_slice %190 {offsets = [1, 0, 0], sizes = [1, 128, 96], strides = [1, 1, 1]} : vector<3x128x96xf32> to vector<1x128x96xf32>
    %251 = vector.shape_cast %250 : vector<1x128x96xf32> to vector<128x96xf32>
    %cst_104 = arith.constant dense<0.000000e+00> : vector<14x96xf32>
    %252 = tpu.matmul %249, %251, %cst_104 {dimension_numbers = #tpu.dot_dimension_numbers<[1], [0], [0], [1], [0, 0, 1, 1], [], []>} : vector<14x128xf32>, vector<128x96xf32>, vector<14x96xf32> -> vector<14x96xf32>
    %253 = arith.addf %248, %252 : vector<14x96xf32>
    %254 = vector.extract_strided_slice %185 {offsets = [1, 0], sizes = [14, 128], strides = [1, 1]} : vector<16x128xf32> to vector<14x128xf32>
    %255 = vector.extract_strided_slice %191 {offsets = [1, 0, 0], sizes = [1, 128, 96], strides = [1, 1, 1]} : vector<3x128x96xf32> to vector<1x128x96xf32>
    %256 = vector.shape_cast %255 : vector<1x128x96xf32> to vector<128x96xf32>
    %cst_105 = arith.constant dense<0.000000e+00> : vector<14x96xf32>
    %257 = tpu.matmul %254, %256, %cst_105 {dimension_numbers = #tpu.dot_dimension_numbers<[1], [0], [0], [1], [0, 0, 1, 1], [], []>} : vector<14x128xf32>, vector<128x96xf32>, vector<14x96xf32> -> vector<14x96xf32>
    %258 = arith.addf %253, %257 : vector<14x96xf32>
    %259 = vector.extract_strided_slice %239 {offsets = [2, 0], sizes = [14, 128], strides = [1, 1]} : vector<16x128xf32> to vector<14x128xf32>
    %260 = vector.extract_strided_slice %190 {offsets = [2, 0, 0], sizes = [1, 128, 96], strides = [1, 1, 1]} : vector<3x128x96xf32> to vector<1x128x96xf32>
    %261 = vector.shape_cast %260 : vector<1x128x96xf32> to vector<128x96xf32>
    %cst_106 = arith.constant dense<0.000000e+00> : vector<14x96xf32>
    %262 = tpu.matmul %259, %261, %cst_106 {dimension_numbers = #tpu.dot_dimension_numbers<[1], [0], [0], [1], [0, 0, 1, 1], [], []>} : vector<14x128xf32>, vector<128x96xf32>, vector<14x96xf32> -> vector<14x96xf32>
    %263 = arith.addf %258, %262 : vector<14x96xf32>
    %264 = vector.extract_strided_slice %185 {offsets = [2, 0], sizes = [14, 128], strides = [1, 1]} : vector<16x128xf32> to vector<14x128xf32>
    %265 = vector.extract_strided_slice %191 {offsets = [2, 0, 0], sizes = [1, 128, 96], strides = [1, 1, 1]} : vector<3x128x96xf32> to vector<1x128x96xf32>
    %266 = vector.shape_cast %265 : vector<1x128x96xf32> to vector<128x96xf32>
    %cst_107 = arith.constant dense<0.000000e+00> : vector<14x96xf32>
    %267 = tpu.matmul %264, %266, %cst_107 {dimension_numbers = #tpu.dot_dimension_numbers<[1], [0], [0], [1], [0, 0, 1, 1], [], []>} : vector<14x128xf32>, vector<128x96xf32>, vector<14x96xf32> -> vector<14x96xf32>
    %268 = arith.addf %263, %267 : vector<14x96xf32>
    %269 = vector.extract_strided_slice %192 {offsets = [0, 0], sizes = [1, 96], strides = [1, 1]} : vector<3x96xf32> to vector<1x96xf32>
    %270 = vector.broadcast %269 : vector<1x96xf32> to vector<14x96xf32>
    %271 = arith.addf %268, %270 : vector<14x96xf32>
    %cst_108 = arith.constant 0.000000e+00 : f32
    %272 = vector.broadcast %cst_108 : f32 to vector<14x96xf32>
    %273 = arith.maximumf %271, %272 : vector<14x96xf32>
    %274 = vector.broadcast %194 : vector<14x1xf32> to vector<14x96xf32>
    %275 = arith.mulf %273, %274 : vector<14x96xf32>
    %cst_109 = arith.constant dense<0.000000e+00> : vector<96xf32>
    %276 = vector.multi_reduction <add>, %275, %cst_109 [0] : vector<14x96xf32> to vector<96xf32>
    %277 = vector.shape_cast %276 : vector<96xf32> to vector<1x96xf32>
    %278 = arith.mulf %273, %273 : vector<14x96xf32>
    %279 = vector.broadcast %194 : vector<14x1xf32> to vector<14x96xf32>
    %280 = arith.mulf %278, %279 : vector<14x96xf32>
    %cst_110 = arith.constant dense<0.000000e+00> : vector<96xf32>
    %281 = vector.multi_reduction <add>, %280, %cst_110 [0] : vector<14x96xf32> to vector<96xf32>
    %282 = vector.shape_cast %281 : vector<96xf32> to vector<1x96xf32>
    %283 = tpu.iota {dimensions = array<i32: 0>} : vector<2x1xi32>
    %c0_i32_111 = arith.constant 0 : i32
    %284 = vector.broadcast %c0_i32_111 : i32 to vector<2x1xi32>
    %285 = arith.cmpi eq, %283, %284 : vector<2x1xi32>
    %286 = vector.shape_cast %285 : vector<2x1xi1> to vector<2x1xi1>
    %287 = vector.broadcast %286 : vector<2x1xi1> to vector<2x96xi1>
    %288 = vector.shape_cast %277 : vector<1x96xf32> to vector<1x96xf32>
    %289 = vector.broadcast %288 : vector<1x96xf32> to vector<2x96xf32>
    %290 = vector.shape_cast %282 : vector<1x96xf32> to vector<1x96xf32>
    %291 = vector.broadcast %290 : vector<1x96xf32> to vector<2x96xf32>
    %292 = arith.select %287, %289, %291 : vector<2x96xi1>, vector<2x96xf32>
    %cst_112 = arith.constant dense<0.000000e+00> : vector<2x96xf32>
    %293 = tpu.matmul %292, %193, %cst_112 {dimension_numbers = #tpu.dot_dimension_numbers<[1], [0], [0], [1], [0, 0, 1, 1], [], []>} : vector<2x96xf32>, vector<96x96xf32>, vector<2x96xf32> -> vector<2x96xf32>
    %294 = vector.extract_strided_slice %293 {offsets = [0, 0], sizes = [1, 96], strides = [1, 1]} : vector<2x96xf32> to vector<1x96xf32>
    %295 = vector.extract_strided_slice %293 {offsets = [1, 0], sizes = [1, 96], strides = [1, 1]} : vector<2x96xf32> to vector<1x96xf32>
    %296 = arith.mulf %294, %294 : vector<1x96xf32>
    %297 = arith.subf %295, %296 : vector<1x96xf32>
    %cst_113 = arith.constant 0.000000e+00 : f32
    %298 = vector.broadcast %cst_113 : f32 to vector<1x96xf32>
    %299 = arith.maximumf %297, %298 : vector<1x96xf32>
    %300 = vector.extract_strided_slice %192 {offsets = [1, 0], sizes = [1, 96], strides = [1, 1]} : vector<3x96xf32> to vector<1x96xf32>
    %cst_114 = arith.constant 9.99999974E-6 : f32
    %301 = vector.broadcast %cst_114 : f32 to vector<1x96xf32>
    %302 = arith.addf %299, %301 : vector<1x96xf32>
    %303 = math.rsqrt %302 : vector<1x96xf32>
    %304 = arith.mulf %300, %303 : vector<1x96xf32>
    %305 = vector.extract_strided_slice %192 {offsets = [2, 0], sizes = [1, 96], strides = [1, 1]} : vector<3x96xf32> to vector<1x96xf32>
    %306 = arith.mulf %294, %304 : vector<1x96xf32>
    %307 = arith.subf %305, %306 : vector<1x96xf32>
    %308 = vector.broadcast %304 : vector<1x96xf32> to vector<14x96xf32>
    %309 = arith.mulf %273, %308 : vector<14x96xf32>
    %310 = vector.broadcast %307 : vector<1x96xf32> to vector<14x96xf32>
    %311 = arith.addf %309, %310 : vector<14x96xf32>
    %312 = vector.extract_strided_slice %311 {offsets = [0, 0], sizes = [12, 96], strides = [1, 1]} : vector<14x96xf32> to vector<12x96xf32>
    %313 = vector.extract_strided_slice %195 {offsets = [0, 0, 0], sizes = [1, 96, 64], strides = [1, 1, 1]} : vector<3x96x64xf32> to vector<1x96x64xf32>
    %314 = vector.shape_cast %313 : vector<1x96x64xf32> to vector<96x64xf32>
    %cst_115 = arith.constant dense<0.000000e+00> : vector<12x64xf32>
    %315 = tpu.matmul %312, %314, %cst_115 {dimension_numbers = #tpu.dot_dimension_numbers<[1], [0], [0], [1], [0, 0, 1, 1], [], []>} : vector<12x96xf32>, vector<96x64xf32>, vector<12x64xf32> -> vector<12x64xf32>
    %316 = vector.extract_strided_slice %311 {offsets = [1, 0], sizes = [12, 96], strides = [1, 1]} : vector<14x96xf32> to vector<12x96xf32>
    %317 = vector.extract_strided_slice %195 {offsets = [1, 0, 0], sizes = [1, 96, 64], strides = [1, 1, 1]} : vector<3x96x64xf32> to vector<1x96x64xf32>
    %318 = vector.shape_cast %317 : vector<1x96x64xf32> to vector<96x64xf32>
    %cst_116 = arith.constant dense<0.000000e+00> : vector<12x64xf32>
    %319 = tpu.matmul %316, %318, %cst_116 {dimension_numbers = #tpu.dot_dimension_numbers<[1], [0], [0], [1], [0, 0, 1, 1], [], []>} : vector<12x96xf32>, vector<96x64xf32>, vector<12x64xf32> -> vector<12x64xf32>
    %320 = arith.addf %315, %319 : vector<12x64xf32>
    %321 = vector.extract_strided_slice %311 {offsets = [2, 0], sizes = [12, 96], strides = [1, 1]} : vector<14x96xf32> to vector<12x96xf32>
    %322 = vector.extract_strided_slice %195 {offsets = [2, 0, 0], sizes = [1, 96, 64], strides = [1, 1, 1]} : vector<3x96x64xf32> to vector<1x96x64xf32>
    %323 = vector.shape_cast %322 : vector<1x96x64xf32> to vector<96x64xf32>
    %cst_117 = arith.constant dense<0.000000e+00> : vector<12x64xf32>
    %324 = tpu.matmul %321, %323, %cst_117 {dimension_numbers = #tpu.dot_dimension_numbers<[1], [0], [0], [1], [0, 0, 1, 1], [], []>} : vector<12x96xf32>, vector<96x64xf32>, vector<12x64xf32> -> vector<12x64xf32>
    %325 = arith.addf %320, %324 : vector<12x64xf32>
    %326 = vector.extract_strided_slice %196 {offsets = [0, 0], sizes = [1, 64], strides = [1, 1]} : vector<3x64xf32> to vector<1x64xf32>
    %327 = vector.broadcast %326 : vector<1x64xf32> to vector<12x64xf32>
    %328 = arith.addf %325, %327 : vector<12x64xf32>
    %cst_118 = arith.constant 0.000000e+00 : f32
    %329 = vector.broadcast %cst_118 : f32 to vector<12x64xf32>
    %330 = arith.maximumf %328, %329 : vector<12x64xf32>
    %331 = vector.broadcast %198 : vector<12x1xf32> to vector<12x64xf32>
    %332 = arith.mulf %330, %331 : vector<12x64xf32>
    %cst_119 = arith.constant dense<0.000000e+00> : vector<64xf32>
    %333 = vector.multi_reduction <add>, %332, %cst_119 [0] : vector<12x64xf32> to vector<64xf32>
    %334 = vector.shape_cast %333 : vector<64xf32> to vector<1x64xf32>
    %335 = arith.mulf %330, %330 : vector<12x64xf32>
    %336 = vector.broadcast %198 : vector<12x1xf32> to vector<12x64xf32>
    %337 = arith.mulf %335, %336 : vector<12x64xf32>
    %cst_120 = arith.constant dense<0.000000e+00> : vector<64xf32>
    %338 = vector.multi_reduction <add>, %337, %cst_120 [0] : vector<12x64xf32> to vector<64xf32>
    %339 = vector.shape_cast %338 : vector<64xf32> to vector<1x64xf32>
    %340 = tpu.iota {dimensions = array<i32: 0>} : vector<2x1xi32>
    %c0_i32_121 = arith.constant 0 : i32
    %341 = vector.broadcast %c0_i32_121 : i32 to vector<2x1xi32>
    %342 = arith.cmpi eq, %340, %341 : vector<2x1xi32>
    %343 = vector.shape_cast %342 : vector<2x1xi1> to vector<2x1xi1>
    %344 = vector.broadcast %343 : vector<2x1xi1> to vector<2x64xi1>
    %345 = vector.shape_cast %334 : vector<1x64xf32> to vector<1x64xf32>
    %346 = vector.broadcast %345 : vector<1x64xf32> to vector<2x64xf32>
    %347 = vector.shape_cast %339 : vector<1x64xf32> to vector<1x64xf32>
    %348 = vector.broadcast %347 : vector<1x64xf32> to vector<2x64xf32>
    %349 = arith.select %344, %346, %348 : vector<2x64xi1>, vector<2x64xf32>
    %cst_122 = arith.constant dense<0.000000e+00> : vector<2x64xf32>
    %350 = tpu.matmul %349, %197, %cst_122 {dimension_numbers = #tpu.dot_dimension_numbers<[1], [0], [0], [1], [0, 0, 1, 1], [], []>} : vector<2x64xf32>, vector<64x64xf32>, vector<2x64xf32> -> vector<2x64xf32>
    %351 = vector.extract_strided_slice %350 {offsets = [0, 0], sizes = [1, 64], strides = [1, 1]} : vector<2x64xf32> to vector<1x64xf32>
    %352 = vector.extract_strided_slice %350 {offsets = [1, 0], sizes = [1, 64], strides = [1, 1]} : vector<2x64xf32> to vector<1x64xf32>
    %353 = arith.mulf %351, %351 : vector<1x64xf32>
    %354 = arith.subf %352, %353 : vector<1x64xf32>
    %cst_123 = arith.constant 0.000000e+00 : f32
    %355 = vector.broadcast %cst_123 : f32 to vector<1x64xf32>
    %356 = arith.maximumf %354, %355 : vector<1x64xf32>
    %357 = vector.extract_strided_slice %196 {offsets = [1, 0], sizes = [1, 64], strides = [1, 1]} : vector<3x64xf32> to vector<1x64xf32>
    %cst_124 = arith.constant 9.99999974E-6 : f32
    %358 = vector.broadcast %cst_124 : f32 to vector<1x64xf32>
    %359 = arith.addf %356, %358 : vector<1x64xf32>
    %360 = math.rsqrt %359 : vector<1x64xf32>
    %361 = arith.mulf %357, %360 : vector<1x64xf32>
    %362 = vector.extract_strided_slice %196 {offsets = [2, 0], sizes = [1, 64], strides = [1, 1]} : vector<3x64xf32> to vector<1x64xf32>
    %363 = arith.mulf %351, %361 : vector<1x64xf32>
    %364 = arith.subf %362, %363 : vector<1x64xf32>
    %365 = vector.broadcast %361 : vector<1x64xf32> to vector<12x64xf32>
    %366 = arith.mulf %330, %365 : vector<12x64xf32>
    %367 = vector.broadcast %364 : vector<1x64xf32> to vector<12x64xf32>
    %368 = arith.addf %366, %367 : vector<12x64xf32>
    %c0_125 = arith.constant 0 : index
    %c0_126 = arith.constant 0 : index
    %369 = vector.load %arg30[%c0_125, %c0_126] : memref<24x96xf32, #tpu.memory_space<vmem>>, vector<24x96xf32>
    %c0_127 = arith.constant 0 : index
    %c0_128 = arith.constant 0 : index
    %370 = vector.load %arg31[%c0_127, %c0_128] : memref<24x12xf32, #tpu.memory_space<vmem>>, vector<24x12xf32>
    %c0_129 = arith.constant 0 : index
    %c0_130 = arith.constant 0 : index
    %371 = vector.load %arg32[%c0_129, %c0_130] : memref<64x96xf32, #tpu.memory_space<vmem>>, vector<64x96xf32>
    %c0_131 = arith.constant 0 : index
    %c0_132 = arith.constant 0 : index
    %372 = vector.load %arg33[%c0_131, %c0_132] : memref<3x96xf32, #tpu.memory_space<vmem>>, vector<3x96xf32>
    %c0_133 = arith.constant 0 : index
    %c0_134 = arith.constant 0 : index
    %373 = vector.load %arg34[%c0_133, %c0_134] : memref<96x96xf32, #tpu.memory_space<vmem>>, vector<96x96xf32>
    %c0_135 = arith.constant 0 : index
    %c0_136 = arith.constant 0 : index
    %c0_137 = arith.constant 0 : index
    %374 = vector.load %arg35[%c0_135, %c0_136, %c0_137] : memref<3x96x80xf32, #tpu.memory_space<vmem>>, vector<3x96x80xf32>
    %c0_138 = arith.constant 0 : index
    %c0_139 = arith.constant 0 : index
    %c0_140 = arith.constant 0 : index
    %375 = vector.load %arg36[%c0_138, %c0_139, %c0_140] : memref<3x96x80xf32, #tpu.memory_space<vmem>>, vector<3x96x80xf32>
    %c0_141 = arith.constant 0 : index
    %c0_142 = arith.constant 0 : index
    %376 = vector.load %arg37[%c0_141, %c0_142] : memref<3x80xf32, #tpu.memory_space<vmem>>, vector<3x80xf32>
    %c0_143 = arith.constant 0 : index
    %c0_144 = arith.constant 0 : index
    %377 = vector.load %arg38[%c0_143, %c0_144] : memref<80x80xf32, #tpu.memory_space<vmem>>, vector<80x80xf32>
    %c0_145 = arith.constant 0 : index
    %c0_146 = arith.constant 0 : index
    %378 = vector.load %arg39[%c0_145, %c0_146] : memref<22x1xf32, #tpu.memory_space<vmem>>, vector<22x1xf32>
    %c0_147 = arith.constant 0 : index
    %c0_148 = arith.constant 0 : index
    %c0_149 = arith.constant 0 : index
    %379 = vector.load %arg40[%c0_147, %c0_148, %c0_149] : memref<3x80x64xf32, #tpu.memory_space<vmem>>, vector<3x80x64xf32>
    %c0_150 = arith.constant 0 : index
    %c0_151 = arith.constant 0 : index
    %380 = vector.load %arg41[%c0_150, %c0_151] : memref<3x64xf32, #tpu.memory_space<vmem>>, vector<3x64xf32>
    %c0_152 = arith.constant 0 : index
    %c0_153 = arith.constant 0 : index
    %381 = vector.load %arg42[%c0_152, %c0_153] : memref<64x64xf32, #tpu.memory_space<vmem>>, vector<64x64xf32>
    %c0_154 = arith.constant 0 : index
    %c0_155 = arith.constant 0 : index
    %382 = vector.load %arg43[%c0_154, %c0_155] : memref<20x1xf32, #tpu.memory_space<vmem>>, vector<20x1xf32>
    %cst_156 = arith.constant dense<0.000000e+00> : vector<24x64xf32>
    %383 = tpu.matmul %370, %368, %cst_156 {dimension_numbers = #tpu.dot_dimension_numbers<[1], [0], [0], [1], [0, 0, 1, 1], [], []>} : vector<24x12xf32>, vector<12x64xf32>, vector<24x64xf32> -> vector<24x64xf32>
    %cst_157 = arith.constant dense<0.000000e+00> : vector<24x96xf32>
    %384 = tpu.matmul %383, %371, %cst_157 {dimension_numbers = #tpu.dot_dimension_numbers<[1], [0], [0], [1], [0, 0, 1, 1], [], []>} : vector<24x64xf32>, vector<64x96xf32>, vector<24x96xf32> -> vector<24x96xf32>
    %385 = vector.extract_strided_slice %372 {offsets = [0, 0], sizes = [1, 96], strides = [1, 1]} : vector<3x96xf32> to vector<1x96xf32>
    %386 = vector.broadcast %385 : vector<1x96xf32> to vector<24x96xf32>
    %387 = arith.addf %384, %386 : vector<24x96xf32>
    %cst_158 = arith.constant 0.000000e+00 : f32
    %388 = vector.broadcast %cst_158 : f32 to vector<24x96xf32>
    %389 = arith.maximumf %387, %388 : vector<24x96xf32>
    %cst_159 = arith.constant dense<0.000000e+00> : vector<96xf32>
    %390 = vector.multi_reduction <add>, %389, %cst_159 [0] : vector<24x96xf32> to vector<96xf32>
    %391 = vector.shape_cast %390 : vector<96xf32> to vector<1x96xf32>
    %392 = arith.mulf %389, %389 : vector<24x96xf32>
    %cst_160 = arith.constant dense<0.000000e+00> : vector<96xf32>
    %393 = vector.multi_reduction <add>, %392, %cst_160 [0] : vector<24x96xf32> to vector<96xf32>
    %394 = vector.shape_cast %393 : vector<96xf32> to vector<1x96xf32>
    %395 = tpu.iota {dimensions = array<i32: 0>} : vector<2x1xi32>
    %c0_i32_161 = arith.constant 0 : i32
    %396 = vector.broadcast %c0_i32_161 : i32 to vector<2x1xi32>
    %397 = arith.cmpi eq, %395, %396 : vector<2x1xi32>
    %398 = vector.shape_cast %397 : vector<2x1xi1> to vector<2x1xi1>
    %399 = vector.broadcast %398 : vector<2x1xi1> to vector<2x96xi1>
    %400 = vector.shape_cast %391 : vector<1x96xf32> to vector<1x96xf32>
    %401 = vector.broadcast %400 : vector<1x96xf32> to vector<2x96xf32>
    %402 = vector.shape_cast %394 : vector<1x96xf32> to vector<1x96xf32>
    %403 = vector.broadcast %402 : vector<1x96xf32> to vector<2x96xf32>
    %404 = arith.select %399, %401, %403 : vector<2x96xi1>, vector<2x96xf32>
    %cst_162 = arith.constant dense<0.000000e+00> : vector<2x96xf32>
    %405 = tpu.matmul %404, %373, %cst_162 {dimension_numbers = #tpu.dot_dimension_numbers<[1], [0], [0], [1], [0, 0, 1, 1], [], []>} : vector<2x96xf32>, vector<96x96xf32>, vector<2x96xf32> -> vector<2x96xf32>
    %406 = vector.extract_strided_slice %405 {offsets = [0, 0], sizes = [1, 96], strides = [1, 1]} : vector<2x96xf32> to vector<1x96xf32>
    %407 = vector.extract_strided_slice %405 {offsets = [1, 0], sizes = [1, 96], strides = [1, 1]} : vector<2x96xf32> to vector<1x96xf32>
    %408 = arith.mulf %406, %406 : vector<1x96xf32>
    %409 = arith.subf %407, %408 : vector<1x96xf32>
    %cst_163 = arith.constant 0.000000e+00 : f32
    %410 = vector.broadcast %cst_163 : f32 to vector<1x96xf32>
    %411 = arith.maximumf %409, %410 : vector<1x96xf32>
    %412 = vector.extract_strided_slice %372 {offsets = [1, 0], sizes = [1, 96], strides = [1, 1]} : vector<3x96xf32> to vector<1x96xf32>
    %cst_164 = arith.constant 9.99999974E-6 : f32
    %413 = vector.broadcast %cst_164 : f32 to vector<1x96xf32>
    %414 = arith.addf %411, %413 : vector<1x96xf32>
    %415 = math.rsqrt %414 : vector<1x96xf32>
    %416 = arith.mulf %412, %415 : vector<1x96xf32>
    %417 = vector.extract_strided_slice %372 {offsets = [2, 0], sizes = [1, 96], strides = [1, 1]} : vector<3x96xf32> to vector<1x96xf32>
    %418 = arith.mulf %406, %416 : vector<1x96xf32>
    %419 = arith.subf %417, %418 : vector<1x96xf32>
    %420 = vector.broadcast %416 : vector<1x96xf32> to vector<24x96xf32>
    %421 = arith.mulf %389, %420 : vector<24x96xf32>
    %422 = vector.broadcast %419 : vector<1x96xf32> to vector<24x96xf32>
    %423 = arith.addf %421, %422 : vector<24x96xf32>
    %424 = vector.extract_strided_slice %423 {offsets = [0, 0], sizes = [22, 96], strides = [1, 1]} : vector<24x96xf32> to vector<22x96xf32>
    %425 = vector.extract_strided_slice %374 {offsets = [0, 0, 0], sizes = [1, 96, 80], strides = [1, 1, 1]} : vector<3x96x80xf32> to vector<1x96x80xf32>
    %426 = vector.shape_cast %425 : vector<1x96x80xf32> to vector<96x80xf32>
    %cst_165 = arith.constant dense<0.000000e+00> : vector<22x80xf32>
    %427 = tpu.matmul %424, %426, %cst_165 {dimension_numbers = #tpu.dot_dimension_numbers<[1], [0], [0], [1], [0, 0, 1, 1], [], []>} : vector<22x96xf32>, vector<96x80xf32>, vector<22x80xf32> -> vector<22x80xf32>
    %428 = vector.extract_strided_slice %369 {offsets = [0, 0], sizes = [22, 96], strides = [1, 1]} : vector<24x96xf32> to vector<22x96xf32>
    %429 = vector.extract_strided_slice %375 {offsets = [0, 0, 0], sizes = [1, 96, 80], strides = [1, 1, 1]} : vector<3x96x80xf32> to vector<1x96x80xf32>
    %430 = vector.shape_cast %429 : vector<1x96x80xf32> to vector<96x80xf32>
    %cst_166 = arith.constant dense<0.000000e+00> : vector<22x80xf32>
    %431 = tpu.matmul %428, %430, %cst_166 {dimension_numbers = #tpu.dot_dimension_numbers<[1], [0], [0], [1], [0, 0, 1, 1], [], []>} : vector<22x96xf32>, vector<96x80xf32>, vector<22x80xf32> -> vector<22x80xf32>
    %432 = arith.addf %427, %431 : vector<22x80xf32>
    %433 = vector.extract_strided_slice %423 {offsets = [1, 0], sizes = [22, 96], strides = [1, 1]} : vector<24x96xf32> to vector<22x96xf32>
    %434 = vector.extract_strided_slice %374 {offsets = [1, 0, 0], sizes = [1, 96, 80], strides = [1, 1, 1]} : vector<3x96x80xf32> to vector<1x96x80xf32>
    %435 = vector.shape_cast %434 : vector<1x96x80xf32> to vector<96x80xf32>
    %cst_167 = arith.constant dense<0.000000e+00> : vector<22x80xf32>
    %436 = tpu.matmul %433, %435, %cst_167 {dimension_numbers = #tpu.dot_dimension_numbers<[1], [0], [0], [1], [0, 0, 1, 1], [], []>} : vector<22x96xf32>, vector<96x80xf32>, vector<22x80xf32> -> vector<22x80xf32>
    %437 = arith.addf %432, %436 : vector<22x80xf32>
    %438 = vector.extract_strided_slice %369 {offsets = [1, 0], sizes = [22, 96], strides = [1, 1]} : vector<24x96xf32> to vector<22x96xf32>
    %439 = vector.extract_strided_slice %375 {offsets = [1, 0, 0], sizes = [1, 96, 80], strides = [1, 1, 1]} : vector<3x96x80xf32> to vector<1x96x80xf32>
    %440 = vector.shape_cast %439 : vector<1x96x80xf32> to vector<96x80xf32>
    %cst_168 = arith.constant dense<0.000000e+00> : vector<22x80xf32>
    %441 = tpu.matmul %438, %440, %cst_168 {dimension_numbers = #tpu.dot_dimension_numbers<[1], [0], [0], [1], [0, 0, 1, 1], [], []>} : vector<22x96xf32>, vector<96x80xf32>, vector<22x80xf32> -> vector<22x80xf32>
    %442 = arith.addf %437, %441 : vector<22x80xf32>
    %443 = vector.extract_strided_slice %423 {offsets = [2, 0], sizes = [22, 96], strides = [1, 1]} : vector<24x96xf32> to vector<22x96xf32>
    %444 = vector.extract_strided_slice %374 {offsets = [2, 0, 0], sizes = [1, 96, 80], strides = [1, 1, 1]} : vector<3x96x80xf32> to vector<1x96x80xf32>
    %445 = vector.shape_cast %444 : vector<1x96x80xf32> to vector<96x80xf32>
    %cst_169 = arith.constant dense<0.000000e+00> : vector<22x80xf32>
    %446 = tpu.matmul %443, %445, %cst_169 {dimension_numbers = #tpu.dot_dimension_numbers<[1], [0], [0], [1], [0, 0, 1, 1], [], []>} : vector<22x96xf32>, vector<96x80xf32>, vector<22x80xf32> -> vector<22x80xf32>
    %447 = arith.addf %442, %446 : vector<22x80xf32>
    %448 = vector.extract_strided_slice %369 {offsets = [2, 0], sizes = [22, 96], strides = [1, 1]} : vector<24x96xf32> to vector<22x96xf32>
    %449 = vector.extract_strided_slice %375 {offsets = [2, 0, 0], sizes = [1, 96, 80], strides = [1, 1, 1]} : vector<3x96x80xf32> to vector<1x96x80xf32>
    %450 = vector.shape_cast %449 : vector<1x96x80xf32> to vector<96x80xf32>
    %cst_170 = arith.constant dense<0.000000e+00> : vector<22x80xf32>
    %451 = tpu.matmul %448, %450, %cst_170 {dimension_numbers = #tpu.dot_dimension_numbers<[1], [0], [0], [1], [0, 0, 1, 1], [], []>} : vector<22x96xf32>, vector<96x80xf32>, vector<22x80xf32> -> vector<22x80xf32>
    %452 = arith.addf %447, %451 : vector<22x80xf32>
    %453 = vector.extract_strided_slice %376 {offsets = [0, 0], sizes = [1, 80], strides = [1, 1]} : vector<3x80xf32> to vector<1x80xf32>
    %454 = vector.broadcast %453 : vector<1x80xf32> to vector<22x80xf32>
    %455 = arith.addf %452, %454 : vector<22x80xf32>
    %cst_171 = arith.constant 0.000000e+00 : f32
    %456 = vector.broadcast %cst_171 : f32 to vector<22x80xf32>
    %457 = arith.maximumf %455, %456 : vector<22x80xf32>
    %458 = vector.broadcast %378 : vector<22x1xf32> to vector<22x80xf32>
    %459 = arith.mulf %457, %458 : vector<22x80xf32>
    %cst_172 = arith.constant dense<0.000000e+00> : vector<80xf32>
    %460 = vector.multi_reduction <add>, %459, %cst_172 [0] : vector<22x80xf32> to vector<80xf32>
    %461 = vector.shape_cast %460 : vector<80xf32> to vector<1x80xf32>
    %462 = arith.mulf %457, %457 : vector<22x80xf32>
    %463 = vector.broadcast %378 : vector<22x1xf32> to vector<22x80xf32>
    %464 = arith.mulf %462, %463 : vector<22x80xf32>
    %cst_173 = arith.constant dense<0.000000e+00> : vector<80xf32>
    %465 = vector.multi_reduction <add>, %464, %cst_173 [0] : vector<22x80xf32> to vector<80xf32>
    %466 = vector.shape_cast %465 : vector<80xf32> to vector<1x80xf32>
    %467 = tpu.iota {dimensions = array<i32: 0>} : vector<2x1xi32>
    %c0_i32_174 = arith.constant 0 : i32
    %468 = vector.broadcast %c0_i32_174 : i32 to vector<2x1xi32>
    %469 = arith.cmpi eq, %467, %468 : vector<2x1xi32>
    %470 = vector.shape_cast %469 : vector<2x1xi1> to vector<2x1xi1>
    %471 = vector.broadcast %470 : vector<2x1xi1> to vector<2x80xi1>
    %472 = vector.shape_cast %461 : vector<1x80xf32> to vector<1x80xf32>
    %473 = vector.broadcast %472 : vector<1x80xf32> to vector<2x80xf32>
    %474 = vector.shape_cast %466 : vector<1x80xf32> to vector<1x80xf32>
    %475 = vector.broadcast %474 : vector<1x80xf32> to vector<2x80xf32>
    %476 = arith.select %471, %473, %475 : vector<2x80xi1>, vector<2x80xf32>
    %cst_175 = arith.constant dense<0.000000e+00> : vector<2x80xf32>
    %477 = tpu.matmul %476, %377, %cst_175 {dimension_numbers = #tpu.dot_dimension_numbers<[1], [0], [0], [1], [0, 0, 1, 1], [], []>} : vector<2x80xf32>, vector<80x80xf32>, vector<2x80xf32> -> vector<2x80xf32>
    %478 = vector.extract_strided_slice %477 {offsets = [0, 0], sizes = [1, 80], strides = [1, 1]} : vector<2x80xf32> to vector<1x80xf32>
    %479 = vector.extract_strided_slice %477 {offsets = [1, 0], sizes = [1, 80], strides = [1, 1]} : vector<2x80xf32> to vector<1x80xf32>
    %480 = arith.mulf %478, %478 : vector<1x80xf32>
    %481 = arith.subf %479, %480 : vector<1x80xf32>
    %cst_176 = arith.constant 0.000000e+00 : f32
    %482 = vector.broadcast %cst_176 : f32 to vector<1x80xf32>
    %483 = arith.maximumf %481, %482 : vector<1x80xf32>
    %484 = vector.extract_strided_slice %376 {offsets = [1, 0], sizes = [1, 80], strides = [1, 1]} : vector<3x80xf32> to vector<1x80xf32>
    %cst_177 = arith.constant 9.99999974E-6 : f32
    %485 = vector.broadcast %cst_177 : f32 to vector<1x80xf32>
    %486 = arith.addf %483, %485 : vector<1x80xf32>
    %487 = math.rsqrt %486 : vector<1x80xf32>
    %488 = arith.mulf %484, %487 : vector<1x80xf32>
    %489 = vector.extract_strided_slice %376 {offsets = [2, 0], sizes = [1, 80], strides = [1, 1]} : vector<3x80xf32> to vector<1x80xf32>
    %490 = arith.mulf %478, %488 : vector<1x80xf32>
    %491 = arith.subf %489, %490 : vector<1x80xf32>
    %492 = vector.broadcast %488 : vector<1x80xf32> to vector<22x80xf32>
    %493 = arith.mulf %457, %492 : vector<22x80xf32>
    %494 = vector.broadcast %491 : vector<1x80xf32> to vector<22x80xf32>
    %495 = arith.addf %493, %494 : vector<22x80xf32>
    %496 = vector.extract_strided_slice %495 {offsets = [0, 0], sizes = [20, 80], strides = [1, 1]} : vector<22x80xf32> to vector<20x80xf32>
    %497 = vector.extract_strided_slice %379 {offsets = [0, 0, 0], sizes = [1, 80, 64], strides = [1, 1, 1]} : vector<3x80x64xf32> to vector<1x80x64xf32>
    %498 = vector.shape_cast %497 : vector<1x80x64xf32> to vector<80x64xf32>
    %cst_178 = arith.constant dense<0.000000e+00> : vector<20x64xf32>
    %499 = tpu.matmul %496, %498, %cst_178 {dimension_numbers = #tpu.dot_dimension_numbers<[1], [0], [0], [1], [0, 0, 1, 1], [], []>} : vector<20x80xf32>, vector<80x64xf32>, vector<20x64xf32> -> vector<20x64xf32>
    %500 = vector.extract_strided_slice %495 {offsets = [1, 0], sizes = [20, 80], strides = [1, 1]} : vector<22x80xf32> to vector<20x80xf32>
    %501 = vector.extract_strided_slice %379 {offsets = [1, 0, 0], sizes = [1, 80, 64], strides = [1, 1, 1]} : vector<3x80x64xf32> to vector<1x80x64xf32>
    %502 = vector.shape_cast %501 : vector<1x80x64xf32> to vector<80x64xf32>
    %cst_179 = arith.constant dense<0.000000e+00> : vector<20x64xf32>
    %503 = tpu.matmul %500, %502, %cst_179 {dimension_numbers = #tpu.dot_dimension_numbers<[1], [0], [0], [1], [0, 0, 1, 1], [], []>} : vector<20x80xf32>, vector<80x64xf32>, vector<20x64xf32> -> vector<20x64xf32>
    %504 = arith.addf %499, %503 : vector<20x64xf32>
    %505 = vector.extract_strided_slice %495 {offsets = [2, 0], sizes = [20, 80], strides = [1, 1]} : vector<22x80xf32> to vector<20x80xf32>
    %506 = vector.extract_strided_slice %379 {offsets = [2, 0, 0], sizes = [1, 80, 64], strides = [1, 1, 1]} : vector<3x80x64xf32> to vector<1x80x64xf32>
    %507 = vector.shape_cast %506 : vector<1x80x64xf32> to vector<80x64xf32>
    %cst_180 = arith.constant dense<0.000000e+00> : vector<20x64xf32>
    %508 = tpu.matmul %505, %507, %cst_180 {dimension_numbers = #tpu.dot_dimension_numbers<[1], [0], [0], [1], [0, 0, 1, 1], [], []>} : vector<20x80xf32>, vector<80x64xf32>, vector<20x64xf32> -> vector<20x64xf32>
    %509 = arith.addf %504, %508 : vector<20x64xf32>
    %510 = vector.extract_strided_slice %380 {offsets = [0, 0], sizes = [1, 64], strides = [1, 1]} : vector<3x64xf32> to vector<1x64xf32>
    %511 = vector.broadcast %510 : vector<1x64xf32> to vector<20x64xf32>
    %512 = arith.addf %509, %511 : vector<20x64xf32>
    %cst_181 = arith.constant 0.000000e+00 : f32
    %513 = vector.broadcast %cst_181 : f32 to vector<20x64xf32>
    %514 = arith.maximumf %512, %513 : vector<20x64xf32>
    %515 = vector.broadcast %382 : vector<20x1xf32> to vector<20x64xf32>
    %516 = arith.mulf %514, %515 : vector<20x64xf32>
    %cst_182 = arith.constant dense<0.000000e+00> : vector<64xf32>
    %517 = vector.multi_reduction <add>, %516, %cst_182 [0] : vector<20x64xf32> to vector<64xf32>
    %518 = vector.shape_cast %517 : vector<64xf32> to vector<1x64xf32>
    %519 = arith.mulf %514, %514 : vector<20x64xf32>
    %520 = vector.broadcast %382 : vector<20x1xf32> to vector<20x64xf32>
    %521 = arith.mulf %519, %520 : vector<20x64xf32>
    %cst_183 = arith.constant dense<0.000000e+00> : vector<64xf32>
    %522 = vector.multi_reduction <add>, %521, %cst_183 [0] : vector<20x64xf32> to vector<64xf32>
    %523 = vector.shape_cast %522 : vector<64xf32> to vector<1x64xf32>
    %524 = tpu.iota {dimensions = array<i32: 0>} : vector<2x1xi32>
    %c0_i32_184 = arith.constant 0 : i32
    %525 = vector.broadcast %c0_i32_184 : i32 to vector<2x1xi32>
    %526 = arith.cmpi eq, %524, %525 : vector<2x1xi32>
    %527 = vector.shape_cast %526 : vector<2x1xi1> to vector<2x1xi1>
    %528 = vector.broadcast %527 : vector<2x1xi1> to vector<2x64xi1>
    %529 = vector.shape_cast %518 : vector<1x64xf32> to vector<1x64xf32>
    %530 = vector.broadcast %529 : vector<1x64xf32> to vector<2x64xf32>
    %531 = vector.shape_cast %523 : vector<1x64xf32> to vector<1x64xf32>
    %532 = vector.broadcast %531 : vector<1x64xf32> to vector<2x64xf32>
    %533 = arith.select %528, %530, %532 : vector<2x64xi1>, vector<2x64xf32>
    %cst_185 = arith.constant dense<0.000000e+00> : vector<2x64xf32>
    %534 = tpu.matmul %533, %381, %cst_185 {dimension_numbers = #tpu.dot_dimension_numbers<[1], [0], [0], [1], [0, 0, 1, 1], [], []>} : vector<2x64xf32>, vector<64x64xf32>, vector<2x64xf32> -> vector<2x64xf32>
    %535 = vector.extract_strided_slice %534 {offsets = [0, 0], sizes = [1, 64], strides = [1, 1]} : vector<2x64xf32> to vector<1x64xf32>
    %536 = vector.extract_strided_slice %534 {offsets = [1, 0], sizes = [1, 64], strides = [1, 1]} : vector<2x64xf32> to vector<1x64xf32>
    %537 = arith.mulf %535, %535 : vector<1x64xf32>
    %538 = arith.subf %536, %537 : vector<1x64xf32>
    %cst_186 = arith.constant 0.000000e+00 : f32
    %539 = vector.broadcast %cst_186 : f32 to vector<1x64xf32>
    %540 = arith.maximumf %538, %539 : vector<1x64xf32>
    %541 = vector.extract_strided_slice %380 {offsets = [1, 0], sizes = [1, 64], strides = [1, 1]} : vector<3x64xf32> to vector<1x64xf32>
    %cst_187 = arith.constant 9.99999974E-6 : f32
    %542 = vector.broadcast %cst_187 : f32 to vector<1x64xf32>
    %543 = arith.addf %540, %542 : vector<1x64xf32>
    %544 = math.rsqrt %543 : vector<1x64xf32>
    %545 = arith.mulf %541, %544 : vector<1x64xf32>
    %546 = vector.extract_strided_slice %380 {offsets = [2, 0], sizes = [1, 64], strides = [1, 1]} : vector<3x64xf32> to vector<1x64xf32>
    %547 = arith.mulf %535, %545 : vector<1x64xf32>
    %548 = arith.subf %546, %547 : vector<1x64xf32>
    %549 = vector.broadcast %545 : vector<1x64xf32> to vector<20x64xf32>
    %550 = arith.mulf %514, %549 : vector<20x64xf32>
    %551 = vector.broadcast %548 : vector<1x64xf32> to vector<20x64xf32>
    %552 = arith.addf %550, %551 : vector<20x64xf32>
    %c0_188 = arith.constant 0 : index
    %c0_189 = arith.constant 0 : index
    %553 = vector.load %arg44[%c0_188, %c0_189] : memref<40x80xf32, #tpu.memory_space<vmem>>, vector<40x80xf32>
    %c0_190 = arith.constant 0 : index
    %c0_191 = arith.constant 0 : index
    %554 = vector.load %arg45[%c0_190, %c0_191] : memref<40x20xf32, #tpu.memory_space<vmem>>, vector<40x20xf32>
    %c0_192 = arith.constant 0 : index
    %c0_193 = arith.constant 0 : index
    %555 = vector.load %arg46[%c0_192, %c0_193] : memref<64x80xf32, #tpu.memory_space<vmem>>, vector<64x80xf32>
    %c0_194 = arith.constant 0 : index
    %c0_195 = arith.constant 0 : index
    %556 = vector.load %arg47[%c0_194, %c0_195] : memref<3x80xf32, #tpu.memory_space<vmem>>, vector<3x80xf32>
    %c0_196 = arith.constant 0 : index
    %c0_197 = arith.constant 0 : index
    %557 = vector.load %arg48[%c0_196, %c0_197] : memref<80x80xf32, #tpu.memory_space<vmem>>, vector<80x80xf32>
    %c0_198 = arith.constant 0 : index
    %c0_199 = arith.constant 0 : index
    %c0_200 = arith.constant 0 : index
    %558 = vector.load %arg49[%c0_198, %c0_199, %c0_200] : memref<3x80x72xf32, #tpu.memory_space<vmem>>, vector<3x80x72xf32>
    %c0_201 = arith.constant 0 : index
    %c0_202 = arith.constant 0 : index
    %c0_203 = arith.constant 0 : index
    %559 = vector.load %arg50[%c0_201, %c0_202, %c0_203] : memref<3x80x72xf32, #tpu.memory_space<vmem>>, vector<3x80x72xf32>
    %c0_204 = arith.constant 0 : index
    %c0_205 = arith.constant 0 : index
    %560 = vector.load %arg51[%c0_204, %c0_205] : memref<3x72xf32, #tpu.memory_space<vmem>>, vector<3x72xf32>
    %c0_206 = arith.constant 0 : index
    %c0_207 = arith.constant 0 : index
    %561 = vector.load %arg52[%c0_206, %c0_207] : memref<72x72xf32, #tpu.memory_space<vmem>>, vector<72x72xf32>
    %c0_208 = arith.constant 0 : index
    %c0_209 = arith.constant 0 : index
    %562 = vector.load %arg53[%c0_208, %c0_209] : memref<38x1xf32, #tpu.memory_space<vmem>>, vector<38x1xf32>
    %c0_210 = arith.constant 0 : index
    %c0_211 = arith.constant 0 : index
    %c0_212 = arith.constant 0 : index
    %563 = vector.load %arg54[%c0_210, %c0_211, %c0_212] : memref<3x72x64xf32, #tpu.memory_space<vmem>>, vector<3x72x64xf32>
    %c0_213 = arith.constant 0 : index
    %c0_214 = arith.constant 0 : index
    %564 = vector.load %arg55[%c0_213, %c0_214] : memref<3x64xf32, #tpu.memory_space<vmem>>, vector<3x64xf32>
    %c0_215 = arith.constant 0 : index
    %c0_216 = arith.constant 0 : index
    %565 = vector.load %arg56[%c0_215, %c0_216] : memref<64x64xf32, #tpu.memory_space<vmem>>, vector<64x64xf32>
    %c0_217 = arith.constant 0 : index
    %c0_218 = arith.constant 0 : index
    %566 = vector.load %arg57[%c0_217, %c0_218] : memref<36x1xf32, #tpu.memory_space<vmem>>, vector<36x1xf32>
    %cst_219 = arith.constant dense<0.000000e+00> : vector<40x64xf32>
    %567 = tpu.matmul %554, %552, %cst_219 {dimension_numbers = #tpu.dot_dimension_numbers<[1], [0], [0], [1], [0, 0, 1, 1], [], []>} : vector<40x20xf32>, vector<20x64xf32>, vector<40x64xf32> -> vector<40x64xf32>
    %cst_220 = arith.constant dense<0.000000e+00> : vector<40x80xf32>
    %568 = tpu.matmul %567, %555, %cst_220 {dimension_numbers = #tpu.dot_dimension_numbers<[1], [0], [0], [1], [0, 0, 1, 1], [], []>} : vector<40x64xf32>, vector<64x80xf32>, vector<40x80xf32> -> vector<40x80xf32>
    %569 = vector.extract_strided_slice %556 {offsets = [0, 0], sizes = [1, 80], strides = [1, 1]} : vector<3x80xf32> to vector<1x80xf32>
    %570 = vector.broadcast %569 : vector<1x80xf32> to vector<40x80xf32>
    %571 = arith.addf %568, %570 : vector<40x80xf32>
    %cst_221 = arith.constant 0.000000e+00 : f32
    %572 = vector.broadcast %cst_221 : f32 to vector<40x80xf32>
    %573 = arith.maximumf %571, %572 : vector<40x80xf32>
    %cst_222 = arith.constant dense<0.000000e+00> : vector<80xf32>
    %574 = vector.multi_reduction <add>, %573, %cst_222 [0] : vector<40x80xf32> to vector<80xf32>
    %575 = vector.shape_cast %574 : vector<80xf32> to vector<1x80xf32>
    %576 = arith.mulf %573, %573 : vector<40x80xf32>
    %cst_223 = arith.constant dense<0.000000e+00> : vector<80xf32>
    %577 = vector.multi_reduction <add>, %576, %cst_223 [0] : vector<40x80xf32> to vector<80xf32>
    %578 = vector.shape_cast %577 : vector<80xf32> to vector<1x80xf32>
    %579 = tpu.iota {dimensions = array<i32: 0>} : vector<2x1xi32>
    %c0_i32_224 = arith.constant 0 : i32
    %580 = vector.broadcast %c0_i32_224 : i32 to vector<2x1xi32>
    %581 = arith.cmpi eq, %579, %580 : vector<2x1xi32>
    %582 = vector.shape_cast %581 : vector<2x1xi1> to vector<2x1xi1>
    %583 = vector.broadcast %582 : vector<2x1xi1> to vector<2x80xi1>
    %584 = vector.shape_cast %575 : vector<1x80xf32> to vector<1x80xf32>
    %585 = vector.broadcast %584 : vector<1x80xf32> to vector<2x80xf32>
    %586 = vector.shape_cast %578 : vector<1x80xf32> to vector<1x80xf32>
    %587 = vector.broadcast %586 : vector<1x80xf32> to vector<2x80xf32>
    %588 = arith.select %583, %585, %587 : vector<2x80xi1>, vector<2x80xf32>
    %cst_225 = arith.constant dense<0.000000e+00> : vector<2x80xf32>
    %589 = tpu.matmul %588, %557, %cst_225 {dimension_numbers = #tpu.dot_dimension_numbers<[1], [0], [0], [1], [0, 0, 1, 1], [], []>} : vector<2x80xf32>, vector<80x80xf32>, vector<2x80xf32> -> vector<2x80xf32>
    %590 = vector.extract_strided_slice %589 {offsets = [0, 0], sizes = [1, 80], strides = [1, 1]} : vector<2x80xf32> to vector<1x80xf32>
    %591 = vector.extract_strided_slice %589 {offsets = [1, 0], sizes = [1, 80], strides = [1, 1]} : vector<2x80xf32> to vector<1x80xf32>
    %592 = arith.mulf %590, %590 : vector<1x80xf32>
    %593 = arith.subf %591, %592 : vector<1x80xf32>
    %cst_226 = arith.constant 0.000000e+00 : f32
    %594 = vector.broadcast %cst_226 : f32 to vector<1x80xf32>
    %595 = arith.maximumf %593, %594 : vector<1x80xf32>
    %596 = vector.extract_strided_slice %556 {offsets = [1, 0], sizes = [1, 80], strides = [1, 1]} : vector<3x80xf32> to vector<1x80xf32>
    %cst_227 = arith.constant 9.99999974E-6 : f32
    %597 = vector.broadcast %cst_227 : f32 to vector<1x80xf32>
    %598 = arith.addf %595, %597 : vector<1x80xf32>
    %599 = math.rsqrt %598 : vector<1x80xf32>
    %600 = arith.mulf %596, %599 : vector<1x80xf32>
    %601 = vector.extract_strided_slice %556 {offsets = [2, 0], sizes = [1, 80], strides = [1, 1]} : vector<3x80xf32> to vector<1x80xf32>
    %602 = arith.mulf %590, %600 : vector<1x80xf32>
    %603 = arith.subf %601, %602 : vector<1x80xf32>
    %604 = vector.broadcast %600 : vector<1x80xf32> to vector<40x80xf32>
    %605 = arith.mulf %573, %604 : vector<40x80xf32>
    %606 = vector.broadcast %603 : vector<1x80xf32> to vector<40x80xf32>
    %607 = arith.addf %605, %606 : vector<40x80xf32>
    %608 = vector.extract_strided_slice %607 {offsets = [0, 0], sizes = [38, 80], strides = [1, 1]} : vector<40x80xf32> to vector<38x80xf32>
    %609 = vector.extract_strided_slice %558 {offsets = [0, 0, 0], sizes = [1, 80, 72], strides = [1, 1, 1]} : vector<3x80x72xf32> to vector<1x80x72xf32>
    %610 = vector.shape_cast %609 : vector<1x80x72xf32> to vector<80x72xf32>
    %cst_228 = arith.constant dense<0.000000e+00> : vector<38x72xf32>
    %611 = tpu.matmul %608, %610, %cst_228 {dimension_numbers = #tpu.dot_dimension_numbers<[1], [0], [0], [1], [0, 0, 1, 1], [], []>} : vector<38x80xf32>, vector<80x72xf32>, vector<38x72xf32> -> vector<38x72xf32>
    %612 = vector.extract_strided_slice %553 {offsets = [0, 0], sizes = [38, 80], strides = [1, 1]} : vector<40x80xf32> to vector<38x80xf32>
    %613 = vector.extract_strided_slice %559 {offsets = [0, 0, 0], sizes = [1, 80, 72], strides = [1, 1, 1]} : vector<3x80x72xf32> to vector<1x80x72xf32>
    %614 = vector.shape_cast %613 : vector<1x80x72xf32> to vector<80x72xf32>
    %cst_229 = arith.constant dense<0.000000e+00> : vector<38x72xf32>
    %615 = tpu.matmul %612, %614, %cst_229 {dimension_numbers = #tpu.dot_dimension_numbers<[1], [0], [0], [1], [0, 0, 1, 1], [], []>} : vector<38x80xf32>, vector<80x72xf32>, vector<38x72xf32> -> vector<38x72xf32>
    %616 = arith.addf %611, %615 : vector<38x72xf32>
    %617 = vector.extract_strided_slice %607 {offsets = [1, 0], sizes = [38, 80], strides = [1, 1]} : vector<40x80xf32> to vector<38x80xf32>
    %618 = vector.extract_strided_slice %558 {offsets = [1, 0, 0], sizes = [1, 80, 72], strides = [1, 1, 1]} : vector<3x80x72xf32> to vector<1x80x72xf32>
    %619 = vector.shape_cast %618 : vector<1x80x72xf32> to vector<80x72xf32>
    %cst_230 = arith.constant dense<0.000000e+00> : vector<38x72xf32>
    %620 = tpu.matmul %617, %619, %cst_230 {dimension_numbers = #tpu.dot_dimension_numbers<[1], [0], [0], [1], [0, 0, 1, 1], [], []>} : vector<38x80xf32>, vector<80x72xf32>, vector<38x72xf32> -> vector<38x72xf32>
    %621 = arith.addf %616, %620 : vector<38x72xf32>
    %622 = vector.extract_strided_slice %553 {offsets = [1, 0], sizes = [38, 80], strides = [1, 1]} : vector<40x80xf32> to vector<38x80xf32>
    %623 = vector.extract_strided_slice %559 {offsets = [1, 0, 0], sizes = [1, 80, 72], strides = [1, 1, 1]} : vector<3x80x72xf32> to vector<1x80x72xf32>
    %624 = vector.shape_cast %623 : vector<1x80x72xf32> to vector<80x72xf32>
    %cst_231 = arith.constant dense<0.000000e+00> : vector<38x72xf32>
    %625 = tpu.matmul %622, %624, %cst_231 {dimension_numbers = #tpu.dot_dimension_numbers<[1], [0], [0], [1], [0, 0, 1, 1], [], []>} : vector<38x80xf32>, vector<80x72xf32>, vector<38x72xf32> -> vector<38x72xf32>
    %626 = arith.addf %621, %625 : vector<38x72xf32>
    %627 = vector.extract_strided_slice %607 {offsets = [2, 0], sizes = [38, 80], strides = [1, 1]} : vector<40x80xf32> to vector<38x80xf32>
    %628 = vector.extract_strided_slice %558 {offsets = [2, 0, 0], sizes = [1, 80, 72], strides = [1, 1, 1]} : vector<3x80x72xf32> to vector<1x80x72xf32>
    %629 = vector.shape_cast %628 : vector<1x80x72xf32> to vector<80x72xf32>
    %cst_232 = arith.constant dense<0.000000e+00> : vector<38x72xf32>
    %630 = tpu.matmul %627, %629, %cst_232 {dimension_numbers = #tpu.dot_dimension_numbers<[1], [0], [0], [1], [0, 0, 1, 1], [], []>} : vector<38x80xf32>, vector<80x72xf32>, vector<38x72xf32> -> vector<38x72xf32>
    %631 = arith.addf %626, %630 : vector<38x72xf32>
    %632 = vector.extract_strided_slice %553 {offsets = [2, 0], sizes = [38, 80], strides = [1, 1]} : vector<40x80xf32> to vector<38x80xf32>
    %633 = vector.extract_strided_slice %559 {offsets = [2, 0, 0], sizes = [1, 80, 72], strides = [1, 1, 1]} : vector<3x80x72xf32> to vector<1x80x72xf32>
    %634 = vector.shape_cast %633 : vector<1x80x72xf32> to vector<80x72xf32>
    %cst_233 = arith.constant dense<0.000000e+00> : vector<38x72xf32>
    %635 = tpu.matmul %632, %634, %cst_233 {dimension_numbers = #tpu.dot_dimension_numbers<[1], [0], [0], [1], [0, 0, 1, 1], [], []>} : vector<38x80xf32>, vector<80x72xf32>, vector<38x72xf32> -> vector<38x72xf32>
    %636 = arith.addf %631, %635 : vector<38x72xf32>
    %637 = vector.extract_strided_slice %560 {offsets = [0, 0], sizes = [1, 72], strides = [1, 1]} : vector<3x72xf32> to vector<1x72xf32>
    %638 = vector.broadcast %637 : vector<1x72xf32> to vector<38x72xf32>
    %639 = arith.addf %636, %638 : vector<38x72xf32>
    %cst_234 = arith.constant 0.000000e+00 : f32
    %640 = vector.broadcast %cst_234 : f32 to vector<38x72xf32>
    %641 = arith.maximumf %639, %640 : vector<38x72xf32>
    %642 = vector.broadcast %562 : vector<38x1xf32> to vector<38x72xf32>
    %643 = arith.mulf %641, %642 : vector<38x72xf32>
    %cst_235 = arith.constant dense<0.000000e+00> : vector<72xf32>
    %644 = vector.multi_reduction <add>, %643, %cst_235 [0] : vector<38x72xf32> to vector<72xf32>
    %645 = vector.shape_cast %644 : vector<72xf32> to vector<1x72xf32>
    %646 = arith.mulf %641, %641 : vector<38x72xf32>
    %647 = vector.broadcast %562 : vector<38x1xf32> to vector<38x72xf32>
    %648 = arith.mulf %646, %647 : vector<38x72xf32>
    %cst_236 = arith.constant dense<0.000000e+00> : vector<72xf32>
    %649 = vector.multi_reduction <add>, %648, %cst_236 [0] : vector<38x72xf32> to vector<72xf32>
    %650 = vector.shape_cast %649 : vector<72xf32> to vector<1x72xf32>
    %651 = tpu.iota {dimensions = array<i32: 0>} : vector<2x1xi32>
    %c0_i32_237 = arith.constant 0 : i32
    %652 = vector.broadcast %c0_i32_237 : i32 to vector<2x1xi32>
    %653 = arith.cmpi eq, %651, %652 : vector<2x1xi32>
    %654 = vector.shape_cast %653 : vector<2x1xi1> to vector<2x1xi1>
    %655 = vector.broadcast %654 : vector<2x1xi1> to vector<2x72xi1>
    %656 = vector.shape_cast %645 : vector<1x72xf32> to vector<1x72xf32>
    %657 = vector.broadcast %656 : vector<1x72xf32> to vector<2x72xf32>
    %658 = vector.shape_cast %650 : vector<1x72xf32> to vector<1x72xf32>
    %659 = vector.broadcast %658 : vector<1x72xf32> to vector<2x72xf32>
    %660 = arith.select %655, %657, %659 : vector<2x72xi1>, vector<2x72xf32>
    %cst_238 = arith.constant dense<0.000000e+00> : vector<2x72xf32>
    %661 = tpu.matmul %660, %561, %cst_238 {dimension_numbers = #tpu.dot_dimension_numbers<[1], [0], [0], [1], [0, 0, 1, 1], [], []>} : vector<2x72xf32>, vector<72x72xf32>, vector<2x72xf32> -> vector<2x72xf32>
    %662 = vector.extract_strided_slice %661 {offsets = [0, 0], sizes = [1, 72], strides = [1, 1]} : vector<2x72xf32> to vector<1x72xf32>
    %663 = vector.extract_strided_slice %661 {offsets = [1, 0], sizes = [1, 72], strides = [1, 1]} : vector<2x72xf32> to vector<1x72xf32>
    %664 = arith.mulf %662, %662 : vector<1x72xf32>
    %665 = arith.subf %663, %664 : vector<1x72xf32>
    %cst_239 = arith.constant 0.000000e+00 : f32
    %666 = vector.broadcast %cst_239 : f32 to vector<1x72xf32>
    %667 = arith.maximumf %665, %666 : vector<1x72xf32>
    %668 = vector.extract_strided_slice %560 {offsets = [1, 0], sizes = [1, 72], strides = [1, 1]} : vector<3x72xf32> to vector<1x72xf32>
    %cst_240 = arith.constant 9.99999974E-6 : f32
    %669 = vector.broadcast %cst_240 : f32 to vector<1x72xf32>
    %670 = arith.addf %667, %669 : vector<1x72xf32>
    %671 = math.rsqrt %670 : vector<1x72xf32>
    %672 = arith.mulf %668, %671 : vector<1x72xf32>
    %673 = vector.extract_strided_slice %560 {offsets = [2, 0], sizes = [1, 72], strides = [1, 1]} : vector<3x72xf32> to vector<1x72xf32>
    %674 = arith.mulf %662, %672 : vector<1x72xf32>
    %675 = arith.subf %673, %674 : vector<1x72xf32>
    %676 = vector.broadcast %672 : vector<1x72xf32> to vector<38x72xf32>
    %677 = arith.mulf %641, %676 : vector<38x72xf32>
    %678 = vector.broadcast %675 : vector<1x72xf32> to vector<38x72xf32>
    %679 = arith.addf %677, %678 : vector<38x72xf32>
    %680 = vector.extract_strided_slice %679 {offsets = [0, 0], sizes = [36, 72], strides = [1, 1]} : vector<38x72xf32> to vector<36x72xf32>
    %681 = vector.extract_strided_slice %563 {offsets = [0, 0, 0], sizes = [1, 72, 64], strides = [1, 1, 1]} : vector<3x72x64xf32> to vector<1x72x64xf32>
    %682 = vector.shape_cast %681 : vector<1x72x64xf32> to vector<72x64xf32>
    %cst_241 = arith.constant dense<0.000000e+00> : vector<36x64xf32>
    %683 = tpu.matmul %680, %682, %cst_241 {dimension_numbers = #tpu.dot_dimension_numbers<[1], [0], [0], [1], [0, 0, 1, 1], [], []>} : vector<36x72xf32>, vector<72x64xf32>, vector<36x64xf32> -> vector<36x64xf32>
    %684 = vector.extract_strided_slice %679 {offsets = [1, 0], sizes = [36, 72], strides = [1, 1]} : vector<38x72xf32> to vector<36x72xf32>
    %685 = vector.extract_strided_slice %563 {offsets = [1, 0, 0], sizes = [1, 72, 64], strides = [1, 1, 1]} : vector<3x72x64xf32> to vector<1x72x64xf32>
    %686 = vector.shape_cast %685 : vector<1x72x64xf32> to vector<72x64xf32>
    %cst_242 = arith.constant dense<0.000000e+00> : vector<36x64xf32>
    %687 = tpu.matmul %684, %686, %cst_242 {dimension_numbers = #tpu.dot_dimension_numbers<[1], [0], [0], [1], [0, 0, 1, 1], [], []>} : vector<36x72xf32>, vector<72x64xf32>, vector<36x64xf32> -> vector<36x64xf32>
    %688 = arith.addf %683, %687 : vector<36x64xf32>
    %689 = vector.extract_strided_slice %679 {offsets = [2, 0], sizes = [36, 72], strides = [1, 1]} : vector<38x72xf32> to vector<36x72xf32>
    %690 = vector.extract_strided_slice %563 {offsets = [2, 0, 0], sizes = [1, 72, 64], strides = [1, 1, 1]} : vector<3x72x64xf32> to vector<1x72x64xf32>
    %691 = vector.shape_cast %690 : vector<1x72x64xf32> to vector<72x64xf32>
    %cst_243 = arith.constant dense<0.000000e+00> : vector<36x64xf32>
    %692 = tpu.matmul %689, %691, %cst_243 {dimension_numbers = #tpu.dot_dimension_numbers<[1], [0], [0], [1], [0, 0, 1, 1], [], []>} : vector<36x72xf32>, vector<72x64xf32>, vector<36x64xf32> -> vector<36x64xf32>
    %693 = arith.addf %688, %692 : vector<36x64xf32>
    %694 = vector.extract_strided_slice %564 {offsets = [0, 0], sizes = [1, 64], strides = [1, 1]} : vector<3x64xf32> to vector<1x64xf32>
    %695 = vector.broadcast %694 : vector<1x64xf32> to vector<36x64xf32>
    %696 = arith.addf %693, %695 : vector<36x64xf32>
    %cst_244 = arith.constant 0.000000e+00 : f32
    %697 = vector.broadcast %cst_244 : f32 to vector<36x64xf32>
    %698 = arith.maximumf %696, %697 : vector<36x64xf32>
    %699 = vector.broadcast %566 : vector<36x1xf32> to vector<36x64xf32>
    %700 = arith.mulf %698, %699 : vector<36x64xf32>
    %cst_245 = arith.constant dense<0.000000e+00> : vector<64xf32>
    %701 = vector.multi_reduction <add>, %700, %cst_245 [0] : vector<36x64xf32> to vector<64xf32>
    %702 = vector.shape_cast %701 : vector<64xf32> to vector<1x64xf32>
    %703 = arith.mulf %698, %698 : vector<36x64xf32>
    %704 = vector.broadcast %566 : vector<36x1xf32> to vector<36x64xf32>
    %705 = arith.mulf %703, %704 : vector<36x64xf32>
    %cst_246 = arith.constant dense<0.000000e+00> : vector<64xf32>
    %706 = vector.multi_reduction <add>, %705, %cst_246 [0] : vector<36x64xf32> to vector<64xf32>
    %707 = vector.shape_cast %706 : vector<64xf32> to vector<1x64xf32>
    %708 = tpu.iota {dimensions = array<i32: 0>} : vector<2x1xi32>
    %c0_i32_247 = arith.constant 0 : i32
    %709 = vector.broadcast %c0_i32_247 : i32 to vector<2x1xi32>
    %710 = arith.cmpi eq, %708, %709 : vector<2x1xi32>
    %711 = vector.shape_cast %710 : vector<2x1xi1> to vector<2x1xi1>
    %712 = vector.broadcast %711 : vector<2x1xi1> to vector<2x64xi1>
    %713 = vector.shape_cast %702 : vector<1x64xf32> to vector<1x64xf32>
    %714 = vector.broadcast %713 : vector<1x64xf32> to vector<2x64xf32>
    %715 = vector.shape_cast %707 : vector<1x64xf32> to vector<1x64xf32>
    %716 = vector.broadcast %715 : vector<1x64xf32> to vector<2x64xf32>
    %717 = arith.select %712, %714, %716 : vector<2x64xi1>, vector<2x64xf32>
    %cst_248 = arith.constant dense<0.000000e+00> : vector<2x64xf32>
    %718 = tpu.matmul %717, %565, %cst_248 {dimension_numbers = #tpu.dot_dimension_numbers<[1], [0], [0], [1], [0, 0, 1, 1], [], []>} : vector<2x64xf32>, vector<64x64xf32>, vector<2x64xf32> -> vector<2x64xf32>
    %719 = vector.extract_strided_slice %718 {offsets = [0, 0], sizes = [1, 64], strides = [1, 1]} : vector<2x64xf32> to vector<1x64xf32>
    %720 = vector.extract_strided_slice %718 {offsets = [1, 0], sizes = [1, 64], strides = [1, 1]} : vector<2x64xf32> to vector<1x64xf32>
    %721 = arith.mulf %719, %719 : vector<1x64xf32>
    %722 = arith.subf %720, %721 : vector<1x64xf32>
    %cst_249 = arith.constant 0.000000e+00 : f32
    %723 = vector.broadcast %cst_249 : f32 to vector<1x64xf32>
    %724 = arith.maximumf %722, %723 : vector<1x64xf32>
    %725 = vector.extract_strided_slice %564 {offsets = [1, 0], sizes = [1, 64], strides = [1, 1]} : vector<3x64xf32> to vector<1x64xf32>
    %cst_250 = arith.constant 9.99999974E-6 : f32
    %726 = vector.broadcast %cst_250 : f32 to vector<1x64xf32>
    %727 = arith.addf %724, %726 : vector<1x64xf32>
    %728 = math.rsqrt %727 : vector<1x64xf32>
    %729 = arith.mulf %725, %728 : vector<1x64xf32>
    %730 = vector.extract_strided_slice %564 {offsets = [2, 0], sizes = [1, 64], strides = [1, 1]} : vector<3x64xf32> to vector<1x64xf32>
    %731 = arith.mulf %719, %729 : vector<1x64xf32>
    %732 = arith.subf %730, %731 : vector<1x64xf32>
    %733 = vector.broadcast %729 : vector<1x64xf32> to vector<36x64xf32>
    %734 = arith.mulf %698, %733 : vector<36x64xf32>
    %735 = vector.broadcast %732 : vector<1x64xf32> to vector<36x64xf32>
    %736 = arith.addf %734, %735 : vector<36x64xf32>
    %c0_251 = arith.constant 0 : index
    %c0_252 = arith.constant 0 : index
    %737 = vector.load %arg58[%c0_251, %c0_252] : memref<48x36xf32, #tpu.memory_space<vmem>>, vector<48x36xf32>
    %c0_253 = arith.constant 0 : index
    %c0_254 = arith.constant 0 : index
    %738 = vector.load %arg59[%c0_253, %c0_254] : memref<64x24xf32, #tpu.memory_space<vmem>>, vector<64x24xf32>
    %c0_255 = arith.constant 0 : index
    %c0_256 = arith.constant 0 : index
    %739 = vector.load %arg60[%c0_255, %c0_256] : memref<1x24xf32, #tpu.memory_space<vmem>>, vector<1x24xf32>
    %cst_257 = arith.constant dense<0.000000e+00> : vector<48x64xf32>
    %740 = tpu.matmul %737, %736, %cst_257 {dimension_numbers = #tpu.dot_dimension_numbers<[1], [0], [0], [1], [0, 0, 1, 1], [], []>} : vector<48x36xf32>, vector<36x64xf32>, vector<48x64xf32> -> vector<48x64xf32>
    %cst_258 = arith.constant dense<0.000000e+00> : vector<48x24xf32>
    %741 = tpu.matmul %740, %738, %cst_258 {dimension_numbers = #tpu.dot_dimension_numbers<[1], [0], [0], [1], [0, 0, 1, 1], [], []>} : vector<48x64xf32>, vector<64x24xf32>, vector<48x24xf32> -> vector<48x24xf32>
    %742 = vector.broadcast %739 : vector<1x24xf32> to vector<48x24xf32>
    %743 = arith.addf %741, %742 : vector<48x24xf32>
    %744 = arith.negf %743 : vector<48x24xf32>
    %745 = math.exp %744 : vector<48x24xf32>
    %cst_259 = arith.constant 1.000000e+00 : f32
    %746 = vector.broadcast %cst_259 : f32 to vector<48x24xf32>
    %747 = arith.addf %746, %745 : vector<48x24xf32>
    %748 = arith.divf %746, %747 : vector<48x24xf32>
    %c0_260 = arith.constant 0 : index
    %c0_261 = arith.constant 0 : index
    %749 = vector.load %arg61[%c0_260, %c0_261] : memref<48x24xf32, #tpu.memory_space<vmem>>, vector<48x24xf32>
    tpu.vector_store %arg61[%c0_260, %c0_261], %748 {strides = array<i32>} : memref<48x24xf32, #tpu.memory_space<vmem>>, vector<48x24xf32>,
    return
  }
  func.func @transform_0(%arg0: i32) -> (i32, i32) {
    %c0_i32 = arith.constant 0 : i32
    %c0_i32_0 = arith.constant 0 : i32
    %c0_i32_1 = arith.constant 0 : i32
    return %c0_i32, %c0_i32_0 : i32, i32
  }
  func.func @transform_1(%arg0: i32) -> (i32, i32) {
    %c0_i32 = arith.constant 0 : i32
    %c0_i32_0 = arith.constant 0 : i32
    %c0_i32_1 = arith.constant 0 : i32
    return %c0_i32, %c0_i32_0 : i32, i32
  }
  func.func @transform_2(%arg0: i32) -> (i32, i32) {
    %c0_i32 = arith.constant 0 : i32
    %c0_i32_0 = arith.constant 0 : i32
    %c0_i32_1 = arith.constant 0 : i32
    return %c0_i32, %c0_i32_0 : i32, i32
  }
  func.func @transform_3(%arg0: i32) -> (i32, i32) {
    %c0_i32 = arith.constant 0 : i32
    %c0_i32_0 = arith.constant 0 : i32
    %c0_i32_1 = arith.constant 0 : i32
    return %c0_i32, %c0_i32_0 : i32, i32
  }
  func.func @transform_4(%arg0: i32) -> (i32, i32) {
    %c0_i32 = arith.constant 0 : i32
    %c0_i32_0 = arith.constant 0 : i32
    %c0_i32_1 = arith.constant 0 : i32
    return %c0_i32, %c0_i32_0 : i32, i32
  }
  func.func @transform_5(%arg0: i32) -> (i32, i32) {
    %c0_i32 = arith.constant 0 : i32
    %c0_i32_0 = arith.constant 0 : i32
    %c0_i32_1 = arith.constant 0 : i32
    return %c0_i32, %c0_i32_0 : i32, i32
  }
  func.func @transform_6(%arg0: i32) -> (i32, i32, i32) {
    %c0_i32 = arith.constant 0 : i32
    %c0_i32_0 = arith.constant 0 : i32
    %c0_i32_1 = arith.constant 0 : i32
    %c0_i32_2 = arith.constant 0 : i32
    return %c0_i32, %c0_i32_0, %c0_i32_1 : i32, i32, i32
  }
  func.func @transform_7(%arg0: i32) -> (i32, i32, i32) {
    %c0_i32 = arith.constant 0 : i32
    %c0_i32_0 = arith.constant 0 : i32
    %c0_i32_1 = arith.constant 0 : i32
    %c0_i32_2 = arith.constant 0 : i32
    return %c0_i32, %c0_i32_0, %c0_i32_1 : i32, i32, i32
  }
  func.func @transform_8(%arg0: i32) -> (i32, i32) {
    %c0_i32 = arith.constant 0 : i32
    %c0_i32_0 = arith.constant 0 : i32
    %c0_i32_1 = arith.constant 0 : i32
    return %c0_i32, %c0_i32_0 : i32, i32
  }
  func.func @transform_9(%arg0: i32) -> (i32, i32) {
    %c0_i32 = arith.constant 0 : i32
    %c0_i32_0 = arith.constant 0 : i32
    %c0_i32_1 = arith.constant 0 : i32
    return %c0_i32, %c0_i32_0 : i32, i32
  }
  func.func @transform_10(%arg0: i32) -> (i32, i32) {
    %c0_i32 = arith.constant 0 : i32
    %c0_i32_0 = arith.constant 0 : i32
    %c0_i32_1 = arith.constant 0 : i32
    return %c0_i32, %c0_i32_0 : i32, i32
  }
  func.func @transform_11(%arg0: i32) -> (i32, i32, i32) {
    %c0_i32 = arith.constant 0 : i32
    %c0_i32_0 = arith.constant 0 : i32
    %c0_i32_1 = arith.constant 0 : i32
    %c0_i32_2 = arith.constant 0 : i32
    return %c0_i32, %c0_i32_0, %c0_i32_1 : i32, i32, i32
  }
  func.func @transform_12(%arg0: i32) -> (i32, i32) {
    %c0_i32 = arith.constant 0 : i32
    %c0_i32_0 = arith.constant 0 : i32
    %c0_i32_1 = arith.constant 0 : i32
    return %c0_i32, %c0_i32_0 : i32, i32
  }
  func.func @transform_13(%arg0: i32) -> (i32, i32) {
    %c0_i32 = arith.constant 0 : i32
    %c0_i32_0 = arith.constant 0 : i32
    %c0_i32_1 = arith.constant 0 : i32
    return %c0_i32, %c0_i32_0 : i32, i32
  }
  func.func @transform_14(%arg0: i32) -> (i32, i32) {
    %c0_i32 = arith.constant 0 : i32
    %c0_i32_0 = arith.constant 0 : i32
    %c0_i32_1 = arith.constant 0 : i32
    return %c0_i32, %c0_i32_0 : i32, i32
  }
  func.func @transform_15(%arg0: i32) -> (i32, i32) {
    %c0_i32 = arith.constant 0 : i32
    %c0_i32_0 = arith.constant 0 : i32
    %c0_i32_1 = arith.constant 0 : i32
    return %c0_i32, %c0_i32_0 : i32, i32
  }
  func.func @transform_16(%arg0: i32) -> (i32, i32) {
    %c0_i32 = arith.constant 0 : i32
    %c0_i32_0 = arith.constant 0 : i32
    %c0_i32_1 = arith.constant 0 : i32
    return %c0_i32, %c0_i32_0 : i32, i32
  }
  func.func @transform_17(%arg0: i32) -> (i32, i32) {
    %c0_i32 = arith.constant 0 : i32
    %c0_i32_0 = arith.constant 0 : i32
    %c0_i32_1 = arith.constant 0 : i32
    return %c0_i32, %c0_i32_0 : i32, i32
  }
  func.func @transform_18(%arg0: i32) -> (i32, i32) {
    %c0_i32 = arith.constant 0 : i32
    %c0_i32_0 = arith.constant 0 : i32
    %c0_i32_1 = arith.constant 0 : i32
    return %c0_i32, %c0_i32_0 : i32, i32
  }
  func.func @transform_19(%arg0: i32) -> (i32, i32) {
    %c0_i32 = arith.constant 0 : i32
    %c0_i32_0 = arith.constant 0 : i32
    %c0_i32_1 = arith.constant 0 : i32
    return %c0_i32, %c0_i32_0 : i32, i32
  }
  func.func @transform_20(%arg0: i32) -> (i32, i32, i32) {
    %c0_i32 = arith.constant 0 : i32
    %c0_i32_0 = arith.constant 0 : i32
    %c0_i32_1 = arith.constant 0 : i32
    %c0_i32_2 = arith.constant 0 : i32
    return %c0_i32, %c0_i32_0, %c0_i32_1 : i32, i32, i32
  }
  func.func @transform_21(%arg0: i32) -> (i32, i32, i32) {
    %c0_i32 = arith.constant 0 : i32
    %c0_i32_0 = arith.constant 0 : i32
    %c0_i32_1 = arith.constant 0 : i32
    %c0_i32_2 = arith.constant 0 : i32
    return %c0_i32, %c0_i32_0, %c0_i32_1 : i32, i32, i32
  }
  func.func @transform_22(%arg0: i32) -> (i32, i32) {
    %c0_i32 = arith.constant 0 : i32
    %c0_i32_0 = arith.constant 0 : i32
    %c0_i32_1 = arith.constant 0 : i32
    return %c0_i32, %c0_i32_0 : i32, i32
  }
  func.func @transform_23(%arg0: i32) -> (i32, i32) {
    %c0_i32 = arith.constant 0 : i32
    %c0_i32_0 = arith.constant 0 : i32
    %c0_i32_1 = arith.constant 0 : i32
    return %c0_i32, %c0_i32_0 : i32, i32
  }
  func.func @transform_24(%arg0: i32) -> (i32, i32) {
    %c0_i32 = arith.constant 0 : i32
    %c0_i32_0 = arith.constant 0 : i32
    %c0_i32_1 = arith.constant 0 : i32
    return %c0_i32, %c0_i32_0 : i32, i32
  }
  func.func @transform_25(%arg0: i32) -> (i32, i32, i32) {
    %c0_i32 = arith.constant 0 : i32
    %c0_i32_0 = arith.constant 0 : i32
    %c0_i32_1 = arith.constant 0 : i32
    %c0_i32_2 = arith.constant 0 : i32
    return %c0_i32, %c0_i32_0, %c0_i32_1 : i32, i32, i32
  }
  func.func @transform_26(%arg0: i32) -> (i32, i32) {
    %c0_i32 = arith.constant 0 : i32
    %c0_i32_0 = arith.constant 0 : i32
    %c0_i32_1 = arith.constant 0 : i32
    return %c0_i32, %c0_i32_0 : i32, i32
  }
  func.func @transform_27(%arg0: i32) -> (i32, i32) {
    %c0_i32 = arith.constant 0 : i32
    %c0_i32_0 = arith.constant 0 : i32
    %c0_i32_1 = arith.constant 0 : i32
    return %c0_i32, %c0_i32_0 : i32, i32
  }
  func.func @transform_28(%arg0: i32) -> (i32, i32) {
    %c0_i32 = arith.constant 0 : i32
    %c0_i32_0 = arith.constant 0 : i32
    %c0_i32_1 = arith.constant 0 : i32
    return %c0_i32, %c0_i32_0 : i32, i32
  }
  func.func @transform_29(%arg0: i32) -> (i32, i32) {
    %c0_i32 = arith.constant 0 : i32
    %c0_i32_0 = arith.constant 0 : i32
    %c0_i32_1 = arith.constant 0 : i32
    return %c0_i32, %c0_i32_0 : i32, i32
  }
  func.func @transform_30(%arg0: i32) -> (i32, i32) {
    %c0_i32 = arith.constant 0 : i32
    %c0_i32_0 = arith.constant 0 : i32
    %c0_i32_1 = arith.constant 0 : i32
    return %c0_i32, %c0_i32_0 : i32, i32
  }
  func.func @transform_31(%arg0: i32) -> (i32, i32) {
    %c0_i32 = arith.constant 0 : i32
    %c0_i32_0 = arith.constant 0 : i32
    %c0_i32_1 = arith.constant 0 : i32
    return %c0_i32, %c0_i32_0 : i32, i32
  }
  func.func @transform_32(%arg0: i32) -> (i32, i32) {
    %c0_i32 = arith.constant 0 : i32
    %c0_i32_0 = arith.constant 0 : i32
    %c0_i32_1 = arith.constant 0 : i32
    return %c0_i32, %c0_i32_0 : i32, i32
  }
  func.func @transform_33(%arg0: i32) -> (i32, i32) {
    %c0_i32 = arith.constant 0 : i32
    %c0_i32_0 = arith.constant 0 : i32
    %c0_i32_1 = arith.constant 0 : i32
    return %c0_i32, %c0_i32_0 : i32, i32
  }
  func.func @transform_34(%arg0: i32) -> (i32, i32, i32) {
    %c0_i32 = arith.constant 0 : i32
    %c0_i32_0 = arith.constant 0 : i32
    %c0_i32_1 = arith.constant 0 : i32
    %c0_i32_2 = arith.constant 0 : i32
    return %c0_i32, %c0_i32_0, %c0_i32_1 : i32, i32, i32
  }
  func.func @transform_35(%arg0: i32) -> (i32, i32, i32) {
    %c0_i32 = arith.constant 0 : i32
    %c0_i32_0 = arith.constant 0 : i32
    %c0_i32_1 = arith.constant 0 : i32
    %c0_i32_2 = arith.constant 0 : i32
    return %c0_i32, %c0_i32_0, %c0_i32_1 : i32, i32, i32
  }
  func.func @transform_36(%arg0: i32) -> (i32, i32) {
    %c0_i32 = arith.constant 0 : i32
    %c0_i32_0 = arith.constant 0 : i32
    %c0_i32_1 = arith.constant 0 : i32
    return %c0_i32, %c0_i32_0 : i32, i32
  }
  func.func @transform_37(%arg0: i32) -> (i32, i32) {
    %c0_i32 = arith.constant 0 : i32
    %c0_i32_0 = arith.constant 0 : i32
    %c0_i32_1 = arith.constant 0 : i32
    return %c0_i32, %c0_i32_0 : i32, i32
  }
  func.func @transform_38(%arg0: i32) -> (i32, i32) {
    %c0_i32 = arith.constant 0 : i32
    %c0_i32_0 = arith.constant 0 : i32
    %c0_i32_1 = arith.constant 0 : i32
    return %c0_i32, %c0_i32_0 : i32, i32
  }
  func.func @transform_39(%arg0: i32) -> (i32, i32, i32) {
    %c0_i32 = arith.constant 0 : i32
    %c0_i32_0 = arith.constant 0 : i32
    %c0_i32_1 = arith.constant 0 : i32
    %c0_i32_2 = arith.constant 0 : i32
    return %c0_i32, %c0_i32_0, %c0_i32_1 : i32, i32, i32
  }
  func.func @transform_40(%arg0: i32) -> (i32, i32) {
    %c0_i32 = arith.constant 0 : i32
    %c0_i32_0 = arith.constant 0 : i32
    %c0_i32_1 = arith.constant 0 : i32
    return %c0_i32, %c0_i32_0 : i32, i32
  }
  func.func @transform_41(%arg0: i32) -> (i32, i32) {
    %c0_i32 = arith.constant 0 : i32
    %c0_i32_0 = arith.constant 0 : i32
    %c0_i32_1 = arith.constant 0 : i32
    return %c0_i32, %c0_i32_0 : i32, i32
  }
  func.func @transform_42(%arg0: i32) -> (i32, i32) {
    %c0_i32 = arith.constant 0 : i32
    %c0_i32_0 = arith.constant 0 : i32
    %c0_i32_1 = arith.constant 0 : i32
    return %c0_i32, %c0_i32_0 : i32, i32
  }
  func.func @transform_43(%arg0: i32) -> (i32, i32) {
    %c0_i32 = arith.constant 0 : i32
    %c0_i32_0 = arith.constant 0 : i32
    %c0_i32_1 = arith.constant 0 : i32
    return %c0_i32, %c0_i32_0 : i32, i32
  }
  func.func @transform_44(%arg0: i32) -> (i32, i32) {
    %c0_i32 = arith.constant 0 : i32
    %c0_i32_0 = arith.constant 0 : i32
    %c0_i32_1 = arith.constant 0 : i32
    return %c0_i32, %c0_i32_0 : i32, i32
  }
  func.func @transform_45(%arg0: i32) -> (i32, i32) {
    %c0_i32 = arith.constant 0 : i32
    %c0_i32_0 = arith.constant 0 : i32
    %c0_i32_1 = arith.constant 0 : i32
    return %c0_i32, %c0_i32_0 : i32, i32
  }
  func.func @transform_46(%arg0: i32) -> (i32, i32) {
    %c0_i32 = arith.constant 0 : i32
    %c0_i32_0 = arith.constant 0 : i32
    %c0_i32_1 = arith.constant 0 : i32
    return %c0_i32, %c0_i32_0 : i32, i32
  }
  func.func @transform_47(%arg0: i32) -> (i32, i32) {
    %c0_i32 = arith.constant 0 : i32
    %c0_i32_0 = arith.constant 0 : i32
    %c0_i32_1 = arith.constant 0 : i32
    return %c0_i32, %c0_i32_0 : i32, i32
  }
  func.func @transform_48(%arg0: i32) -> (i32, i32, i32) {
    %c0_i32 = arith.constant 0 : i32
    %c0_i32_0 = arith.constant 0 : i32
    %c0_i32_1 = arith.constant 0 : i32
    %c0_i32_2 = arith.constant 0 : i32
    return %c0_i32, %c0_i32_0, %c0_i32_1 : i32, i32, i32
  }
  func.func @transform_49(%arg0: i32) -> (i32, i32, i32) {
    %c0_i32 = arith.constant 0 : i32
    %c0_i32_0 = arith.constant 0 : i32
    %c0_i32_1 = arith.constant 0 : i32
    %c0_i32_2 = arith.constant 0 : i32
    return %c0_i32, %c0_i32_0, %c0_i32_1 : i32, i32, i32
  }
  func.func @transform_50(%arg0: i32) -> (i32, i32) {
    %c0_i32 = arith.constant 0 : i32
    %c0_i32_0 = arith.constant 0 : i32
    %c0_i32_1 = arith.constant 0 : i32
    return %c0_i32, %c0_i32_0 : i32, i32
  }
  func.func @transform_51(%arg0: i32) -> (i32, i32) {
    %c0_i32 = arith.constant 0 : i32
    %c0_i32_0 = arith.constant 0 : i32
    %c0_i32_1 = arith.constant 0 : i32
    return %c0_i32, %c0_i32_0 : i32, i32
  }
  func.func @transform_52(%arg0: i32) -> (i32, i32) {
    %c0_i32 = arith.constant 0 : i32
    %c0_i32_0 = arith.constant 0 : i32
    %c0_i32_1 = arith.constant 0 : i32
    return %c0_i32, %c0_i32_0 : i32, i32
  }
  func.func @transform_53(%arg0: i32) -> (i32, i32, i32) {
    %c0_i32 = arith.constant 0 : i32
    %c0_i32_0 = arith.constant 0 : i32
    %c0_i32_1 = arith.constant 0 : i32
    %c0_i32_2 = arith.constant 0 : i32
    return %c0_i32, %c0_i32_0, %c0_i32_1 : i32, i32, i32
  }
  func.func @transform_54(%arg0: i32) -> (i32, i32) {
    %c0_i32 = arith.constant 0 : i32
    %c0_i32_0 = arith.constant 0 : i32
    %c0_i32_1 = arith.constant 0 : i32
    return %c0_i32, %c0_i32_0 : i32, i32
  }
  func.func @transform_55(%arg0: i32) -> (i32, i32) {
    %c0_i32 = arith.constant 0 : i32
    %c0_i32_0 = arith.constant 0 : i32
    %c0_i32_1 = arith.constant 0 : i32
    return %c0_i32, %c0_i32_0 : i32, i32
  }
  func.func @transform_56(%arg0: i32) -> (i32, i32) {
    %c0_i32 = arith.constant 0 : i32
    %c0_i32_0 = arith.constant 0 : i32
    %c0_i32_1 = arith.constant 0 : i32
    return %c0_i32, %c0_i32_0 : i32, i32
  }
  func.func @transform_57(%arg0: i32) -> (i32, i32) {
    %c0_i32 = arith.constant 0 : i32
    %c0_i32_0 = arith.constant 0 : i32
    %c0_i32_1 = arith.constant 0 : i32
    return %c0_i32, %c0_i32_0 : i32, i32
  }
  func.func @transform_58(%arg0: i32) -> (i32, i32) {
    %c0_i32 = arith.constant 0 : i32
    %c0_i32_0 = arith.constant 0 : i32
    %c0_i32_1 = arith.constant 0 : i32
    return %c0_i32, %c0_i32_0 : i32, i32
  }
  func.func @transform_59(%arg0: i32) -> (i32, i32) {
    %c0_i32 = arith.constant 0 : i32
    %c0_i32_0 = arith.constant 0 : i32
    %c0_i32_1 = arith.constant 0 : i32
    return %c0_i32, %c0_i32_0 : i32, i32
  }
  func.func @transform_60(%arg0: i32) -> (i32, i32) {
    %c0_i32 = arith.constant 0 : i32
    %c0_i32_0 = arith.constant 0 : i32
    %c0_i32_1 = arith.constant 0 : i32
    return %c0_i32, %c0_i32_0 : i32, i32
  }
}

</mosaic_0001>

<llo_original>
// kernel: decoder_forward.1
$region0: #{decoder_forward.1}
  #allocation0 [shape = 'u32[]', space=smem, size = 0x4, offset = 0x4, fixed_abs, tag = 'smem constant byte address 0x4 - core index']
  #allocation1 [shape = 'u32[144,128]{1,0:T(1,128)}', space=vmem, size = 0x12000, scoped, tag = 'internal scratch']
  %s0 = inlined_call_operand.smem [shape: u32[61], index: -1, kind: input, shape index: {}]
  %s1 = sld [smem:[%s0]]
  %s2 = scalar_lea.smem %s0, 1
  %s3 = sld [smem:[%s2]]
  %s4 = scalar_lea.smem %s0, 2
  %s5 = sld [smem:[%s4]]
  %s6 = scalar_lea.smem %s0, 3
  %s7 = sld [smem:[%s6]]
  %s8 = scalar_lea.smem %s0, 4
  %s9 = sld [smem:[%s8]]
  %s10 = scalar_lea.smem %s0, 5
  %s11 = sld [smem:[%s10]]
  %s12 = scalar_lea.smem %s0, 6
  %s13 = sld [smem:[%s12]]
  %s14 = scalar_lea.smem %s0, 7
  %s15 = sld [smem:[%s14]]
  %s16 = scalar_lea.smem %s0, 8
  %s17 = sld [smem:[%s16]]
  %s18 = scalar_lea.smem %s0, 9
  %s19 = sld [smem:[%s18]]
  %s20 = scalar_lea.smem %s0, 10
  %s21 = sld [smem:[%s20]]
  %s22 = scalar_lea.smem %s0, 11
  %s23 = sld [smem:[%s22]]
  %s24 = scalar_lea.smem %s0, 12
  %s25 = sld [smem:[%s24]]
  %s26 = scalar_lea.smem %s0, 13
  %s27 = sld [smem:[%s26]]
  %s28 = scalar_lea.smem %s0, 14
  %s29 = sld [smem:[%s28]]
  %s30 = scalar_lea.smem %s0, 15
  %s31 = sld [smem:[%s30]]
  %s32 = scalar_lea.smem %s0, 16
  %s33 = sld [smem:[%s32]]
  %s34 = scalar_lea.smem %s0, 17
  %s35 = sld [smem:[%s34]]
  %s36 = scalar_lea.smem %s0, 18
  %s37 = sld [smem:[%s36]]
  %s38 = scalar_lea.smem %s0, 19
  %s39 = sld [smem:[%s38]]
  %s40 = scalar_lea.smem %s0, 20
  %s41 = sld [smem:[%s40]]
  %s42 = scalar_lea.smem %s0, 21
  %s43 = sld [smem:[%s42]]
  %s44 = scalar_lea.smem %s0, 22
  %s45 = sld [smem:[%s44]]
  %s46 = scalar_lea.smem %s0, 23
  %s47 = sld [smem:[%s46]]
  %s48 = scalar_lea.smem %s0, 24
  %s49 = sld [smem:[%s48]]
  %s50 = scalar_lea.smem %s0, 25
  %s51 = sld [smem:[%s50]]
  %s52 = scalar_lea.smem %s0, 26
  %s53 = sld [smem:[%s52]]
  %s54 = scalar_lea.smem %s0, 27
  %s55 = sld [smem:[%s54]]
  %s56 = scalar_lea.smem %s0, 28
  %s57 = sld [smem:[%s56]]
  %s58 = scalar_lea.smem %s0, 29
  %s59 = sld [smem:[%s58]]
  %s60 = scalar_lea.smem %s0, 30
  %s61 = sld [smem:[%s60]]
  %s62 = scalar_lea.smem %s0, 31
  %s63 = sld [smem:[%s62]]
  %s64 = scalar_lea.smem %s0, 32
  %s65 = sld [smem:[%s64]]
  %s66 = scalar_lea.smem %s0, 33
  %s67 = sld [smem:[%s66]]
  %s68 = scalar_lea.smem %s0, 34
  %s69 = sld [smem:[%s68]]
  %s70 = scalar_lea.smem %s0, 35
  %s71 = sld [smem:[%s70]]
  %s72 = scalar_lea.smem %s0, 36
  %s73 = sld [smem:[%s72]]
  %s74 = scalar_lea.smem %s0, 37
  %s75 = sld [smem:[%s74]]
  %s76 = scalar_lea.smem %s0, 38
  %s77 = sld [smem:[%s76]]
  %s78 = scalar_lea.smem %s0, 39
  %s79 = sld [smem:[%s78]]
  %s80 = scalar_lea.smem %s0, 40
  %s81 = sld [smem:[%s80]]
  %s82 = scalar_lea.smem %s0, 41
  %s83 = sld [smem:[%s82]]
  %s84 = scalar_lea.smem %s0, 42
  %s85 = sld [smem:[%s84]]
  %s86 = scalar_lea.smem %s0, 43
  %s87 = sld [smem:[%s86]]
  %s88 = scalar_lea.smem %s0, 44
  %s89 = sld [smem:[%s88]]
  %s90 = scalar_lea.smem %s0, 45
  %s91 = sld [smem:[%s90]]
  %s92 = scalar_lea.smem %s0, 46
  %s93 = sld [smem:[%s92]]
  %s94 = scalar_lea.smem %s0, 47
  %s95 = sld [smem:[%s94]]
  %s96 = scalar_lea.smem %s0, 48
  %s97 = sld [smem:[%s96]]
  %s98 = scalar_lea.smem %s0, 49
  %s99 = sld [smem:[%s98]]
  %s100 = scalar_lea.smem %s0, 50
  %s101 = sld [smem:[%s100]]
  %s102 = scalar_lea.smem %s0, 51
  %s103 = sld [smem:[%s102]]
  %s104 = scalar_lea.smem %s0, 52
  %s105 = sld [smem:[%s104]]
  %s106 = scalar_lea.smem %s0, 53
  %s107 = sld [smem:[%s106]]
  %s108 = scalar_lea.smem %s0, 54
  %s109 = sld [smem:[%s108]]
  %s110 = scalar_lea.smem %s0, 55
  %s111 = sld [smem:[%s110]]
  %s112 = scalar_lea.smem %s0, 56
  %s113 = sld [smem:[%s112]]
  %s114 = scalar_lea.smem %s0, 57
  %s115 = sld [smem:[%s114]]
  %s116 = scalar_lea.smem %s0, 58
  %s117 = sld [smem:[%s116]]
  %s118 = scalar_lea.smem %s0, 59
  %s119 = sld [smem:[%s118]]
  %s120 = scalar_lea.smem %s0, 60
  %s121 = sld [smem:[%s120]]
  %s122 = sld [smem:[#allocation0]]
  $region250: #{decoder_forward.1} parent=0
    _
  %s124 = ssub.s32 1, %s122
  %s125 = scalar_select 0, %s124, %s122
  $region1: #{decoder_forward.1} parent=0
    #allocation2 [shape = 'u8[24576]{0}', space=vmem, size = 0x6000, scoped, tag = 'output window, operand 0, single buffered']
    #allocation3 [shape = 's32[1]{0}', space=sflag, size = 0x4, scoped, tag = 'scoped memory for decoder_forward.1']
    %126 = vsyncpa [#allocation3], 0
    // Predicated region
    $region2: #{decoder_forward.1} parent=1 // pred_check
      _
    $region3: #{decoder_forward.1} parent=1 // pred_check_branch
      %128 = sbr.rel (0) target = $region5
    $region4: #{decoder_forward.1} parent=1 // pred_region
      _
    $region5: #{decoder_forward.1} parent=1 // pred_fallthru
      _
    // Predicated region
    $region6: #{decoder_forward.1} parent=1 // pred_check
      _
    $region7: #{decoder_forward.1} parent=1 // pred_check_branch
      %130 = sbr.rel (0) target = $region9
    $region8: #{decoder_forward.1} parent=1 // pred_region
      _
    $region9: #{decoder_forward.1} parent=1 // pred_fallthru
      _
    // Predicated region
    $region10: #{decoder_forward.1} parent=1 // pred_check
      _
    $region11: #{decoder_forward.1} parent=1 // pred_check_branch
      %132 = sbr.rel (0) target = $region13
    $region12: #{decoder_forward.1} parent=1 // pred_region
      _
    $region13: #{decoder_forward.1} parent=1 // pred_fallthru
      _
    // Predicated region
    $region14: #{decoder_forward.1} parent=1 // pred_check
      _
    $region15: #{decoder_forward.1} parent=1 // pred_check_branch
      %134 = sbr.rel (0) target = $region17
    $region16: #{decoder_forward.1} parent=1 // pred_region
      _
    $region17: #{decoder_forward.1} parent=1 // pred_fallthru
      _
    // Predicated region
    $region18: #{decoder_forward.1} parent=1 // pred_check
      _
    $region19: #{decoder_forward.1} parent=1 // pred_check_branch
      %136 = sbr.rel (0) target = $region21
    $region20: #{decoder_forward.1} parent=1 // pred_region
      _
    $region21: #{decoder_forward.1} parent=1 // pred_fallthru
      _
    // Predicated region
    $region22: #{decoder_forward.1} parent=1 // pred_check
      _
    $region23: #{decoder_forward.1} parent=1 // pred_check_branch
      %138 = sbr.rel (0) target = $region25
    $region24: #{decoder_forward.1} parent=1 // pred_region
      _
    $region25: #{decoder_forward.1} parent=1 // pred_fallthru
      _
    // Predicated region
    $region26: #{decoder_forward.1} parent=1 // pred_check
      _
    $region27: #{decoder_forward.1} parent=1 // pred_check_branch
      %140 = sbr.rel (0) target = $region29
    $region28: #{decoder_forward.1} parent=1 // pred_region
      _
    $region29: #{decoder_forward.1} parent=1 // pred_fallthru
      _
    // Predicated region
    $region30: #{decoder_forward.1} parent=1 // pred_check
      _
    $region31: #{decoder_forward.1} parent=1 // pred_check_branch
      %142 = sbr.rel (0) target = $region33
    $region32: #{decoder_forward.1} parent=1 // pred_region
      _
    $region33: #{decoder_forward.1} parent=1 // pred_fallthru
      _
    // Predicated region
    $region34: #{decoder_forward.1} parent=1 // pred_check
      _
    $region35: #{decoder_forward.1} parent=1 // pred_check_branch
      %144 = sbr.rel (0) target = $region37
    $region36: #{decoder_forward.1} parent=1 // pred_region
      _
    $region37: #{decoder_forward.1} parent=1 // pred_fallthru
      _
    // Predicated region
    $region38: #{decoder_forward.1} parent=1 // pred_check
      _
    $region39: #{decoder_forward.1} parent=1 // pred_check_branch
      %146 = sbr.rel (0) target = $region41
    $region40: #{decoder_forward.1} parent=1 // pred_region
      _
    $region41: #{decoder_forward.1} parent=1 // pred_fallthru
      _
    // Predicated region
    $region42: #{decoder_forward.1} parent=1 // pred_check
      _
    $region43: #{decoder_forward.1} parent=1 // pred_check_branch
      %148 = sbr.rel (0) target = $region45
    $region44: #{decoder_forward.1} parent=1 // pred_region
      _
    $region45: #{decoder_forward.1} parent=1 // pred_fallthru
      _
    // Predicated region
    $region46: #{decoder_forward.1} parent=1 // pred_check
      _
    $region47: #{decoder_forward.1} parent=1 // pred_check_branch
      %150 = sbr.rel (0) target = $region49
    $region48: #{decoder_forward.1} parent=1 // pred_region
      _
    $region49: #{decoder_forward.1} parent=1 // pred_fallthru
      _
    // Predicated region
    $region50: #{decoder_forward.1} parent=1 // pred_check
      _
    $region51: #{decoder_forward.1} parent=1 // pred_check_branch
      %152 = sbr.rel (0) target = $region53
    $region52: #{decoder_forward.1} parent=1 // pred_region
      _
    $region53: #{decoder_forward.1} parent=1 // pred_fallthru
      _
    // Predicated region
    $region54: #{decoder_forward.1} parent=1 // pred_check
      _
    $region55: #{decoder_forward.1} parent=1 // pred_check_branch
      %154 = sbr.rel (0) target = $region57
    $region56: #{decoder_forward.1} parent=1 // pred_region
      _
    $region57: #{decoder_forward.1} parent=1 // pred_fallthru
      _
    // Predicated region
    $region58: #{decoder_forward.1} parent=1 // pred_check
      _
    $region59: #{decoder_forward.1} parent=1 // pred_check_branch
      %156 = sbr.rel (0) target = $region61
    $region60: #{decoder_forward.1} parent=1 // pred_region
      _
    $region61: #{decoder_forward.1} parent=1 // pred_fallthru
      _
    // Predicated region
    $region62: #{decoder_forward.1} parent=1 // pred_check
      _
    $region63: #{decoder_forward.1} parent=1 // pred_check_branch
      %158 = sbr.rel (0) target = $region65
    $region64: #{decoder_forward.1} parent=1 // pred_region
      _
    $region65: #{decoder_forward.1} parent=1 // pred_fallthru
      _
    // Predicated region
    $region66: #{decoder_forward.1} parent=1 // pred_check
      _
    $region67: #{decoder_forward.1} parent=1 // pred_check_branch
      %160 = sbr.rel (0) target = $region69
    $region68: #{decoder_forward.1} parent=1 // pred_region
      _
    $region69: #{decoder_forward.1} parent=1 // pred_fallthru
      _
    // Predicated region
    $region70: #{decoder_forward.1} parent=1 // pred_check
      _
    $region71: #{decoder_forward.1} parent=1 // pred_check_branch
      %162 = sbr.rel (0) target = $region73
    $region72: #{decoder_forward.1} parent=1 // pred_region
      _
    $region73: #{decoder_forward.1} parent=1 // pred_fallthru
      _
    // Predicated region
    $region74: #{decoder_forward.1} parent=1 // pred_check
      _
    $region75: #{decoder_forward.1} parent=1 // pred_check_branch
      %164 = sbr.rel (0) target = $region77
    $region76: #{decoder_forward.1} parent=1 // pred_region
      _
    $region77: #{decoder_forward.1} parent=1 // pred_fallthru
      _
    // Predicated region
    $region78: #{decoder_forward.1} parent=1 // pred_check
      _
    $region79: #{decoder_forward.1} parent=1 // pred_check_branch
      %166 = sbr.rel (0) target = $region81
    $region80: #{decoder_forward.1} parent=1 // pred_region
      _
    $region81: #{decoder_forward.1} parent=1 // pred_fallthru
      _
    // Predicated region
    $region82: #{decoder_forward.1} parent=1 // pred_check
      _
    $region83: #{decoder_forward.1} parent=1 // pred_check_branch
      %168 = sbr.rel (0) target = $region85
    $region84: #{decoder_forward.1} parent=1 // pred_region
      _
    $region85: #{decoder_forward.1} parent=1 // pred_fallthru
      _
    // Predicated region
    $region86: #{decoder_forward.1} parent=1 // pred_check
      _
    $region87: #{decoder_forward.1} parent=1 // pred_check_branch
      %170 = sbr.rel (0) target = $region89
    $region88: #{decoder_forward.1} parent=1 // pred_region
      _
    $region89: #{decoder_forward.1} parent=1 // pred_fallthru
      _
    // Predicated region
    $region90: #{decoder_forward.1} parent=1 // pred_check
      _
    $region91: #{decoder_forward.1} parent=1 // pred_check_branch
      %172 = sbr.rel (0) target = $region93
    $region92: #{decoder_forward.1} parent=1 // pred_region
      _
    $region93: #{decoder_forward.1} parent=1 // pred_fallthru
      _
    // Predicated region
    $region94: #{decoder_forward.1} parent=1 // pred_check
      _
    $region95: #{decoder_forward.1} parent=1 // pred_check_branch
      %174 = sbr.rel (0) target = $region97
    $region96: #{decoder_forward.1} parent=1 // pred_region
      _
    $region97: #{decoder_forward.1} parent=1 // pred_fallthru
      _
    // Predicated region
    $region98: #{decoder_forward.1} parent=1 // pred_check
      _
    $region99: #{decoder_forward.1} parent=1 // pred_check_branch
      %176 = sbr.rel (0) target = $region101
    $region100: #{decoder_forward.1} parent=1 // pred_region
      _
    $region101: #{decoder_forward.1} parent=1 // pred_fallthru
      _
    // Predicated region
    $region102: #{decoder_forward.1} parent=1 // pred_check
      _
    $region103: #{decoder_forward.1} parent=1 // pred_check_branch
      %178 = sbr.rel (0) target = $region105
    $region104: #{decoder_forward.1} parent=1 // pred_region
      _
    $region105: #{decoder_forward.1} parent=1 // pred_fallthru
      _
    // Predicated region
    $region106: #{decoder_forward.1} parent=1 // pred_check
      _
    $region107: #{decoder_forward.1} parent=1 // pred_check_branch
      %180 = sbr.rel (0) target = $region109
    $region108: #{decoder_forward.1} parent=1 // pred_region
      _
    $region109: #{decoder_forward.1} parent=1 // pred_fallthru
      _
    // Predicated region
    $region110: #{decoder_forward.1} parent=1 // pred_check
      _
    $region111: #{decoder_forward.1} parent=1 // pred_check_branch
      %182 = sbr.rel (0) target = $region113
    $region112: #{decoder_forward.1} parent=1 // pred_region
      _
    $region113: #{decoder_forward.1} parent=1 // pred_fallthru
      _
    // Predicated region
    $region114: #{decoder_forward.1} parent=1 // pred_check
      _
    $region115: #{decoder_forward.1} parent=1 // pred_check_branch
      %184 = sbr.rel (0) target = $region117
    $region116: #{decoder_forward.1} parent=1 // pred_region
      _
    $region117: #{decoder_forward.1} parent=1 // pred_fallthru
      _
    // Predicated region
    $region118: #{decoder_forward.1} parent=1 // pred_check
      _
    $region119: #{decoder_forward.1} parent=1 // pred_check_branch
      %186 = sbr.rel (0) target = $region121
    $region120: #{decoder_forward.1} parent=1 // pred_region
      _
    $region121: #{decoder_forward.1} parent=1 // pred_fallthru
      _
    // Predicated region
    $region122: #{decoder_forward.1} parent=1 // pred_check
      _
    $region123: #{decoder_forward.1} parent=1 // pred_check_branch
      %188 = sbr.rel (0) target = $region125
    $region124: #{decoder_forward.1} parent=1 // pred_region
      _
    $region125: #{decoder_forward.1} parent=1 // pred_fallthru
      _
    // Predicated region
    $region126: #{decoder_forward.1} parent=1 // pred_check
      _
    $region127: #{decoder_forward.1} parent=1 // pred_check_branch
      %190 = sbr.rel (0) target = $region129
    $region128: #{decoder_forward.1} parent=1 // pred_region
      _
    $region129: #{decoder_forward.1} parent=1 // pred_fallthru
      _
    // Predicated region
    $region130: #{decoder_forward.1} parent=1 // pred_check
      _
    $region131: #{decoder_forward.1} parent=1 // pred_check_branch
      %192 = sbr.rel (0) target = $region133
    $region132: #{decoder_forward.1} parent=1 // pred_region
      _
    $region133: #{decoder_forward.1} parent=1 // pred_fallthru
      _
    // Predicated region
    $region134: #{decoder_forward.1} parent=1 // pred_check
      _
    $region135: #{decoder_forward.1} parent=1 // pred_check_branch
      %194 = sbr.rel (0) target = $region137
    $region136: #{decoder_forward.1} parent=1 // pred_region
      _
    $region137: #{decoder_forward.1} parent=1 // pred_fallthru
      _
    // Predicated region
    $region138: #{decoder_forward.1} parent=1 // pred_check
      _
    $region139: #{decoder_forward.1} parent=1 // pred_check_branch
      %196 = sbr.rel (0) target = $region141
    $region140: #{decoder_forward.1} parent=1 // pred_region
      _
    $region141: #{decoder_forward.1} parent=1 // pred_fallthru
      _
    // Predicated region
    $region142: #{decoder_forward.1} parent=1 // pred_check
      _
    $region143: #{decoder_forward.1} parent=1 // pred_check_branch
      %198 = sbr.rel (0) target = $region145
    $region144: #{decoder_forward.1} parent=1 // pred_region
      _
    $region145: #{decoder_forward.1} parent=1 // pred_fallthru
      _
    // Predicated region
    $region146: #{decoder_forward.1} parent=1 // pred_check
      _
    $region147: #{decoder_forward.1} parent=1 // pred_check_branch
      %200 = sbr.rel (0) target = $region149
    $region148: #{decoder_forward.1} parent=1 // pred_region
      _
    $region149: #{decoder_forward.1} parent=1 // pred_fallthru
      _
    // Predicated region
    $region150: #{decoder_forward.1} parent=1 // pred_check
      _
    $region151: #{decoder_forward.1} parent=1 // pred_check_branch
      %202 = sbr.rel (0) target = $region153
    $region152: #{decoder_forward.1} parent=1 // pred_region
      _
    $region153: #{decoder_forward.1} parent=1 // pred_fallthru
      _
    // Predicated region
    $region154: #{decoder_forward.1} parent=1 // pred_check
      _
    $region155: #{decoder_forward.1} parent=1 // pred_check_branch
      %204 = sbr.rel (0) target = $region157
    $region156: #{decoder_forward.1} parent=1 // pred_region
      _
    $region157: #{decoder_forward.1} parent=1 // pred_fallthru
      _
    // Predicated region
    $region158: #{decoder_forward.1} parent=1 // pred_check
      _
    $region159: #{decoder_forward.1} parent=1 // pred_check_branch
      %206 = sbr.rel (0) target = $region161
    $region160: #{decoder_forward.1} parent=1 // pred_region
      _
    $region161: #{decoder_forward.1} parent=1 // pred_fallthru
      _
    // Predicated region
    $region162: #{decoder_forward.1} parent=1 // pred_check
      _
    $region163: #{decoder_forward.1} parent=1 // pred_check_branch
      %208 = sbr.rel (0) target = $region165
    $region164: #{decoder_forward.1} parent=1 // pred_region
      _
    $region165: #{decoder_forward.1} parent=1 // pred_fallthru
      _
    // Predicated region
    $region166: #{decoder_forward.1} parent=1 // pred_check
      _
    $region167: #{decoder_forward.1} parent=1 // pred_check_branch
      %210 = sbr.rel (0) target = $region169
    $region168: #{decoder_forward.1} parent=1 // pred_region
      _
    $region169: #{decoder_forward.1} parent=1 // pred_fallthru
      _
    // Predicated region
    $region170: #{decoder_forward.1} parent=1 // pred_check
      _
    $region171: #{decoder_forward.1} parent=1 // pred_check_branch
      %212 = sbr.rel (0) target = $region173
    $region172: #{decoder_forward.1} parent=1 // pred_region
      _
    $region173: #{decoder_forward.1} parent=1 // pred_fallthru
      _
    // Predicated region
    $region174: #{decoder_forward.1} parent=1 // pred_check
      _
    $region175: #{decoder_forward.1} parent=1 // pred_check_branch
      %214 = sbr.rel (0) target = $region177
    $region176: #{decoder_forward.1} parent=1 // pred_region
      _
    $region177: #{decoder_forward.1} parent=1 // pred_fallthru
      _
    // Predicated region
    $region178: #{decoder_forward.1} parent=1 // pred_check
      _
    $region179: #{decoder_forward.1} parent=1 // pred_check_branch
      %216 = sbr.rel (0) target = $region181
    $region180: #{decoder_forward.1} parent=1 // pred_region
      _
    $region181: #{decoder_forward.1} parent=1 // pred_fallthru
      _
    // Predicated region
    $region182: #{decoder_forward.1} parent=1 // pred_check
      _
    $region183: #{decoder_forward.1} parent=1 // pred_check_branch
      %218 = sbr.rel (0) target = $region185
    $region184: #{decoder_forward.1} parent=1 // pred_region
      _
    $region185: #{decoder_forward.1} parent=1 // pred_fallthru
      _
    // Predicated region
    $region186: #{decoder_forward.1} parent=1 // pred_check
      _
    $region187: #{decoder_forward.1} parent=1 // pred_check_branch
      %220 = sbr.rel (0) target = $region189
    $region188: #{decoder_forward.1} parent=1 // pred_region
      _
    $region189: #{decoder_forward.1} parent=1 // pred_fallthru
      _
    // Predicated region
    $region190: #{decoder_forward.1} parent=1 // pred_check
      _
    $region191: #{decoder_forward.1} parent=1 // pred_check_branch
      %222 = sbr.rel (0) target = $region193
    $region192: #{decoder_forward.1} parent=1 // pred_region
      _
    $region193: #{decoder_forward.1} parent=1 // pred_fallthru
      _
    // Predicated region
    $region194: #{decoder_forward.1} parent=1 // pred_check
      _
    $region195: #{decoder_forward.1} parent=1 // pred_check_branch
      %224 = sbr.rel (0) target = $region197
    $region196: #{decoder_forward.1} parent=1 // pred_region
      _
    $region197: #{decoder_forward.1} parent=1 // pred_fallthru
      _
    // Predicated region
    $region198: #{decoder_forward.1} parent=1 // pred_check
      _
    $region199: #{decoder_forward.1} parent=1 // pred_check_branch
      %226 = sbr.rel (0) target = $region201
    $region200: #{decoder_forward.1} parent=1 // pred_region
      _
    $region201: #{decoder_forward.1} parent=1 // pred_fallthru
      _
    // Predicated region
    $region202: #{decoder_forward.1} parent=1 // pred_check
      _
    $region203: #{decoder_forward.1} parent=1 // pred_check_branch
      %228 = sbr.rel (0) target = $region205
    $region204: #{decoder_forward.1} parent=1 // pred_region
      _
    $region205: #{decoder_forward.1} parent=1 // pred_fallthru
      _
    // Predicated region
    $region206: #{decoder_forward.1} parent=1 // pred_check
      _
    $region207: #{decoder_forward.1} parent=1 // pred_check_branch
      %230 = sbr.rel (0) target = $region209
    $region208: #{decoder_forward.1} parent=1 // pred_region
      _
    $region209: #{decoder_forward.1} parent=1 // pred_fallthru
      _
    // Predicated region
    $region210: #{decoder_forward.1} parent=1 // pred_check
      _
    $region211: #{decoder_forward.1} parent=1 // pred_check_branch
      %232 = sbr.rel (0) target = $region213
    $region212: #{decoder_forward.1} parent=1 // pred_region
      _
    $region213: #{decoder_forward.1} parent=1 // pred_fallthru
      _
    // Predicated region
    $region214: #{decoder_forward.1} parent=1 // pred_check
      _
    $region215: #{decoder_forward.1} parent=1 // pred_check_branch
      %234 = sbr.rel (0) target = $region217
    $region216: #{decoder_forward.1} parent=1 // pred_region
      _
    $region217: #{decoder_forward.1} parent=1 // pred_fallthru
      _
    // Predicated region
    $region218: #{decoder_forward.1} parent=1 // pred_check
      _
    $region219: #{decoder_forward.1} parent=1 // pred_check_branch
      %236 = sbr.rel (0) target = $region221
    $region220: #{decoder_forward.1} parent=1 // pred_region
      _
    $region221: #{decoder_forward.1} parent=1 // pred_fallthru
      _
    // Predicated region
    $region222: #{decoder_forward.1} parent=1 // pred_check
      _
    $region223: #{decoder_forward.1} parent=1 // pred_check_branch
      %238 = sbr.rel (0) target = $region225
    $region224: #{decoder_forward.1} parent=1 // pred_region
      _
    $region225: #{decoder_forward.1} parent=1 // pred_fallthru
      _
    // Predicated region
    $region226: #{decoder_forward.1} parent=1 // pred_check
      _
    $region227: #{decoder_forward.1} parent=1 // pred_check_branch
      %240 = sbr.rel (0) target = $region229
    $region228: #{decoder_forward.1} parent=1 // pred_region
      _
    $region229: #{decoder_forward.1} parent=1 // pred_fallthru
      _
    // Predicated region
    $region230: #{decoder_forward.1} parent=1 // pred_check
      _
    $region231: #{decoder_forward.1} parent=1 // pred_check_branch
      %242 = sbr.rel (0) target = $region233
    $region232: #{decoder_forward.1} parent=1 // pred_region
      _
    $region233: #{decoder_forward.1} parent=1 // pred_fallthru
      _
    // Predicated region
    $region234: #{decoder_forward.1} parent=1 // pred_check
      _
    $region235: #{decoder_forward.1} parent=1 // pred_check_branch
      %244 = sbr.rel (0) target = $region237
    $region236: #{decoder_forward.1} parent=1 // pred_region
      _
    $region237: #{decoder_forward.1} parent=1 // pred_fallthru
      _
    // Predicated region
    $region238: #{decoder_forward.1} parent=1 // pred_check
      _
    $region239: #{decoder_forward.1} parent=1 // pred_check_branch
      %246 = sbr.rel (0) target = $region241
    $region240: #{decoder_forward.1} parent=1 // pred_region
      _
    $region241: #{decoder_forward.1} parent=1 // pred_fallthru
      _
    %v247 = vld [vmem:[%s1] sm:$0xff]
    %v248 = vld [vmem:[%s1 + $0x8] sm:$0xff]
    %v249 = vld [vmem:[%s3] sm:$0xff]
    %v250 = vld [vmem:[%s3 + $0x8] sm:$0xff]
    %v251 = vld [vmem:[%s3 + $0x10] sm:$0xf]
    %v252 = vld [vmem:[%s3 + $0x18] sm:$0xf]
    %v253 = vld [vmem:[%s5] sm:$0xff]
    %v254 = vld [vmem:[%s5 + $0x8] sm:$0xf]
    %v255 = vld [vmem:[%s7] sm:$0xff]
    %v256 = vld [vmem:[%s7 + $0x8] sm:$0xff]
    %v257 = vld [vmem:[%s7 + $0x10] sm:$0xff]
    %v258 = vld [vmem:[%s7 + $0x18] sm:$0xff]
    %v259 = vld [vmem:[%s7 + $0x20] sm:$0xff]
    %v260 = vld [vmem:[%s7 + $0x28] sm:$0xff]
    %v261 = vld [vmem:[%s7 + $0x30] sm:$0xff]
    %v262 = vld [vmem:[%s7 + $0x38] sm:$0xff]
    %v263 = vld [vmem:[%s7 + $0x40] sm:$0xff]
    %v264 = vld [vmem:[%s7 + $0x48] sm:$0xff]
    %v265 = vld [vmem:[%s7 + $0x50] sm:$0xff]
    %v266 = vld [vmem:[%s7 + $0x58] sm:$0xff]
    %v267 = vld [vmem:[%s7 + $0x60] sm:$0xff]
    %v268 = vld [vmem:[%s7 + $0x68] sm:$0xff]
    %v269 = vld [vmem:[%s7 + $0x70] sm:$0xff]
    %v270 = vld [vmem:[%s7 + $0x78] sm:$0xff]
    %v271 = vld [vmem:[%s7 + $0x80] sm:$0xff]
    %v272 = vld [vmem:[%s7 + $0x88] sm:$0xff]
    %v273 = vld [vmem:[%s7 + $0x90] sm:$0xff]
    %v274 = vld [vmem:[%s7 + $0x98] sm:$0xff]
    %v275 = vld [vmem:[%s7 + $0xa0] sm:$0xff]
    %v276 = vld [vmem:[%s7 + $0xa8] sm:$0xff]
    %v277 = vld [vmem:[%s7 + $0xb0] sm:$0xff]
    %v278 = vld [vmem:[%s7 + $0xb8] sm:$0xff]
    %v279 = vld [vmem:[%s7 + $0xc0] sm:$0xff]
    %v280 = vld [vmem:[%s7 + $0xc8] sm:$0xff]
    %v281 = vld [vmem:[%s7 + $0xd0] sm:$0xff]
    %v282 = vld [vmem:[%s7 + $0xd8] sm:$0xff]
    %v283 = vld [vmem:[%s7 + $0xe0] sm:$0xff]
    %v284 = vld [vmem:[%s7 + $0xe8] sm:$0xff]
    %v285 = vld [vmem:[%s7 + $0xf0] sm:$0xff]
    %v286 = vld [vmem:[%s7 + $0xf8] sm:$0xff]
    %v287 = vld [vmem:[%s7 + $0x100] sm:$0xff]
    %v288 = vld [vmem:[%s7 + $0x108] sm:$0xff]
    %v289 = vld [vmem:[%s7 + $0x110] sm:$0xff]
    %v290 = vld [vmem:[%s7 + $0x118] sm:$0xff]
    %v291 = vld [vmem:[%s7 + $0x120] sm:$0xff]
    %v292 = vld [vmem:[%s7 + $0x128] sm:$0xff]
    %v293 = vld [vmem:[%s7 + $0x130] sm:$0xff]
    %v294 = vld [vmem:[%s7 + $0x138] sm:$0xff]
    %v295 = vld [vmem:[%s7 + $0x140] sm:$0xff]
    %v296 = vld [vmem:[%s7 + $0x148] sm:$0xff]
    %v297 = vld [vmem:[%s7 + $0x150] sm:$0xff]
    %v298 = vld [vmem:[%s7 + $0x158] sm:$0xff]
    %v299 = vld [vmem:[%s7 + $0x160] sm:$0xff]
    %v300 = vld [vmem:[%s7 + $0x168] sm:$0xff]
    %v301 = vld [vmem:[%s7 + $0x170] sm:$0xff]
    %v302 = vld [vmem:[%s7 + $0x178] sm:$0xff]
    %v303 = vld [vmem:[%s7 + $0x180] sm:$0xff]
    %v304 = vld [vmem:[%s7 + $0x188] sm:$0xff]
    %v305 = vld [vmem:[%s7 + $0x190] sm:$0xff]
    %v306 = vld [vmem:[%s7 + $0x198] sm:$0xff]
    %v307 = vld [vmem:[%s7 + $0x1a0] sm:$0xff]
    %v308 = vld [vmem:[%s7 + $0x1a8] sm:$0xff]
    %v309 = vld [vmem:[%s7 + $0x1b0] sm:$0xff]
    %v310 = vld [vmem:[%s7 + $0x1b8] sm:$0xff]
    %v311 = vld [vmem:[%s7 + $0x1c0] sm:$0xff]
    %v312 = vld [vmem:[%s7 + $0x1c8] sm:$0xff]
    %v313 = vld [vmem:[%s7 + $0x1d0] sm:$0xff]
    %v314 = vld [vmem:[%s7 + $0x1d8] sm:$0xff]
    %v315 = vld [vmem:[%s7 + $0x1e0] sm:$0xff]
    %v316 = vld [vmem:[%s7 + $0x1e8] sm:$0xff]
    %v317 = vld [vmem:[%s7 + $0x1f0] sm:$0xff]
    %v318 = vld [vmem:[%s7 + $0x1f8] sm:$0xff]
    %v319 = vld [vmem:[%s9] sm:$0x77]
    %v320 = vld [vmem:[%s11] sm:$0xff]
    %v321 = vld [vmem:[%s11 + $0x8] sm:$0xff]
    %v322 = vld [vmem:[%s11 + $0x10] sm:$0xff]
    %v323 = vld [vmem:[%s11 + $0x18] sm:$0xff]
    %v324 = vld [vmem:[%s11 + $0x20] sm:$0xff]
    %v325 = vld [vmem:[%s11 + $0x28] sm:$0xff]
    %v326 = vld [vmem:[%s11 + $0x30] sm:$0xff]
    %v327 = vld [vmem:[%s11 + $0x38] sm:$0xff]
    %v328 = vld [vmem:[%s11 + $0x40] sm:$0xff]
    %v329 = vld [vmem:[%s11 + $0x48] sm:$0xff]
    %v330 = vld [vmem:[%s11 + $0x50] sm:$0xff]
    %v331 = vld [vmem:[%s11 + $0x58] sm:$0xff]
    %v332 = vld [vmem:[%s11 + $0x60] sm:$0xff]
    %v333 = vld [vmem:[%s11 + $0x68] sm:$0xff]
    %v334 = vld [vmem:[%s11 + $0x70] sm:$0xff]
    %v335 = vld [vmem:[%s11 + $0x78] sm:$0xff]
    %v336 = vld [vmem:[%s11 + $0x80] sm:$0xff]
    %v337 = vld [vmem:[%s11 + $0x88] sm:$0xff]
    %v338 = vld [vmem:[%s11 + $0x90] sm:$0xff]
    %v339 = vld [vmem:[%s11 + $0x98] sm:$0xff]
    %v340 = vld [vmem:[%s11 + $0xa0] sm:$0xff]
    %v341 = vld [vmem:[%s11 + $0xa8] sm:$0xff]
    %v342 = vld [vmem:[%s11 + $0xb0] sm:$0xff]
    %v343 = vld [vmem:[%s11 + $0xb8] sm:$0xff]
    %v344 = vld [vmem:[%s11 + $0xc0] sm:$0xff]
    %v345 = vld [vmem:[%s11 + $0xc8] sm:$0xff]
    %v346 = vld [vmem:[%s11 + $0xd0] sm:$0xff]
    %v347 = vld [vmem:[%s11 + $0xd8] sm:$0xff]
    %v348 = vld [vmem:[%s11 + $0xe0] sm:$0xff]
    %v349 = vld [vmem:[%s11 + $0xe8] sm:$0xff]
    %v350 = vld [vmem:[%s11 + $0xf0] sm:$0xff]
    %v351 = vld [vmem:[%s11 + $0xf8] sm:$0xff]
    %v352 = vld [vmem:[%s11 + $0x100] sm:$0xff]
    %v353 = vld [vmem:[%s11 + $0x108] sm:$0xff]
    %v354 = vld [vmem:[%s11 + $0x110] sm:$0xff]
    %v355 = vld [vmem:[%s11 + $0x118] sm:$0xff]
    %v356 = vld [vmem:[%s11 + $0x120] sm:$0xff]
    %v357 = vld [vmem:[%s11 + $0x128] sm:$0xff]
    %v358 = vld [vmem:[%s11 + $0x130] sm:$0xff]
    %v359 = vld [vmem:[%s11 + $0x138] sm:$0xff]
    %v360 = vld [vmem:[%s11 + $0x140] sm:$0xff]
    %v361 = vld [vmem:[%s11 + $0x148] sm:$0xff]
    %v362 = vld [vmem:[%s11 + $0x150] sm:$0xff]
    %v363 = vld [vmem:[%s11 + $0x158] sm:$0xff]
    %v364 = vld [vmem:[%s11 + $0x160] sm:$0xff]
    %v365 = vld [vmem:[%s11 + $0x168] sm:$0xff]
    %v366 = vld [vmem:[%s11 + $0x170] sm:$0xff]
    %v367 = vld [vmem:[%s11 + $0x178] sm:$0xff]
    %v368 = vld [vmem:[%s13] sm:$0xff]
    %v369 = vld [vmem:[%s13 + $0x8] sm:$0xff]
    %v370 = vld [vmem:[%s13 + $0x10] sm:$0xff]
    %v371 = vld [vmem:[%s13 + $0x18] sm:$0xff]
    %v372 = vld [vmem:[%s13 + $0x20] sm:$0xff]
    %v373 = vld [vmem:[%s13 + $0x28] sm:$0xff]
    %v374 = vld [vmem:[%s13 + $0x30] sm:$0xff]
    %v375 = vld [vmem:[%s13 + $0x38] sm:$0xff]
    %v376 = vld [vmem:[%s13 + $0x40] sm:$0xff]
    %v377 = vld [vmem:[%s13 + $0x48] sm:$0xff]
    %v378 = vld [vmem:[%s13 + $0x50] sm:$0xff]
    %v379 = vld [vmem:[%s13 + $0x58] sm:$0xff]
    %v380 = vld [vmem:[%s13 + $0x60] sm:$0xff]
    %v381 = vld [vmem:[%s13 + $0x68] sm:$0xff]
    %v382 = vld [vmem:[%s13 + $0x70] sm:$0xff]
    %v383 = vld [vmem:[%s13 + $0x78] sm:$0xff]
    %v384 = vld [vmem:[%s13 + $0x80] sm:$0xff]
    %v385 = vld [vmem:[%s13 + $0x88] sm:$0xff]
    %v386 = vld [vmem:[%s13 + $0x90] sm:$0xff]
    %v387 = vld [vmem:[%s13 + $0x98] sm:$0xff]
    %v388 = vld [vmem:[%s13 + $0xa0] sm:$0xff]
    %v389 = vld [vmem:[%s13 + $0xa8] sm:$0xff]
    %v390 = vld [vmem:[%s13 + $0xb0] sm:$0xff]
    %v391 = vld [vmem:[%s13 + $0xb8] sm:$0xff]
    %v392 = vld [vmem:[%s13 + $0xc0] sm:$0xff]
    %v393 = vld [vmem:[%s13 + $0xc8] sm:$0xff]
    %v394 = vld [vmem:[%s13 + $0xd0] sm:$0xff]
    %v395 = vld [vmem:[%s13 + $0xd8] sm:$0xff]
    %v396 = vld [vmem:[%s13 + $0xe0] sm:$0xff]
    %v397 = vld [vmem:[%s13 + $0xe8] sm:$0xff]
    %v398 = vld [vmem:[%s13 + $0xf0] sm:$0xff]
    %v399 = vld [vmem:[%s13 + $0xf8] sm:$0xff]
    %v400 = vld [vmem:[%s13 + $0x100] sm:$0xff]
    %v401 = vld [vmem:[%s13 + $0x108] sm:$0xff]
    %v402 = vld [vmem:[%s13 + $0x110] sm:$0xff]
    %v403 = vld [vmem:[%s13 + $0x118] sm:$0xff]
    %v404 = vld [vmem:[%s13 + $0x120] sm:$0xff]
    %v405 = vld [vmem:[%s13 + $0x128] sm:$0xff]
    %v406 = vld [vmem:[%s13 + $0x130] sm:$0xff]
    %v407 = vld [vmem:[%s13 + $0x138] sm:$0xff]
    %v408 = vld [vmem:[%s13 + $0x140] sm:$0xff]
    %v409 = vld [vmem:[%s13 + $0x148] sm:$0xff]
    %v410 = vld [vmem:[%s13 + $0x150] sm:$0xff]
    %v411 = vld [vmem:[%s13 + $0x158] sm:$0xff]
    %v412 = vld [vmem:[%s13 + $0x160] sm:$0xff]
    %v413 = vld [vmem:[%s13 + $0x168] sm:$0xff]
    %v414 = vld [vmem:[%s13 + $0x170] sm:$0xff]
    %v415 = vld [vmem:[%s13 + $0x178] sm:$0xff]
    %v416 = vld [vmem:[%s13 + $0x180] sm:$0xff]
    %v417 = vld [vmem:[%s13 + $0x188] sm:$0xff]
    %v418 = vld [vmem:[%s13 + $0x190] sm:$0xff]
    %v419 = vld [vmem:[%s13 + $0x198] sm:$0xff]
    %v420 = vld [vmem:[%s13 + $0x1a0] sm:$0xff]
    %v421 = vld [vmem:[%s13 + $0x1a8] sm:$0xff]
    %v422 = vld [vmem:[%s13 + $0x1b0] sm:$0xff]
    %v423 = vld [vmem:[%s13 + $0x1b8] sm:$0xff]
    %v424 = vld [vmem:[%s13 + $0x1c0] sm:$0xff]
    %v425 = vld [vmem:[%s13 + $0x1c8] sm:$0xff]
    %v426 = vld [vmem:[%s13 + $0x1d0] sm:$0xff]
    %v427 = vld [vmem:[%s13 + $0x1d8] sm:$0xff]
    %v428 = vld [vmem:[%s13 + $0x1e0] sm:$0xff]
    %v429 = vld [vmem:[%s13 + $0x1e8] sm:$0xff]
    %v430 = vld [vmem:[%s13 + $0x1f0] sm:$0xff]
    %v431 = vld [vmem:[%s13 + $0x1f8] sm:$0xff]
    %v432 = vld [vmem:[%s13 + $0x200] sm:$0xff]
    %v433 = vld [vmem:[%s13 + $0x208] sm:$0xff]
    %v434 = vld [vmem:[%s13 + $0x210] sm:$0xff]
    %v435 = vld [vmem:[%s13 + $0x218] sm:$0xff]
    %v436 = vld [vmem:[%s13 + $0x220] sm:$0xff]
    %v437 = vld [vmem:[%s13 + $0x228] sm:$0xff]
    %v438 = vld [vmem:[%s13 + $0x230] sm:$0xff]
    %v439 = vld [vmem:[%s13 + $0x238] sm:$0xff]
    %v440 = vld [vmem:[%s15] sm:$0xff]
    %v441 = vld [vmem:[%s15 + $0x8] sm:$0xff]
    %v442 = vld [vmem:[%s15 + $0x10] sm:$0xff]
    %v443 = vld [vmem:[%s15 + $0x18] sm:$0xff]
    %v444 = vld [vmem:[%s15 + $0x20] sm:$0xff]
    %v445 = vld [vmem:[%s15 + $0x28] sm:$0xff]
    %v446 = vld [vmem:[%s15 + $0x30] sm:$0xff]
    %v447 = vld [vmem:[%s15 + $0x38] sm:$0xff]
    %v448 = vld [vmem:[%s15 + $0x40] sm:$0xff]
    %v449 = vld [vmem:[%s15 + $0x48] sm:$0xff]
    %v450 = vld [vmem:[%s15 + $0x50] sm:$0xff]
    %v451 = vld [vmem:[%s15 + $0x58] sm:$0xff]
    %v452 = vld [vmem:[%s15 + $0x60] sm:$0xff]
    %v453 = vld [vmem:[%s15 + $0x68] sm:$0xff]
    %v454 = vld [vmem:[%s15 + $0x70] sm:$0xff]
    %v455 = vld [vmem:[%s15 + $0x78] sm:$0xff]
    %v456 = vld [vmem:[%s15 + $0x80] sm:$0xff]
    %v457 = vld [vmem:[%s15 + $0x88] sm:$0xff]
    %v458 = vld [vmem:[%s15 + $0x90] sm:$0xff]
    %v459 = vld [vmem:[%s15 + $0x98] sm:$0xff]
    %v460 = vld [vmem:[%s15 + $0xa0] sm:$0xff]
    %v461 = vld [vmem:[%s15 + $0xa8] sm:$0xff]
    %v462 = vld [vmem:[%s15 + $0xb0] sm:$0xff]
    %v463 = vld [vmem:[%s15 + $0xb8] sm:$0xff]
    %v464 = vld [vmem:[%s15 + $0xc0] sm:$0xff]
    %v465 = vld [vmem:[%s15 + $0xc8] sm:$0xff]
    %v466 = vld [vmem:[%s15 + $0xd0] sm:$0xff]
    %v467 = vld [vmem:[%s15 + $0xd8] sm:$0xff]
    %v468 = vld [vmem:[%s15 + $0xe0] sm:$0xff]
    %v469 = vld [vmem:[%s15 + $0xe8] sm:$0xff]
    %v470 = vld [vmem:[%s15 + $0xf0] sm:$0xff]
    %v471 = vld [vmem:[%s15 + $0xf8] sm:$0xff]
    %v472 = vld [vmem:[%s15 + $0x100] sm:$0xff]
    %v473 = vld [vmem:[%s15 + $0x108] sm:$0xff]
    %v474 = vld [vmem:[%s15 + $0x110] sm:$0xff]
    %v475 = vld [vmem:[%s15 + $0x118] sm:$0xff]
    %v476 = vld [vmem:[%s15 + $0x120] sm:$0xff]
    %v477 = vld [vmem:[%s15 + $0x128] sm:$0xff]
    %v478 = vld [vmem:[%s15 + $0x130] sm:$0xff]
    %v479 = vld [vmem:[%s15 + $0x138] sm:$0xff]
    %v480 = vld [vmem:[%s15 + $0x140] sm:$0xff]
    %v481 = vld [vmem:[%s15 + $0x148] sm:$0xff]
    %v482 = vld [vmem:[%s15 + $0x150] sm:$0xff]
    %v483 = vld [vmem:[%s15 + $0x158] sm:$0xff]
    %v484 = vld [vmem:[%s15 + $0x160] sm:$0xff]
    %v485 = vld [vmem:[%s15 + $0x168] sm:$0xff]
    %v486 = vld [vmem:[%s15 + $0x170] sm:$0xff]
    %v487 = vld [vmem:[%s15 + $0x178] sm:$0xff]
    %v488 = vld [vmem:[%s15 + $0x180] sm:$0xff]
    %v489 = vld [vmem:[%s15 + $0x188] sm:$0xff]
    %v490 = vld [vmem:[%s15 + $0x190] sm:$0xff]
    %v491 = vld [vmem:[%s15 + $0x198] sm:$0xff]
    %v492 = vld [vmem:[%s15 + $0x1a0] sm:$0xff]
    %v493 = vld [vmem:[%s15 + $0x1a8] sm:$0xff]
    %v494 = vld [vmem:[%s15 + $0x1b0] sm:$0xff]
    %v495 = vld [vmem:[%s15 + $0x1b8] sm:$0xff]
    %v496 = vld [vmem:[%s15 + $0x1c0] sm:$0xff]
    %v497 = vld [vmem:[%s15 + $0x1c8] sm:$0xff]
    %v498 = vld [vmem:[%s15 + $0x1d0] sm:$0xff]
    %v499 = vld [vmem:[%s15 + $0x1d8] sm:$0xff]
    %v500 = vld [vmem:[%s15 + $0x1e0] sm:$0xff]
    %v501 = vld [vmem:[%s15 + $0x1e8] sm:$0xff]
    %v502 = vld [vmem:[%s15 + $0x1f0] sm:$0xff]
    %v503 = vld [vmem:[%s15 + $0x1f8] sm:$0xff]
    %v504 = vld [vmem:[%s15 + $0x200] sm:$0xff]
    %v505 = vld [vmem:[%s15 + $0x208] sm:$0xff]
    %v506 = vld [vmem:[%s15 + $0x210] sm:$0xff]
    %v507 = vld [vmem:[%s15 + $0x218] sm:$0xff]
    %v508 = vld [vmem:[%s15 + $0x220] sm:$0xff]
    %v509 = vld [vmem:[%s15 + $0x228] sm:$0xff]
    %v510 = vld [vmem:[%s15 + $0x230] sm:$0xff]
    %v511 = vld [vmem:[%s15 + $0x238] sm:$0xff]
    %v512 = vld [vmem:[%s17] sm:$0x7]
    %v513 = vld [vmem:[%s19] sm:$0xff]
    %v514 = vld [vmem:[%s19 + $0x8] sm:$0xff]
    %v515 = vld [vmem:[%s19 + $0x10] sm:$0xff]
    %v516 = vld [vmem:[%s19 + $0x18] sm:$0xff]
    %v517 = vld [vmem:[%s19 + $0x20] sm:$0xff]
    %v518 = vld [vmem:[%s19 + $0x28] sm:$0xff]
    %v519 = vld [vmem:[%s19 + $0x30] sm:$0xff]
    %v520 = vld [vmem:[%s19 + $0x38] sm:$0xff]
    %v521 = vld [vmem:[%s19 + $0x40] sm:$0xff]
    %v522 = vld [vmem:[%s19 + $0x48] sm:$0xff]
    %v523 = vld [vmem:[%s19 + $0x50] sm:$0xff]
    %v524 = vld [vmem:[%s19 + $0x58] sm:$0xff]
    %v525 = vld [vmem:[%s19 + $0x60] sm:$0xff]
    %v526 = vld [vmem:[%s19 + $0x68] sm:$0xff]
    %v527 = vld [vmem:[%s19 + $0x70] sm:$0xff]
    %v528 = vld [vmem:[%s19 + $0x78] sm:$0xff]
    %v529 = vld [vmem:[%s21] sm:$0xff]
    %v530 = vld [vmem:[%s21 + $0x8] sm:$0x3]
    %v531 = vld [vmem:[%s23] sm:$0xff]
    %v532 = vld [vmem:[%s23 + $0x8] sm:$0xff]
    %v533 = vld [vmem:[%s23 + $0x10] sm:$0xff]
    %v534 = vld [vmem:[%s23 + $0x18] sm:$0xff]
    %v535 = vld [vmem:[%s23 + $0x20] sm:$0xff]
    %v536 = vld [vmem:[%s23 + $0x28] sm:$0xff]
    %v537 = vld [vmem:[%s23 + $0x30] sm:$0xff]
    %v538 = vld [vmem:[%s23 + $0x38] sm:$0xff]
    %v539 = vld [vmem:[%s23 + $0x40] sm:$0xff]
    %v540 = vld [vmem:[%s23 + $0x48] sm:$0xff]
    %v541 = vld [vmem:[%s23 + $0x50] sm:$0xff]
    %v542 = vld [vmem:[%s23 + $0x58] sm:$0xff]
    %v543 = vld [vmem:[%s23 + $0x60] sm:$0xff]
    %v544 = vld [vmem:[%s23 + $0x68] sm:$0xff]
    %v545 = vld [vmem:[%s23 + $0x70] sm:$0xff]
    %v546 = vld [vmem:[%s23 + $0x78] sm:$0xff]
    %v547 = vld [vmem:[%s23 + $0x80] sm:$0xff]
    %v548 = vld [vmem:[%s23 + $0x88] sm:$0xff]
    %v549 = vld [vmem:[%s23 + $0x90] sm:$0xff]
    %v550 = vld [vmem:[%s23 + $0x98] sm:$0xff]
    %v551 = vld [vmem:[%s23 + $0xa0] sm:$0xff]
    %v552 = vld [vmem:[%s23 + $0xa8] sm:$0xff]
    %v553 = vld [vmem:[%s23 + $0xb0] sm:$0xff]
    %v554 = vld [vmem:[%s23 + $0xb8] sm:$0xff]
    %v555 = vld [vmem:[%s23 + $0xc0] sm:$0xff]
    %v556 = vld [vmem:[%s23 + $0xc8] sm:$0xff]
    %v557 = vld [vmem:[%s23 + $0xd0] sm:$0xff]
    %v558 = vld [vmem:[%s23 + $0xd8] sm:$0xff]
    %v559 = vld [vmem:[%s23 + $0xe0] sm:$0xff]
    %v560 = vld [vmem:[%s23 + $0xe8] sm:$0xff]
    %v561 = vld [vmem:[%s23 + $0xf0] sm:$0xff]
    %v562 = vld [vmem:[%s23 + $0xf8] sm:$0xff]
    %v563 = vld [vmem:[%s23 + $0x100] sm:$0xff]
    %v564 = vld [vmem:[%s23 + $0x108] sm:$0xff]
    %v565 = vld [vmem:[%s23 + $0x110] sm:$0xff]
    %v566 = vld [vmem:[%s23 + $0x118] sm:$0xff]
    %v567 = vld [vmem:[%s23 + $0x120] sm:$0xff]
    %v568 = vld [vmem:[%s23 + $0x128] sm:$0xff]
    %v569 = vld [vmem:[%s23 + $0x130] sm:$0xff]
    %v570 = vld [vmem:[%s23 + $0x138] sm:$0xff]
    %v571 = vld [vmem:[%s23 + $0x140] sm:$0xff]
    %v572 = vld [vmem:[%s23 + $0x148] sm:$0xff]
    %v573 = vld [vmem:[%s23 + $0x150] sm:$0xff]
    %v574 = vld [vmem:[%s23 + $0x158] sm:$0xff]
    %v575 = vld [vmem:[%s23 + $0x160] sm:$0xff]
    %v576 = vld [vmem:[%s23 + $0x168] sm:$0xff]
    %v577 = vld [vmem:[%s23 + $0x170] sm:$0xff]
    %v578 = vld [vmem:[%s23 + $0x178] sm:$0xff]
    %v579 = vld [vmem:[%s25] sm:$0x7]
    %v580 = vld [vmem:[%s27] sm:$0xff]
    %v581 = vld [vmem:[%s27 + $0x8] sm:$0xff]
    %v582 = vld [vmem:[%s27 + $0x10] sm:$0xff]
    %v583 = vld [vmem:[%s27 + $0x18] sm:$0xff]
    %v584 = vld [vmem:[%s27 + $0x20] sm:$0xff]
    %v585 = vld [vmem:[%s27 + $0x28] sm:$0xff]
    %v586 = vld [vmem:[%s27 + $0x30] sm:$0xff]
    %v587 = vld [vmem:[%s27 + $0x38] sm:$0xff]
    %v588 = vld [vmem:[%s29] sm:$0xff]
    %vm589 = vcmask 64512
    %v591 = vsel %vm589, %v253, 0
    %v594 = vsel %vm589, %v254, 0
    %596 = vmatprep.subr.mxu0 %v248
    %597 = vmatpush1.msra.mxu0 %v247
    %598 = vmatprep.subr.mxu0 0.0
    %599 = vmatpush1.msra.mxu0 0.0
    %600 = vmatprep.subr.mxu0 0.0
    %601 = vmatpush1.msra.mxu0 0.0
    %602 = vmatprep.subr.mxu0 0.0
    %603 = vmatpush1.msra.mxu0 0.0
    %604 = vmatprep.subr.mxu0 0.0
    %605 = vmatpush1.msra.mxu0 0.0
    %606 = vmatprep.subr.mxu0 0.0
    %607 = vmatpush1.msra.mxu0 0.0
    %608 = vmatprep.subr.mxu0 0.0
    %609 = vmatpush1.msra.mxu0 0.0
    %610 = vmatprep.subr.mxu0 0.0
    %611 = vmatpush1.msra.mxu0 0.0
    %612 = vmatprep.subr.mxu0 0.0
    %613 = vmatpush1.msra.mxu0 0.0
    %614 = vmatprep.subr.mxu0 0.0
    %615 = vmatpush1.msra.mxu0 0.0
    %616 = vmatprep.subr.mxu0 0.0
    %617 = vmatpush1.msra.mxu0 0.0
    %618 = vmatprep.subr.mxu0 0.0
    %619 = vmatpush1.msra.mxu0 0.0
    %620 = vmatprep.subr.mxu0 0.0
    %621 = vmatpush1.msra.mxu0 0.0
    %622 = vmatprep.subr.mxu0 0.0
    %623 = vmatpush1.msra.mxu0 0.0
    %624 = vmatprep.subr.mxu0 0.0
    %625 = vmatpush1.msra.mxu0 0.0
    %626 = vmatprep.subr.mxu0 0.0
    %627 = vmatpush1.msra.mxu0 0.0
    %628 = vmatprep.subr.mxu0 0.0
    %629 = vmatpush1.msra.mxu0 0.0
    %630 = vmatprep.subr.mxu0 0.0
    %631 = vmatpush1.msra.mxu0 0.0
    %632 = vmatprep.subr.mxu0 0.0
    %633 = vmatpush1.msra.mxu0 0.0
    %634 = vmatprep.subr.mxu0 0.0
    %635 = vmatpush1.msra.mxu0 0.0
    %636 = vmatprep.subr.mxu0 0.0
    %637 = vmatpush1.msra.mxu0 0.0
    %638 = vmatprep.subr.mxu0 0.0
    %639 = vmatpush1.msra.mxu0 0.0
    %640 = vmatprep.subr.mxu0 0.0
    %641 = vmatpush1.msra.mxu0 0.0
    %642 = vmatprep.subr.mxu0 0.0
    %643 = vmatpush1.msra.mxu0 0.0
    %644 = vmatprep.subr.mxu0 0.0
    %645 = vmatpush1.msra.mxu0 0.0
    %646 = vmatprep.subr.mxu0 0.0
    %647 = vmatpush1.msra.mxu0 0.0
    %648 = vmatprep.subr.mxu0 0.0
    %649 = vmatpush1.msra.mxu0 0.0
    %650 = vmatprep.subr.mxu0 0.0
    %651 = vmatpush1.msra.mxu0 0.0
    %652 = vmatprep.subr.mxu0 0.0
    %653 = vmatpush1.msra.mxu0 0.0
    %654 = vmatprep.subr.mxu0 0.0
    %655 = vmatpush1.msra.mxu0 0.0
    %656 = vmatprep.subr.mxu0 0.0
    %657 = vmatpush1.msra.mxu0 0.0
    %658 = vmatprep.subr.mxu0 0.0
    %659 = vmatpush1.msra.mxu0 0.0
    %660 = vmatprep.mubr.f32.mxu0 0.0
    %661 = vmatmul.mubr.f32.gmra.mrb[0].mxu0 %v591
    %v662 = vpop.f32.mrb[0].mxu0
    %v663 = vadd.f32 0.0, %v662
    %v664 = vpop.f32.mrb[0].mxu0
    %v665 = vadd.f32 0.0, %v664
    %666 = vmatprep.mubr.f32.mxu0 0.0
    %667 = vmatmul.mubr.f32.gmra.mrb[0].mxu0 %v594
    %v668 = vpop.f32.mrb[0].mxu0
    %v669 = vadd.f32 0.0, %v668
    %v670 = vpop.f32.mrb[0].mxu0
    %v671 = vadd.f32 0.0, %v670
    %672 = vdwg.mxu0
    %v674 = vlaneseq
    %v675 = vshrl.u32 %v674, 7
    %v676 = vsub.s32 0, %v675
    %v677 = vrot.slane %v319, %v676
    %v678 = vlaneseq
    %v679 = vshrl.u32 %v678, 7
    %v680 = vsub.s32 4, %v679
    %v681 = vrot.slane %v319, %v680
    %v684 = vlaneseq
    %v685 = vshrl.u32 %v684, 7
    %v686 = vsub.s32 0, %v685
    %v687 = vrot.slane %v677, %v686
    %v688 = vlaneseq
    %v689 = vshrl.u32 %v688, 7
    %v690 = vsub.s32 0, %v689
    %v691 = vrot.slane %v681, %v690
    %692 = vmatprep.subr.mxu0 %v256
    %693 = vmatpush1.msra.mxu0 %v255
    %694 = vmatprep.subr.mxu0 %v258
    %695 = vmatpush1.msra.mxu0 %v257
    %696 = vmatprep.subr.mxu0 %v260
    %697 = vmatpush1.msra.mxu0 %v259
    %698 = vmatprep.subr.mxu0 %v262
    %699 = vmatpush1.msra.mxu0 %v261
    %700 = vmatprep.subr.mxu0 %v264
    %701 = vmatpush1.msra.mxu0 %v263
    %702 = vmatprep.subr.mxu0 %v266
    %703 = vmatpush1.msra.mxu0 %v265
    %704 = vmatprep.subr.mxu0 %v268
    %705 = vmatpush1.msra.mxu0 %v267
    %706 = vmatprep.subr.mxu0 %v270
    %707 = vmatpush1.msra.mxu0 %v269
    %708 = vmatprep.subr.mxu0 %v272
    %709 = vmatpush1.msra.mxu0 %v271
    %710 = vmatprep.subr.mxu0 %v274
    %711 = vmatpush1.msra.mxu0 %v273
    %712 = vmatprep.subr.mxu0 %v276
    %713 = vmatpush1.msra.mxu0 %v275
    %714 = vmatprep.subr.mxu0 %v278
    %715 = vmatpush1.msra.mxu0 %v277
    %716 = vmatprep.subr.mxu0 %v280
    %717 = vmatpush1.msra.mxu0 %v279
    %718 = vmatprep.subr.mxu0 %v282
    %719 = vmatpush1.msra.mxu0 %v281
    %720 = vmatprep.subr.mxu0 %v284
    %721 = vmatpush1.msra.mxu0 %v283
    %722 = vmatprep.subr.mxu0 %v286
    %723 = vmatpush1.msra.mxu0 %v285
    %724 = vmatprep.subr.mxu0 %v288
    %725 = vmatpush1.msra.mxu0 %v287
    %726 = vmatprep.subr.mxu0 %v290
    %727 = vmatpush1.msra.mxu0 %v289
    %728 = vmatprep.subr.mxu0 %v292
    %729 = vmatpush1.msra.mxu0 %v291
    %730 = vmatprep.subr.mxu0 %v294
    %731 = vmatpush1.msra.mxu0 %v293
    %732 = vmatprep.subr.mxu0 %v296
    %733 = vmatpush1.msra.mxu0 %v295
    %734 = vmatprep.subr.mxu0 %v298
    %735 = vmatpush1.msra.mxu0 %v297
    %736 = vmatprep.subr.mxu0 %v300
    %737 = vmatpush1.msra.mxu0 %v299
    %738 = vmatprep.subr.mxu0 %v302
    %739 = vmatpush1.msra.mxu0 %v301
    %740 = vmatprep.subr.mxu0 %v304
    %741 = vmatpush1.msra.mxu0 %v303
    %742 = vmatprep.subr.mxu0 %v306
    %743 = vmatpush1.msra.mxu0 %v305
    %744 = vmatprep.subr.mxu0 %v308
    %745 = vmatpush1.msra.mxu0 %v307
    %746 = vmatprep.subr.mxu0 %v310
    %747 = vmatpush1.msra.mxu0 %v309
    %748 = vmatprep.subr.mxu0 %v312
    %749 = vmatpush1.msra.mxu0 %v311
    %750 = vmatprep.subr.mxu0 %v314
    %751 = vmatpush1.msra.mxu0 %v313
    %752 = vmatprep.subr.mxu0 %v316
    %753 = vmatpush1.msra.mxu0 %v315
    %754 = vmatprep.subr.mxu0 %v318
    %755 = vmatpush1.msra.mxu0 %v317
    %756 = vmatprep.mubr.f32.mxu0 %v665
    %757 = vmatmul.mubr.f32.gmra.mrb[0].mxu0 %v663
    %v758 = vpop.f32.mrb[0].mxu0
    %v759 = vadd.f32 %v687, %v758
    %v760 = vpop.f32.mrb[0].mxu0
    %v761 = vadd.f32 %v691, %v760
    %762 = vmatprep.mubr.f32.mxu0 %v671
    %763 = vmatmul.mubr.f32.gmra.mrb[0].mxu0 %v669
    %v764 = vpop.f32.mrb[0].mxu0
    %v765 = vadd.f32 %v687, %v764
    %v766 = vpop.f32.mrb[0].mxu0
    %v767 = vadd.f32 %v691, %v766
    %768 = vdwg.mxu0
    %v769 = vmax.f32 %v759, 0.0
    %v770 = vmax.f32 %v761, 0.0
    %v771 = vmax.f32 %v765, 0.0
    %v772 = vmax.f32 %v767, 0.0
    %vm773 = vcmask 1043456
    %v774 = vsel %vm773, %v771, 0.0
    %v775 = vadd.f32 %v769, %v774
    %v776 = vrot.slane %v775, 4
    %v777 = vadd.f32 %v775, %v776
    %v778 = vrot.slane %v777, 2
    %v779 = vadd.f32 %v777, %v778
    %v780 = vrot.slane %v779, 1
    %v781 = vadd.f32 %v779, %v780
    %vm782 = vcmask 523264
    %v783 = vsel %vm782, %v770, 0.0
    %vm784 = vcmask 519168
    %v785 = vsel %vm784, %v772, 0.0
    %v786 = vadd.f32 %v783, %v785
    %v787 = vrot.slane %v786, 4
    %v788 = vadd.f32 %v786, %v787
    %v789 = vrot.slane %v788, 2
    %v790 = vadd.f32 %v788, %v789
    %v791 = vrot.slane %v790, 1
    %v792 = vadd.f32 %v790, %v791
    %v793 = vmul.f32 %v769, %v769
    %v794 = vmul.f32 %v770, %v770
    %v795 = vmul.f32 %v771, %v771
    %v796 = vmul.f32 %v772, %v772
    %v797 = vsel %vm773, %v795, 0.0
    %v798 = vadd.f32 %v793, %v797
    %v799 = vrot.slane %v798, 4
    %v800 = vadd.f32 %v798, %v799
    %v801 = vrot.slane %v800, 2
    %v802 = vadd.f32 %v800, %v801
    %v803 = vrot.slane %v802, 1
    %v804 = vadd.f32 %v802, %v803
    %v805 = vsel %vm782, %v794, 0.0
    %v806 = vsel %vm784, %v796, 0.0
    %v807 = vadd.f32 %v805, %v806
    %v808 = vrot.slane %v807, 4
    %v809 = vadd.f32 %v807, %v808
    %v810 = vrot.slane %v809, 2
    %v811 = vadd.f32 %v809, %v810
    %v812 = vrot.slane %v811, 1
    %v813 = vadd.f32 %v811, %v812
    %v814 = vlaneseq
    %v815 = vshrl.u32 %v814, 7
    %vm816 = vcmp.eq.s32.totalorder %v815, 0
    %v817 = vsel %vm816, 1, 0
    %vm818 = vcmp.eq.s32.totalorder %v817, 1
    %v819 = vsel %vm818, %v781, %v804
    %v820 = vsel %vm818, %v792, %v813
    %v822 = vsel %vm782, %v820, 0
    %824 = vmatprep.subr.mxu0 %v321
    %825 = vmatpush1.msra.mxu0 %v320
    %826 = vmatprep.subr.mxu0 %v323
    %827 = vmatpush1.msra.mxu0 %v322
    %828 = vmatprep.subr.mxu0 %v325
    %829 = vmatpush1.msra.mxu0 %v324
    %830 = vmatprep.subr.mxu0 %v327
    %831 = vmatpush1.msra.mxu0 %v326
    %832 = vmatprep.subr.mxu0 %v329
    %833 = vmatpush1.msra.mxu0 %v328
    %834 = vmatprep.subr.mxu0 %v331
    %835 = vmatpush1.msra.mxu0 %v330
    %836 = vmatprep.subr.mxu0 %v333
    %837 = vmatpush1.msra.mxu0 %v332
    %838 = vmatprep.subr.mxu0 %v335
    %839 = vmatpush1.msra.mxu0 %v334
    %840 = vmatprep.subr.mxu0 %v337
    %841 = vmatpush1.msra.mxu0 %v336
    %842 = vmatprep.subr.mxu0 %v339
    %843 = vmatpush1.msra.mxu0 %v338
    %844 = vmatprep.subr.mxu0 %v341
    %845 = vmatpush1.msra.mxu0 %v340
    %846 = vmatprep.subr.mxu0 %v343
    %847 = vmatpush1.msra.mxu0 %v342
    %848 = vmatprep.subr.mxu0 %v345
    %849 = vmatpush1.msra.mxu0 %v344
    %850 = vmatprep.subr.mxu0 %v347
    %851 = vmatpush1.msra.mxu0 %v346
    %852 = vmatprep.subr.mxu0 %v349
    %853 = vmatpush1.msra.mxu0 %v348
    %854 = vmatprep.subr.mxu0 %v351
    %855 = vmatpush1.msra.mxu0 %v350
    %856 = vmatprep.subr.mxu0 %v353
    %857 = vmatpush1.msra.mxu0 %v352
    %858 = vmatprep.subr.mxu0 %v355
    %859 = vmatpush1.msra.mxu0 %v354
    %860 = vmatprep.subr.mxu0 %v357
    %861 = vmatpush1.msra.mxu0 %v356
    %862 = vmatprep.subr.mxu0 %v359
    %863 = vmatpush1.msra.mxu0 %v358
    %864 = vmatprep.subr.mxu0 %v361
    %865 = vmatpush1.msra.mxu0 %v360
    %866 = vmatprep.subr.mxu0 %v363
    %867 = vmatpush1.msra.mxu0 %v362
    %868 = vmatprep.subr.mxu0 %v365
    %869 = vmatpush1.msra.mxu0 %v364
    %870 = vmatprep.subr.mxu0 %v367
    %871 = vmatpush1.msra.mxu0 %v366
    %872 = vmatprep.subr.mxu0 0.0
    %873 = vmatpush1.msra.mxu0 0.0
    %874 = vmatprep.subr.mxu0 0.0
    %875 = vmatpush1.msra.mxu0 0.0
    %876 = vmatprep.subr.mxu0 0.0
    %877 = vmatpush1.msra.mxu0 0.0
    %878 = vmatprep.subr.mxu0 0.0
    %879 = vmatpush1.msra.mxu0 0.0
    %880 = vmatprep.subr.mxu0 0.0
    %881 = vmatpush1.msra.mxu0 0.0
    %882 = vmatprep.subr.mxu0 0.0
    %883 = vmatpush1.msra.mxu0 0.0
    %884 = vmatprep.subr.mxu0 0.0
    %885 = vmatpush1.msra.mxu0 0.0
    %886 = vmatprep.subr.mxu0 0.0
    %887 = vmatpush1.msra.mxu0 0.0
    %888 = vmatprep.mubr.f32.mxu0 %v822
    %889 = vmatmul.mubr.f32.gmra.mrb[0].mxu0 %v819
    %v890 = vpop.f32.mrb[0].mxu0
    %v891 = vadd.f32 0.0, %v890
    %v892 = vpop.f32.mrb[0].mxu0
    %v893 = vadd.f32 0.0, %v892
    %894 = vdwg.mxu0
    %v895 = vmul.f32 %v891, %v891
    %v896 = vmul.f32 %v893, %v893
    %v899 = vrot.slane %v895, 7
    %v900 = vrot.slane %v896, 7
    %v903 = vsub.f32 %v891, %v899
    %v904 = vsub.f32 %v893, %v900
    %v905 = vmax.f32 %v903, 0.0
    %v906 = vmax.f32 %v904, 0.0
    %v907 = vadd.f32 %v905, 1e-05
    %v908 = vadd.f32 %v906, 1e-05
    %v909 = vrsqrt.pop %v907
    %v910 = vrsqrt.pop %v908
    %v913 = vcombine.low %v909, %v910
    %v915 = vmul.f32 %v319, %v913
    %v917 = vlaneseq
    %v918 = vshrl.u32 %v917, 7
    %v919 = vsub.s32 1, %v918
    %v920 = vrot.slane %v915, %v919
    %v921 = vlaneseq
    %v922 = vshrl.u32 %v921, 7
    %v923 = vsub.s32 5, %v922
    %v924 = vrot.slane %v915, %v923
    %v927 = vmul.f32 %v891, %v920
    %v928 = vmul.f32 %v893, %v924
    %v931 = vcombine.low %v927, %v928
    %v932 = vrot.slane %v931, 6
    %v934 = vsub.f32 %v319, %v932
    %v935 = vlaneseq
    %v936 = vshrl.u32 %v935, 7
    %v937 = vsub.s32 1, %v936
    %v938 = vrot.slane %v920, %v937
    %v939 = vlaneseq
    %v940 = vshrl.u32 %v939, 7
    %v941 = vsub.s32 1, %v940
    %v942 = vrot.slane %v924, %v941
    %v943 = vmul.f32 %v769, %v938
    %v944 = vmul.f32 %v770, %v942
    %v945 = vmul.f32 %v771, %v938
    %v946 = vmul.f32 %v772, %v942
    %v948 = vlaneseq
    %v949 = vshrl.u32 %v948, 7
    %v950 = vsub.s32 2, %v949
    %v951 = vrot.slane %v934, %v950
    %v952 = vlaneseq
    %v953 = vshrl.u32 %v952, 7
    %v954 = vsub.s32 6, %v953
    %v955 = vrot.slane %v934, %v954
    %v958 = vlaneseq
    %v959 = vshrl.u32 %v958, 7
    %v960 = vsub.s32 2, %v959
    %v961 = vrot.slane %v951, %v960
    %v962 = vlaneseq
    %v963 = vshrl.u32 %v962, 7
    %v964 = vsub.s32 2, %v963
    %v965 = vrot.slane %v955, %v964
    %v966 = vadd.f32 %v943, %v961
    %v967 = vadd.f32 %v944, %v965
    %v968 = vadd.f32 %v945, %v961
    %v969 = vadd.f32 %v946, %v965
    %v971 = vsel %vm782, %v250, 0
    %v974 = vsel %vm782, %v252, 0
    %976 = vmatprep.subr.mxu0 0.0
    %977 = vmatpush1.msra.mxu0 %v440
    %978 = vmatprep.subr.mxu0 0.0
    %979 = vmatpush1.msra.mxu0 %v441
    %980 = vmatprep.subr.mxu0 0.0
    %981 = vmatpush1.msra.mxu0 %v442
    %982 = vmatprep.subr.mxu0 0.0
    %983 = vmatpush1.msra.mxu0 %v443
    %984 = vmatprep.subr.mxu0 0.0
    %985 = vmatpush1.msra.mxu0 %v444
    %986 = vmatprep.subr.mxu0 0.0
    %987 = vmatpush1.msra.mxu0 %v445
    %988 = vmatprep.subr.mxu0 0.0
    %989 = vmatpush1.msra.mxu0 %v446
    %990 = vmatprep.subr.mxu0 0.0
    %991 = vmatpush1.msra.mxu0 %v447
    %992 = vmatprep.subr.mxu0 0.0
    %993 = vmatpush1.msra.mxu0 %v448
    %994 = vmatprep.subr.mxu0 0.0
    %995 = vmatpush1.msra.mxu0 %v449
    %996 = vmatprep.subr.mxu0 0.0
    %997 = vmatpush1.msra.mxu0 %v450
    %998 = vmatprep.subr.mxu0 0.0
    %999 = vmatpush1.msra.mxu0 %v451
    %1000 = vmatprep.subr.mxu0 0.0
    %1001 = vmatpush1.msra.mxu0 %v452
    %1002 = vmatprep.subr.mxu0 0.0
    %1003 = vmatpush1.msra.mxu0 %v453
    %1004 = vmatprep.subr.mxu0 0.0
    %1005 = vmatpush1.msra.mxu0 %v454
    %1006 = vmatprep.subr.mxu0 0.0
    %1007 = vmatpush1.msra.mxu0 %v455
    %1008 = vmatprep.subr.mxu0 0.0
    %1009 = vmatpush1.msra.mxu0 %v456
    %1010 = vmatprep.subr.mxu0 0.0
    %1011 = vmatpush1.msra.mxu0 %v457
    %1012 = vmatprep.subr.mxu0 0.0
    %1013 = vmatpush1.msra.mxu0 %v458
    %1014 = vmatprep.subr.mxu0 0.0
    %1015 = vmatpush1.msra.mxu0 %v459
    %1016 = vmatprep.subr.mxu0 0.0
    %1017 = vmatpush1.msra.mxu0 %v460
    %1018 = vmatprep.subr.mxu0 0.0
    %1019 = vmatpush1.msra.mxu0 %v461
    %1020 = vmatprep.subr.mxu0 0.0
    %1021 = vmatpush1.msra.mxu0 %v462
    %1022 = vmatprep.subr.mxu0 0.0
    %1023 = vmatpush1.msra.mxu0 %v463
    %1024 = vmatprep.subr.mxu0 0.0
    %1025 = vmatpush1.msra.mxu0 0.0
    %1026 = vmatprep.subr.mxu0 0.0
    %1027 = vmatpush1.msra.mxu0 0.0
    %1028 = vmatprep.subr.mxu0 0.0
    %1029 = vmatpush1.msra.mxu0 0.0
    %1030 = vmatprep.subr.mxu0 0.0
    %1031 = vmatpush1.msra.mxu0 0.0
    %1032 = vmatprep.subr.mxu0 0.0
    %1033 = vmatpush1.msra.mxu0 0.0
    %1034 = vmatprep.subr.mxu0 0.0
    %1035 = vmatpush1.msra.mxu0 0.0
    %1036 = vmatprep.subr.mxu0 0.0
    %1037 = vmatpush1.msra.mxu0 0.0
    %1038 = vmatprep.subr.mxu0 0.0
    %1039 = vmatpush1.msra.mxu0 0.0
    %1040 = vmatprep.mubr.f32.mxu0 %v971
    %1041 = vmatmul.mubr.f32.gmra.mrb[0].mxu0 %v249
    %v1042 = vpop.f32.mrb[0].mxu0
    %v1043 = vadd.f32 0.0, %v1042
    %v1044 = vpop.f32.mrb[0].mxu0
    %1045 = vmatprep.mubr.f32.mxu0 %v974
    %1046 = vmatmul.mubr.f32.gmra.mrb[0].mxu0 %v251
    %v1047 = vpop.f32.mrb[0].mxu0
    %v1048 = vadd.f32 0.0, %v1047
    %v1049 = vpop.f32.mrb[0].mxu0
    %1050 = vdwg.mxu0
    %v1052 = vsel %vm782, %v967, 0
    %v1055 = vsel %vm782, %v969, 0
    %1057 = vmatprep.subr.mxu0 0.0
    %1058 = vmatpush1.msra.mxu0 %v368
    %1059 = vmatprep.subr.mxu0 0.0
    %1060 = vmatpush1.msra.mxu0 %v369
    %1061 = vmatprep.subr.mxu0 0.0
    %1062 = vmatpush1.msra.mxu0 %v370
    %1063 = vmatprep.subr.mxu0 0.0
    %1064 = vmatpush1.msra.mxu0 %v371
    %1065 = vmatprep.subr.mxu0 0.0
    %1066 = vmatpush1.msra.mxu0 %v372
    %1067 = vmatprep.subr.mxu0 0.0
    %1068 = vmatpush1.msra.mxu0 %v373
    %1069 = vmatprep.subr.mxu0 0.0
    %1070 = vmatpush1.msra.mxu0 %v374
    %1071 = vmatprep.subr.mxu0 0.0
    %1072 = vmatpush1.msra.mxu0 %v375
    %1073 = vmatprep.subr.mxu0 0.0
    %1074 = vmatpush1.msra.mxu0 %v376
    %1075 = vmatprep.subr.mxu0 0.0
    %1076 = vmatpush1.msra.mxu0 %v377
    %1077 = vmatprep.subr.mxu0 0.0
    %1078 = vmatpush1.msra.mxu0 %v378
    %1079 = vmatprep.subr.mxu0 0.0
    %1080 = vmatpush1.msra.mxu0 %v379
    %1081 = vmatprep.subr.mxu0 0.0
    %1082 = vmatpush1.msra.mxu0 %v380
    %1083 = vmatprep.subr.mxu0 0.0
    %1084 = vmatpush1.msra.mxu0 %v381
    %1085 = vmatprep.subr.mxu0 0.0
    %1086 = vmatpush1.msra.mxu0 %v382
    %1087 = vmatprep.subr.mxu0 0.0
    %1088 = vmatpush1.msra.mxu0 %v383
    %1089 = vmatprep.subr.mxu0 0.0
    %1090 = vmatpush1.msra.mxu0 %v384
    %1091 = vmatprep.subr.mxu0 0.0
    %1092 = vmatpush1.msra.mxu0 %v385
    %1093 = vmatprep.subr.mxu0 0.0
    %1094 = vmatpush1.msra.mxu0 %v386
    %1095 = vmatprep.subr.mxu0 0.0
    %1096 = vmatpush1.msra.mxu0 %v387
    %1097 = vmatprep.subr.mxu0 0.0
    %1098 = vmatpush1.msra.mxu0 %v388
    %1099 = vmatprep.subr.mxu0 0.0
    %1100 = vmatpush1.msra.mxu0 %v389
    %1101 = vmatprep.subr.mxu0 0.0
    %1102 = vmatpush1.msra.mxu0 %v390
    %1103 = vmatprep.subr.mxu0 0.0
    %1104 = vmatpush1.msra.mxu0 %v391
    %1105 = vmatprep.subr.mxu0 0.0
    %1106 = vmatpush1.msra.mxu0 0.0
    %1107 = vmatprep.subr.mxu0 0.0
    %1108 = vmatpush1.msra.mxu0 0.0
    %1109 = vmatprep.subr.mxu0 0.0
    %1110 = vmatpush1.msra.mxu0 0.0
    %1111 = vmatprep.subr.mxu0 0.0
    %1112 = vmatpush1.msra.mxu0 0.0
    %1113 = vmatprep.subr.mxu0 0.0
    %1114 = vmatpush1.msra.mxu0 0.0
    %1115 = vmatprep.subr.mxu0 0.0
    %1116 = vmatpush1.msra.mxu0 0.0
    %1117 = vmatprep.subr.mxu0 0.0
    %1118 = vmatpush1.msra.mxu0 0.0
    %1119 = vmatprep.subr.mxu0 0.0
    %1120 = vmatpush1.msra.mxu0 0.0
    %1121 = vmatprep.mubr.f32.mxu0 %v1052
    %1122 = vmatmul.mubr.f32.gmra.mrb[0].mxu0 %v966
    %v1123 = vpop.f32.mrb[0].mxu0
    %v1124 = vadd.f32 %v1043, %v1123
    %v1125 = vpop.f32.mrb[0].mxu0
    %1126 = vmatprep.mubr.f32.mxu0 %v1055
    %1127 = vmatmul.mubr.f32.gmra.mrb[0].mxu0 %v968
    %v1128 = vpop.f32.mrb[0].mxu0
    %v1129 = vadd.f32 %v1048, %v1128
    %v1130 = vpop.f32.mrb[0].mxu0
    %1131 = vdwg.mxu0
    %vm1134 = vcmask 1046528
    %v1135 = vrot.slane %v966, 1
    %v1136 = vrot.slane %v968, 1
    %v1137 = vsel %vm1134, %v1135, %v1136
    %v1138 = vrot.slane %v967, 1
    %v1139 = vrot.slane %v969, 1
    %v1140 = vsel %vm1134, %v1138, %v1139
    %v1143 = vsel %vm782, %v1140, 0
    %v1145 = vsel %vm782, %v1139, 0
    %1147 = vmatprep.subr.mxu0 0.0
    %1148 = vmatpush1.msra.mxu0 %v392
    %1149 = vmatprep.subr.mxu0 0.0
    %1150 = vmatpush1.msra.mxu0 %v393
    %1151 = vmatprep.subr.mxu0 0.0
    %1152 = vmatpush1.msra.mxu0 %v394
    %1153 = vmatprep.subr.mxu0 0.0
    %1154 = vmatpush1.msra.mxu0 %v395
    %1155 = vmatprep.subr.mxu0 0.0
    %1156 = vmatpush1.msra.mxu0 %v396
    %1157 = vmatprep.subr.mxu0 0.0
    %1158 = vmatpush1.msra.mxu0 %v397
    %1159 = vmatprep.subr.mxu0 0.0
    %1160 = vmatpush1.msra.mxu0 %v398
    %1161 = vmatprep.subr.mxu0 0.0
    %1162 = vmatpush1.msra.mxu0 %v399
    %1163 = vmatprep.subr.mxu0 0.0
    %1164 = vmatpush1.msra.mxu0 %v400
    %1165 = vmatprep.subr.mxu0 0.0
    %1166 = vmatpush1.msra.mxu0 %v401
    %1167 = vmatprep.subr.mxu0 0.0
    %1168 = vmatpush1.msra.mxu0 %v402
    %1169 = vmatprep.subr.mxu0 0.0
    %1170 = vmatpush1.msra.mxu0 %v403
    %1171 = vmatprep.subr.mxu0 0.0
    %1172 = vmatpush1.msra.mxu0 %v404
    %1173 = vmatprep.subr.mxu0 0.0
    %1174 = vmatpush1.msra.mxu0 %v405
    %1175 = vmatprep.subr.mxu0 0.0
    %1176 = vmatpush1.msra.mxu0 %v406
    %1177 = vmatprep.subr.mxu0 0.0
    %1178 = vmatpush1.msra.mxu0 %v407
    %1179 = vmatprep.subr.mxu0 0.0
    %1180 = vmatpush1.msra.mxu0 %v408
    %1181 = vmatprep.subr.mxu0 0.0
    %1182 = vmatpush1.msra.mxu0 %v409
    %1183 = vmatprep.subr.mxu0 0.0
    %1184 = vmatpush1.msra.mxu0 %v410
    %1185 = vmatprep.subr.mxu0 0.0
    %1186 = vmatpush1.msra.mxu0 %v411
    %1187 = vmatprep.subr.mxu0 0.0
    %1188 = vmatpush1.msra.mxu0 %v412
    %1189 = vmatprep.subr.mxu0 0.0
    %1190 = vmatpush1.msra.mxu0 %v413
    %1191 = vmatprep.subr.mxu0 0.0
    %1192 = vmatpush1.msra.mxu0 %v414
    %1193 = vmatprep.subr.mxu0 0.0
    %1194 = vmatpush1.msra.mxu0 %v415
    %1195 = vmatprep.subr.mxu0 0.0
    %1196 = vmatpush1.msra.mxu0 0.0
    %1197 = vmatprep.subr.mxu0 0.0
    %1198 = vmatpush1.msra.mxu0 0.0
    %1199 = vmatprep.subr.mxu0 0.0
    %1200 = vmatpush1.msra.mxu0 0.0
    %1201 = vmatprep.subr.mxu0 0.0
    %1202 = vmatpush1.msra.mxu0 0.0
    %1203 = vmatprep.subr.mxu0 0.0
    %1204 = vmatpush1.msra.mxu0 0.0
    %1205 = vmatprep.subr.mxu0 0.0
    %1206 = vmatpush1.msra.mxu0 0.0
    %1207 = vmatprep.subr.mxu0 0.0
    %1208 = vmatpush1.msra.mxu0 0.0
    %1209 = vmatprep.subr.mxu0 0.0
    %1210 = vmatpush1.msra.mxu0 0.0
    %1211 = vmatprep.mubr.f32.mxu0 %v1143
    %1212 = vmatmul.mubr.f32.gmra.mrb[0].mxu0 %v1137
    %v1213 = vpop.f32.mrb[0].mxu0
    %v1214 = vadd.f32 0.0, %v1213
    %v1215 = vpop.f32.mrb[0].mxu0
    %1216 = vmatprep.mubr.f32.mxu0 %v1145
    %1217 = vmatmul.mubr.f32.gmra.mrb[0].mxu0 %v1136
    %v1218 = vpop.f32.mrb[0].mxu0
    %v1219 = vadd.f32 0.0, %v1218
    %v1220 = vpop.f32.mrb[0].mxu0
    %1221 = vdwg.mxu0
    %v1222 = vadd.f32 %v1124, %v1214
    %v1223 = vadd.f32 %v1129, %v1219
    %v1226 = vrot.slane %v249, 1
    %v1227 = vrot.slane %v251, 1
    %v1228 = vsel %vm1134, %v1226, %v1227
    %v1229 = vrot.slane %v250, 1
    %v1230 = vrot.slane %v252, 1
    %v1231 = vsel %vm1134, %v1229, %v1230
    %v1234 = vsel %vm782, %v1231, 0
    %v1236 = vsel %vm782, %v1230, 0
    %1238 = vmatprep.subr.mxu0 0.0
    %1239 = vmatpush1.msra.mxu0 %v464
    %1240 = vmatprep.subr.mxu0 0.0
    %1241 = vmatpush1.msra.mxu0 %v465
    %1242 = vmatprep.subr.mxu0 0.0
    %1243 = vmatpush1.msra.mxu0 %v466
    %1244 = vmatprep.subr.mxu0 0.0
    %1245 = vmatpush1.msra.mxu0 %v467
    %1246 = vmatprep.subr.mxu0 0.0
    %1247 = vmatpush1.msra.mxu0 %v468
    %1248 = vmatprep.subr.mxu0 0.0
    %1249 = vmatpush1.msra.mxu0 %v469
    %1250 = vmatprep.subr.mxu0 0.0
    %1251 = vmatpush1.msra.mxu0 %v470
    %1252 = vmatprep.subr.mxu0 0.0
    %1253 = vmatpush1.msra.mxu0 %v471
    %1254 = vmatprep.subr.mxu0 0.0
    %1255 = vmatpush1.msra.mxu0 %v472
    %1256 = vmatprep.subr.mxu0 0.0
    %1257 = vmatpush1.msra.mxu0 %v473
    %1258 = vmatprep.subr.mxu0 0.0
    %1259 = vmatpush1.msra.mxu0 %v474
    %1260 = vmatprep.subr.mxu0 0.0
    %1261 = vmatpush1.msra.mxu0 %v475
    %1262 = vmatprep.subr.mxu0 0.0
    %1263 = vmatpush1.msra.mxu0 %v476
    %1264 = vmatprep.subr.mxu0 0.0
    %1265 = vmatpush1.msra.mxu0 %v477
    %1266 = vmatprep.subr.mxu0 0.0
    %1267 = vmatpush1.msra.mxu0 %v478
    %1268 = vmatprep.subr.mxu0 0.0
    %1269 = vmatpush1.msra.mxu0 %v479
    %1270 = vmatprep.subr.mxu0 0.0
    %1271 = vmatpush1.msra.mxu0 %v480
    %1272 = vmatprep.subr.mxu0 0.0
    %1273 = vmatpush1.msra.mxu0 %v481
    %1274 = vmatprep.subr.mxu0 0.0
    %1275 = vmatpush1.msra.mxu0 %v482
    %1276 = vmatprep.subr.mxu0 0.0
    %1277 = vmatpush1.msra.mxu0 %v483
    %1278 = vmatprep.subr.mxu0 0.0
    %1279 = vmatpush1.msra.mxu0 %v484
    %1280 = vmatprep.subr.mxu0 0.0
    %1281 = vmatpush1.msra.mxu0 %v485
    %1282 = vmatprep.subr.mxu0 0.0
    %1283 = vmatpush1.msra.mxu0 %v486
    %1284 = vmatprep.subr.mxu0 0.0
    %1285 = vmatpush1.msra.mxu0 %v487
    %1286 = vmatprep.subr.mxu0 0.0
    %1287 = vmatpush1.msra.mxu0 0.0
    %1288 = vmatprep.subr.mxu0 0.0
    %1289 = vmatpush1.msra.mxu0 0.0
    %1290 = vmatprep.subr.mxu0 0.0
    %1291 = vmatpush1.msra.mxu0 0.0
    %1292 = vmatprep.subr.mxu0 0.0
    %1293 = vmatpush1.msra.mxu0 0.0
    %1294 = vmatprep.subr.mxu0 0.0
    %1295 = vmatpush1.msra.mxu0 0.0
    %1296 = vmatprep.subr.mxu0 0.0
    %1297 = vmatpush1.msra.mxu0 0.0
    %1298 = vmatprep.subr.mxu0 0.0
    %1299 = vmatpush1.msra.mxu0 0.0
    %1300 = vmatprep.subr.mxu0 0.0
    %1301 = vmatpush1.msra.mxu0 0.0
    %1302 = vmatprep.mubr.f32.mxu0 %v1234
    %1303 = vmatmul.mubr.f32.gmra.mrb[0].mxu0 %v1228
    %v1304 = vpop.f32.mrb[0].mxu0
    %v1305 = vadd.f32 0.0, %v1304
    %v1306 = vpop.f32.mrb[0].mxu0
    %1307 = vmatprep.mubr.f32.mxu0 %v1236
    %1308 = vmatmul.mubr.f32.gmra.mrb[0].mxu0 %v1227
    %v1309 = vpop.f32.mrb[0].mxu0
    %v1310 = vadd.f32 0.0, %v1309
    %v1311 = vpop.f32.mrb[0].mxu0
    %1312 = vdwg.mxu0
    %v1313 = vadd.f32 %v1222, %v1305
    %v1314 = vadd.f32 %v1223, %v1310
    %vm1315 = vcmask 1045504
    %v1316 = vrot.slane %v966, 2
    %v1317 = vrot.slane %v968, 2
    %v1318 = vsel %vm1315, %v1316, %v1317
    %v1319 = vrot.slane %v967, 2
    %v1320 = vrot.slane %v969, 2
    %v1321 = vsel %vm1315, %v1319, %v1320
    %v1324 = vsel %vm782, %v1321, 0
    %v1326 = vsel %vm782, %v1320, 0
    %1328 = vmatprep.subr.mxu0 0.0
    %1329 = vmatpush1.msra.mxu0 %v416
    %1330 = vmatprep.subr.mxu0 0.0
    %1331 = vmatpush1.msra.mxu0 %v417
    %1332 = vmatprep.subr.mxu0 0.0
    %1333 = vmatpush1.msra.mxu0 %v418
    %1334 = vmatprep.subr.mxu0 0.0
    %1335 = vmatpush1.msra.mxu0 %v419
    %1336 = vmatprep.subr.mxu0 0.0
    %1337 = vmatpush1.msra.mxu0 %v420
    %1338 = vmatprep.subr.mxu0 0.0
    %1339 = vmatpush1.msra.mxu0 %v421
    %1340 = vmatprep.subr.mxu0 0.0
    %1341 = vmatpush1.msra.mxu0 %v422
    %1342 = vmatprep.subr.mxu0 0.0
    %1343 = vmatpush1.msra.mxu0 %v423
    %1344 = vmatprep.subr.mxu0 0.0
    %1345 = vmatpush1.msra.mxu0 %v424
    %1346 = vmatprep.subr.mxu0 0.0
    %1347 = vmatpush1.msra.mxu0 %v425
    %1348 = vmatprep.subr.mxu0 0.0
    %1349 = vmatpush1.msra.mxu0 %v426
    %1350 = vmatprep.subr.mxu0 0.0
    %1351 = vmatpush1.msra.mxu0 %v427
    %1352 = vmatprep.subr.mxu0 0.0
    %1353 = vmatpush1.msra.mxu0 %v428
    %1354 = vmatprep.subr.mxu0 0.0
    %1355 = vmatpush1.msra.mxu0 %v429
    %1356 = vmatprep.subr.mxu0 0.0
    %1357 = vmatpush1.msra.mxu0 %v430
    %1358 = vmatprep.subr.mxu0 0.0
    %1359 = vmatpush1.msra.mxu0 %v431
    %1360 = vmatprep.subr.mxu0 0.0
    %1361 = vmatpush1.msra.mxu0 %v432
    %1362 = vmatprep.subr.mxu0 0.0
    %1363 = vmatpush1.msra.mxu0 %v433
    %1364 = vmatprep.subr.mxu0 0.0
    %1365 = vmatpush1.msra.mxu0 %v434
    %1366 = vmatprep.subr.mxu0 0.0
    %1367 = vmatpush1.msra.mxu0 %v435
    %1368 = vmatprep.subr.mxu0 0.0
    %1369 = vmatpush1.msra.mxu0 %v436
    %1370 = vmatprep.subr.mxu0 0.0
    %1371 = vmatpush1.msra.mxu0 %v437
    %1372 = vmatprep.subr.mxu0 0.0
    %1373 = vmatpush1.msra.mxu0 %v438
    %1374 = vmatprep.subr.mxu0 0.0
    %1375 = vmatpush1.msra.mxu0 %v439
    %1376 = vmatprep.subr.mxu0 0.0
    %1377 = vmatpush1.msra.mxu0 0.0
    %1378 = vmatprep.subr.mxu0 0.0
    %1379 = vmatpush1.msra.mxu0 0.0
    %1380 = vmatprep.subr.mxu0 0.0
    %1381 = vmatpush1.msra.mxu0 0.0
    %1382 = vmatprep.subr.mxu0 0.0
    %1383 = vmatpush1.msra.mxu0 0.0
    %1384 = vmatprep.subr.mxu0 0.0
    %1385 = vmatpush1.msra.mxu0 0.0
    %1386 = vmatprep.subr.mxu0 0.0
    %1387 = vmatpush1.msra.mxu0 0.0
    %1388 = vmatprep.subr.mxu0 0.0
    %1389 = vmatpush1.msra.mxu0 0.0
    %1390 = vmatprep.subr.mxu0 0.0
    %1391 = vmatpush1.msra.mxu0 0.0
    %1392 = vmatprep.mubr.f32.mxu0 %v1324
    %1393 = vmatmul.mubr.f32.gmra.mrb[0].mxu0 %v1318
    %v1394 = vpop.f32.mrb[0].mxu0
    %v1395 = vadd.f32 0.0, %v1394
    %v1396 = vpop.f32.mrb[0].mxu0
    %1397 = vmatprep.mubr.f32.mxu0 %v1326
    %1398 = vmatmul.mubr.f32.gmra.mrb[0].mxu0 %v1317
    %v1399 = vpop.f32.mrb[0].mxu0
    %v1400 = vadd.f32 0.0, %v1399
    %v1401 = vpop.f32.mrb[0].mxu0
    %1402 = vdwg.mxu0
    %v1403 = vadd.f32 %v1313, %v1395
    %v1404 = vadd.f32 %v1314, %v1400
    %v1405 = vrot.slane %v249, 2
    %v1406 = vrot.slane %v251, 2
    %v1407 = vsel %vm1315, %v1405, %v1406
    %v1408 = vrot.slane %v250, 2
    %v1409 = vrot.slane %v252, 2
    %v1410 = vsel %vm1315, %v1408, %v1409
    %v1413 = vsel %vm782, %v1410, 0
    %v1415 = vsel %vm782, %v1409, 0
    %1417 = vmatprep.subr.mxu0 0.0
    %1418 = vmatpush1.msra.mxu0 %v488
    %1419 = vmatprep.subr.mxu0 0.0
    %1420 = vmatpush1.msra.mxu0 %v489
    %1421 = vmatprep.subr.mxu0 0.0
    %1422 = vmatpush1.msra.mxu0 %v490
    %1423 = vmatprep.subr.mxu0 0.0
    %1424 = vmatpush1.msra.mxu0 %v491
    %1425 = vmatprep.subr.mxu0 0.0
    %1426 = vmatpush1.msra.mxu0 %v492
    %1427 = vmatprep.subr.mxu0 0.0
    %1428 = vmatpush1.msra.mxu0 %v493
    %1429 = vmatprep.subr.mxu0 0.0
    %1430 = vmatpush1.msra.mxu0 %v494
    %1431 = vmatprep.subr.mxu0 0.0
    %1432 = vmatpush1.msra.mxu0 %v495
    %1433 = vmatprep.subr.mxu0 0.0
    %1434 = vmatpush1.msra.mxu0 %v496
    %1435 = vmatprep.subr.mxu0 0.0
    %1436 = vmatpush1.msra.mxu0 %v497
    %1437 = vmatprep.subr.mxu0 0.0
    %1438 = vmatpush1.msra.mxu0 %v498
    %1439 = vmatprep.subr.mxu0 0.0
    %1440 = vmatpush1.msra.mxu0 %v499
    %1441 = vmatprep.subr.mxu0 0.0
    %1442 = vmatpush1.msra.mxu0 %v500
    %1443 = vmatprep.subr.mxu0 0.0
    %1444 = vmatpush1.msra.mxu0 %v501
    %1445 = vmatprep.subr.mxu0 0.0
    %1446 = vmatpush1.msra.mxu0 %v502
    %1447 = vmatprep.subr.mxu0 0.0
    %1448 = vmatpush1.msra.mxu0 %v503
    %1449 = vmatprep.subr.mxu0 0.0
    %1450 = vmatpush1.msra.mxu0 %v504
    %1451 = vmatprep.subr.mxu0 0.0
    %1452 = vmatpush1.msra.mxu0 %v505
    %1453 = vmatprep.subr.mxu0 0.0
    %1454 = vmatpush1.msra.mxu0 %v506
    %1455 = vmatprep.subr.mxu0 0.0
    %1456 = vmatpush1.msra.mxu0 %v507
    %1457 = vmatprep.subr.mxu0 0.0
    %1458 = vmatpush1.msra.mxu0 %v508
    %1459 = vmatprep.subr.mxu0 0.0
    %1460 = vmatpush1.msra.mxu0 %v509
    %1461 = vmatprep.subr.mxu0 0.0
    %1462 = vmatpush1.msra.mxu0 %v510
    %1463 = vmatprep.subr.mxu0 0.0
    %1464 = vmatpush1.msra.mxu0 %v511
    %1465 = vmatprep.subr.mxu0 0.0
    %1466 = vmatpush1.msra.mxu0 0.0
    %1467 = vmatprep.subr.mxu0 0.0
    %1468 = vmatpush1.msra.mxu0 0.0
    %1469 = vmatprep.subr.mxu0 0.0
    %1470 = vmatpush1.msra.mxu0 0.0
    %1471 = vmatprep.subr.mxu0 0.0
    %1472 = vmatpush1.msra.mxu0 0.0
    %1473 = vmatprep.subr.mxu0 0.0
    %1474 = vmatpush1.msra.mxu0 0.0
    %1475 = vmatprep.subr.mxu0 0.0
    %1476 = vmatpush1.msra.mxu0 0.0
    %1477 = vmatprep.subr.mxu0 0.0
    %1478 = vmatpush1.msra.mxu0 0.0
    %1479 = vmatprep.subr.mxu0 0.0
    %1480 = vmatpush1.msra.mxu0 0.0
    %1481 = vmatprep.mubr.f32.mxu0 %v1413
    %1482 = vmatmul.mubr.f32.gmra.mrb[0].mxu0 %v1407
    %v1483 = vpop.f32.mrb[0].mxu0
    %v1484 = vadd.f32 0.0, %v1483
    %v1485 = vpop.f32.mrb[0].mxu0
    %1486 = vmatprep.mubr.f32.mxu0 %v1415
    %1487 = vmatmul.mubr.f32.gmra.mrb[0].mxu0 %v1406
    %v1488 = vpop.f32.mrb[0].mxu0
    %v1489 = vadd.f32 0.0, %v1488
    %v1490 = vpop.f32.mrb[0].mxu0
    %1491 = vdwg.mxu0
    %v1492 = vadd.f32 %v1403, %v1484
    %v1493 = vadd.f32 %v1404, %v1489
    %v1494 = vlaneseq
    %v1495 = vshrl.u32 %v1494, 7
    %v1496 = vsub.s32 0, %v1495
    %v1497 = vrot.slane %v512, %v1496
    %v1498 = vadd.f32 %v1492, %v1497
    %v1499 = vadd.f32 %v1493, %v1497
    %v1500 = vmax.f32 %v1498, 0.0
    %v1501 = vmax.f32 %v1499, 0.0
    %1503 = vset.pattern.permute.xlu0 0
    %1504 = vperm.xlu0 %1503, %v529
    %v1505 = vpop.permute.xlu0 %1504
    %1508 = vset.pattern.permute.xlu0 0
    %1509 = vperm.xlu0 %1508, %v530
    %v1510 = vpop.permute.xlu0 %1509
    %v1512 = vmul.f32 %v1500, %v1505
    %v1513 = vmul.f32 %v1501, %v1510
    %vm1514 = vcmask 1041408
    %v1515 = vsel %vm1514, %v1513, 0.0
    %v1516 = vadd.f32 %v1512, %v1515
    %v1517 = vrot.slane %v1516, 4
    %v1518 = vadd.f32 %v1516, %v1517
    %v1519 = vrot.slane %v1518, 2
    %v1520 = vadd.f32 %v1518, %v1519
    %v1521 = vrot.slane %v1520, 1
    %v1522 = vadd.f32 %v1520, %v1521
    %v1523 = vmul.f32 %v1500, %v1500
    %v1524 = vmul.f32 %v1501, %v1501
    %v1525 = vmul.f32 %v1523, %v1505
    %v1526 = vmul.f32 %v1524, %v1510
    %v1527 = vsel %vm1514, %v1526, 0.0
    %v1528 = vadd.f32 %v1525, %v1527
    %v1529 = vrot.slane %v1528, 4
    %v1530 = vadd.f32 %v1528, %v1529
    %v1531 = vrot.slane %v1530, 2
    %v1532 = vadd.f32 %v1530, %v1531
    %v1533 = vrot.slane %v1532, 1
    %v1534 = vadd.f32 %v1532, %v1533
    %v1535 = vsel %vm818, %v1522, %v1534
    %1536 = vmatprep.subr.mxu0 0.0
    %1537 = vmatpush1.msra.mxu0 %v513
    %1538 = vmatprep.subr.mxu0 0.0
    %1539 = vmatpush1.msra.mxu0 %v514
    %1540 = vmatprep.subr.mxu0 0.0
    %1541 = vmatpush1.msra.mxu0 %v515
    %1542 = vmatprep.subr.mxu0 0.0
    %1543 = vmatpush1.msra.mxu0 %v516
    %1544 = vmatprep.subr.mxu0 0.0
    %1545 = vmatpush1.msra.mxu0 %v517
    %1546 = vmatprep.subr.mxu0 0.0
    %1547 = vmatpush1.msra.mxu0 %v518
    %1548 = vmatprep.subr.mxu0 0.0
    %1549 = vmatpush1.msra.mxu0 %v519
    %1550 = vmatprep.subr.mxu0 0.0
    %1551 = vmatpush1.msra.mxu0 %v520
    %1552 = vmatprep.subr.mxu0 0.0
    %1553 = vmatpush1.msra.mxu0 %v521
    %1554 = vmatprep.subr.mxu0 0.0
    %1555 = vmatpush1.msra.mxu0 %v522
    %1556 = vmatprep.subr.mxu0 0.0
    %1557 = vmatpush1.msra.mxu0 %v523
    %1558 = vmatprep.subr.mxu0 0.0
    %1559 = vmatpush1.msra.mxu0 %v524
    %1560 = vmatprep.subr.mxu0 0.0
    %1561 = vmatpush1.msra.mxu0 %v525
    %1562 = vmatprep.subr.mxu0 0.0
    %1563 = vmatpush1.msra.mxu0 %v526
    %1564 = vmatprep.subr.mxu0 0.0
    %1565 = vmatpush1.msra.mxu0 %v527
    %1566 = vmatprep.subr.mxu0 0.0
    %1567 = vmatpush1.msra.mxu0 %v528
    %1568 = vmatprep.subr.mxu0 0.0
    %1569 = vmatpush1.msra.mxu0 0.0
    %1570 = vmatprep.subr.mxu0 0.0
    %1571 = vmatpush1.msra.mxu0 0.0
    %1572 = vmatprep.subr.mxu0 0.0
    %1573 = vmatpush1.msra.mxu0 0.0
    %1574 = vmatprep.subr.mxu0 0.0
    %1575 = vmatpush1.msra.mxu0 0.0
    %1576 = vmatprep.subr.mxu0 0.0
    %1577 = vmatpush1.msra.mxu0 0.0
    %1578 = vmatprep.subr.mxu0 0.0
    %1579 = vmatpush1.msra.mxu0 0.0
    %1580 = vmatprep.subr.mxu0 0.0
    %1581 = vmatpush1.msra.mxu0 0.0
    %1582 = vmatprep.subr.mxu0 0.0
    %1583 = vmatpush1.msra.mxu0 0.0
    %1584 = vmatprep.subr.mxu0 0.0
    %1585 = vmatpush1.msra.mxu0 0.0
    %1586 = vmatprep.subr.mxu0 0.0
    %1587 = vmatpush1.msra.mxu0 0.0
    %1588 = vmatprep.subr.mxu0 0.0
    %1589 = vmatpush1.msra.mxu0 0.0
    %1590 = vmatprep.subr.mxu0 0.0
    %1591 = vmatpush1.msra.mxu0 0.0
    %1592 = vmatprep.subr.mxu0 0.0
    %1593 = vmatpush1.msra.mxu0 0.0
    %1594 = vmatprep.subr.mxu0 0.0
    %1595 = vmatpush1.msra.mxu0 0.0
    %1596 = vmatprep.subr.mxu0 0.0
    %1597 = vmatpush1.msra.mxu0 0.0
    %1598 = vmatprep.subr.mxu0 0.0
    %1599 = vmatpush1.msra.mxu0 0.0
    %1600 = vmatprep.mubr.f32.mxu0 0.0
    %1601 = vmatmul.mubr.f32.gmra.mrb[0].mxu0 %v1535
    %v1602 = vpop.f32.mrb[0].mxu0
    %v1603 = vadd.f32 0.0, %v1602
    %v1604 = vpop.f32.mrb[0].mxu0
    %1605 = vdwg.mxu0
    %v1606 = vmul.f32 %v1603, %v1603
    %v1608 = vrot.slane %v1606, 7
    %v1610 = vsub.f32 %v1603, %v1608
    %v1611 = vmax.f32 %v1610, 0.0
    %v1612 = vadd.f32 %v1611, 1e-05
    %v1613 = vrsqrt.pop %v1612
    %v1614 = vmul.f32 %v512, %v1613
    %v1616 = vrot.slane %v1614, 1
    %v1618 = vmul.f32 %v1603, %v1616
    %v1620 = vrot.slane %v1618, 6
    %v1622 = vsub.f32 %v512, %v1620
    %v1623 = vlaneseq
    %v1624 = vshrl.u32 %v1623, 7
    %v1625 = vsub.s32 1, %v1624
    %v1626 = vrot.slane %v1614, %v1625
    %v1627 = vmul.f32 %v1500, %v1626
    %v1628 = vmul.f32 %v1501, %v1626
    %v1629 = vlaneseq
    %v1630 = vshrl.u32 %v1629, 7
    %v1631 = vsub.s32 2, %v1630
    %v1632 = vrot.slane %v1622, %v1631
    %v1633 = vadd.f32 %v1627, %v1632
    %v1634 = vadd.f32 %v1628, %v1632
    %v1637 = vrot.slane %v1633, 1
    %v1638 = vrot.slane %v1634, 1
    %v1639 = vsel %vm1134, %v1637, %v1638
    %1641 = vmatprep.subr.mxu0 0.0
    %1642 = vmatpush1.msra.mxu0 %v547
    %1643 = vmatprep.subr.mxu0 0.0
    %1644 = vmatpush1.msra.mxu0 %v548
    %1645 = vmatprep.subr.mxu0 0.0
    %1646 = vmatpush1.msra.mxu0 %v549
    %1647 = vmatprep.subr.mxu0 0.0
    %1648 = vmatpush1.msra.mxu0 %v550
    %1649 = vmatprep.subr.mxu0 0.0
    %1650 = vmatpush1.msra.mxu0 %v551
    %1651 = vmatprep.subr.mxu0 0.0
    %1652 = vmatpush1.msra.mxu0 %v552
    %1653 = vmatprep.subr.mxu0 0.0
    %1654 = vmatpush1.msra.mxu0 %v553
    %1655 = vmatprep.subr.mxu0 0.0
    %1656 = vmatpush1.msra.mxu0 %v554
    %1657 = vmatprep.subr.mxu0 0.0
    %1658 = vmatpush1.msra.mxu0 %v555
    %1659 = vmatprep.subr.mxu0 0.0
    %1660 = vmatpush1.msra.mxu0 %v556
    %1661 = vmatprep.subr.mxu0 0.0
    %1662 = vmatpush1.msra.mxu0 %v557
    %1663 = vmatprep.subr.mxu0 0.0
    %1664 = vmatpush1.msra.mxu0 %v558
    %1665 = vmatprep.subr.mxu0 0.0
    %1666 = vmatpush1.msra.mxu0 %v559
    %1667 = vmatprep.subr.mxu0 0.0
    %1668 = vmatpush1.msra.mxu0 %v560
    %1669 = vmatprep.subr.mxu0 0.0
    %1670 = vmatpush1.msra.mxu0 %v561
    %1671 = vmatprep.subr.mxu0 0.0
    %1672 = vmatpush1.msra.mxu0 %v562
    %1673 = vmatprep.subr.mxu0 0.0
    %1674 = vmatpush1.msra.mxu0 0.0
    %1675 = vmatprep.subr.mxu0 0.0
    %1676 = vmatpush1.msra.mxu0 0.0
    %1677 = vmatprep.subr.mxu0 0.0
    %1678 = vmatpush1.msra.mxu0 0.0
    %1679 = vmatprep.subr.mxu0 0.0
    %1680 = vmatpush1.msra.mxu0 0.0
    %1681 = vmatprep.subr.mxu0 0.0
    %1682 = vmatpush1.msra.mxu0 0.0
    %1683 = vmatprep.subr.mxu0 0.0
    %1684 = vmatpush1.msra.mxu0 0.0
    %1685 = vmatprep.subr.mxu0 0.0
    %1686 = vmatpush1.msra.mxu0 0.0
    %1687 = vmatprep.subr.mxu0 0.0
    %1688 = vmatpush1.msra.mxu0 0.0
    %1689 = vmatprep.subr.mxu0 0.0
    %1690 = vmatpush1.msra.mxu0 0.0
    %1691 = vmatprep.subr.mxu0 0.0
    %1692 = vmatpush1.msra.mxu0 0.0
    %1693 = vmatprep.subr.mxu0 0.0
    %1694 = vmatpush1.msra.mxu0 0.0
    %1695 = vmatprep.subr.mxu0 0.0
    %1696 = vmatpush1.msra.mxu0 0.0
    %1697 = vmatprep.subr.mxu0 0.0
    %1698 = vmatpush1.msra.mxu0 0.0
    %1699 = vmatprep.subr.mxu0 0.0
    %1700 = vmatpush1.msra.mxu0 0.0
    %1701 = vmatprep.subr.mxu0 0.0
    %1702 = vmatpush1.msra.mxu0 0.0
    %1703 = vmatprep.subr.mxu0 0.0
    %1704 = vmatpush1.msra.mxu0 0.0
    %1705 = vmatprep.mubr.f32.mxu0 0.0
    %1706 = vmatmul.mubr.f32.gmra.mrb[0].mxu0 %v1639
    %v1707 = vpop.f32.mrb[0].mxu0
    %v1708 = vadd.f32 0.0, %v1707
    %v1709 = vpop.f32.mrb[0].mxu0
    %1710 = vdwg.mxu0
    %1711 = vmatprep.subr.mxu0 0.0
    %1712 = vmatpush1.msra.mxu0 %v531
    %1713 = vmatprep.subr.mxu0 0.0
    %1714 = vmatpush1.msra.mxu0 %v532
    %1715 = vmatprep.subr.mxu0 0.0
    %1716 = vmatpush1.msra.mxu0 %v533
    %1717 = vmatprep.subr.mxu0 0.0
    %1718 = vmatpush1.msra.mxu0 %v534
    %1719 = vmatprep.subr.mxu0 0.0
    %1720 = vmatpush1.msra.mxu0 %v535
    %1721 = vmatprep.subr.mxu0 0.0
    %1722 = vmatpush1.msra.mxu0 %v536
    %1723 = vmatprep.subr.mxu0 0.0
    %1724 = vmatpush1.msra.mxu0 %v537
    %1725 = vmatprep.subr.mxu0 0.0
    %1726 = vmatpush1.msra.mxu0 %v538
    %1727 = vmatprep.subr.mxu0 0.0
    %1728 = vmatpush1.msra.mxu0 %v539
    %1729 = vmatprep.subr.mxu0 0.0
    %1730 = vmatpush1.msra.mxu0 %v540
    %1731 = vmatprep.subr.mxu0 0.0
    %1732 = vmatpush1.msra.mxu0 %v541
    %1733 = vmatprep.subr.mxu0 0.0
    %1734 = vmatpush1.msra.mxu0 %v542
    %1735 = vmatprep.subr.mxu0 0.0
    %1736 = vmatpush1.msra.mxu0 %v543
    %1737 = vmatprep.subr.mxu0 0.0
    %1738 = vmatpush1.msra.mxu0 %v544
    %1739 = vmatprep.subr.mxu0 0.0
    %1740 = vmatpush1.msra.mxu0 %v545
    %1741 = vmatprep.subr.mxu0 0.0
    %1742 = vmatpush1.msra.mxu0 %v546
    %1743 = vmatprep.subr.mxu0 0.0
    %1744 = vmatpush1.msra.mxu0 0.0
    %1745 = vmatprep.subr.mxu0 0.0
    %1746 = vmatpush1.msra.mxu0 0.0
    %1747 = vmatprep.subr.mxu0 0.0
    %1748 = vmatpush1.msra.mxu0 0.0
    %1749 = vmatprep.subr.mxu0 0.0
    %1750 = vmatpush1.msra.mxu0 0.0
    %1751 = vmatprep.subr.mxu0 0.0
    %1752 = vmatpush1.msra.mxu0 0.0
    %1753 = vmatprep.subr.mxu0 0.0
    %1754 = vmatpush1.msra.mxu0 0.0
    %1755 = vmatprep.subr.mxu0 0.0
    %1756 = vmatpush1.msra.mxu0 0.0
    %1757 = vmatprep.subr.mxu0 0.0
    %1758 = vmatpush1.msra.mxu0 0.0
    %1759 = vmatprep.subr.mxu0 0.0
    %1760 = vmatpush1.msra.mxu0 0.0
    %1761 = vmatprep.subr.mxu0 0.0
    %1762 = vmatpush1.msra.mxu0 0.0
    %1763 = vmatprep.subr.mxu0 0.0
    %1764 = vmatpush1.msra.mxu0 0.0
    %1765 = vmatprep.subr.mxu0 0.0
    %1766 = vmatpush1.msra.mxu0 0.0
    %1767 = vmatprep.subr.mxu0 0.0
    %1768 = vmatpush1.msra.mxu0 0.0
    %1769 = vmatprep.subr.mxu0 0.0
    %1770 = vmatpush1.msra.mxu0 0.0
    %1771 = vmatprep.subr.mxu0 0.0
    %1772 = vmatpush1.msra.mxu0 0.0
    %1773 = vmatprep.subr.mxu0 0.0
    %1774 = vmatpush1.msra.mxu0 0.0
    %1775 = vmatprep.mubr.f32.mxu0 0.0
    %1776 = vmatmul.mubr.f32.gmra.mrb[0].mxu0 %v1633
    %v1777 = vpop.f32.mrb[0].mxu0
    %v1778 = vadd.f32 %v1708, %v1777
    %v1779 = vpop.f32.mrb[0].mxu0
    %1780 = vdwg.mxu0
    %v1781 = vrot.slane %v1633, 2
    %v1782 = vrot.slane %v1634, 2
    %v1783 = vsel %vm1315, %v1781, %v1782
    %1785 = vmatprep.subr.mxu0 0.0
    %1786 = vmatpush1.msra.mxu0 %v563
    %1787 = vmatprep.subr.mxu0 0.0
    %1788 = vmatpush1.msra.mxu0 %v564
    %1789 = vmatprep.subr.mxu0 0.0
    %1790 = vmatpush1.msra.mxu0 %v565
    %1791 = vmatprep.subr.mxu0 0.0
    %1792 = vmatpush1.msra.mxu0 %v566
    %1793 = vmatprep.subr.mxu0 0.0
    %1794 = vmatpush1.msra.mxu0 %v567
    %1795 = vmatprep.subr.mxu0 0.0
    %1796 = vmatpush1.msra.mxu0 %v568
    %1797 = vmatprep.subr.mxu0 0.0
    %1798 = vmatpush1.msra.mxu0 %v569
    %1799 = vmatprep.subr.mxu0 0.0
    %1800 = vmatpush1.msra.mxu0 %v570
    %1801 = vmatprep.subr.mxu0 0.0
    %1802 = vmatpush1.msra.mxu0 %v571
    %1803 = vmatprep.subr.mxu0 0.0
    %1804 = vmatpush1.msra.mxu0 %v572
    %1805 = vmatprep.subr.mxu0 0.0
    %1806 = vmatpush1.msra.mxu0 %v573
    %1807 = vmatprep.subr.mxu0 0.0
    %1808 = vmatpush1.msra.mxu0 %v574
    %1809 = vmatprep.subr.mxu0 0.0
    %1810 = vmatpush1.msra.mxu0 %v575
    %1811 = vmatprep.subr.mxu0 0.0
    %1812 = vmatpush1.msra.mxu0 %v576
    %1813 = vmatprep.subr.mxu0 0.0
    %1814 = vmatpush1.msra.mxu0 %v577
    %1815 = vmatprep.subr.mxu0 0.0
    %1816 = vmatpush1.msra.mxu0 %v578
    %1817 = vmatprep.subr.mxu0 0.0
    %1818 = vmatpush1.msra.mxu0 0.0
    %1819 = vmatprep.subr.mxu0 0.0
    %1820 = vmatpush1.msra.mxu0 0.0
    %1821 = vmatprep.subr.mxu0 0.0
    %1822 = vmatpush1.msra.mxu0 0.0
    %1823 = vmatprep.subr.mxu0 0.0
    %1824 = vmatpush1.msra.mxu0 0.0
    %1825 = vmatprep.subr.mxu0 0.0
    %1826 = vmatpush1.msra.mxu0 0.0
    %1827 = vmatprep.subr.mxu0 0.0
    %1828 = vmatpush1.msra.mxu0 0.0
    %1829 = vmatprep.subr.mxu0 0.0
    %1830 = vmatpush1.msra.mxu0 0.0
    %1831 = vmatprep.subr.mxu0 0.0
    %1832 = vmatpush1.msra.mxu0 0.0
    %1833 = vmatprep.subr.mxu0 0.0
    %1834 = vmatpush1.msra.mxu0 0.0
    %1835 = vmatprep.subr.mxu0 0.0
    %1836 = vmatpush1.msra.mxu0 0.0
    %1837 = vmatprep.subr.mxu0 0.0
    %1838 = vmatpush1.msra.mxu0 0.0
    %1839 = vmatprep.subr.mxu0 0.0
    %1840 = vmatpush1.msra.mxu0 0.0
    %1841 = vmatprep.subr.mxu0 0.0
    %1842 = vmatpush1.msra.mxu0 0.0
    %1843 = vmatprep.subr.mxu0 0.0
    %1844 = vmatpush1.msra.mxu0 0.0
    %1845 = vmatprep.subr.mxu0 0.0
    %1846 = vmatpush1.msra.mxu0 0.0
    %1847 = vmatprep.subr.mxu0 0.0
    %1848 = vmatpush1.msra.mxu0 0.0
    %1849 = vmatprep.mubr.f32.mxu0 0.0
    %1850 = vmatmul.mubr.f32.gmra.mrb[0].mxu0 %v1783
    %v1851 = vpop.f32.mrb[0].mxu0
    %v1852 = vadd.f32 0.0, %v1851
    %v1853 = vpop.f32.mrb[0].mxu0
    %1854 = vdwg.mxu0
    %v1855 = vadd.f32 %v1778, %v1852
    %v1856 = vlaneseq
    %v1857 = vshrl.u32 %v1856, 7
    %v1858 = vsub.s32 0, %v1857
    %v1859 = vrot.slane %v579, %v1858
    %v1860 = vadd.f32 %v1855, %v1859
    %v1861 = vmax.f32 %v1860, 0.0
    %1863 = vset.pattern.permute.xlu0 0
    %1864 = vperm.xlu0 %1863, %v588
    %v1865 = vpop.permute.xlu0 %1864
    %v1867 = vmul.f32 %v1861, %v1865
    %v1868 = vsel %vm782, %v1867, 0.0
    %v1869 = vrot.slane %v1868, 4
    %v1870 = vadd.f32 %v1868, %v1869
    %v1871 = vrot.slane %v1870, 2
    %v1872 = vadd.f32 %v1870, %v1871
    %v1873 = vrot.slane %v1872, 1
    %v1874 = vadd.f32 %v1872, %v1873
    %v1875 = vmul.f32 %v1861, %v1861
    %v1876 = vmul.f32 %v1875, %v1865
    %v1877 = vsel %vm782, %v1876, 0.0
    %v1878 = vrot.slane %v1877, 4
    %v1879 = vadd.f32 %v1877, %v1878
    %v1880 = vrot.slane %v1879, 2
    %v1881 = vadd.f32 %v1879, %v1880
    %v1882 = vrot.slane %v1881, 1
    %v1883 = vadd.f32 %v1881, %v1882
    %v1884 = vsel %vm818, %v1874, %v1883
    %v1886 = vsel %vm782, %v1884, 0
    %1888 = vmatprep.subr.mxu0 0.0
    %1889 = vmatpush1.msra.mxu0 %v580
    %1890 = vmatprep.subr.mxu0 0.0
    %1891 = vmatpush1.msra.mxu0 %v581
    %1892 = vmatprep.subr.mxu0 0.0
    %1893 = vmatpush1.msra.mxu0 %v582
    %1894 = vmatprep.subr.mxu0 0.0
    %1895 = vmatpush1.msra.mxu0 %v583
    %1896 = vmatprep.subr.mxu0 0.0
    %1897 = vmatpush1.msra.mxu0 %v584
    %1898 = vmatprep.subr.mxu0 0.0
    %1899 = vmatpush1.msra.mxu0 %v585
    %1900 = vmatprep.subr.mxu0 0.0
    %1901 = vmatpush1.msra.mxu0 %v586
    %1902 = vmatprep.subr.mxu0 0.0
    %1903 = vmatpush1.msra.mxu0 %v587
    %1904 = vmatprep.subr.mxu0 0.0
    %1905 = vmatpush1.msra.mxu0 0.0
    %1906 = vmatprep.subr.mxu0 0.0
    %1907 = vmatpush1.msra.mxu0 0.0
    %1908 = vmatprep.subr.mxu0 0.0
    %1909 = vmatpush1.msra.mxu0 0.0
    %1910 = vmatprep.subr.mxu0 0.0
    %1911 = vmatpush1.msra.mxu0 0.0
    %1912 = vmatprep.subr.mxu0 0.0
    %1913 = vmatpush1.msra.mxu0 0.0
    %1914 = vmatprep.subr.mxu0 0.0
    %1915 = vmatpush1.msra.mxu0 0.0
    %1916 = vmatprep.subr.mxu0 0.0
    %1917 = vmatpush1.msra.mxu0 0.0
    %1918 = vmatprep.subr.mxu0 0.0
    %1919 = vmatpush1.msra.mxu0 0.0
    %1920 = vmatprep.subr.mxu0 0.0
    %1921 = vmatpush1.msra.mxu0 0.0
    %1922 = vmatprep.subr.mxu0 0.0
    %1923 = vmatpush1.msra.mxu0 0.0
    %1924 = vmatprep.subr.mxu0 0.0
    %1925 = vmatpush1.msra.mxu0 0.0
    %1926 = vmatprep.subr.mxu0 0.0
    %1927 = vmatpush1.msra.mxu0 0.0
    %1928 = vmatprep.subr.mxu0 0.0
    %1929 = vmatpush1.msra.mxu0 0.0
    %1930 = vmatprep.subr.mxu0 0.0
    %1931 = vmatpush1.msra.mxu0 0.0
    %1932 = vmatprep.subr.mxu0 0.0
    %1933 = vmatpush1.msra.mxu0 0.0
    %1934 = vmatprep.subr.mxu0 0.0
    %1935 = vmatpush1.msra.mxu0 0.0
    %1936 = vmatprep.subr.mxu0 0.0
    %1937 = vmatpush1.msra.mxu0 0.0
    %1938 = vmatprep.subr.mxu0 0.0
    %1939 = vmatpush1.msra.mxu0 0.0
    %1940 = vmatprep.subr.mxu0 0.0
    %1941 = vmatpush1.msra.mxu0 0.0
    %1942 = vmatprep.subr.mxu0 0.0
    %1943 = vmatpush1.msra.mxu0 0.0
    %1944 = vmatprep.subr.mxu0 0.0
    %1945 = vmatpush1.msra.mxu0 0.0
    %1946 = vmatprep.subr.mxu0 0.0
    %1947 = vmatpush1.msra.mxu0 0.0
    %1948 = vmatprep.subr.mxu0 0.0
    %1949 = vmatpush1.msra.mxu0 0.0
    %1950 = vmatprep.subr.mxu0 0.0
    %1951 = vmatpush1.msra.mxu0 0.0
    %1952 = vmatprep.mubr.f32.mxu0 0.0
    %1953 = vmatmul.mubr.f32.gmra.mrb[0].mxu0 %v1886
    %v1954 = vpop.f32.mrb[0].mxu0
    %v1955 = vadd.f32 0.0, %v1954
    %v1956 = vpop.f32.mrb[0].mxu0
    %1957 = vdwg.mxu0
    %v1958 = vmul.f32 %v1955, %v1955
    %v1960 = vrot.slane %v1958, 7
    %v1962 = vsub.f32 %v1955, %v1960
    %v1963 = vmax.f32 %v1962, 0.0
    %v1964 = vadd.f32 %v1963, 1e-05
    %v1965 = vrsqrt.pop %v1964
    %v1966 = vmul.f32 %v579, %v1965
    %v1968 = vrot.slane %v1966, 1
    %v1970 = vmul.f32 %v1955, %v1968
    %v1972 = vrot.slane %v1970, 6
    %v1974 = vsub.f32 %v579, %v1972
    %v1975 = vlaneseq
    %v1976 = vshrl.u32 %v1975, 7
    %v1977 = vsub.s32 1, %v1976
    %v1978 = vrot.slane %v1966, %v1977
    %v1979 = vmul.f32 %v1861, %v1978
    %v1980 = vlaneseq
    %v1981 = vshrl.u32 %v1980, 7
    %v1982 = vsub.s32 2, %v1981
    %v1983 = vrot.slane %v1974, %v1982
    %v1984 = vadd.f32 %v1979, %v1983
    %v1985 = vld [vmem:[%s31] sm:$0xff]
    %v1986 = vld [vmem:[%s31 + $0x8] sm:$0xff]
    %v1987 = vld [vmem:[%s33] sm:$0xff]
    %v1988 = vld [vmem:[%s33 + $0x8] sm:$0xff]
    %v1989 = vld [vmem:[%s35] sm:$0xff]
    %v1990 = vld [vmem:[%s35 + $0x8] sm:$0xff]
    %v1991 = vld [vmem:[%s35 + $0x10] sm:$0xff]
    %v1992 = vld [vmem:[%s35 + $0x18] sm:$0xff]
    %v1993 = vld [vmem:[%s35 + $0x20] sm:$0xff]
    %v1994 = vld [vmem:[%s35 + $0x28] sm:$0xff]
    %v1995 = vld [vmem:[%s35 + $0x30] sm:$0xff]
    %v1996 = vld [vmem:[%s35 + $0x38] sm:$0xff]
    %v1997 = vld [vmem:[%s37] sm:$0x7]
    %v1998 = vld [vmem:[%s39] sm:$0xff]
    %v1999 = vld [vmem:[%s39 + $0x8] sm:$0xff]
    %v2000 = vld [vmem:[%s39 + $0x10] sm:$0xff]
    %v2001 = vld [vmem:[%s39 + $0x18] sm:$0xff]
    %v2002 = vld [vmem:[%s39 + $0x20] sm:$0xff]
    %v2003 = vld [vmem:[%s39 + $0x28] sm:$0xff]
    %v2004 = vld [vmem:[%s39 + $0x30] sm:$0xff]
    %v2005 = vld [vmem:[%s39 + $0x38] sm:$0xff]
    %v2006 = vld [vmem:[%s39 + $0x40] sm:$0xff]
    %v2007 = vld [vmem:[%s39 + $0x48] sm:$0xff]
    %v2008 = vld [vmem:[%s39 + $0x50] sm:$0xff]
    %v2009 = vld [vmem:[%s39 + $0x58] sm:$0xff]
    %v2010 = vld [vmem:[%s39 + $0x60] sm:$0xff]
    %v2011 = vld [vmem:[%s39 + $0x68] sm:$0xff]
    %v2012 = vld [vmem:[%s39 + $0x70] sm:$0xff]
    %v2013 = vld [vmem:[%s39 + $0x78] sm:$0xff]
    %v2014 = vld [vmem:[%s41] sm:$0xff]
    %v2015 = vld [vmem:[%s41 + $0x8] sm:$0xff]
    %v2016 = vld [vmem:[%s41 + $0x10] sm:$0xff]
    %v2017 = vld [vmem:[%s41 + $0x18] sm:$0xff]
    %v2018 = vld [vmem:[%s41 + $0x20] sm:$0xff]
    %v2019 = vld [vmem:[%s41 + $0x28] sm:$0xff]
    %v2020 = vld [vmem:[%s41 + $0x30] sm:$0xff]
    %v2021 = vld [vmem:[%s41 + $0x38] sm:$0xff]
    %v2022 = vld [vmem:[%s41 + $0x40] sm:$0xff]
    %v2023 = vld [vmem:[%s41 + $0x48] sm:$0xff]
    %v2024 = vld [vmem:[%s41 + $0x50] sm:$0xff]
    %v2025 = vld [vmem:[%s41 + $0x58] sm:$0xff]
    %v2026 = vld [vmem:[%s41 + $0x60] sm:$0xff]
    %v2027 = vld [vmem:[%s41 + $0x68] sm:$0xff]
    %v2028 = vld [vmem:[%s41 + $0x70] sm:$0xff]
    %v2029 = vld [vmem:[%s41 + $0x78] sm:$0xff]
    %v2030 = vld [vmem:[%s41 + $0x80] sm:$0xff]
    %v2031 = vld [vmem:[%s41 + $0x88] sm:$0xff]
    %v2032 = vld [vmem:[%s41 + $0x90] sm:$0xff]
    %v2033 = vld [vmem:[%s41 + $0x98] sm:$0xff]
    %v2034 = vld [vmem:[%s41 + $0xa0] sm:$0xff]
    %v2035 = vld [vmem:[%s41 + $0xa8] sm:$0xff]
    %v2036 = vld [vmem:[%s41 + $0xb0] sm:$0xff]
    %v2037 = vld [vmem:[%s41 + $0xb8] sm:$0xff]
    %v2038 = vld [vmem:[%s41 + $0xc0] sm:$0xff]
    %v2039 = vld [vmem:[%s41 + $0xc8] sm:$0xff]
    %v2040 = vld [vmem:[%s41 + $0xd0] sm:$0xff]
    %v2041 = vld [vmem:[%s41 + $0xd8] sm:$0xff]
    %v2042 = vld [vmem:[%s41 + $0xe0] sm:$0xff]
    %v2043 = vld [vmem:[%s41 + $0xe8] sm:$0xff]
    %v2044 = vld [vmem:[%s41 + $0xf0] sm:$0xff]
    %v2045 = vld [vmem:[%s41 + $0xf8] sm:$0xff]
    %v2046 = vld [vmem:[%s41 + $0x100] sm:$0xff]
    %v2047 = vld [vmem:[%s41 + $0x108] sm:$0xff]
    %v2048 = vld [vmem:[%s41 + $0x110] sm:$0xff]
    %v2049 = vld [vmem:[%s41 + $0x118] sm:$0xff]
    %v2050 = vld [vmem:[%s41 + $0x120] sm:$0xff]
    %v2051 = vld [vmem:[%s41 + $0x128] sm:$0xff]
    %v2052 = vld [vmem:[%s41 + $0x130] sm:$0xff]
    %v2053 = vld [vmem:[%s41 + $0x138] sm:$0xff]
    %v2054 = vld [vmem:[%s41 + $0x140] sm:$0xff]
    %v2055 = vld [vmem:[%s41 + $0x148] sm:$0xff]
    %v2056 = vld [vmem:[%s41 + $0x150] sm:$0xff]
    %v2057 = vld [vmem:[%s41 + $0x158] sm:$0xff]
    %v2058 = vld [vmem:[%s41 + $0x160] sm:$0xff]
    %v2059 = vld [vmem:[%s41 + $0x168] sm:$0xff]
    %v2060 = vld [vmem:[%s41 + $0x170] sm:$0xff]
    %v2061 = vld [vmem:[%s41 + $0x178] sm:$0xff]
    %v2062 = vld [vmem:[%s43] sm:$0xff]
    %v2063 = vld [vmem:[%s43 + $0x8] sm:$0xff]
    %v2064 = vld [vmem:[%s43 + $0x10] sm:$0xff]
    %v2065 = vld [vmem:[%s43 + $0x18] sm:$0xff]
    %v2066 = vld [vmem:[%s43 + $0x20] sm:$0xff]
    %v2067 = vld [vmem:[%s43 + $0x28] sm:$0xff]
    %v2068 = vld [vmem:[%s43 + $0x30] sm:$0xff]
    %v2069 = vld [vmem:[%s43 + $0x38] sm:$0xff]
    %v2070 = vld [vmem:[%s43 + $0x40] sm:$0xff]
    %v2071 = vld [vmem:[%s43 + $0x48] sm:$0xff]
    %v2072 = vld [vmem:[%s43 + $0x50] sm:$0xff]
    %v2073 = vld [vmem:[%s43 + $0x58] sm:$0xff]
    %v2074 = vld [vmem:[%s43 + $0x60] sm:$0xff]
    %v2075 = vld [vmem:[%s43 + $0x68] sm:$0xff]
    %v2076 = vld [vmem:[%s43 + $0x70] sm:$0xff]
    %v2077 = vld [vmem:[%s43 + $0x78] sm:$0xff]
    %v2078 = vld [vmem:[%s43 + $0x80] sm:$0xff]
    %v2079 = vld [vmem:[%s43 + $0x88] sm:$0xff]
    %v2080 = vld [vmem:[%s43 + $0x90] sm:$0xff]
    %v2081 = vld [vmem:[%s43 + $0x98] sm:$0xff]
    %v2082 = vld [vmem:[%s43 + $0xa0] sm:$0xff]
    %v2083 = vld [vmem:[%s43 + $0xa8] sm:$0xff]
    %v2084 = vld [vmem:[%s43 + $0xb0] sm:$0xff]
    %v2085 = vld [vmem:[%s43 + $0xb8] sm:$0xff]
    %v2086 = vld [vmem:[%s43 + $0xc0] sm:$0xff]
    %v2087 = vld [vmem:[%s43 + $0xc8] sm:$0xff]
    %v2088 = vld [vmem:[%s43 + $0xd0] sm:$0xff]
    %v2089 = vld [vmem:[%s43 + $0xd8] sm:$0xff]
    %v2090 = vld [vmem:[%s43 + $0xe0] sm:$0xff]
    %v2091 = vld [vmem:[%s43 + $0xe8] sm:$0xff]
    %v2092 = vld [vmem:[%s43 + $0xf0] sm:$0xff]
    %v2093 = vld [vmem:[%s43 + $0xf8] sm:$0xff]
    %v2094 = vld [vmem:[%s43 + $0x100] sm:$0xff]
    %v2095 = vld [vmem:[%s43 + $0x108] sm:$0xff]
    %v2096 = vld [vmem:[%s43 + $0x110] sm:$0xff]
    %v2097 = vld [vmem:[%s43 + $0x118] sm:$0xff]
    %v2098 = vld [vmem:[%s43 + $0x120] sm:$0xff]
    %v2099 = vld [vmem:[%s43 + $0x128] sm:$0xff]
    %v2100 = vld [vmem:[%s43 + $0x130] sm:$0xff]
    %v2101 = vld [vmem:[%s43 + $0x138] sm:$0xff]
    %v2102 = vld [vmem:[%s43 + $0x140] sm:$0xff]
    %v2103 = vld [vmem:[%s43 + $0x148] sm:$0xff]
    %v2104 = vld [vmem:[%s43 + $0x150] sm:$0xff]
    %v2105 = vld [vmem:[%s43 + $0x158] sm:$0xff]
    %v2106 = vld [vmem:[%s43 + $0x160] sm:$0xff]
    %v2107 = vld [vmem:[%s43 + $0x168] sm:$0xff]
    %v2108 = vld [vmem:[%s43 + $0x170] sm:$0xff]
    %v2109 = vld [vmem:[%s43 + $0x178] sm:$0xff]
    %v2110 = vld [vmem:[%s45] sm:$0x7]
    %v2111 = vld [vmem:[%s47] sm:$0xff]
    %v2112 = vld [vmem:[%s47 + $0x8] sm:$0xff]
    %v2113 = vld [vmem:[%s47 + $0x10] sm:$0xff]
    %v2114 = vld [vmem:[%s47 + $0x18] sm:$0xff]
    %v2115 = vld [vmem:[%s47 + $0x20] sm:$0xff]
    %v2116 = vld [vmem:[%s47 + $0x28] sm:$0xff]
    %v2117 = vld [vmem:[%s47 + $0x30] sm:$0xff]
    %v2118 = vld [vmem:[%s47 + $0x38] sm:$0xff]
    %v2119 = vld [vmem:[%s47 + $0x40] sm:$0xff]
    %v2120 = vld [vmem:[%s47 + $0x48] sm:$0xff]
    %v2121 = vld [vmem:[%s47 + $0x50] sm:$0xff]
    %v2122 = vld [vmem:[%s47 + $0x58] sm:$0xff]
    %v2123 = vld [vmem:[%s49] sm:$0xff]
    %v2124 = vld [vmem:[%s49 + $0x8] sm:$0x3f]
    %v2125 = vld [vmem:[%s51] sm:$0xff]
    %v2126 = vld [vmem:[%s51 + $0x8] sm:$0xff]
    %v2127 = vld [vmem:[%s51 + $0x10] sm:$0xff]
    %v2128 = vld [vmem:[%s51 + $0x18] sm:$0xff]
    %v2129 = vld [vmem:[%s51 + $0x20] sm:$0xff]
    %v2130 = vld [vmem:[%s51 + $0x28] sm:$0xff]
    %v2131 = vld [vmem:[%s51 + $0x30] sm:$0xff]
    %v2132 = vld [vmem:[%s51 + $0x38] sm:$0xff]
    %v2133 = vld [vmem:[%s51 + $0x40] sm:$0xff]
    %v2134 = vld [vmem:[%s51 + $0x48] sm:$0xff]
    %v2135 = vld [vmem:[%s51 + $0x50] sm:$0xff]
    %v2136 = vld [vmem:[%s51 + $0x58] sm:$0xff]
    %v2137 = vld [vmem:[%s51 + $0x60] sm:$0xff]
    %v2138 = vld [vmem:[%s51 + $0x68] sm:$0xff]
    %v2139 = vld [vmem:[%s51 + $0x70] sm:$0xff]
    %v2140 = vld [vmem:[%s51 + $0x78] sm:$0xff]
    %v2141 = vld [vmem:[%s51 + $0x80] sm:$0xff]
    %v2142 = vld [vmem:[%s51 + $0x88] sm:$0xff]
    %v2143 = vld [vmem:[%s51 + $0x90] sm:$0xff]
    %v2144 = vld [vmem:[%s51 + $0x98] sm:$0xff]
    %v2145 = vld [vmem:[%s51 + $0xa0] sm:$0xff]
    %v2146 = vld [vmem:[%s51 + $0xa8] sm:$0xff]
    %v2147 = vld [vmem:[%s51 + $0xb0] sm:$0xff]
    %v2148 = vld [vmem:[%s51 + $0xb8] sm:$0xff]
    %v2149 = vld [vmem:[%s51 + $0xc0] sm:$0xff]
    %v2150 = vld [vmem:[%s51 + $0xc8] sm:$0xff]
    %v2151 = vld [vmem:[%s51 + $0xd0] sm:$0xff]
    %v2152 = vld [vmem:[%s51 + $0xd8] sm:$0xff]
    %v2153 = vld [vmem:[%s51 + $0xe0] sm:$0xff]
    %v2154 = vld [vmem:[%s51 + $0xe8] sm:$0xff]
    %v2155 = vld [vmem:[%s51 + $0xf0] sm:$0xff]
    %v2156 = vld [vmem:[%s51 + $0xf8] sm:$0xff]
    %v2157 = vld [vmem:[%s51 + $0x100] sm:$0xff]
    %v2158 = vld [vmem:[%s51 + $0x108] sm:$0xff]
    %v2159 = vld [vmem:[%s51 + $0x110] sm:$0xff]
    %v2160 = vld [vmem:[%s51 + $0x118] sm:$0xff]
    %v2161 = vld [vmem:[%s53] sm:$0x7]
    %v2162 = vld [vmem:[%s55] sm:$0xff]
    %v2163 = vld [vmem:[%s55 + $0x8] sm:$0xff]
    %v2164 = vld [vmem:[%s55 + $0x10] sm:$0xff]
    %v2165 = vld [vmem:[%s55 + $0x18] sm:$0xff]
    %v2166 = vld [vmem:[%s55 + $0x20] sm:$0xff]
    %v2167 = vld [vmem:[%s55 + $0x28] sm:$0xff]
    %v2168 = vld [vmem:[%s55 + $0x30] sm:$0xff]
    %v2169 = vld [vmem:[%s55 + $0x38] sm:$0xff]
    %v2170 = vld [vmem:[%s57] sm:$0xff]
    %v2171 = vld [vmem:[%s57 + $0x8] sm:$0xf]
    %v2173 = vsel %vm589, %v1987, 0
    %v2176 = vsel %vm589, %v1988, 0
    %2178 = vmatprep.subr.mxu0 0.0
    %2179 = vmatpush1.msra.mxu0 %v1984
    %2180 = vmatprep.subr.mxu0 0.0
    %2181 = vmatpush1.msra.mxu0 0.0
    %2182 = vmatprep.subr.mxu0 0.0
    %2183 = vmatpush1.msra.mxu0 0.0
    %2184 = vmatprep.subr.mxu0 0.0
    %2185 = vmatpush1.msra.mxu0 0.0
    %2186 = vmatprep.subr.mxu0 0.0
    %2187 = vmatpush1.msra.mxu0 0.0
    %2188 = vmatprep.subr.mxu0 0.0
    %2189 = vmatpush1.msra.mxu0 0.0
    %2190 = vmatprep.subr.mxu0 0.0
    %2191 = vmatpush1.msra.mxu0 0.0
    %2192 = vmatprep.subr.mxu0 0.0
    %2193 = vmatpush1.msra.mxu0 0.0
    %2194 = vmatprep.subr.mxu0 0.0
    %2195 = vmatpush1.msra.mxu0 0.0
    %2196 = vmatprep.subr.mxu0 0.0
    %2197 = vmatpush1.msra.mxu0 0.0
    %2198 = vmatprep.subr.mxu0 0.0
    %2199 = vmatpush1.msra.mxu0 0.0
    %2200 = vmatprep.subr.mxu0 0.0
    %2201 = vmatpush1.msra.mxu0 0.0
    %2202 = vmatprep.subr.mxu0 0.0
    %2203 = vmatpush1.msra.mxu0 0.0
    %2204 = vmatprep.subr.mxu0 0.0
    %2205 = vmatpush1.msra.mxu0 0.0
    %2206 = vmatprep.subr.mxu0 0.0
    %2207 = vmatpush1.msra.mxu0 0.0
    %2208 = vmatprep.subr.mxu0 0.0
    %2209 = vmatpush1.msra.mxu0 0.0
    %2210 = vmatprep.subr.mxu0 0.0
    %2211 = vmatpush1.msra.mxu0 0.0
    %2212 = vmatprep.subr.mxu0 0.0
    %2213 = vmatpush1.msra.mxu0 0.0
    %2214 = vmatprep.subr.mxu0 0.0
    %2215 = vmatpush1.msra.mxu0 0.0
    %2216 = vmatprep.subr.mxu0 0.0
    %2217 = vmatpush1.msra.mxu0 0.0
    %2218 = vmatprep.subr.mxu0 0.0
    %2219 = vmatpush1.msra.mxu0 0.0
    %2220 = vmatprep.subr.mxu0 0.0
    %2221 = vmatpush1.msra.mxu0 0.0
    %2222 = vmatprep.subr.mxu0 0.0
    %2223 = vmatpush1.msra.mxu0 0.0
    %2224 = vmatprep.subr.mxu0 0.0
    %2225 = vmatpush1.msra.mxu0 0.0
    %2226 = vmatprep.subr.mxu0 0.0
    %2227 = vmatpush1.msra.mxu0 0.0
    %2228 = vmatprep.subr.mxu0 0.0
    %2229 = vmatpush1.msra.mxu0 0.0
    %2230 = vmatprep.subr.mxu0 0.0
    %2231 = vmatpush1.msra.mxu0 0.0
    %2232 = vmatprep.subr.mxu0 0.0
    %2233 = vmatpush1.msra.mxu0 0.0
    %2234 = vmatprep.subr.mxu0 0.0
    %2235 = vmatpush1.msra.mxu0 0.0
    %2236 = vmatprep.subr.mxu0 0.0
    %2237 = vmatpush1.msra.mxu0 0.0
    %2238 = vmatprep.subr.mxu0 0.0
    %2239 = vmatpush1.msra.mxu0 0.0
    %2240 = vmatprep.subr.mxu0 0.0
    %2241 = vmatpush1.msra.mxu0 0.0
    %2242 = vmatprep.mubr.f32.mxu0 0.0
    %2243 = vmatmul.mubr.f32.gmra.mrb[0].mxu0 %v2173
    %v2244 = vpop.f32.mrb[0].mxu0
    %v2245 = vadd.f32 0.0, %v2244
    %v2246 = vpop.f32.mrb[0].mxu0
    %2247 = vmatprep.mubr.f32.mxu0 0.0
    %2248 = vmatmul.mubr.f32.gmra.mrb[0].mxu0 %v2176
    %v2249 = vpop.f32.mrb[0].mxu0
    %v2250 = vadd.f32 0.0, %v2249
    %v2251 = vpop.f32.mrb[0].mxu0
    %2252 = vdwg.mxu0
    %v2253 = vlaneseq
    %v2254 = vshrl.u32 %v2253, 7
    %v2255 = vsub.s32 0, %v2254
    %v2256 = vrot.slane %v1997, %v2255
    %v2258 = vsel %vm782, %v2245, 0
    %v2261 = vsel %vm782, %v2250, 0
    %2263 = vmatprep.subr.mxu0 0.0
    %2264 = vmatpush1.msra.mxu0 %v1989
    %2265 = vmatprep.subr.mxu0 0.0
    %2266 = vmatpush1.msra.mxu0 %v1990
    %2267 = vmatprep.subr.mxu0 0.0
    %2268 = vmatpush1.msra.mxu0 %v1991
    %2269 = vmatprep.subr.mxu0 0.0
    %2270 = vmatpush1.msra.mxu0 %v1992
    %2271 = vmatprep.subr.mxu0 0.0
    %2272 = vmatpush1.msra.mxu0 %v1993
    %2273 = vmatprep.subr.mxu0 0.0
    %2274 = vmatpush1.msra.mxu0 %v1994
    %2275 = vmatprep.subr.mxu0 0.0
    %2276 = vmatpush1.msra.mxu0 %v1995
    %2277 = vmatprep.subr.mxu0 0.0
    %2278 = vmatpush1.msra.mxu0 %v1996
    %2279 = vmatprep.subr.mxu0 0.0
    %2280 = vmatpush1.msra.mxu0 0.0
    %2281 = vmatprep.subr.mxu0 0.0
    %2282 = vmatpush1.msra.mxu0 0.0
    %2283 = vmatprep.subr.mxu0 0.0
    %2284 = vmatpush1.msra.mxu0 0.0
    %2285 = vmatprep.subr.mxu0 0.0
    %2286 = vmatpush1.msra.mxu0 0.0
    %2287 = vmatprep.subr.mxu0 0.0
    %2288 = vmatpush1.msra.mxu0 0.0
    %2289 = vmatprep.subr.mxu0 0.0
    %2290 = vmatpush1.msra.mxu0 0.0
    %2291 = vmatprep.subr.mxu0 0.0
    %2292 = vmatpush1.msra.mxu0 0.0
    %2293 = vmatprep.subr.mxu0 0.0
    %2294 = vmatpush1.msra.mxu0 0.0
    %2295 = vmatprep.subr.mxu0 0.0
    %2296 = vmatpush1.msra.mxu0 0.0
    %2297 = vmatprep.subr.mxu0 0.0
    %2298 = vmatpush1.msra.mxu0 0.0
    %2299 = vmatprep.subr.mxu0 0.0
    %2300 = vmatpush1.msra.mxu0 0.0
    %2301 = vmatprep.subr.mxu0 0.0
    %2302 = vmatpush1.msra.mxu0 0.0
    %2303 = vmatprep.subr.mxu0 0.0
    %2304 = vmatpush1.msra.mxu0 0.0
    %2305 = vmatprep.subr.mxu0 0.0
    %2306 = vmatpush1.msra.mxu0 0.0
    %2307 = vmatprep.subr.mxu0 0.0
    %2308 = vmatpush1.msra.mxu0 0.0
    %2309 = vmatprep.subr.mxu0 0.0
    %2310 = vmatpush1.msra.mxu0 0.0
    %2311 = vmatprep.subr.mxu0 0.0
    %2312 = vmatpush1.msra.mxu0 0.0
    %2313 = vmatprep.subr.mxu0 0.0
    %2314 = vmatpush1.msra.mxu0 0.0
    %2315 = vmatprep.subr.mxu0 0.0
    %2316 = vmatpush1.msra.mxu0 0.0
    %2317 = vmatprep.subr.mxu0 0.0
    %2318 = vmatpush1.msra.mxu0 0.0
    %2319 = vmatprep.subr.mxu0 0.0
    %2320 = vmatpush1.msra.mxu0 0.0
    %2321 = vmatprep.subr.mxu0 0.0
    %2322 = vmatpush1.msra.mxu0 0.0
    %2323 = vmatprep.subr.mxu0 0.0
    %2324 = vmatpush1.msra.mxu0 0.0
    %2325 = vmatprep.subr.mxu0 0.0
    %2326 = vmatpush1.msra.mxu0 0.0
    %2327 = vmatprep.mubr.f32.mxu0 0.0
    %2328 = vmatmul.mubr.f32.gmra.mrb[0].mxu0 %v2258
    %v2329 = vpop.f32.mrb[0].mxu0
    %v2330 = vadd.f32 %v2256, %v2329
    %v2331 = vpop.f32.mrb[0].mxu0
    %2332 = vmatprep.mubr.f32.mxu0 0.0
    %2333 = vmatmul.mubr.f32.gmra.mrb[0].mxu0 %v2261
    %v2334 = vpop.f32.mrb[0].mxu0
    %v2335 = vadd.f32 %v2256, %v2334
    %v2336 = vpop.f32.mrb[0].mxu0
    %2337 = vdwg.mxu0
    %v2338 = vmax.f32 %v2330, 0.0
    %v2339 = vmax.f32 %v2335, 0.0
    %v2340 = vadd.f32 %v2338, %v2339
    %v2341 = vrot.slane %v2340, 4
    %v2342 = vadd.f32 %v2340, %v2341
    %v2343 = vrot.slane %v2342, 2
    %v2344 = vadd.f32 %v2342, %v2343
    %v2345 = vrot.slane %v2344, 1
    %v2346 = vadd.f32 %v2344, %v2345
    %v2347 = vmul.f32 %v2338, %v2338
    %v2348 = vmul.f32 %v2339, %v2339
    %v2349 = vadd.f32 %v2347, %v2348
    %v2350 = vrot.slane %v2349, 4
    %v2351 = vadd.f32 %v2349, %v2350
    %v2352 = vrot.slane %v2351, 2
    %v2353 = vadd.f32 %v2351, %v2352
    %v2354 = vrot.slane %v2353, 1
    %v2355 = vadd.f32 %v2353, %v2354
    %v2356 = vsel %vm818, %v2346, %v2355
    %2357 = vmatprep.subr.mxu0 0.0
    %2358 = vmatpush1.msra.mxu0 %v1998
    %2359 = vmatprep.subr.mxu0 0.0
    %2360 = vmatpush1.msra.mxu0 %v1999
    %2361 = vmatprep.subr.mxu0 0.0
    %2362 = vmatpush1.msra.mxu0 %v2000
    %2363 = vmatprep.subr.mxu0 0.0
    %2364 = vmatpush1.msra.mxu0 %v2001
    %2365 = vmatprep.subr.mxu0 0.0
    %2366 = vmatpush1.msra.mxu0 %v2002
    %2367 = vmatprep.subr.mxu0 0.0
    %2368 = vmatpush1.msra.mxu0 %v2003
    %2369 = vmatprep.subr.mxu0 0.0
    %2370 = vmatpush1.msra.mxu0 %v2004
    %2371 = vmatprep.subr.mxu0 0.0
    %2372 = vmatpush1.msra.mxu0 %v2005
    %2373 = vmatprep.subr.mxu0 0.0
    %2374 = vmatpush1.msra.mxu0 %v2006
    %2375 = vmatprep.subr.mxu0 0.0
    %2376 = vmatpush1.msra.mxu0 %v2007
    %2377 = vmatprep.subr.mxu0 0.0
    %2378 = vmatpush1.msra.mxu0 %v2008
    %2379 = vmatprep.subr.mxu0 0.0
    %2380 = vmatpush1.msra.mxu0 %v2009
    %2381 = vmatprep.subr.mxu0 0.0
    %2382 = vmatpush1.msra.mxu0 %v2010
    %2383 = vmatprep.subr.mxu0 0.0
    %2384 = vmatpush1.msra.mxu0 %v2011
    %2385 = vmatprep.subr.mxu0 0.0
    %2386 = vmatpush1.msra.mxu0 %v2012
    %2387 = vmatprep.subr.mxu0 0.0
    %2388 = vmatpush1.msra.mxu0 %v2013
    %2389 = vmatprep.subr.mxu0 0.0
    %2390 = vmatpush1.msra.mxu0 0.0
    %2391 = vmatprep.subr.mxu0 0.0
    %2392 = vmatpush1.msra.mxu0 0.0
    %2393 = vmatprep.subr.mxu0 0.0
    %2394 = vmatpush1.msra.mxu0 0.0
    %2395 = vmatprep.subr.mxu0 0.0
    %2396 = vmatpush1.msra.mxu0 0.0
    %2397 = vmatprep.subr.mxu0 0.0
    %2398 = vmatpush1.msra.mxu0 0.0
    %2399 = vmatprep.subr.mxu0 0.0
    %2400 = vmatpush1.msra.mxu0 0.0
    %2401 = vmatprep.subr.mxu0 0.0
    %2402 = vmatpush1.msra.mxu0 0.0
    %2403 = vmatprep.subr.mxu0 0.0
    %2404 = vmatpush1.msra.mxu0 0.0
    %2405 = vmatprep.subr.mxu0 0.0
    %2406 = vmatpush1.msra.mxu0 0.0
    %2407 = vmatprep.subr.mxu0 0.0
    %2408 = vmatpush1.msra.mxu0 0.0
    %2409 = vmatprep.subr.mxu0 0.0
    %2410 = vmatpush1.msra.mxu0 0.0
    %2411 = vmatprep.subr.mxu0 0.0
    %2412 = vmatpush1.msra.mxu0 0.0
    %2413 = vmatprep.subr.mxu0 0.0
    %2414 = vmatpush1.msra.mxu0 0.0
    %2415 = vmatprep.subr.mxu0 0.0
    %2416 = vmatpush1.msra.mxu0 0.0
    %2417 = vmatprep.subr.mxu0 0.0
    %2418 = vmatpush1.msra.mxu0 0.0
    %2419 = vmatprep.subr.mxu0 0.0
    %2420 = vmatpush1.msra.mxu0 0.0
    %2421 = vmatprep.mubr.f32.mxu0 0.0
    %2422 = vmatmul.mubr.f32.gmra.mrb[0].mxu0 %v2356
    %v2423 = vpop.f32.mrb[0].mxu0
    %v2424 = vadd.f32 0.0, %v2423
    %v2425 = vpop.f32.mrb[0].mxu0
    %2426 = vdwg.mxu0
    %v2427 = vmul.f32 %v2424, %v2424
    %v2429 = vrot.slane %v2427, 7
    %v2431 = vsub.f32 %v2424, %v2429
    %v2432 = vmax.f32 %v2431, 0.0
    %v2433 = vadd.f32 %v2432, 1e-05
    %v2434 = vrsqrt.pop %v2433
    %v2435 = vmul.f32 %v1997, %v2434
    %v2437 = vrot.slane %v2435, 1
    %v2439 = vmul.f32 %v2424, %v2437
    %v2441 = vrot.slane %v2439, 6
    %v2443 = vsub.f32 %v1997, %v2441
    %v2444 = vlaneseq
    %v2445 = vshrl.u32 %v2444, 7
    %v2446 = vsub.s32 1, %v2445
    %v2447 = vrot.slane %v2435, %v2446
    %v2448 = vmul.f32 %v2338, %v2447
    %v2449 = vmul.f32 %v2339, %v2447
    %v2450 = vlaneseq
    %v2451 = vshrl.u32 %v2450, 7
    %v2452 = vsub.s32 2, %v2451
    %v2453 = vrot.slane %v2443, %v2452
    %v2454 = vadd.f32 %v2448, %v2453
    %v2455 = vadd.f32 %v2449, %v2453
    %2456 = vmatprep.subr.mxu0 0.0
    %2457 = vmatpush1.msra.mxu0 %v2062
    %2458 = vmatprep.subr.mxu0 0.0
    %2459 = vmatpush1.msra.mxu0 %v2063
    %2460 = vmatprep.subr.mxu0 0.0
    %2461 = vmatpush1.msra.mxu0 %v2064
    %2462 = vmatprep.subr.mxu0 0.0
    %2463 = vmatpush1.msra.mxu0 %v2065
    %2464 = vmatprep.subr.mxu0 0.0
    %2465 = vmatpush1.msra.mxu0 %v2066
    %2466 = vmatprep.subr.mxu0 0.0
    %2467 = vmatpush1.msra.mxu0 %v2067
    %2468 = vmatprep.subr.mxu0 0.0
    %2469 = vmatpush1.msra.mxu0 %v2068
    %2470 = vmatprep.subr.mxu0 0.0
    %2471 = vmatpush1.msra.mxu0 %v2069
    %2472 = vmatprep.subr.mxu0 0.0
    %2473 = vmatpush1.msra.mxu0 %v2070
    %2474 = vmatprep.subr.mxu0 0.0
    %2475 = vmatpush1.msra.mxu0 %v2071
    %2476 = vmatprep.subr.mxu0 0.0
    %2477 = vmatpush1.msra.mxu0 %v2072
    %2478 = vmatprep.subr.mxu0 0.0
    %2479 = vmatpush1.msra.mxu0 %v2073
    %2480 = vmatprep.subr.mxu0 0.0
    %2481 = vmatpush1.msra.mxu0 %v2074
    %2482 = vmatprep.subr.mxu0 0.0
    %2483 = vmatpush1.msra.mxu0 %v2075
    %2484 = vmatprep.subr.mxu0 0.0
    %2485 = vmatpush1.msra.mxu0 %v2076
    %2486 = vmatprep.subr.mxu0 0.0
    %2487 = vmatpush1.msra.mxu0 %v2077
    %2488 = vmatprep.subr.mxu0 0.0
    %2489 = vmatpush1.msra.mxu0 0.0
    %2490 = vmatprep.subr.mxu0 0.0
    %2491 = vmatpush1.msra.mxu0 0.0
    %2492 = vmatprep.subr.mxu0 0.0
    %2493 = vmatpush1.msra.mxu0 0.0
    %2494 = vmatprep.subr.mxu0 0.0
    %2495 = vmatpush1.msra.mxu0 0.0
    %2496 = vmatprep.subr.mxu0 0.0
    %2497 = vmatpush1.msra.mxu0 0.0
    %2498 = vmatprep.subr.mxu0 0.0
    %2499 = vmatpush1.msra.mxu0 0.0
    %2500 = vmatprep.subr.mxu0 0.0
    %2501 = vmatpush1.msra.mxu0 0.0
    %2502 = vmatprep.subr.mxu0 0.0
    %2503 = vmatpush1.msra.mxu0 0.0
    %2504 = vmatprep.subr.mxu0 0.0
    %2505 = vmatpush1.msra.mxu0 0.0
    %2506 = vmatprep.subr.mxu0 0.0
    %2507 = vmatpush1.msra.mxu0 0.0
    %2508 = vmatprep.subr.mxu0 0.0
    %2509 = vmatpush1.msra.mxu0 0.0
    %2510 = vmatprep.subr.mxu0 0.0
    %2511 = vmatpush1.msra.mxu0 0.0
    %2512 = vmatprep.subr.mxu0 0.0
    %2513 = vmatpush1.msra.mxu0 0.0
    %2514 = vmatprep.subr.mxu0 0.0
    %2515 = vmatpush1.msra.mxu0 0.0
    %2516 = vmatprep.subr.mxu0 0.0
    %2517 = vmatpush1.msra.mxu0 0.0
    %2518 = vmatprep.subr.mxu0 0.0
    %2519 = vmatpush1.msra.mxu0 0.0
    %2520 = vmatprep.mubr.f32.mxu0 0.0
    %2521 = vmatmul.mubr.f32.gmra.mrb[0].mxu0 %v1985
    %v2522 = vpop.f32.mrb[0].mxu0
    %v2523 = vadd.f32 0.0, %v2522
    %v2524 = vpop.f32.mrb[0].mxu0
    %2525 = vmatprep.mubr.f32.mxu0 0.0
    %2526 = vmatmul.mubr.f32.gmra.mrb[0].mxu0 %v1986
    %v2527 = vpop.f32.mrb[0].mxu0
    %v2528 = vadd.f32 0.0, %v2527
    %v2529 = vpop.f32.mrb[0].mxu0
    %2530 = vdwg.mxu0
    %2531 = vmatprep.subr.mxu0 0.0
    %2532 = vmatpush1.msra.mxu0 %v2014
    %2533 = vmatprep.subr.mxu0 0.0
    %2534 = vmatpush1.msra.mxu0 %v2015
    %2535 = vmatprep.subr.mxu0 0.0
    %2536 = vmatpush1.msra.mxu0 %v2016
    %2537 = vmatprep.subr.mxu0 0.0
    %2538 = vmatpush1.msra.mxu0 %v2017
    %2539 = vmatprep.subr.mxu0 0.0
    %2540 = vmatpush1.msra.mxu0 %v2018
    %2541 = vmatprep.subr.mxu0 0.0
    %2542 = vmatpush1.msra.mxu0 %v2019
    %2543 = vmatprep.subr.mxu0 0.0
    %2544 = vmatpush1.msra.mxu0 %v2020
    %2545 = vmatprep.subr.mxu0 0.0
    %2546 = vmatpush1.msra.mxu0 %v2021
    %2547 = vmatprep.subr.mxu0 0.0
    %2548 = vmatpush1.msra.mxu0 %v2022
    %2549 = vmatprep.subr.mxu0 0.0
    %2550 = vmatpush1.msra.mxu0 %v2023
    %2551 = vmatprep.subr.mxu0 0.0
    %2552 = vmatpush1.msra.mxu0 %v2024
    %2553 = vmatprep.subr.mxu0 0.0
    %2554 = vmatpush1.msra.mxu0 %v2025
    %2555 = vmatprep.subr.mxu0 0.0
    %2556 = vmatpush1.msra.mxu0 %v2026
    %2557 = vmatprep.subr.mxu0 0.0
    %2558 = vmatpush1.msra.mxu0 %v2027
    %2559 = vmatprep.subr.mxu0 0.0
    %2560 = vmatpush1.msra.mxu0 %v2028
    %2561 = vmatprep.subr.mxu0 0.0
    %2562 = vmatpush1.msra.mxu0 %v2029
    %2563 = vmatprep.subr.mxu0 0.0
    %2564 = vmatpush1.msra.mxu0 0.0
    %2565 = vmatprep.subr.mxu0 0.0
    %2566 = vmatpush1.msra.mxu0 0.0
    %2567 = vmatprep.subr.mxu0 0.0
    %2568 = vmatpush1.msra.mxu0 0.0
    %2569 = vmatprep.subr.mxu0 0.0
    %2570 = vmatpush1.msra.mxu0 0.0
    %2571 = vmatprep.subr.mxu0 0.0
    %2572 = vmatpush1.msra.mxu0 0.0
    %2573 = vmatprep.subr.mxu0 0.0
    %2574 = vmatpush1.msra.mxu0 0.0
    %2575 = vmatprep.subr.mxu0 0.0
    %2576 = vmatpush1.msra.mxu0 0.0
    %2577 = vmatprep.subr.mxu0 0.0
    %2578 = vmatpush1.msra.mxu0 0.0
    %2579 = vmatprep.subr.mxu0 0.0
    %2580 = vmatpush1.msra.mxu0 0.0
    %2581 = vmatprep.subr.mxu0 0.0
    %2582 = vmatpush1.msra.mxu0 0.0
    %2583 = vmatprep.subr.mxu0 0.0
    %2584 = vmatpush1.msra.mxu0 0.0
    %2585 = vmatprep.subr.mxu0 0.0
    %2586 = vmatpush1.msra.mxu0 0.0
    %2587 = vmatprep.subr.mxu0 0.0
    %2588 = vmatpush1.msra.mxu0 0.0
    %2589 = vmatprep.subr.mxu0 0.0
    %2590 = vmatpush1.msra.mxu0 0.0
    %2591 = vmatprep.subr.mxu0 0.0
    %2592 = vmatpush1.msra.mxu0 0.0
    %2593 = vmatprep.subr.mxu0 0.0
    %2594 = vmatpush1.msra.mxu0 0.0
    %2595 = vmatprep.mubr.f32.mxu0 0.0
    %2596 = vmatmul.mubr.f32.gmra.mrb[0].mxu0 %v2454
    %v2597 = vpop.f32.mrb[0].mxu0
    %v2598 = vadd.f32 %v2523, %v2597
    %v2599 = vpop.f32.mrb[0].mxu0
    %2600 = vmatprep.mubr.f32.mxu0 0.0
    %2601 = vmatmul.mubr.f32.gmra.mrb[0].mxu0 %v2455
    %v2602 = vpop.f32.mrb[0].mxu0
    %v2603 = vadd.f32 %v2528, %v2602
    %v2604 = vpop.f32.mrb[0].mxu0
    %2605 = vdwg.mxu0
    %v2608 = vrot.slane %v2454, 1
    %v2609 = vrot.slane %v2455, 1
    %v2610 = vsel %vm1134, %v2608, %v2609
    %2613 = vmatprep.subr.mxu0 0.0
    %2614 = vmatpush1.msra.mxu0 %v2030
    %2615 = vmatprep.subr.mxu0 0.0
    %2616 = vmatpush1.msra.mxu0 %v2031
    %2617 = vmatprep.subr.mxu0 0.0
    %2618 = vmatpush1.msra.mxu0 %v2032
    %2619 = vmatprep.subr.mxu0 0.0
    %2620 = vmatpush1.msra.mxu0 %v2033
    %2621 = vmatprep.subr.mxu0 0.0
    %2622 = vmatpush1.msra.mxu0 %v2034
    %2623 = vmatprep.subr.mxu0 0.0
    %2624 = vmatpush1.msra.mxu0 %v2035
    %2625 = vmatprep.subr.mxu0 0.0
    %2626 = vmatpush1.msra.mxu0 %v2036
    %2627 = vmatprep.subr.mxu0 0.0
    %2628 = vmatpush1.msra.mxu0 %v2037
    %2629 = vmatprep.subr.mxu0 0.0
    %2630 = vmatpush1.msra.mxu0 %v2038
    %2631 = vmatprep.subr.mxu0 0.0
    %2632 = vmatpush1.msra.mxu0 %v2039
    %2633 = vmatprep.subr.mxu0 0.0
    %2634 = vmatpush1.msra.mxu0 %v2040
    %2635 = vmatprep.subr.mxu0 0.0
    %2636 = vmatpush1.msra.mxu0 %v2041
    %2637 = vmatprep.subr.mxu0 0.0
    %2638 = vmatpush1.msra.mxu0 %v2042
    %2639 = vmatprep.subr.mxu0 0.0
    %2640 = vmatpush1.msra.mxu0 %v2043
    %2641 = vmatprep.subr.mxu0 0.0
    %2642 = vmatpush1.msra.mxu0 %v2044
    %2643 = vmatprep.subr.mxu0 0.0
    %2644 = vmatpush1.msra.mxu0 %v2045
    %2645 = vmatprep.subr.mxu0 0.0
    %2646 = vmatpush1.msra.mxu0 0.0
    %2647 = vmatprep.subr.mxu0 0.0
    %2648 = vmatpush1.msra.mxu0 0.0
    %2649 = vmatprep.subr.mxu0 0.0
    %2650 = vmatpush1.msra.mxu0 0.0
    %2651 = vmatprep.subr.mxu0 0.0
    %2652 = vmatpush1.msra.mxu0 0.0
    %2653 = vmatprep.subr.mxu0 0.0
    %2654 = vmatpush1.msra.mxu0 0.0
    %2655 = vmatprep.subr.mxu0 0.0
    %2656 = vmatpush1.msra.mxu0 0.0
    %2657 = vmatprep.subr.mxu0 0.0
    %2658 = vmatpush1.msra.mxu0 0.0
    %2659 = vmatprep.subr.mxu0 0.0
    %2660 = vmatpush1.msra.mxu0 0.0
    %2661 = vmatprep.subr.mxu0 0.0
    %2662 = vmatpush1.msra.mxu0 0.0
    %2663 = vmatprep.subr.mxu0 0.0
    %2664 = vmatpush1.msra.mxu0 0.0
    %2665 = vmatprep.subr.mxu0 0.0
    %2666 = vmatpush1.msra.mxu0 0.0
    %2667 = vmatprep.subr.mxu0 0.0
    %2668 = vmatpush1.msra.mxu0 0.0
    %2669 = vmatprep.subr.mxu0 0.0
    %2670 = vmatpush1.msra.mxu0 0.0
    %2671 = vmatprep.subr.mxu0 0.0
    %2672 = vmatpush1.msra.mxu0 0.0
    %2673 = vmatprep.subr.mxu0 0.0
    %2674 = vmatpush1.msra.mxu0 0.0
    %2675 = vmatprep.subr.mxu0 0.0
    %2676 = vmatpush1.msra.mxu0 0.0
    %2677 = vmatprep.mubr.f32.mxu0 0.0
    %2678 = vmatmul.mubr.f32.gmra.mrb[0].mxu0 %v2610
    %v2679 = vpop.f32.mrb[0].mxu0
    %v2680 = vadd.f32 0.0, %v2679
    %v2681 = vpop.f32.mrb[0].mxu0
    %2682 = vmatprep.mubr.f32.mxu0 0.0
    %2683 = vmatmul.mubr.f32.gmra.mrb[0].mxu0 %v2609
    %v2684 = vpop.f32.mrb[0].mxu0
    %v2685 = vadd.f32 0.0, %v2684
    %v2686 = vpop.f32.mrb[0].mxu0
    %2687 = vdwg.mxu0
    %v2688 = vadd.f32 %v2598, %v2680
    %v2689 = vadd.f32 %v2603, %v2685
    %v2692 = vrot.slane %v1985, 1
    %v2693 = vrot.slane %v1986, 1
    %v2694 = vsel %vm1134, %v2692, %v2693
    %2697 = vmatprep.subr.mxu0 0.0
    %2698 = vmatpush1.msra.mxu0 %v2078
    %2699 = vmatprep.subr.mxu0 0.0
    %2700 = vmatpush1.msra.mxu0 %v2079
    %2701 = vmatprep.subr.mxu0 0.0
    %2702 = vmatpush1.msra.mxu0 %v2080
    %2703 = vmatprep.subr.mxu0 0.0
    %2704 = vmatpush1.msra.mxu0 %v2081
    %2705 = vmatprep.subr.mxu0 0.0
    %2706 = vmatpush1.msra.mxu0 %v2082
    %2707 = vmatprep.subr.mxu0 0.0
    %2708 = vmatpush1.msra.mxu0 %v2083
    %2709 = vmatprep.subr.mxu0 0.0
    %2710 = vmatpush1.msra.mxu0 %v2084
    %2711 = vmatprep.subr.mxu0 0.0
    %2712 = vmatpush1.msra.mxu0 %v2085
    %2713 = vmatprep.subr.mxu0 0.0
    %2714 = vmatpush1.msra.mxu0 %v2086
    %2715 = vmatprep.subr.mxu0 0.0
    %2716 = vmatpush1.msra.mxu0 %v2087
    %2717 = vmatprep.subr.mxu0 0.0
    %2718 = vmatpush1.msra.mxu0 %v2088
    %2719 = vmatprep.subr.mxu0 0.0
    %2720 = vmatpush1.msra.mxu0 %v2089
    %2721 = vmatprep.subr.mxu0 0.0
    %2722 = vmatpush1.msra.mxu0 %v2090
    %2723 = vmatprep.subr.mxu0 0.0
    %2724 = vmatpush1.msra.mxu0 %v2091
    %2725 = vmatprep.subr.mxu0 0.0
    %2726 = vmatpush1.msra.mxu0 %v2092
    %2727 = vmatprep.subr.mxu0 0.0
    %2728 = vmatpush1.msra.mxu0 %v2093
    %2729 = vmatprep.subr.mxu0 0.0
    %2730 = vmatpush1.msra.mxu0 0.0
    %2731 = vmatprep.subr.mxu0 0.0
    %2732 = vmatpush1.msra.mxu0 0.0
    %2733 = vmatprep.subr.mxu0 0.0
    %2734 = vmatpush1.msra.mxu0 0.0
    %2735 = vmatprep.subr.mxu0 0.0
    %2736 = vmatpush1.msra.mxu0 0.0
    %2737 = vmatprep.subr.mxu0 0.0
    %2738 = vmatpush1.msra.mxu0 0.0
    %2739 = vmatprep.subr.mxu0 0.0
    %2740 = vmatpush1.msra.mxu0 0.0
    %2741 = vmatprep.subr.mxu0 0.0
    %2742 = vmatpush1.msra.mxu0 0.0
    %2743 = vmatprep.subr.mxu0 0.0
    %2744 = vmatpush1.msra.mxu0 0.0
    %2745 = vmatprep.subr.mxu0 0.0
    %2746 = vmatpush1.msra.mxu0 0.0
    %2747 = vmatprep.subr.mxu0 0.0
    %2748 = vmatpush1.msra.mxu0 0.0
    %2749 = vmatprep.subr.mxu0 0.0
    %2750 = vmatpush1.msra.mxu0 0.0
    %2751 = vmatprep.subr.mxu0 0.0
    %2752 = vmatpush1.msra.mxu0 0.0
    %2753 = vmatprep.subr.mxu0 0.0
    %2754 = vmatpush1.msra.mxu0 0.0
    %2755 = vmatprep.subr.mxu0 0.0
    %2756 = vmatpush1.msra.mxu0 0.0
    %2757 = vmatprep.subr.mxu0 0.0
    %2758 = vmatpush1.msra.mxu0 0.0
    %2759 = vmatprep.subr.mxu0 0.0
    %2760 = vmatpush1.msra.mxu0 0.0
    %2761 = vmatprep.mubr.f32.mxu0 0.0
    %2762 = vmatmul.mubr.f32.gmra.mrb[0].mxu0 %v2694
    %v2763 = vpop.f32.mrb[0].mxu0
    %v2764 = vadd.f32 0.0, %v2763
    %v2765 = vpop.f32.mrb[0].mxu0
    %2766 = vmatprep.mubr.f32.mxu0 0.0
    %2767 = vmatmul.mubr.f32.gmra.mrb[0].mxu0 %v2693
    %v2768 = vpop.f32.mrb[0].mxu0
    %v2769 = vadd.f32 0.0, %v2768
    %v2770 = vpop.f32.mrb[0].mxu0
    %2771 = vdwg.mxu0
    %v2772 = vadd.f32 %v2688, %v2764
    %v2773 = vadd.f32 %v2689, %v2769
    %v2774 = vrot.slane %v2454, 2
    %v2775 = vrot.slane %v2455, 2
    %v2776 = vsel %vm1315, %v2774, %v2775
    %2779 = vmatprep.subr.mxu0 0.0
    %2780 = vmatpush1.msra.mxu0 %v2046
    %2781 = vmatprep.subr.mxu0 0.0
    %2782 = vmatpush1.msra.mxu0 %v2047
    %2783 = vmatprep.subr.mxu0 0.0
    %2784 = vmatpush1.msra.mxu0 %v2048
    %2785 = vmatprep.subr.mxu0 0.0
    %2786 = vmatpush1.msra.mxu0 %v2049
    %2787 = vmatprep.subr.mxu0 0.0
    %2788 = vmatpush1.msra.mxu0 %v2050
    %2789 = vmatprep.subr.mxu0 0.0
    %2790 = vmatpush1.msra.mxu0 %v2051
    %2791 = vmatprep.subr.mxu0 0.0
    %2792 = vmatpush1.msra.mxu0 %v2052
    %2793 = vmatprep.subr.mxu0 0.0
    %2794 = vmatpush1.msra.mxu0 %v2053
    %2795 = vmatprep.subr.mxu0 0.0
    %2796 = vmatpush1.msra.mxu0 %v2054
    %2797 = vmatprep.subr.mxu0 0.0
    %2798 = vmatpush1.msra.mxu0 %v2055
    %2799 = vmatprep.subr.mxu0 0.0
    %2800 = vmatpush1.msra.mxu0 %v2056
    %2801 = vmatprep.subr.mxu0 0.0
    %2802 = vmatpush1.msra.mxu0 %v2057
    %2803 = vmatprep.subr.mxu0 0.0
    %2804 = vmatpush1.msra.mxu0 %v2058
    %2805 = vmatprep.subr.mxu0 0.0
    %2806 = vmatpush1.msra.mxu0 %v2059
    %2807 = vmatprep.subr.mxu0 0.0
    %2808 = vmatpush1.msra.mxu0 %v2060
    %2809 = vmatprep.subr.mxu0 0.0
    %2810 = vmatpush1.msra.mxu0 %v2061
    %2811 = vmatprep.subr.mxu0 0.0
    %2812 = vmatpush1.msra.mxu0 0.0
    %2813 = vmatprep.subr.mxu0 0.0
    %2814 = vmatpush1.msra.mxu0 0.0
    %2815 = vmatprep.subr.mxu0 0.0
    %2816 = vmatpush1.msra.mxu0 0.0
    %2817 = vmatprep.subr.mxu0 0.0
    %2818 = vmatpush1.msra.mxu0 0.0
    %2819 = vmatprep.subr.mxu0 0.0
    %2820 = vmatpush1.msra.mxu0 0.0
    %2821 = vmatprep.subr.mxu0 0.0
    %2822 = vmatpush1.msra.mxu0 0.0
    %2823 = vmatprep.subr.mxu0 0.0
    %2824 = vmatpush1.msra.mxu0 0.0
    %2825 = vmatprep.subr.mxu0 0.0
    %2826 = vmatpush1.msra.mxu0 0.0
    %2827 = vmatprep.subr.mxu0 0.0
    %2828 = vmatpush1.msra.mxu0 0.0
    %2829 = vmatprep.subr.mxu0 0.0
    %2830 = vmatpush1.msra.mxu0 0.0
    %2831 = vmatprep.subr.mxu0 0.0
    %2832 = vmatpush1.msra.mxu0 0.0
    %2833 = vmatprep.subr.mxu0 0.0
    %2834 = vmatpush1.msra.mxu0 0.0
    %2835 = vmatprep.subr.mxu0 0.0
    %2836 = vmatpush1.msra.mxu0 0.0
    %2837 = vmatprep.subr.mxu0 0.0
    %2838 = vmatpush1.msra.mxu0 0.0
    %2839 = vmatprep.subr.mxu0 0.0
    %2840 = vmatpush1.msra.mxu0 0.0
    %2841 = vmatprep.subr.mxu0 0.0
    %2842 = vmatpush1.msra.mxu0 0.0
    %2843 = vmatprep.mubr.f32.mxu0 0.0
    %2844 = vmatmul.mubr.f32.gmra.mrb[0].mxu0 %v2776
    %v2845 = vpop.f32.mrb[0].mxu0
    %v2846 = vadd.f32 0.0, %v2845
    %v2847 = vpop.f32.mrb[0].mxu0
    %2848 = vmatprep.mubr.f32.mxu0 0.0
    %2849 = vmatmul.mubr.f32.gmra.mrb[0].mxu0 %v2775
    %v2850 = vpop.f32.mrb[0].mxu0
    %v2851 = vadd.f32 0.0, %v2850
    %v2852 = vpop.f32.mrb[0].mxu0
    %2853 = vdwg.mxu0
    %v2854 = vadd.f32 %v2772, %v2846
    %v2855 = vadd.f32 %v2773, %v2851
    %v2856 = vrot.slane %v1985, 2
    %v2857 = vrot.slane %v1986, 2
    %v2858 = vsel %vm1315, %v2856, %v2857
    %2861 = vmatprep.subr.mxu0 0.0
    %2862 = vmatpush1.msra.mxu0 %v2094
    %2863 = vmatprep.subr.mxu0 0.0
    %2864 = vmatpush1.msra.mxu0 %v2095
    %2865 = vmatprep.subr.mxu0 0.0
    %2866 = vmatpush1.msra.mxu0 %v2096
    %2867 = vmatprep.subr.mxu0 0.0
    %2868 = vmatpush1.msra.mxu0 %v2097
    %2869 = vmatprep.subr.mxu0 0.0
    %2870 = vmatpush1.msra.mxu0 %v2098
    %2871 = vmatprep.subr.mxu0 0.0
    %2872 = vmatpush1.msra.mxu0 %v2099
    %2873 = vmatprep.subr.mxu0 0.0
    %2874 = vmatpush1.msra.mxu0 %v2100
    %2875 = vmatprep.subr.mxu0 0.0
    %2876 = vmatpush1.msra.mxu0 %v2101
    %2877 = vmatprep.subr.mxu0 0.0
    %2878 = vmatpush1.msra.mxu0 %v2102
    %2879 = vmatprep.subr.mxu0 0.0
    %2880 = vmatpush1.msra.mxu0 %v2103
    %2881 = vmatprep.subr.mxu0 0.0
    %2882 = vmatpush1.msra.mxu0 %v2104
    %2883 = vmatprep.subr.mxu0 0.0
    %2884 = vmatpush1.msra.mxu0 %v2105
    %2885 = vmatprep.subr.mxu0 0.0
    %2886 = vmatpush1.msra.mxu0 %v2106
    %2887 = vmatprep.subr.mxu0 0.0
    %2888 = vmatpush1.msra.mxu0 %v2107
    %2889 = vmatprep.subr.mxu0 0.0
    %2890 = vmatpush1.msra.mxu0 %v2108
    %2891 = vmatprep.subr.mxu0 0.0
    %2892 = vmatpush1.msra.mxu0 %v2109
    %2893 = vmatprep.subr.mxu0 0.0
    %2894 = vmatpush1.msra.mxu0 0.0
    %2895 = vmatprep.subr.mxu0 0.0
    %2896 = vmatpush1.msra.mxu0 0.0
    %2897 = vmatprep.subr.mxu0 0.0
    %2898 = vmatpush1.msra.mxu0 0.0
    %2899 = vmatprep.subr.mxu0 0.0
    %2900 = vmatpush1.msra.mxu0 0.0
    %2901 = vmatprep.subr.mxu0 0.0
    %2902 = vmatpush1.msra.mxu0 0.0
    %2903 = vmatprep.subr.mxu0 0.0
    %2904 = vmatpush1.msra.mxu0 0.0
    %2905 = vmatprep.subr.mxu0 0.0
    %2906 = vmatpush1.msra.mxu0 0.0
    %2907 = vmatprep.subr.mxu0 0.0
    %2908 = vmatpush1.msra.mxu0 0.0
    %2909 = vmatprep.subr.mxu0 0.0
    %2910 = vmatpush1.msra.mxu0 0.0
    %2911 = vmatprep.subr.mxu0 0.0
    %2912 = vmatpush1.msra.mxu0 0.0
    %2913 = vmatprep.subr.mxu0 0.0
    %2914 = vmatpush1.msra.mxu0 0.0
    %2915 = vmatprep.subr.mxu0 0.0
    %2916 = vmatpush1.msra.mxu0 0.0
    %2917 = vmatprep.subr.mxu0 0.0
    %2918 = vmatpush1.msra.mxu0 0.0
    %2919 = vmatprep.subr.mxu0 0.0
    %2920 = vmatpush1.msra.mxu0 0.0
    %2921 = vmatprep.subr.mxu0 0.0
    %2922 = vmatpush1.msra.mxu0 0.0
    %2923 = vmatprep.subr.mxu0 0.0
    %2924 = vmatpush1.msra.mxu0 0.0
    %2925 = vmatprep.mubr.f32.mxu0 0.0
    %2926 = vmatmul.mubr.f32.gmra.mrb[0].mxu0 %v2858
    %v2927 = vpop.f32.mrb[0].mxu0
    %v2928 = vadd.f32 0.0, %v2927
    %v2929 = vpop.f32.mrb[0].mxu0
    %2930 = vmatprep.mubr.f32.mxu0 0.0
    %2931 = vmatmul.mubr.f32.gmra.mrb[0].mxu0 %v2857
    %v2932 = vpop.f32.mrb[0].mxu0
    %v2933 = vadd.f32 0.0, %v2932
    %v2934 = vpop.f32.mrb[0].mxu0
    %2935 = vdwg.mxu0
    %v2936 = vadd.f32 %v2854, %v2928
    %v2937 = vadd.f32 %v2855, %v2933
    %v2938 = vlaneseq
    %v2939 = vshrl.u32 %v2938, 7
    %v2940 = vsub.s32 0, %v2939
    %v2941 = vrot.slane %v2110, %v2940
    %v2942 = vadd.f32 %v2936, %v2941
    %v2943 = vadd.f32 %v2937, %v2941
    %v2944 = vmax.f32 %v2942, 0.0
    %v2945 = vmax.f32 %v2943, 0.0
    %2947 = vset.pattern.permute.xlu0 0
    %2948 = vperm.xlu0 %2947, %v2123
    %v2949 = vpop.permute.xlu0 %2948
    %2952 = vset.pattern.permute.xlu0 0
    %2953 = vperm.xlu0 %2952, %v2124
    %v2954 = vpop.permute.xlu0 %2953
    %v2956 = vmul.f32 %v2944, %v2949
    %v2957 = vmul.f32 %v2945, %v2954
    %vm2958 = vcmask 785408
    %v2959 = vsel %vm2958, %v2956, 0.0
    %vm2960 = vcmask 783360
    %v2961 = vsel %vm2960, %v2957, 0.0
    %v2962 = vadd.f32 %v2959, %v2961
    %v2963 = vrot.slane %v2962, 4
    %v2964 = vadd.f32 %v2962, %v2963
    %v2965 = vrot.slane %v2964, 2
    %v2966 = vadd.f32 %v2964, %v2965
    %v2967 = vrot.slane %v2966, 1
    %v2968 = vadd.f32 %v2966, %v2967
    %v2969 = vmul.f32 %v2944, %v2944
    %v2970 = vmul.f32 %v2945, %v2945
    %v2971 = vmul.f32 %v2969, %v2949
    %v2972 = vmul.f32 %v2970, %v2954
    %v2973 = vsel %vm2958, %v2971, 0.0
    %v2974 = vsel %vm2960, %v2972, 0.0
    %v2975 = vadd.f32 %v2973, %v2974
    %v2976 = vrot.slane %v2975, 4
    %v2977 = vadd.f32 %v2975, %v2976
    %v2978 = vrot.slane %v2977, 2
    %v2979 = vadd.f32 %v2977, %v2978
    %v2980 = vrot.slane %v2979, 1
    %v2981 = vadd.f32 %v2979, %v2980
    %v2982 = vsel %vm818, %v2968, %v2981
    %v2984 = vsel %vm2958, %v2982, 0
    %2986 = vmatprep.subr.mxu0 0.0
    %2987 = vmatpush1.msra.mxu0 %v2111
    %2988 = vmatprep.subr.mxu0 0.0
    %2989 = vmatpush1.msra.mxu0 %v2112
    %2990 = vmatprep.subr.mxu0 0.0
    %2991 = vmatpush1.msra.mxu0 %v2113
    %2992 = vmatprep.subr.mxu0 0.0
    %2993 = vmatpush1.msra.mxu0 %v2114
    %2994 = vmatprep.subr.mxu0 0.0
    %2995 = vmatpush1.msra.mxu0 %v2115
    %2996 = vmatprep.subr.mxu0 0.0
    %2997 = vmatpush1.msra.mxu0 %v2116
    %2998 = vmatprep.subr.mxu0 0.0
    %2999 = vmatpush1.msra.mxu0 %v2117
    %3000 = vmatprep.subr.mxu0 0.0
    %3001 = vmatpush1.msra.mxu0 %v2118
    %3002 = vmatprep.subr.mxu0 0.0
    %3003 = vmatpush1.msra.mxu0 %v2119
    %3004 = vmatprep.subr.mxu0 0.0
    %3005 = vmatpush1.msra.mxu0 %v2120
    %3006 = vmatprep.subr.mxu0 0.0
    %3007 = vmatpush1.msra.mxu0 %v2121
    %3008 = vmatprep.subr.mxu0 0.0
    %3009 = vmatpush1.msra.mxu0 %v2122
    %3010 = vmatprep.subr.mxu0 0.0
    %3011 = vmatpush1.msra.mxu0 0.0
    %3012 = vmatprep.subr.mxu0 0.0
    %3013 = vmatpush1.msra.mxu0 0.0
    %3014 = vmatprep.subr.mxu0 0.0
    %3015 = vmatpush1.msra.mxu0 0.0
    %3016 = vmatprep.subr.mxu0 0.0
    %3017 = vmatpush1.msra.mxu0 0.0
    %3018 = vmatprep.subr.mxu0 0.0
    %3019 = vmatpush1.msra.mxu0 0.0
    %3020 = vmatprep.subr.mxu0 0.0
    %3021 = vmatpush1.msra.mxu0 0.0
    %3022 = vmatprep.subr.mxu0 0.0
    %3023 = vmatpush1.msra.mxu0 0.0
    %3024 = vmatprep.subr.mxu0 0.0
    %3025 = vmatpush1.msra.mxu0 0.0
    %3026 = vmatprep.subr.mxu0 0.0
    %3027 = vmatpush1.msra.mxu0 0.0
    %3028 = vmatprep.subr.mxu0 0.0
    %3029 = vmatpush1.msra.mxu0 0.0
    %3030 = vmatprep.subr.mxu0 0.0
    %3031 = vmatpush1.msra.mxu0 0.0
    %3032 = vmatprep.subr.mxu0 0.0
    %3033 = vmatpush1.msra.mxu0 0.0
    %3034 = vmatprep.subr.mxu0 0.0
    %3035 = vmatpush1.msra.mxu0 0.0
    %3036 = vmatprep.subr.mxu0 0.0
    %3037 = vmatpush1.msra.mxu0 0.0
    %3038 = vmatprep.subr.mxu0 0.0
    %3039 = vmatpush1.msra.mxu0 0.0
    %3040 = vmatprep.subr.mxu0 0.0
    %3041 = vmatpush1.msra.mxu0 0.0
    %3042 = vmatprep.subr.mxu0 0.0
    %3043 = vmatpush1.msra.mxu0 0.0
    %3044 = vmatprep.subr.mxu0 0.0
    %3045 = vmatpush1.msra.mxu0 0.0
    %3046 = vmatprep.subr.mxu0 0.0
    %3047 = vmatpush1.msra.mxu0 0.0
    %3048 = vmatprep.subr.mxu0 0.0
    %3049 = vmatpush1.msra.mxu0 0.0
    %3050 = vmatprep.mubr.f32.mxu0 0.0
    %3051 = vmatmul.mubr.f32.gmra.mrb[0].mxu0 %v2984
    %v3052 = vpop.f32.mrb[0].mxu0
    %v3053 = vadd.f32 0.0, %v3052
    %v3054 = vpop.f32.mrb[0].mxu0
    %3055 = vdwg.mxu0
    %v3056 = vmul.f32 %v3053, %v3053
    %v3058 = vrot.slane %v3056, 7
    %v3060 = vsub.f32 %v3053, %v3058
    %v3061 = vmax.f32 %v3060, 0.0
    %v3062 = vadd.f32 %v3061, 1e-05
    %v3063 = vrsqrt.pop %v3062
    %v3064 = vmul.f32 %v2110, %v3063
    %v3066 = vrot.slane %v3064, 1
    %v3068 = vmul.f32 %v3053, %v3066
    %v3070 = vrot.slane %v3068, 6
    %v3072 = vsub.f32 %v2110, %v3070
    %v3073 = vlaneseq
    %v3074 = vshrl.u32 %v3073, 7
    %v3075 = vsub.s32 1, %v3074
    %v3076 = vrot.slane %v3064, %v3075
    %v3077 = vmul.f32 %v2944, %v3076
    %v3078 = vmul.f32 %v2945, %v3076
    %v3079 = vlaneseq
    %v3080 = vshrl.u32 %v3079, 7
    %v3081 = vsub.s32 2, %v3080
    %v3082 = vrot.slane %v3072, %v3081
    %v3083 = vadd.f32 %v3077, %v3082
    %v3084 = vadd.f32 %v3078, %v3082
    %v3087 = vrot.slane %v3083, 1
    %v3088 = vrot.slane %v3084, 1
    %v3089 = vsel %vm1134, %v3087, %v3088
    %v3090 = vsel %vm2958, %v3089, 0
    %v3092 = vsel %vm2958, %v3088, 0
    %3094 = vmatprep.subr.mxu0 0.0
    %3095 = vmatpush1.msra.mxu0 %v2137
    %3096 = vmatprep.subr.mxu0 0.0
    %3097 = vmatpush1.msra.mxu0 %v2138
    %3098 = vmatprep.subr.mxu0 0.0
    %3099 = vmatpush1.msra.mxu0 %v2139
    %3100 = vmatprep.subr.mxu0 0.0
    %3101 = vmatpush1.msra.mxu0 %v2140
    %3102 = vmatprep.subr.mxu0 0.0
    %3103 = vmatpush1.msra.mxu0 %v2141
    %3104 = vmatprep.subr.mxu0 0.0
    %3105 = vmatpush1.msra.mxu0 %v2142
    %3106 = vmatprep.subr.mxu0 0.0
    %3107 = vmatpush1.msra.mxu0 %v2143
    %3108 = vmatprep.subr.mxu0 0.0
    %3109 = vmatpush1.msra.mxu0 %v2144
    %3110 = vmatprep.subr.mxu0 0.0
    %3111 = vmatpush1.msra.mxu0 %v2145
    %3112 = vmatprep.subr.mxu0 0.0
    %3113 = vmatpush1.msra.mxu0 %v2146
    %3114 = vmatprep.subr.mxu0 0.0
    %3115 = vmatpush1.msra.mxu0 %v2147
    %3116 = vmatprep.subr.mxu0 0.0
    %3117 = vmatpush1.msra.mxu0 %v2148
    %3118 = vmatprep.subr.mxu0 0.0
    %3119 = vmatpush1.msra.mxu0 0.0
    %3120 = vmatprep.subr.mxu0 0.0
    %3121 = vmatpush1.msra.mxu0 0.0
    %3122 = vmatprep.subr.mxu0 0.0
    %3123 = vmatpush1.msra.mxu0 0.0
    %3124 = vmatprep.subr.mxu0 0.0
    %3125 = vmatpush1.msra.mxu0 0.0
    %3126 = vmatprep.subr.mxu0 0.0
    %3127 = vmatpush1.msra.mxu0 0.0
    %3128 = vmatprep.subr.mxu0 0.0
    %3129 = vmatpush1.msra.mxu0 0.0
    %3130 = vmatprep.subr.mxu0 0.0
    %3131 = vmatpush1.msra.mxu0 0.0
    %3132 = vmatprep.subr.mxu0 0.0
    %3133 = vmatpush1.msra.mxu0 0.0
    %3134 = vmatprep.subr.mxu0 0.0
    %3135 = vmatpush1.msra.mxu0 0.0
    %3136 = vmatprep.subr.mxu0 0.0
    %3137 = vmatpush1.msra.mxu0 0.0
    %3138 = vmatprep.subr.mxu0 0.0
    %3139 = vmatpush1.msra.mxu0 0.0
    %3140 = vmatprep.subr.mxu0 0.0
    %3141 = vmatpush1.msra.mxu0 0.0
    %3142 = vmatprep.subr.mxu0 0.0
    %3143 = vmatpush1.msra.mxu0 0.0
    %3144 = vmatprep.subr.mxu0 0.0
    %3145 = vmatpush1.msra.mxu0 0.0
    %3146 = vmatprep.subr.mxu0 0.0
    %3147 = vmatpush1.msra.mxu0 0.0
    %3148 = vmatprep.subr.mxu0 0.0
    %3149 = vmatpush1.msra.mxu0 0.0
    %3150 = vmatprep.subr.mxu0 0.0
    %3151 = vmatpush1.msra.mxu0 0.0
    %3152 = vmatprep.subr.mxu0 0.0
    %3153 = vmatpush1.msra.mxu0 0.0
    %3154 = vmatprep.subr.mxu0 0.0
    %3155 = vmatpush1.msra.mxu0 0.0
    %3156 = vmatprep.subr.mxu0 0.0
    %3157 = vmatpush1.msra.mxu0 0.0
    %3158 = vmatprep.mubr.f32.mxu0 0.0
    %3159 = vmatmul.mubr.f32.gmra.mrb[0].mxu0 %v3090
    %v3160 = vpop.f32.mrb[0].mxu0
    %v3161 = vadd.f32 0.0, %v3160
    %v3162 = vpop.f32.mrb[0].mxu0
    %3163 = vmatprep.mubr.f32.mxu0 0.0
    %3164 = vmatmul.mubr.f32.gmra.mrb[0].mxu0 %v3092
    %v3165 = vpop.f32.mrb[0].mxu0
    %v3166 = vadd.f32 0.0, %v3165
    %v3167 = vpop.f32.mrb[0].mxu0
    %3168 = vdwg.mxu0
    %v3169 = vsel %vm2958, %v3083, 0
    %v3171 = vsel %vm2958, %v3084, 0
    %3173 = vmatprep.subr.mxu0 0.0
    %3174 = vmatpush1.msra.mxu0 %v2125
    %3175 = vmatprep.subr.mxu0 0.0
    %3176 = vmatpush1.msra.mxu0 %v2126
    %3177 = vmatprep.subr.mxu0 0.0
    %3178 = vmatpush1.msra.mxu0 %v2127
    %3179 = vmatprep.subr.mxu0 0.0
    %3180 = vmatpush1.msra.mxu0 %v2128
    %3181 = vmatprep.subr.mxu0 0.0
    %3182 = vmatpush1.msra.mxu0 %v2129
    %3183 = vmatprep.subr.mxu0 0.0
    %3184 = vmatpush1.msra.mxu0 %v2130
    %3185 = vmatprep.subr.mxu0 0.0
    %3186 = vmatpush1.msra.mxu0 %v2131
    %3187 = vmatprep.subr.mxu0 0.0
    %3188 = vmatpush1.msra.mxu0 %v2132
    %3189 = vmatprep.subr.mxu0 0.0
    %3190 = vmatpush1.msra.mxu0 %v2133
    %3191 = vmatprep.subr.mxu0 0.0
    %3192 = vmatpush1.msra.mxu0 %v2134
    %3193 = vmatprep.subr.mxu0 0.0
    %3194 = vmatpush1.msra.mxu0 %v2135
    %3195 = vmatprep.subr.mxu0 0.0
    %3196 = vmatpush1.msra.mxu0 %v2136
    %3197 = vmatprep.subr.mxu0 0.0
    %3198 = vmatpush1.msra.mxu0 0.0
    %3199 = vmatprep.subr.mxu0 0.0
    %3200 = vmatpush1.msra.mxu0 0.0
    %3201 = vmatprep.subr.mxu0 0.0
    %3202 = vmatpush1.msra.mxu0 0.0
    %3203 = vmatprep.subr.mxu0 0.0
    %3204 = vmatpush1.msra.mxu0 0.0
    %3205 = vmatprep.subr.mxu0 0.0
    %3206 = vmatpush1.msra.mxu0 0.0
    %3207 = vmatprep.subr.mxu0 0.0
    %3208 = vmatpush1.msra.mxu0 0.0
    %3209 = vmatprep.subr.mxu0 0.0
    %3210 = vmatpush1.msra.mxu0 0.0
    %3211 = vmatprep.subr.mxu0 0.0
    %3212 = vmatpush1.msra.mxu0 0.0
    %3213 = vmatprep.subr.mxu0 0.0
    %3214 = vmatpush1.msra.mxu0 0.0
    %3215 = vmatprep.subr.mxu0 0.0
    %3216 = vmatpush1.msra.mxu0 0.0
    %3217 = vmatprep.subr.mxu0 0.0
    %3218 = vmatpush1.msra.mxu0 0.0
    %3219 = vmatprep.subr.mxu0 0.0
    %3220 = vmatpush1.msra.mxu0 0.0
    %3221 = vmatprep.subr.mxu0 0.0
    %3222 = vmatpush1.msra.mxu0 0.0
    %3223 = vmatprep.subr.mxu0 0.0
    %3224 = vmatpush1.msra.mxu0 0.0
    %3225 = vmatprep.subr.mxu0 0.0
    %3226 = vmatpush1.msra.mxu0 0.0
    %3227 = vmatprep.subr.mxu0 0.0
    %3228 = vmatpush1.msra.mxu0 0.0
    %3229 = vmatprep.subr.mxu0 0.0
    %3230 = vmatpush1.msra.mxu0 0.0
    %3231 = vmatprep.subr.mxu0 0.0
    %3232 = vmatpush1.msra.mxu0 0.0
    %3233 = vmatprep.subr.mxu0 0.0
    %3234 = vmatpush1.msra.mxu0 0.0
    %3235 = vmatprep.subr.mxu0 0.0
    %3236 = vmatpush1.msra.mxu0 0.0
    %3237 = vmatprep.mubr.f32.mxu0 0.0
    %3238 = vmatmul.mubr.f32.gmra.mrb[0].mxu0 %v3169
    %v3239 = vpop.f32.mrb[0].mxu0
    %v3240 = vadd.f32 %v3161, %v3239
    %v3241 = vpop.f32.mrb[0].mxu0
    %3242 = vmatprep.mubr.f32.mxu0 0.0
    %3243 = vmatmul.mubr.f32.gmra.mrb[0].mxu0 %v3171
    %v3244 = vpop.f32.mrb[0].mxu0
    %v3245 = vadd.f32 %v3166, %v3244
    %v3246 = vpop.f32.mrb[0].mxu0
    %3247 = vdwg.mxu0
    %v3248 = vrot.slane %v3083, 2
    %v3249 = vrot.slane %v3084, 2
    %v3250 = vsel %vm1315, %v3248, %v3249
    %v3251 = vsel %vm2958, %v3250, 0
    %v3253 = vsel %vm2958, %v3249, 0
    %3255 = vmatprep.subr.mxu0 0.0
    %3256 = vmatpush1.msra.mxu0 %v2149
    %3257 = vmatprep.subr.mxu0 0.0
    %3258 = vmatpush1.msra.mxu0 %v2150
    %3259 = vmatprep.subr.mxu0 0.0
    %3260 = vmatpush1.msra.mxu0 %v2151
    %3261 = vmatprep.subr.mxu0 0.0
    %3262 = vmatpush1.msra.mxu0 %v2152
    %3263 = vmatprep.subr.mxu0 0.0
    %3264 = vmatpush1.msra.mxu0 %v2153
    %3265 = vmatprep.subr.mxu0 0.0
    %3266 = vmatpush1.msra.mxu0 %v2154
    %3267 = vmatprep.subr.mxu0 0.0
    %3268 = vmatpush1.msra.mxu0 %v2155
    %3269 = vmatprep.subr.mxu0 0.0
    %3270 = vmatpush1.msra.mxu0 %v2156
    %3271 = vmatprep.subr.mxu0 0.0
    %3272 = vmatpush1.msra.mxu0 %v2157
    %3273 = vmatprep.subr.mxu0 0.0
    %3274 = vmatpush1.msra.mxu0 %v2158
    %3275 = vmatprep.subr.mxu0 0.0
    %3276 = vmatpush1.msra.mxu0 %v2159
    %3277 = vmatprep.subr.mxu0 0.0
    %3278 = vmatpush1.msra.mxu0 %v2160
    %3279 = vmatprep.subr.mxu0 0.0
    %3280 = vmatpush1.msra.mxu0 0.0
    %3281 = vmatprep.subr.mxu0 0.0
    %3282 = vmatpush1.msra.mxu0 0.0
    %3283 = vmatprep.subr.mxu0 0.0
    %3284 = vmatpush1.msra.mxu0 0.0
    %3285 = vmatprep.subr.mxu0 0.0
    %3286 = vmatpush1.msra.mxu0 0.0
    %3287 = vmatprep.subr.mxu0 0.0
    %3288 = vmatpush1.msra.mxu0 0.0
    %3289 = vmatprep.subr.mxu0 0.0
    %3290 = vmatpush1.msra.mxu0 0.0
    %3291 = vmatprep.subr.mxu0 0.0
    %3292 = vmatpush1.msra.mxu0 0.0
    %3293 = vmatprep.subr.mxu0 0.0
    %3294 = vmatpush1.msra.mxu0 0.0
    %3295 = vmatprep.subr.mxu0 0.0
    %3296 = vmatpush1.msra.mxu0 0.0
    %3297 = vmatprep.subr.mxu0 0.0
    %3298 = vmatpush1.msra.mxu0 0.0
    %3299 = vmatprep.subr.mxu0 0.0
    %3300 = vmatpush1.msra.mxu0 0.0
    %3301 = vmatprep.subr.mxu0 0.0
    %3302 = vmatpush1.msra.mxu0 0.0
    %3303 = vmatprep.subr.mxu0 0.0
    %3304 = vmatpush1.msra.mxu0 0.0
    %3305 = vmatprep.subr.mxu0 0.0
    %3306 = vmatpush1.msra.mxu0 0.0
    %3307 = vmatprep.subr.mxu0 0.0
    %3308 = vmatpush1.msra.mxu0 0.0
    %3309 = vmatprep.subr.mxu0 0.0
    %3310 = vmatpush1.msra.mxu0 0.0
    %3311 = vmatprep.subr.mxu0 0.0
    %3312 = vmatpush1.msra.mxu0 0.0
    %3313 = vmatprep.subr.mxu0 0.0
    %3314 = vmatpush1.msra.mxu0 0.0
    %3315 = vmatprep.subr.mxu0 0.0
    %3316 = vmatpush1.msra.mxu0 0.0
    %3317 = vmatprep.subr.mxu0 0.0
    %3318 = vmatpush1.msra.mxu0 0.0
    %3319 = vmatprep.mubr.f32.mxu0 0.0
    %3320 = vmatmul.mubr.f32.gmra.mrb[0].mxu0 %v3251
    %v3321 = vpop.f32.mrb[0].mxu0
    %v3322 = vadd.f32 0.0, %v3321
    %v3323 = vpop.f32.mrb[0].mxu0
    %3324 = vmatprep.mubr.f32.mxu0 0.0
    %3325 = vmatmul.mubr.f32.gmra.mrb[0].mxu0 %v3253
    %v3326 = vpop.f32.mrb[0].mxu0
    %v3327 = vadd.f32 0.0, %v3326
    %v3328 = vpop.f32.mrb[0].mxu0
    %3329 = vdwg.mxu0
    %v3330 = vadd.f32 %v3240, %v3322
    %v3331 = vadd.f32 %v3245, %v3327
    %v3332 = vlaneseq
    %v3333 = vshrl.u32 %v3332, 7
    %v3334 = vsub.s32 0, %v3333
    %v3335 = vrot.slane %v2161, %v3334
    %v3336 = vadd.f32 %v3330, %v3335
    %v3337 = vadd.f32 %v3331, %v3335
    %v3338 = vmax.f32 %v3336, 0.0
    %v3339 = vmax.f32 %v3337, 0.0
    %3341 = vset.pattern.permute.xlu0 0
    %3342 = vperm.xlu0 %3341, %v2170
    %v3343 = vpop.permute.xlu0 %3342
    %3346 = vset.pattern.permute.xlu0 0
    %3347 = vperm.xlu0 %3346, %v2171
    %v3348 = vpop.permute.xlu0 %3347
    %v3350 = vmul.f32 %v3338, %v3343
    %v3351 = vmul.f32 %v3339, %v3348
    %v3352 = vsel %vm782, %v3350, 0.0
    %v3353 = vsel %vm784, %v3351, 0.0
    %v3354 = vadd.f32 %v3352, %v3353
    %v3355 = vrot.slane %v3354, 4
    %v3356 = vadd.f32 %v3354, %v3355
    %v3357 = vrot.slane %v3356, 2
    %v3358 = vadd.f32 %v3356, %v3357
    %v3359 = vrot.slane %v3358, 1
    %v3360 = vadd.f32 %v3358, %v3359
    %v3361 = vmul.f32 %v3338, %v3338
    %v3362 = vmul.f32 %v3339, %v3339
    %v3363 = vmul.f32 %v3361, %v3343
    %v3364 = vmul.f32 %v3362, %v3348
    %v3365 = vsel %vm782, %v3363, 0.0
    %v3366 = vsel %vm784, %v3364, 0.0
    %v3367 = vadd.f32 %v3365, %v3366
    %v3368 = vrot.slane %v3367, 4
    %v3369 = vadd.f32 %v3367, %v3368
    %v3370 = vrot.slane %v3369, 2
    %v3371 = vadd.f32 %v3369, %v3370
    %v3372 = vrot.slane %v3371, 1
    %v3373 = vadd.f32 %v3371, %v3372
    %v3374 = vsel %vm818, %v3360, %v3373
    %v3376 = vsel %vm782, %v3374, 0
    %3378 = vmatprep.subr.mxu0 0.0
    %3379 = vmatpush1.msra.mxu0 %v2162
    %3380 = vmatprep.subr.mxu0 0.0
    %3381 = vmatpush1.msra.mxu0 %v2163
    %3382 = vmatprep.subr.mxu0 0.0
    %3383 = vmatpush1.msra.mxu0 %v2164
    %3384 = vmatprep.subr.mxu0 0.0
    %3385 = vmatpush1.msra.mxu0 %v2165
    %3386 = vmatprep.subr.mxu0 0.0
    %3387 = vmatpush1.msra.mxu0 %v2166
    %3388 = vmatprep.subr.mxu0 0.0
    %3389 = vmatpush1.msra.mxu0 %v2167
    %3390 = vmatprep.subr.mxu0 0.0
    %3391 = vmatpush1.msra.mxu0 %v2168
    %3392 = vmatprep.subr.mxu0 0.0
    %3393 = vmatpush1.msra.mxu0 %v2169
    %3394 = vmatprep.subr.mxu0 0.0
    %3395 = vmatpush1.msra.mxu0 0.0
    %3396 = vmatprep.subr.mxu0 0.0
    %3397 = vmatpush1.msra.mxu0 0.0
    %3398 = vmatprep.subr.mxu0 0.0
    %3399 = vmatpush1.msra.mxu0 0.0
    %3400 = vmatprep.subr.mxu0 0.0
    %3401 = vmatpush1.msra.mxu0 0.0
    %3402 = vmatprep.subr.mxu0 0.0
    %3403 = vmatpush1.msra.mxu0 0.0
    %3404 = vmatprep.subr.mxu0 0.0
    %3405 = vmatpush1.msra.mxu0 0.0
    %3406 = vmatprep.subr.mxu0 0.0
    %3407 = vmatpush1.msra.mxu0 0.0
    %3408 = vmatprep.subr.mxu0 0.0
    %3409 = vmatpush1.msra.mxu0 0.0
    %3410 = vmatprep.subr.mxu0 0.0
    %3411 = vmatpush1.msra.mxu0 0.0
    %3412 = vmatprep.subr.mxu0 0.0
    %3413 = vmatpush1.msra.mxu0 0.0
    %3414 = vmatprep.subr.mxu0 0.0
    %3415 = vmatpush1.msra.mxu0 0.0
    %3416 = vmatprep.subr.mxu0 0.0
    %3417 = vmatpush1.msra.mxu0 0.0
    %3418 = vmatprep.subr.mxu0 0.0
    %3419 = vmatpush1.msra.mxu0 0.0
    %3420 = vmatprep.subr.mxu0 0.0
    %3421 = vmatpush1.msra.mxu0 0.0
    %3422 = vmatprep.subr.mxu0 0.0
    %3423 = vmatpush1.msra.mxu0 0.0
    %3424 = vmatprep.subr.mxu0 0.0
    %3425 = vmatpush1.msra.mxu0 0.0
    %3426 = vmatprep.subr.mxu0 0.0
    %3427 = vmatpush1.msra.mxu0 0.0
    %3428 = vmatprep.subr.mxu0 0.0
    %3429 = vmatpush1.msra.mxu0 0.0
    %3430 = vmatprep.subr.mxu0 0.0
    %3431 = vmatpush1.msra.mxu0 0.0
    %3432 = vmatprep.subr.mxu0 0.0
    %3433 = vmatpush1.msra.mxu0 0.0
    %3434 = vmatprep.subr.mxu0 0.0
    %3435 = vmatpush1.msra.mxu0 0.0
    %3436 = vmatprep.subr.mxu0 0.0
    %3437 = vmatpush1.msra.mxu0 0.0
    %3438 = vmatprep.subr.mxu0 0.0
    %3439 = vmatpush1.msra.mxu0 0.0
    %3440 = vmatprep.subr.mxu0 0.0
    %3441 = vmatpush1.msra.mxu0 0.0
    %3442 = vmatprep.mubr.f32.mxu0 0.0
    %3443 = vmatmul.mubr.f32.gmra.mrb[0].mxu0 %v3376
    %v3444 = vpop.f32.mrb[0].mxu0
    %v3445 = vadd.f32 0.0, %v3444
    %v3446 = vpop.f32.mrb[0].mxu0
    %3447 = vdwg.mxu0
    %v3448 = vmul.f32 %v3445, %v3445
    %v3450 = vrot.slane %v3448, 7
    %v3452 = vsub.f32 %v3445, %v3450
    %v3453 = vmax.f32 %v3452, 0.0
    %v3454 = vadd.f32 %v3453, 1e-05
    %v3455 = vrsqrt.pop %v3454
    %v3456 = vmul.f32 %v2161, %v3455
    %v3458 = vrot.slane %v3456, 1
    %v3460 = vmul.f32 %v3445, %v3458
    %v3462 = vrot.slane %v3460, 6
    %v3464 = vsub.f32 %v2161, %v3462
    %v3465 = vlaneseq
    %v3466 = vshrl.u32 %v3465, 7
    %v3467 = vsub.s32 1, %v3466
    %v3468 = vrot.slane %v3456, %v3467
    %v3469 = vmul.f32 %v3338, %v3468
    %v3470 = vmul.f32 %v3339, %v3468
    %v3471 = vlaneseq
    %v3472 = vshrl.u32 %v3471, 7
    %v3473 = vsub.s32 2, %v3472
    %v3474 = vrot.slane %v3464, %v3473
    %v3475 = vadd.f32 %v3469, %v3474
    %v3476 = vadd.f32 %v3470, %v3474
    %v3477 = vld [vmem:[%s59] sm:$0xff]
    %v3478 = vld [vmem:[%s59 + $0x8] sm:$0xff]
    %v3479 = vld [vmem:[%s59 + $0x10] sm:$0xff]
    %v3480 = vld [vmem:[%s61] sm:$0xff]
    %v3481 = vld [vmem:[%s61 + $0x8] sm:$0xff]
    %v3482 = vld [vmem:[%s61 + $0x10] sm:$0xff]
    %v3483 = vld [vmem:[%s63] sm:$0xff]
    %v3484 = vld [vmem:[%s63 + $0x8] sm:$0xff]
    %v3485 = vld [vmem:[%s63 + $0x10] sm:$0xff]
    %v3486 = vld [vmem:[%s63 + $0x18] sm:$0xff]
    %v3487 = vld [vmem:[%s63 + $0x20] sm:$0xff]
    %v3488 = vld [vmem:[%s63 + $0x28] sm:$0xff]
    %v3489 = vld [vmem:[%s63 + $0x30] sm:$0xff]
    %v3490 = vld [vmem:[%s63 + $0x38] sm:$0xff]
    %v3491 = vld [vmem:[%s65] sm:$0x7]
    %v3492 = vld [vmem:[%s67] sm:$0xff]
    %v3493 = vld [vmem:[%s67 + $0x8] sm:$0xff]
    %v3494 = vld [vmem:[%s67 + $0x10] sm:$0xff]
    %v3495 = vld [vmem:[%s67 + $0x18] sm:$0xff]
    %v3496 = vld [vmem:[%s67 + $0x20] sm:$0xff]
    %v3497 = vld [vmem:[%s67 + $0x28] sm:$0xff]
    %v3498 = vld [vmem:[%s67 + $0x30] sm:$0xff]
    %v3499 = vld [vmem:[%s67 + $0x38] sm:$0xff]
    %v3500 = vld [vmem:[%s67 + $0x40] sm:$0xff]
    %v3501 = vld [vmem:[%s67 + $0x48] sm:$0xff]
    %v3502 = vld [vmem:[%s67 + $0x50] sm:$0xff]
    %v3503 = vld [vmem:[%s67 + $0x58] sm:$0xff]
    %v3504 = vld [vmem:[%s69] sm:$0xff]
    %v3505 = vld [vmem:[%s69 + $0x8] sm:$0xff]
    %v3506 = vld [vmem:[%s69 + $0x10] sm:$0xff]
    %v3507 = vld [vmem:[%s69 + $0x18] sm:$0xff]
    %v3508 = vld [vmem:[%s69 + $0x20] sm:$0xff]
    %v3509 = vld [vmem:[%s69 + $0x28] sm:$0xff]
    %v3510 = vld [vmem:[%s69 + $0x30] sm:$0xff]
    %v3511 = vld [vmem:[%s69 + $0x38] sm:$0xff]
    %v3512 = vld [vmem:[%s69 + $0x40] sm:$0xff]
    %v3513 = vld [vmem:[%s69 + $0x48] sm:$0xff]
    %v3514 = vld [vmem:[%s69 + $0x50] sm:$0xff]
    %v3515 = vld [vmem:[%s69 + $0x58] sm:$0xff]
    %v3516 = vld [vmem:[%s69 + $0x60] sm:$0xff]
    %v3517 = vld [vmem:[%s69 + $0x68] sm:$0xff]
    %v3518 = vld [vmem:[%s69 + $0x70] sm:$0xff]
    %v3519 = vld [vmem:[%s69 + $0x78] sm:$0xff]
    %v3520 = vld [vmem:[%s69 + $0x80] sm:$0xff]
    %v3521 = vld [vmem:[%s69 + $0x88] sm:$0xff]
    %v3522 = vld [vmem:[%s69 + $0x90] sm:$0xff]
    %v3523 = vld [vmem:[%s69 + $0x98] sm:$0xff]
    %v3524 = vld [vmem:[%s69 + $0xa0] sm:$0xff]
    %v3525 = vld [vmem:[%s69 + $0xa8] sm:$0xff]
    %v3526 = vld [vmem:[%s69 + $0xb0] sm:$0xff]
    %v3527 = vld [vmem:[%s69 + $0xb8] sm:$0xff]
    %v3528 = vld [vmem:[%s69 + $0xc0] sm:$0xff]
    %v3529 = vld [vmem:[%s69 + $0xc8] sm:$0xff]
    %v3530 = vld [vmem:[%s69 + $0xd0] sm:$0xff]
    %v3531 = vld [vmem:[%s69 + $0xd8] sm:$0xff]
    %v3532 = vld [vmem:[%s69 + $0xe0] sm:$0xff]
    %v3533 = vld [vmem:[%s69 + $0xe8] sm:$0xff]
    %v3534 = vld [vmem:[%s69 + $0xf0] sm:$0xff]
    %v3535 = vld [vmem:[%s69 + $0xf8] sm:$0xff]
    %v3536 = vld [vmem:[%s69 + $0x100] sm:$0xff]
    %v3537 = vld [vmem:[%s69 + $0x108] sm:$0xff]
    %v3538 = vld [vmem:[%s69 + $0x110] sm:$0xff]
    %v3539 = vld [vmem:[%s69 + $0x118] sm:$0xff]
    %v3540 = vld [vmem:[%s71] sm:$0xff]
    %v3541 = vld [vmem:[%s71 + $0x8] sm:$0xff]
    %v3542 = vld [vmem:[%s71 + $0x10] sm:$0xff]
    %v3543 = vld [vmem:[%s71 + $0x18] sm:$0xff]
    %v3544 = vld [vmem:[%s71 + $0x20] sm:$0xff]
    %v3545 = vld [vmem:[%s71 + $0x28] sm:$0xff]
    %v3546 = vld [vmem:[%s71 + $0x30] sm:$0xff]
    %v3547 = vld [vmem:[%s71 + $0x38] sm:$0xff]
    %v3548 = vld [vmem:[%s71 + $0x40] sm:$0xff]
    %v3549 = vld [vmem:[%s71 + $0x48] sm:$0xff]
    %v3550 = vld [vmem:[%s71 + $0x50] sm:$0xff]
    %v3551 = vld [vmem:[%s71 + $0x58] sm:$0xff]
    %v3552 = vld [vmem:[%s71 + $0x60] sm:$0xff]
    %v3553 = vld [vmem:[%s71 + $0x68] sm:$0xff]
    %v3554 = vld [vmem:[%s71 + $0x70] sm:$0xff]
    %v3555 = vld [vmem:[%s71 + $0x78] sm:$0xff]
    %v3556 = vld [vmem:[%s71 + $0x80] sm:$0xff]
    %v3557 = vld [vmem:[%s71 + $0x88] sm:$0xff]
    %v3558 = vld [vmem:[%s71 + $0x90] sm:$0xff]
    %v3559 = vld [vmem:[%s71 + $0x98] sm:$0xff]
    %v3560 = vld [vmem:[%s71 + $0xa0] sm:$0xff]
    %v3561 = vld [vmem:[%s71 + $0xa8] sm:$0xff]
    %v3562 = vld [vmem:[%s71 + $0xb0] sm:$0xff]
    %v3563 = vld [vmem:[%s71 + $0xb8] sm:$0xff]
    %v3564 = vld [vmem:[%s71 + $0xc0] sm:$0xff]
    %v3565 = vld [vmem:[%s71 + $0xc8] sm:$0xff]
    %v3566 = vld [vmem:[%s71 + $0xd0] sm:$0xff]
    %v3567 = vld [vmem:[%s71 + $0xd8] sm:$0xff]
    %v3568 = vld [vmem:[%s71 + $0xe0] sm:$0xff]
    %v3569 = vld [vmem:[%s71 + $0xe8] sm:$0xff]
    %v3570 = vld [vmem:[%s71 + $0xf0] sm:$0xff]
    %v3571 = vld [vmem:[%s71 + $0xf8] sm:$0xff]
    %v3572 = vld [vmem:[%s71 + $0x100] sm:$0xff]
    %v3573 = vld [vmem:[%s71 + $0x108] sm:$0xff]
    %v3574 = vld [vmem:[%s71 + $0x110] sm:$0xff]
    %v3575 = vld [vmem:[%s71 + $0x118] sm:$0xff]
    %v3576 = vld [vmem:[%s73] sm:$0x7]
    %v3577 = vld [vmem:[%s75] sm:$0xff]
    %v3578 = vld [vmem:[%s75 + $0x8] sm:$0xff]
    %v3579 = vld [vmem:[%s75 + $0x10] sm:$0xff]
    %v3580 = vld [vmem:[%s75 + $0x18] sm:$0xff]
    %v3581 = vld [vmem:[%s75 + $0x20] sm:$0xff]
    %v3582 = vld [vmem:[%s75 + $0x28] sm:$0xff]
    %v3583 = vld [vmem:[%s75 + $0x30] sm:$0xff]
    %v3584 = vld [vmem:[%s75 + $0x38] sm:$0xff]
    %v3585 = vld [vmem:[%s75 + $0x40] sm:$0xff]
    %v3586 = vld [vmem:[%s75 + $0x48] sm:$0xff]
    %v3587 = vld [vmem:[%s77] sm:$0xff]
    %v3588 = vld [vmem:[%s77 + $0x8] sm:$0xff]
    %v3589 = vld [vmem:[%s77 + $0x10] sm:$0x3f]
    %v3590 = vld [vmem:[%s79] sm:$0xff]
    %v3591 = vld [vmem:[%s79 + $0x8] sm:$0xff]
    %v3592 = vld [vmem:[%s79 + $0x10] sm:$0xff]
    %v3593 = vld [vmem:[%s79 + $0x18] sm:$0xff]
    %v3594 = vld [vmem:[%s79 + $0x20] sm:$0xff]
    %v3595 = vld [vmem:[%s79 + $0x28] sm:$0xff]
    %v3596 = vld [vmem:[%s79 + $0x30] sm:$0xff]
    %v3597 = vld [vmem:[%s79 + $0x38] sm:$0xff]
    %v3598 = vld [vmem:[%s79 + $0x40] sm:$0xff]
    %v3599 = vld [vmem:[%s79 + $0x48] sm:$0xff]
    %v3600 = vld [vmem:[%s79 + $0x50] sm:$0xff]
    %v3601 = vld [vmem:[%s79 + $0x58] sm:$0xff]
    %v3602 = vld [vmem:[%s79 + $0x60] sm:$0xff]
    %v3603 = vld [vmem:[%s79 + $0x68] sm:$0xff]
    %v3604 = vld [vmem:[%s79 + $0x70] sm:$0xff]
    %v3605 = vld [vmem:[%s79 + $0x78] sm:$0xff]
    %v3606 = vld [vmem:[%s79 + $0x80] sm:$0xff]
    %v3607 = vld [vmem:[%s79 + $0x88] sm:$0xff]
    %v3608 = vld [vmem:[%s79 + $0x90] sm:$0xff]
    %v3609 = vld [vmem:[%s79 + $0x98] sm:$0xff]
    %v3610 = vld [vmem:[%s79 + $0xa0] sm:$0xff]
    %v3611 = vld [vmem:[%s79 + $0xa8] sm:$0xff]
    %v3612 = vld [vmem:[%s79 + $0xb0] sm:$0xff]
    %v3613 = vld [vmem:[%s79 + $0xb8] sm:$0xff]
    %v3614 = vld [vmem:[%s79 + $0xc0] sm:$0xff]
    %v3615 = vld [vmem:[%s79 + $0xc8] sm:$0xff]
    %v3616 = vld [vmem:[%s79 + $0xd0] sm:$0xff]
    %v3617 = vld [vmem:[%s79 + $0xd8] sm:$0xff]
    %v3618 = vld [vmem:[%s79 + $0xe0] sm:$0xff]
    %v3619 = vld [vmem:[%s79 + $0xe8] sm:$0xff]
    %v3620 = vld [vmem:[%s81] sm:$0x7]
    %v3621 = vld [vmem:[%s83] sm:$0xff]
    %v3622 = vld [vmem:[%s83 + $0x8] sm:$0xff]
    %v3623 = vld [vmem:[%s83 + $0x10] sm:$0xff]
    %v3624 = vld [vmem:[%s83 + $0x18] sm:$0xff]
    %v3625 = vld [vmem:[%s83 + $0x20] sm:$0xff]
    %v3626 = vld [vmem:[%s83 + $0x28] sm:$0xff]
    %v3627 = vld [vmem:[%s83 + $0x30] sm:$0xff]
    %v3628 = vld [vmem:[%s83 + $0x38] sm:$0xff]
    %v3629 = vld [vmem:[%s85] sm:$0xff]
    %v3630 = vld [vmem:[%s85 + $0x8] sm:$0xff]
    %v3631 = vld [vmem:[%s85 + $0x10] sm:$0xf]
    %vm3632 = vcmask 97280
    %v3634 = vsel %vm3632, %v3480, 0
    %v3637 = vsel %vm3632, %v3481, 0
    %v3640 = vsel %vm3632, %v3482, 0
    %v3643 = vsel %vm773, %v3476, 0
    %3645 = vmatprep.subr.mxu0 0.0
    %3646 = vmatpush1.msra.mxu0 %v3475
    %3647 = vmatprep.subr.mxu0 0.0
    %3648 = vmatpush1.msra.mxu0 %v3643
    %3649 = vmatprep.subr.mxu0 0.0
    %3650 = vmatpush1.msra.mxu0 0.0
    %3651 = vmatprep.subr.mxu0 0.0
    %3652 = vmatpush1.msra.mxu0 0.0
    %3653 = vmatprep.subr.mxu0 0.0
    %3654 = vmatpush1.msra.mxu0 0.0
    %3655 = vmatprep.subr.mxu0 0.0
    %3656 = vmatpush1.msra.mxu0 0.0
    %3657 = vmatprep.subr.mxu0 0.0
    %3658 = vmatpush1.msra.mxu0 0.0
    %3659 = vmatprep.subr.mxu0 0.0
    %3660 = vmatpush1.msra.mxu0 0.0
    %3661 = vmatprep.subr.mxu0 0.0
    %3662 = vmatpush1.msra.mxu0 0.0
    %3663 = vmatprep.subr.mxu0 0.0
    %3664 = vmatpush1.msra.mxu0 0.0
    %3665 = vmatprep.subr.mxu0 0.0
    %3666 = vmatpush1.msra.mxu0 0.0
    %3667 = vmatprep.subr.mxu0 0.0
    %3668 = vmatpush1.msra.mxu0 0.0
    %3669 = vmatprep.subr.mxu0 0.0
    %3670 = vmatpush1.msra.mxu0 0.0
    %3671 = vmatprep.subr.mxu0 0.0
    %3672 = vmatpush1.msra.mxu0 0.0
    %3673 = vmatprep.subr.mxu0 0.0
    %3674 = vmatpush1.msra.mxu0 0.0
    %3675 = vmatprep.subr.mxu0 0.0
    %3676 = vmatpush1.msra.mxu0 0.0
    %3677 = vmatprep.subr.mxu0 0.0
    %3678 = vmatpush1.msra.mxu0 0.0
    %3679 = vmatprep.subr.mxu0 0.0
    %3680 = vmatpush1.msra.mxu0 0.0
    %3681 = vmatprep.subr.mxu0 0.0
    %3682 = vmatpush1.msra.mxu0 0.0
    %3683 = vmatprep.subr.mxu0 0.0
    %3684 = vmatpush1.msra.mxu0 0.0
    %3685 = vmatprep.subr.mxu0 0.0
    %3686 = vmatpush1.msra.mxu0 0.0
    %3687 = vmatprep.subr.mxu0 0.0
    %3688 = vmatpush1.msra.mxu0 0.0
    %3689 = vmatprep.subr.mxu0 0.0
    %3690 = vmatpush1.msra.mxu0 0.0
    %3691 = vmatprep.subr.mxu0 0.0
    %3692 = vmatpush1.msra.mxu0 0.0
    %3693 = vmatprep.subr.mxu0 0.0
    %3694 = vmatpush1.msra.mxu0 0.0
    %3695 = vmatprep.subr.mxu0 0.0
    %3696 = vmatpush1.msra.mxu0 0.0
    %3697 = vmatprep.subr.mxu0 0.0
    %3698 = vmatpush1.msra.mxu0 0.0
    %3699 = vmatprep.subr.mxu0 0.0
    %3700 = vmatpush1.msra.mxu0 0.0
    %3701 = vmatprep.subr.mxu0 0.0
    %3702 = vmatpush1.msra.mxu0 0.0
    %3703 = vmatprep.subr.mxu0 0.0
    %3704 = vmatpush1.msra.mxu0 0.0
    %3705 = vmatprep.subr.mxu0 0.0
    %3706 = vmatpush1.msra.mxu0 0.0
    %3707 = vmatprep.subr.mxu0 0.0
    %3708 = vmatpush1.msra.mxu0 0.0
    %3709 = vmatprep.mubr.f32.mxu0 0.0
    %3710 = vmatmul.mubr.f32.gmra.mrb[0].mxu0 %v3634
    %v3711 = vpop.f32.mrb[0].mxu0
    %v3712 = vadd.f32 0.0, %v3711
    %v3713 = vpop.f32.mrb[0].mxu0
    %3714 = vmatprep.mubr.f32.mxu0 0.0
    %3715 = vmatmul.mubr.f32.gmra.mrb[0].mxu0 %v3637
    %v3716 = vpop.f32.mrb[0].mxu0
    %v3717 = vadd.f32 0.0, %v3716
    %v3718 = vpop.f32.mrb[0].mxu0
    %3719 = vmatprep.mubr.f32.mxu0 0.0
    %3720 = vmatmul.mubr.f32.gmra.mrb[0].mxu0 %v3640
    %v3721 = vpop.f32.mrb[0].mxu0
    %v3722 = vadd.f32 0.0, %v3721
    %v3723 = vpop.f32.mrb[0].mxu0
    %3724 = vdwg.mxu0
    %v3725 = vlaneseq
    %v3726 = vshrl.u32 %v3725, 7
    %v3727 = vsub.s32 0, %v3726
    %v3728 = vrot.slane %v3491, %v3727
    %v3730 = vsel %vm782, %v3712, 0
    %v3733 = vsel %vm782, %v3717, 0
    %v3736 = vsel %vm782, %v3722, 0
    %3738 = vmatprep.subr.mxu0 0.0
    %3739 = vmatpush1.msra.mxu0 %v3483
    %3740 = vmatprep.subr.mxu0 0.0
    %3741 = vmatpush1.msra.mxu0 %v3484
    %3742 = vmatprep.subr.mxu0 0.0
    %3743 = vmatpush1.msra.mxu0 %v3485
    %3744 = vmatprep.subr.mxu0 0.0
    %3745 = vmatpush1.msra.mxu0 %v3486
    %3746 = vmatprep.subr.mxu0 0.0
    %3747 = vmatpush1.msra.mxu0 %v3487
    %3748 = vmatprep.subr.mxu0 0.0
    %3749 = vmatpush1.msra.mxu0 %v3488
    %3750 = vmatprep.subr.mxu0 0.0
    %3751 = vmatpush1.msra.mxu0 %v3489
    %3752 = vmatprep.subr.mxu0 0.0
    %3753 = vmatpush1.msra.mxu0 %v3490
    %3754 = vmatprep.subr.mxu0 0.0
    %3755 = vmatpush1.msra.mxu0 0.0
    %3756 = vmatprep.subr.mxu0 0.0
    %3757 = vmatpush1.msra.mxu0 0.0
    %3758 = vmatprep.subr.mxu0 0.0
    %3759 = vmatpush1.msra.mxu0 0.0
    %3760 = vmatprep.subr.mxu0 0.0
    %3761 = vmatpush1.msra.mxu0 0.0
    %3762 = vmatprep.subr.mxu0 0.0
    %3763 = vmatpush1.msra.mxu0 0.0
    %3764 = vmatprep.subr.mxu0 0.0
    %3765 = vmatpush1.msra.mxu0 0.0
    %3766 = vmatprep.subr.mxu0 0.0
    %3767 = vmatpush1.msra.mxu0 0.0
    %3768 = vmatprep.subr.mxu0 0.0
    %3769 = vmatpush1.msra.mxu0 0.0
    %3770 = vmatprep.subr.mxu0 0.0
    %3771 = vmatpush1.msra.mxu0 0.0
    %3772 = vmatprep.subr.mxu0 0.0
    %3773 = vmatpush1.msra.mxu0 0.0
    %3774 = vmatprep.subr.mxu0 0.0
    %3775 = vmatpush1.msra.mxu0 0.0
    %3776 = vmatprep.subr.mxu0 0.0
    %3777 = vmatpush1.msra.mxu0 0.0
    %3778 = vmatprep.subr.mxu0 0.0
    %3779 = vmatpush1.msra.mxu0 0.0
    %3780 = vmatprep.subr.mxu0 0.0
    %3781 = vmatpush1.msra.mxu0 0.0
    %3782 = vmatprep.subr.mxu0 0.0
    %3783 = vmatpush1.msra.mxu0 0.0
    %3784 = vmatprep.subr.mxu0 0.0
    %3785 = vmatpush1.msra.mxu0 0.0
    %3786 = vmatprep.subr.mxu0 0.0
    %3787 = vmatpush1.msra.mxu0 0.0
    %3788 = vmatprep.subr.mxu0 0.0
    %3789 = vmatpush1.msra.mxu0 0.0
    %3790 = vmatprep.subr.mxu0 0.0
    %3791 = vmatpush1.msra.mxu0 0.0
    %3792 = vmatprep.subr.mxu0 0.0
    %3793 = vmatpush1.msra.mxu0 0.0
    %3794 = vmatprep.subr.mxu0 0.0
    %3795 = vmatpush1.msra.mxu0 0.0
    %3796 = vmatprep.subr.mxu0 0.0
    %3797 = vmatpush1.msra.mxu0 0.0
    %3798 = vmatprep.subr.mxu0 0.0
    %3799 = vmatpush1.msra.mxu0 0.0
    %3800 = vmatprep.subr.mxu0 0.0
    %3801 = vmatpush1.msra.mxu0 0.0
    %3802 = vmatprep.mubr.f32.mxu0 0.0
    %3803 = vmatmul.mubr.f32.gmra.mrb[0].mxu0 %v3730
    %v3804 = vpop.f32.mrb[0].mxu0
    %v3805 = vadd.f32 %v3728, %v3804
    %v3806 = vpop.f32.mrb[0].mxu0
    %3807 = vmatprep.mubr.f32.mxu0 0.0
    %3808 = vmatmul.mubr.f32.gmra.mrb[0].mxu0 %v3733
    %v3809 = vpop.f32.mrb[0].mxu0
    %v3810 = vadd.f32 %v3728, %v3809
    %v3811 = vpop.f32.mrb[0].mxu0
    %3812 = vmatprep.mubr.f32.mxu0 0.0
    %3813 = vmatmul.mubr.f32.gmra.mrb[0].mxu0 %v3736
    %v3814 = vpop.f32.mrb[0].mxu0
    %v3815 = vadd.f32 %v3728, %v3814
    %v3816 = vpop.f32.mrb[0].mxu0
    %3817 = vdwg.mxu0
    %v3818 = vmax.f32 %v3805, 0.0
    %v3819 = vmax.f32 %v3810, 0.0
    %v3820 = vmax.f32 %v3815, 0.0
    %v3821 = vsel %vm2958, %v3818, 0.0
    %v3822 = vsel %vm2958, %v3819, 0.0
    %v3823 = vadd.f32 %v3821, %v3822
    %v3824 = vsel %vm2958, %v3820, 0.0
    %v3825 = vadd.f32 %v3823, %v3824
    %v3826 = vrot.slane %v3825, 4
    %v3827 = vadd.f32 %v3825, %v3826
    %v3828 = vrot.slane %v3827, 2
    %v3829 = vadd.f32 %v3827, %v3828
    %v3830 = vrot.slane %v3829, 1
    %v3831 = vadd.f32 %v3829, %v3830
    %v3832 = vmul.f32 %v3818, %v3818
    %v3833 = vmul.f32 %v3819, %v3819
    %v3834 = vmul.f32 %v3820, %v3820
    %v3835 = vsel %vm2958, %v3832, 0.0
    %v3836 = vsel %vm2958, %v3833, 0.0
    %v3837 = vadd.f32 %v3835, %v3836
    %v3838 = vsel %vm2958, %v3834, 0.0
    %v3839 = vadd.f32 %v3837, %v3838
    %v3840 = vrot.slane %v3839, 4
    %v3841 = vadd.f32 %v3839, %v3840
    %v3842 = vrot.slane %v3841, 2
    %v3843 = vadd.f32 %v3841, %v3842
    %v3844 = vrot.slane %v3843, 1
    %v3845 = vadd.f32 %v3843, %v3844
    %v3846 = vsel %vm818, %v3831, %v3845
    %v3848 = vsel %vm2958, %v3846, 0
    %3850 = vmatprep.subr.mxu0 0.0
    %3851 = vmatpush1.msra.mxu0 %v3492
    %3852 = vmatprep.subr.mxu0 0.0
    %3853 = vmatpush1.msra.mxu0 %v3493
    %3854 = vmatprep.subr.mxu0 0.0
    %3855 = vmatpush1.msra.mxu0 %v3494
    %3856 = vmatprep.subr.mxu0 0.0
    %3857 = vmatpush1.msra.mxu0 %v3495
    %3858 = vmatprep.subr.mxu0 0.0
    %3859 = vmatpush1.msra.mxu0 %v3496
    %3860 = vmatprep.subr.mxu0 0.0
    %3861 = vmatpush1.msra.mxu0 %v3497
    %3862 = vmatprep.subr.mxu0 0.0
    %3863 = vmatpush1.msra.mxu0 %v3498
    %3864 = vmatprep.subr.mxu0 0.0
    %3865 = vmatpush1.msra.mxu0 %v3499
    %3866 = vmatprep.subr.mxu0 0.0
    %3867 = vmatpush1.msra.mxu0 %v3500
    %3868 = vmatprep.subr.mxu0 0.0
    %3869 = vmatpush1.msra.mxu0 %v3501
    %3870 = vmatprep.subr.mxu0 0.0
    %3871 = vmatpush1.msra.mxu0 %v3502
    %3872 = vmatprep.subr.mxu0 0.0
    %3873 = vmatpush1.msra.mxu0 %v3503
    %3874 = vmatprep.subr.mxu0 0.0
    %3875 = vmatpush1.msra.mxu0 0.0
    %3876 = vmatprep.subr.mxu0 0.0
    %3877 = vmatpush1.msra.mxu0 0.0
    %3878 = vmatprep.subr.mxu0 0.0
    %3879 = vmatpush1.msra.mxu0 0.0
    %3880 = vmatprep.subr.mxu0 0.0
    %3881 = vmatpush1.msra.mxu0 0.0
    %3882 = vmatprep.subr.mxu0 0.0
    %3883 = vmatpush1.msra.mxu0 0.0
    %3884 = vmatprep.subr.mxu0 0.0
    %3885 = vmatpush1.msra.mxu0 0.0
    %3886 = vmatprep.subr.mxu0 0.0
    %3887 = vmatpush1.msra.mxu0 0.0
    %3888 = vmatprep.subr.mxu0 0.0
    %3889 = vmatpush1.msra.mxu0 0.0
    %3890 = vmatprep.subr.mxu0 0.0
    %3891 = vmatpush1.msra.mxu0 0.0
    %3892 = vmatprep.subr.mxu0 0.0
    %3893 = vmatpush1.msra.mxu0 0.0
    %3894 = vmatprep.subr.mxu0 0.0
    %3895 = vmatpush1.msra.mxu0 0.0
    %3896 = vmatprep.subr.mxu0 0.0
    %3897 = vmatpush1.msra.mxu0 0.0
    %3898 = vmatprep.subr.mxu0 0.0
    %3899 = vmatpush1.msra.mxu0 0.0
    %3900 = vmatprep.subr.mxu0 0.0
    %3901 = vmatpush1.msra.mxu0 0.0
    %3902 = vmatprep.subr.mxu0 0.0
    %3903 = vmatpush1.msra.mxu0 0.0
    %3904 = vmatprep.subr.mxu0 0.0
    %3905 = vmatpush1.msra.mxu0 0.0
    %3906 = vmatprep.subr.mxu0 0.0
    %3907 = vmatpush1.msra.mxu0 0.0
    %3908 = vmatprep.subr.mxu0 0.0
    %3909 = vmatpush1.msra.mxu0 0.0
    %3910 = vmatprep.subr.mxu0 0.0
    %3911 = vmatpush1.msra.mxu0 0.0
    %3912 = vmatprep.subr.mxu0 0.0
    %3913 = vmatpush1.msra.mxu0 0.0
    %3914 = vmatprep.mubr.f32.mxu0 0.0
    %3915 = vmatmul.mubr.f32.gmra.mrb[0].mxu0 %v3848
    %v3916 = vpop.f32.mrb[0].mxu0
    %v3917 = vadd.f32 0.0, %v3916
    %v3918 = vpop.f32.mrb[0].mxu0
    %3919 = vdwg.mxu0
    %v3920 = vmul.f32 %v3917, %v3917
    %v3922 = vrot.slane %v3920, 7
    %v3924 = vsub.f32 %v3917, %v3922
    %v3925 = vmax.f32 %v3924, 0.0
    %v3926 = vadd.f32 %v3925, 1e-05
    %v3927 = vrsqrt.pop %v3926
    %v3928 = vmul.f32 %v3491, %v3927
    %v3930 = vrot.slane %v3928, 1
    %v3932 = vmul.f32 %v3917, %v3930
    %v3934 = vrot.slane %v3932, 6
    %v3936 = vsub.f32 %v3491, %v3934
    %v3937 = vlaneseq
    %v3938 = vshrl.u32 %v3937, 7
    %v3939 = vsub.s32 1, %v3938
    %v3940 = vrot.slane %v3928, %v3939
    %v3941 = vmul.f32 %v3818, %v3940
    %v3942 = vmul.f32 %v3819, %v3940
    %v3943 = vmul.f32 %v3820, %v3940
    %v3944 = vlaneseq
    %v3945 = vshrl.u32 %v3944, 7
    %v3946 = vsub.s32 2, %v3945
    %v3947 = vrot.slane %v3936, %v3946
    %v3948 = vadd.f32 %v3941, %v3947
    %v3949 = vadd.f32 %v3942, %v3947
    %v3950 = vadd.f32 %v3943, %v3947
    %v3952 = vsel %vm2958, %v3477, 0
    %v3955 = vsel %vm2958, %v3478, 0
    %v3958 = vsel %vm2958, %v3479, 0
    %3960 = vmatprep.subr.mxu0 0.0
    %3961 = vmatpush1.msra.mxu0 %v3540
    %3962 = vmatprep.subr.mxu0 0.0
    %3963 = vmatpush1.msra.mxu0 %v3541
    %3964 = vmatprep.subr.mxu0 0.0
    %3965 = vmatpush1.msra.mxu0 %v3542
    %3966 = vmatprep.subr.mxu0 0.0
    %3967 = vmatpush1.msra.mxu0 %v3543
    %3968 = vmatprep.subr.mxu0 0.0
    %3969 = vmatpush1.msra.mxu0 %v3544
    %3970 = vmatprep.subr.mxu0 0.0
    %3971 = vmatpush1.msra.mxu0 %v3545
    %3972 = vmatprep.subr.mxu0 0.0
    %3973 = vmatpush1.msra.mxu0 %v3546
    %3974 = vmatprep.subr.mxu0 0.0
    %3975 = vmatpush1.msra.mxu0 %v3547
    %3976 = vmatprep.subr.mxu0 0.0
    %3977 = vmatpush1.msra.mxu0 %v3548
    %3978 = vmatprep.subr.mxu0 0.0
    %3979 = vmatpush1.msra.mxu0 %v3549
    %3980 = vmatprep.subr.mxu0 0.0
    %3981 = vmatpush1.msra.mxu0 %v3550
    %3982 = vmatprep.subr.mxu0 0.0
    %3983 = vmatpush1.msra.mxu0 %v3551
    %3984 = vmatprep.subr.mxu0 0.0
    %3985 = vmatpush1.msra.mxu0 0.0
    %3986 = vmatprep.subr.mxu0 0.0
    %3987 = vmatpush1.msra.mxu0 0.0
    %3988 = vmatprep.subr.mxu0 0.0
    %3989 = vmatpush1.msra.mxu0 0.0
    %3990 = vmatprep.subr.mxu0 0.0
    %3991 = vmatpush1.msra.mxu0 0.0
    %3992 = vmatprep.subr.mxu0 0.0
    %3993 = vmatpush1.msra.mxu0 0.0
    %3994 = vmatprep.subr.mxu0 0.0
    %3995 = vmatpush1.msra.mxu0 0.0
    %3996 = vmatprep.subr.mxu0 0.0
    %3997 = vmatpush1.msra.mxu0 0.0
    %3998 = vmatprep.subr.mxu0 0.0
    %3999 = vmatpush1.msra.mxu0 0.0
    %4000 = vmatprep.subr.mxu0 0.0
    %4001 = vmatpush1.msra.mxu0 0.0
    %4002 = vmatprep.subr.mxu0 0.0
    %4003 = vmatpush1.msra.mxu0 0.0
    %4004 = vmatprep.subr.mxu0 0.0
    %4005 = vmatpush1.msra.mxu0 0.0
    %4006 = vmatprep.subr.mxu0 0.0
    %4007 = vmatpush1.msra.mxu0 0.0
    %4008 = vmatprep.subr.mxu0 0.0
    %4009 = vmatpush1.msra.mxu0 0.0
    %4010 = vmatprep.subr.mxu0 0.0
    %4011 = vmatpush1.msra.mxu0 0.0
    %4012 = vmatprep.subr.mxu0 0.0
    %4013 = vmatpush1.msra.mxu0 0.0
    %4014 = vmatprep.subr.mxu0 0.0
    %4015 = vmatpush1.msra.mxu0 0.0
    %4016 = vmatprep.subr.mxu0 0.0
    %4017 = vmatpush1.msra.mxu0 0.0
    %4018 = vmatprep.subr.mxu0 0.0
    %4019 = vmatpush1.msra.mxu0 0.0
    %4020 = vmatprep.subr.mxu0 0.0
    %4021 = vmatpush1.msra.mxu0 0.0
    %4022 = vmatprep.subr.mxu0 0.0
    %4023 = vmatpush1.msra.mxu0 0.0
    %4024 = vmatprep.mubr.f32.mxu0 0.0
    %4025 = vmatmul.mubr.f32.gmra.mrb[0].mxu0 %v3952
    %v4026 = vpop.f32.mrb[0].mxu0
    %v4027 = vadd.f32 0.0, %v4026
    %v4028 = vpop.f32.mrb[0].mxu0
    %4029 = vmatprep.mubr.f32.mxu0 0.0
    %4030 = vmatmul.mubr.f32.gmra.mrb[0].mxu0 %v3955
    %v4031 = vpop.f32.mrb[0].mxu0
    %v4032 = vadd.f32 0.0, %v4031
    %v4033 = vpop.f32.mrb[0].mxu0
    %4034 = vmatprep.mubr.f32.mxu0 0.0
    %4035 = vmatmul.mubr.f32.gmra.mrb[0].mxu0 %v3958
    %v4036 = vpop.f32.mrb[0].mxu0
    %v4037 = vadd.f32 0.0, %v4036
    %v4038 = vpop.f32.mrb[0].mxu0
    %4039 = vdwg.mxu0
    %v4041 = vsel %vm2958, %v3948, 0
    %v4044 = vsel %vm2958, %v3949, 0
    %v4047 = vsel %vm2958, %v3950, 0
    %4049 = vmatprep.subr.mxu0 0.0
    %4050 = vmatpush1.msra.mxu0 %v3504
    %4051 = vmatprep.subr.mxu0 0.0
    %4052 = vmatpush1.msra.mxu0 %v3505
    %4053 = vmatprep.subr.mxu0 0.0
    %4054 = vmatpush1.msra.mxu0 %v3506
    %4055 = vmatprep.subr.mxu0 0.0
    %4056 = vmatpush1.msra.mxu0 %v3507
    %4057 = vmatprep.subr.mxu0 0.0
    %4058 = vmatpush1.msra.mxu0 %v3508
    %4059 = vmatprep.subr.mxu0 0.0
    %4060 = vmatpush1.msra.mxu0 %v3509
    %4061 = vmatprep.subr.mxu0 0.0
    %4062 = vmatpush1.msra.mxu0 %v3510
    %4063 = vmatprep.subr.mxu0 0.0
    %4064 = vmatpush1.msra.mxu0 %v3511
    %4065 = vmatprep.subr.mxu0 0.0
    %4066 = vmatpush1.msra.mxu0 %v3512
    %4067 = vmatprep.subr.mxu0 0.0
    %4068 = vmatpush1.msra.mxu0 %v3513
    %4069 = vmatprep.subr.mxu0 0.0
    %4070 = vmatpush1.msra.mxu0 %v3514
    %4071 = vmatprep.subr.mxu0 0.0
    %4072 = vmatpush1.msra.mxu0 %v3515
    %4073 = vmatprep.subr.mxu0 0.0
    %4074 = vmatpush1.msra.mxu0 0.0
    %4075 = vmatprep.subr.mxu0 0.0
    %4076 = vmatpush1.msra.mxu0 0.0
    %4077 = vmatprep.subr.mxu0 0.0
    %4078 = vmatpush1.msra.mxu0 0.0
    %4079 = vmatprep.subr.mxu0 0.0
    %4080 = vmatpush1.msra.mxu0 0.0
    %4081 = vmatprep.subr.mxu0 0.0
    %4082 = vmatpush1.msra.mxu0 0.0
    %4083 = vmatprep.subr.mxu0 0.0
    %4084 = vmatpush1.msra.mxu0 0.0
    %4085 = vmatprep.subr.mxu0 0.0
    %4086 = vmatpush1.msra.mxu0 0.0
    %4087 = vmatprep.subr.mxu0 0.0
    %4088 = vmatpush1.msra.mxu0 0.0
    %4089 = vmatprep.subr.mxu0 0.0
    %4090 = vmatpush1.msra.mxu0 0.0
    %4091 = vmatprep.subr.mxu0 0.0
    %4092 = vmatpush1.msra.mxu0 0.0
    %4093 = vmatprep.subr.mxu0 0.0
    %4094 = vmatpush1.msra.mxu0 0.0
    %4095 = vmatprep.subr.mxu0 0.0
    %4096 = vmatpush1.msra.mxu0 0.0
    %4097 = vmatprep.subr.mxu0 0.0
    %4098 = vmatpush1.msra.mxu0 0.0
    %4099 = vmatprep.subr.mxu0 0.0
    %4100 = vmatpush1.msra.mxu0 0.0
    %4101 = vmatprep.subr.mxu0 0.0
    %4102 = vmatpush1.msra.mxu0 0.0
    %4103 = vmatprep.subr.mxu0 0.0
    %4104 = vmatpush1.msra.mxu0 0.0
    %4105 = vmatprep.subr.mxu0 0.0
    %4106 = vmatpush1.msra.mxu0 0.0
    %4107 = vmatprep.subr.mxu0 0.0
    %4108 = vmatpush1.msra.mxu0 0.0
    %4109 = vmatprep.subr.mxu0 0.0
    %4110 = vmatpush1.msra.mxu0 0.0
    %4111 = vmatprep.subr.mxu0 0.0
    %4112 = vmatpush1.msra.mxu0 0.0
    %4113 = vmatprep.mubr.f32.mxu0 0.0
    %4114 = vmatmul.mubr.f32.gmra.mrb[0].mxu0 %v4041
    %v4115 = vpop.f32.mrb[0].mxu0
    %v4116 = vadd.f32 %v4027, %v4115
    %v4117 = vpop.f32.mrb[0].mxu0
    %4118 = vmatprep.mubr.f32.mxu0 0.0
    %4119 = vmatmul.mubr.f32.gmra.mrb[0].mxu0 %v4044
    %v4120 = vpop.f32.mrb[0].mxu0
    %v4121 = vadd.f32 %v4032, %v4120
    %v4122 = vpop.f32.mrb[0].mxu0
    %4123 = vmatprep.mubr.f32.mxu0 0.0
    %4124 = vmatmul.mubr.f32.gmra.mrb[0].mxu0 %v4047
    %v4125 = vpop.f32.mrb[0].mxu0
    %v4126 = vadd.f32 %v4037, %v4125
    %v4127 = vpop.f32.mrb[0].mxu0
    %4128 = vdwg.mxu0
    %v4129 = vrot.slane %v3948, 1
    %v4130 = vrot.slane %v3949, 1
    %v4131 = vsel %vm1134, %v4129, %v4130
    %v4132 = vrot.slane %v3950, 1
    %v4133 = vsel %vm1134, %v4130, %v4132
    %v4134 = vsel %vm2958, %v4131, 0
    %v4136 = vsel %vm2958, %v4133, 0
    %v4138 = vsel %vm2958, %v4132, 0
    %4140 = vmatprep.subr.mxu0 0.0
    %4141 = vmatpush1.msra.mxu0 %v3516
    %4142 = vmatprep.subr.mxu0 0.0
    %4143 = vmatpush1.msra.mxu0 %v3517
    %4144 = vmatprep.subr.mxu0 0.0
    %4145 = vmatpush1.msra.mxu0 %v3518
    %4146 = vmatprep.subr.mxu0 0.0
    %4147 = vmatpush1.msra.mxu0 %v3519
    %4148 = vmatprep.subr.mxu0 0.0
    %4149 = vmatpush1.msra.mxu0 %v3520
    %4150 = vmatprep.subr.mxu0 0.0
    %4151 = vmatpush1.msra.mxu0 %v3521
    %4152 = vmatprep.subr.mxu0 0.0
    %4153 = vmatpush1.msra.mxu0 %v3522
    %4154 = vmatprep.subr.mxu0 0.0
    %4155 = vmatpush1.msra.mxu0 %v3523
    %4156 = vmatprep.subr.mxu0 0.0
    %4157 = vmatpush1.msra.mxu0 %v3524
    %4158 = vmatprep.subr.mxu0 0.0
    %4159 = vmatpush1.msra.mxu0 %v3525
    %4160 = vmatprep.subr.mxu0 0.0
    %4161 = vmatpush1.msra.mxu0 %v3526
    %4162 = vmatprep.subr.mxu0 0.0
    %4163 = vmatpush1.msra.mxu0 %v3527
    %4164 = vmatprep.subr.mxu0 0.0
    %4165 = vmatpush1.msra.mxu0 0.0
    %4166 = vmatprep.subr.mxu0 0.0
    %4167 = vmatpush1.msra.mxu0 0.0
    %4168 = vmatprep.subr.mxu0 0.0
    %4169 = vmatpush1.msra.mxu0 0.0
    %4170 = vmatprep.subr.mxu0 0.0
    %4171 = vmatpush1.msra.mxu0 0.0
    %4172 = vmatprep.subr.mxu0 0.0
    %4173 = vmatpush1.msra.mxu0 0.0
    %4174 = vmatprep.subr.mxu0 0.0
    %4175 = vmatpush1.msra.mxu0 0.0
    %4176 = vmatprep.subr.mxu0 0.0
    %4177 = vmatpush1.msra.mxu0 0.0
    %4178 = vmatprep.subr.mxu0 0.0
    %4179 = vmatpush1.msra.mxu0 0.0
    %4180 = vmatprep.subr.mxu0 0.0
    %4181 = vmatpush1.msra.mxu0 0.0
    %4182 = vmatprep.subr.mxu0 0.0
    %4183 = vmatpush1.msra.mxu0 0.0
    %4184 = vmatprep.subr.mxu0 0.0
    %4185 = vmatpush1.msra.mxu0 0.0
    %4186 = vmatprep.subr.mxu0 0.0
    %4187 = vmatpush1.msra.mxu0 0.0
    %4188 = vmatprep.subr.mxu0 0.0
    %4189 = vmatpush1.msra.mxu0 0.0
    %4190 = vmatprep.subr.mxu0 0.0
    %4191 = vmatpush1.msra.mxu0 0.0
    %4192 = vmatprep.subr.mxu0 0.0
    %4193 = vmatpush1.msra.mxu0 0.0
    %4194 = vmatprep.subr.mxu0 0.0
    %4195 = vmatpush1.msra.mxu0 0.0
    %4196 = vmatprep.subr.mxu0 0.0
    %4197 = vmatpush1.msra.mxu0 0.0
    %4198 = vmatprep.subr.mxu0 0.0
    %4199 = vmatpush1.msra.mxu0 0.0
    %4200 = vmatprep.subr.mxu0 0.0
    %4201 = vmatpush1.msra.mxu0 0.0
    %4202 = vmatprep.subr.mxu0 0.0
    %4203 = vmatpush1.msra.mxu0 0.0
    %4204 = vmatprep.mubr.f32.mxu0 0.0
    %4205 = vmatmul.mubr.f32.gmra.mrb[0].mxu0 %v4134
    %v4206 = vpop.f32.mrb[0].mxu0
    %v4207 = vadd.f32 0.0, %v4206
    %v4208 = vpop.f32.mrb[0].mxu0
    %4209 = vmatprep.mubr.f32.mxu0 0.0
    %4210 = vmatmul.mubr.f32.gmra.mrb[0].mxu0 %v4136
    %v4211 = vpop.f32.mrb[0].mxu0
    %v4212 = vadd.f32 0.0, %v4211
    %v4213 = vpop.f32.mrb[0].mxu0
    %4214 = vmatprep.mubr.f32.mxu0 0.0
    %4215 = vmatmul.mubr.f32.gmra.mrb[0].mxu0 %v4138
    %v4216 = vpop.f32.mrb[0].mxu0
    %v4217 = vadd.f32 0.0, %v4216
    %v4218 = vpop.f32.mrb[0].mxu0
    %4219 = vdwg.mxu0
    %v4220 = vadd.f32 %v4116, %v4207
    %v4221 = vadd.f32 %v4121, %v4212
    %v4222 = vadd.f32 %v4126, %v4217
    %v4223 = vrot.slane %v3477, 1
    %v4224 = vrot.slane %v3478, 1
    %v4225 = vsel %vm1134, %v4223, %v4224
    %v4226 = vrot.slane %v3479, 1
    %v4227 = vsel %vm1134, %v4224, %v4226
    %v4228 = vsel %vm2958, %v4225, 0
    %v4230 = vsel %vm2958, %v4227, 0
    %v4232 = vsel %vm2958, %v4226, 0
    %4234 = vmatprep.subr.mxu0 0.0
    %4235 = vmatpush1.msra.mxu0 %v3552
    %4236 = vmatprep.subr.mxu0 0.0
    %4237 = vmatpush1.msra.mxu0 %v3553
    %4238 = vmatprep.subr.mxu0 0.0
    %4239 = vmatpush1.msra.mxu0 %v3554
    %4240 = vmatprep.subr.mxu0 0.0
    %4241 = vmatpush1.msra.mxu0 %v3555
    %4242 = vmatprep.subr.mxu0 0.0
    %4243 = vmatpush1.msra.mxu0 %v3556
    %4244 = vmatprep.subr.mxu0 0.0
    %4245 = vmatpush1.msra.mxu0 %v3557
    %4246 = vmatprep.subr.mxu0 0.0
    %4247 = vmatpush1.msra.mxu0 %v3558
    %4248 = vmatprep.subr.mxu0 0.0
    %4249 = vmatpush1.msra.mxu0 %v3559
    %4250 = vmatprep.subr.mxu0 0.0
    %4251 = vmatpush1.msra.mxu0 %v3560
    %4252 = vmatprep.subr.mxu0 0.0
    %4253 = vmatpush1.msra.mxu0 %v3561
    %4254 = vmatprep.subr.mxu0 0.0
    %4255 = vmatpush1.msra.mxu0 %v3562
    %4256 = vmatprep.subr.mxu0 0.0
    %4257 = vmatpush1.msra.mxu0 %v3563
    %4258 = vmatprep.subr.mxu0 0.0
    %4259 = vmatpush1.msra.mxu0 0.0
    %4260 = vmatprep.subr.mxu0 0.0
    %4261 = vmatpush1.msra.mxu0 0.0
    %4262 = vmatprep.subr.mxu0 0.0
    %4263 = vmatpush1.msra.mxu0 0.0
    %4264 = vmatprep.subr.mxu0 0.0
    %4265 = vmatpush1.msra.mxu0 0.0
    %4266 = vmatprep.subr.mxu0 0.0
    %4267 = vmatpush1.msra.mxu0 0.0
    %4268 = vmatprep.subr.mxu0 0.0
    %4269 = vmatpush1.msra.mxu0 0.0
    %4270 = vmatprep.subr.mxu0 0.0
    %4271 = vmatpush1.msra.mxu0 0.0
    %4272 = vmatprep.subr.mxu0 0.0
    %4273 = vmatpush1.msra.mxu0 0.0
    %4274 = vmatprep.subr.mxu0 0.0
    %4275 = vmatpush1.msra.mxu0 0.0
    %4276 = vmatprep.subr.mxu0 0.0
    %4277 = vmatpush1.msra.mxu0 0.0
    %4278 = vmatprep.subr.mxu0 0.0
    %4279 = vmatpush1.msra.mxu0 0.0
    %4280 = vmatprep.subr.mxu0 0.0
    %4281 = vmatpush1.msra.mxu0 0.0
    %4282 = vmatprep.subr.mxu0 0.0
    %4283 = vmatpush1.msra.mxu0 0.0
    %4284 = vmatprep.subr.mxu0 0.0
    %4285 = vmatpush1.msra.mxu0 0.0
    %4286 = vmatprep.subr.mxu0 0.0
    %4287 = vmatpush1.msra.mxu0 0.0
    %4288 = vmatprep.subr.mxu0 0.0
    %4289 = vmatpush1.msra.mxu0 0.0
    %4290 = vmatprep.subr.mxu0 0.0
    %4291 = vmatpush1.msra.mxu0 0.0
    %4292 = vmatprep.subr.mxu0 0.0
    %4293 = vmatpush1.msra.mxu0 0.0
    %4294 = vmatprep.subr.mxu0 0.0
    %4295 = vmatpush1.msra.mxu0 0.0
    %4296 = vmatprep.subr.mxu0 0.0
    %4297 = vmatpush1.msra.mxu0 0.0
    %4298 = vmatprep.mubr.f32.mxu0 0.0
    %4299 = vmatmul.mubr.f32.gmra.mrb[0].mxu0 %v4228
    %v4300 = vpop.f32.mrb[0].mxu0
    %v4301 = vadd.f32 0.0, %v4300
    %v4302 = vpop.f32.mrb[0].mxu0
    %4303 = vmatprep.mubr.f32.mxu0 0.0
    %4304 = vmatmul.mubr.f32.gmra.mrb[0].mxu0 %v4230
    %v4305 = vpop.f32.mrb[0].mxu0
    %v4306 = vadd.f32 0.0, %v4305
    %v4307 = vpop.f32.mrb[0].mxu0
    %4308 = vmatprep.mubr.f32.mxu0 0.0
    %4309 = vmatmul.mubr.f32.gmra.mrb[0].mxu0 %v4232
    %v4310 = vpop.f32.mrb[0].mxu0
    %v4311 = vadd.f32 0.0, %v4310
    %v4312 = vpop.f32.mrb[0].mxu0
    %4313 = vdwg.mxu0
    %v4314 = vadd.f32 %v4220, %v4301
    %v4315 = vadd.f32 %v4221, %v4306
    %v4316 = vadd.f32 %v4222, %v4311
    %v4317 = vrot.slane %v3948, 2
    %v4318 = vrot.slane %v3949, 2
    %v4319 = vsel %vm1315, %v4317, %v4318
    %v4320 = vrot.slane %v3950, 2
    %v4321 = vsel %vm1315, %v4318, %v4320
    %v4322 = vsel %vm2958, %v4319, 0
    %v4324 = vsel %vm2958, %v4321, 0
    %v4326 = vsel %vm2958, %v4320, 0
    %4328 = vmatprep.subr.mxu0 0.0
    %4329 = vmatpush1.msra.mxu0 %v3528
    %4330 = vmatprep.subr.mxu0 0.0
    %4331 = vmatpush1.msra.mxu0 %v3529
    %4332 = vmatprep.subr.mxu0 0.0
    %4333 = vmatpush1.msra.mxu0 %v3530
    %4334 = vmatprep.subr.mxu0 0.0
    %4335 = vmatpush1.msra.mxu0 %v3531
    %4336 = vmatprep.subr.mxu0 0.0
    %4337 = vmatpush1.msra.mxu0 %v3532
    %4338 = vmatprep.subr.mxu0 0.0
    %4339 = vmatpush1.msra.mxu0 %v3533
    %4340 = vmatprep.subr.mxu0 0.0
    %4341 = vmatpush1.msra.mxu0 %v3534
    %4342 = vmatprep.subr.mxu0 0.0
    %4343 = vmatpush1.msra.mxu0 %v3535
    %4344 = vmatprep.subr.mxu0 0.0
    %4345 = vmatpush1.msra.mxu0 %v3536
    %4346 = vmatprep.subr.mxu0 0.0
    %4347 = vmatpush1.msra.mxu0 %v3537
    %4348 = vmatprep.subr.mxu0 0.0
    %4349 = vmatpush1.msra.mxu0 %v3538
    %4350 = vmatprep.subr.mxu0 0.0
    %4351 = vmatpush1.msra.mxu0 %v3539
    %4352 = vmatprep.subr.mxu0 0.0
    %4353 = vmatpush1.msra.mxu0 0.0
    %4354 = vmatprep.subr.mxu0 0.0
    %4355 = vmatpush1.msra.mxu0 0.0
    %4356 = vmatprep.subr.mxu0 0.0
    %4357 = vmatpush1.msra.mxu0 0.0
    %4358 = vmatprep.subr.mxu0 0.0
    %4359 = vmatpush1.msra.mxu0 0.0
    %4360 = vmatprep.subr.mxu0 0.0
    %4361 = vmatpush1.msra.mxu0 0.0
    %4362 = vmatprep.subr.mxu0 0.0
    %4363 = vmatpush1.msra.mxu0 0.0
    %4364 = vmatprep.subr.mxu0 0.0
    %4365 = vmatpush1.msra.mxu0 0.0
    %4366 = vmatprep.subr.mxu0 0.0
    %4367 = vmatpush1.msra.mxu0 0.0
    %4368 = vmatprep.subr.mxu0 0.0
    %4369 = vmatpush1.msra.mxu0 0.0
    %4370 = vmatprep.subr.mxu0 0.0
    %4371 = vmatpush1.msra.mxu0 0.0
    %4372 = vmatprep.subr.mxu0 0.0
    %4373 = vmatpush1.msra.mxu0 0.0
    %4374 = vmatprep.subr.mxu0 0.0
    %4375 = vmatpush1.msra.mxu0 0.0
    %4376 = vmatprep.subr.mxu0 0.0
    %4377 = vmatpush1.msra.mxu0 0.0
    %4378 = vmatprep.subr.mxu0 0.0
    %4379 = vmatpush1.msra.mxu0 0.0
    %4380 = vmatprep.subr.mxu0 0.0
    %4381 = vmatpush1.msra.mxu0 0.0
    %4382 = vmatprep.subr.mxu0 0.0
    %4383 = vmatpush1.msra.mxu0 0.0
    %4384 = vmatprep.subr.mxu0 0.0
    %4385 = vmatpush1.msra.mxu0 0.0
    %4386 = vmatprep.subr.mxu0 0.0
    %4387 = vmatpush1.msra.mxu0 0.0
    %4388 = vmatprep.subr.mxu0 0.0
    %4389 = vmatpush1.msra.mxu0 0.0
    %4390 = vmatprep.subr.mxu0 0.0
    %4391 = vmatpush1.msra.mxu0 0.0
    %4392 = vmatprep.mubr.f32.mxu0 0.0
    %4393 = vmatmul.mubr.f32.gmra.mrb[0].mxu0 %v4322
    %v4394 = vpop.f32.mrb[0].mxu0
    %v4395 = vadd.f32 0.0, %v4394
    %v4396 = vpop.f32.mrb[0].mxu0
    %4397 = vmatprep.mubr.f32.mxu0 0.0
    %4398 = vmatmul.mubr.f32.gmra.mrb[0].mxu0 %v4324
    %v4399 = vpop.f32.mrb[0].mxu0
    %v4400 = vadd.f32 0.0, %v4399
    %v4401 = vpop.f32.mrb[0].mxu0
    %4402 = vmatprep.mubr.f32.mxu0 0.0
    %4403 = vmatmul.mubr.f32.gmra.mrb[0].mxu0 %v4326
    %v4404 = vpop.f32.mrb[0].mxu0
    %v4405 = vadd.f32 0.0, %v4404
    %v4406 = vpop.f32.mrb[0].mxu0
    %4407 = vdwg.mxu0
    %v4408 = vadd.f32 %v4314, %v4395
    %v4409 = vadd.f32 %v4315, %v4400
    %v4410 = vadd.f32 %v4316, %v4405
    %v4411 = vrot.slane %v3477, 2
    %v4412 = vrot.slane %v3478, 2
    %v4413 = vsel %vm1315, %v4411, %v4412
    %v4414 = vrot.slane %v3479, 2
    %v4415 = vsel %vm1315, %v4412, %v4414
    %v4416 = vsel %vm2958, %v4413, 0
    %v4418 = vsel %vm2958, %v4415, 0
    %v4420 = vsel %vm2958, %v4414, 0
    %4422 = vmatprep.subr.mxu0 0.0
    %4423 = vmatpush1.msra.mxu0 %v3564
    %4424 = vmatprep.subr.mxu0 0.0
    %4425 = vmatpush1.msra.mxu0 %v3565
    %4426 = vmatprep.subr.mxu0 0.0
    %4427 = vmatpush1.msra.mxu0 %v3566
    %4428 = vmatprep.subr.mxu0 0.0
    %4429 = vmatpush1.msra.mxu0 %v3567
    %4430 = vmatprep.subr.mxu0 0.0
    %4431 = vmatpush1.msra.mxu0 %v3568
    %4432 = vmatprep.subr.mxu0 0.0
    %4433 = vmatpush1.msra.mxu0 %v3569
    %4434 = vmatprep.subr.mxu0 0.0
    %4435 = vmatpush1.msra.mxu0 %v3570
    %4436 = vmatprep.subr.mxu0 0.0
    %4437 = vmatpush1.msra.mxu0 %v3571
    %4438 = vmatprep.subr.mxu0 0.0
    %4439 = vmatpush1.msra.mxu0 %v3572
    %4440 = vmatprep.subr.mxu0 0.0
    %4441 = vmatpush1.msra.mxu0 %v3573
    %4442 = vmatprep.subr.mxu0 0.0
    %4443 = vmatpush1.msra.mxu0 %v3574
    %4444 = vmatprep.subr.mxu0 0.0
    %4445 = vmatpush1.msra.mxu0 %v3575
    %4446 = vmatprep.subr.mxu0 0.0
    %4447 = vmatpush1.msra.mxu0 0.0
    %4448 = vmatprep.subr.mxu0 0.0
    %4449 = vmatpush1.msra.mxu0 0.0
    %4450 = vmatprep.subr.mxu0 0.0
    %4451 = vmatpush1.msra.mxu0 0.0
    %4452 = vmatprep.subr.mxu0 0.0
    %4453 = vmatpush1.msra.mxu0 0.0
    %4454 = vmatprep.subr.mxu0 0.0
    %4455 = vmatpush1.msra.mxu0 0.0
    %4456 = vmatprep.subr.mxu0 0.0
    %4457 = vmatpush1.msra.mxu0 0.0
    %4458 = vmatprep.subr.mxu0 0.0
    %4459 = vmatpush1.msra.mxu0 0.0
    %4460 = vmatprep.subr.mxu0 0.0
    %4461 = vmatpush1.msra.mxu0 0.0
    %4462 = vmatprep.subr.mxu0 0.0
    %4463 = vmatpush1.msra.mxu0 0.0
    %4464 = vmatprep.subr.mxu0 0.0
    %4465 = vmatpush1.msra.mxu0 0.0
    %4466 = vmatprep.subr.mxu0 0.0
    %4467 = vmatpush1.msra.mxu0 0.0
    %4468 = vmatprep.subr.mxu0 0.0
    %4469 = vmatpush1.msra.mxu0 0.0
    %4470 = vmatprep.subr.mxu0 0.0
    %4471 = vmatpush1.msra.mxu0 0.0
    %4472 = vmatprep.subr.mxu0 0.0
    %4473 = vmatpush1.msra.mxu0 0.0
    %4474 = vmatprep.subr.mxu0 0.0
    %4475 = vmatpush1.msra.mxu0 0.0
    %4476 = vmatprep.subr.mxu0 0.0
    %4477 = vmatpush1.msra.mxu0 0.0
    %4478 = vmatprep.subr.mxu0 0.0
    %4479 = vmatpush1.msra.mxu0 0.0
    %4480 = vmatprep.subr.mxu0 0.0
    %4481 = vmatpush1.msra.mxu0 0.0
    %4482 = vmatprep.subr.mxu0 0.0
    %4483 = vmatpush1.msra.mxu0 0.0
    %4484 = vmatprep.subr.mxu0 0.0
    %4485 = vmatpush1.msra.mxu0 0.0
    %4486 = vmatprep.mubr.f32.mxu0 0.0
    %4487 = vmatmul.mubr.f32.gmra.mrb[0].mxu0 %v4416
    %v4488 = vpop.f32.mrb[0].mxu0
    %v4489 = vadd.f32 0.0, %v4488
    %v4490 = vpop.f32.mrb[0].mxu0
    %4491 = vmatprep.mubr.f32.mxu0 0.0
    %4492 = vmatmul.mubr.f32.gmra.mrb[0].mxu0 %v4418
    %v4493 = vpop.f32.mrb[0].mxu0
    %v4494 = vadd.f32 0.0, %v4493
    %v4495 = vpop.f32.mrb[0].mxu0
    %4496 = vmatprep.mubr.f32.mxu0 0.0
    %4497 = vmatmul.mubr.f32.gmra.mrb[0].mxu0 %v4420
    %v4498 = vpop.f32.mrb[0].mxu0
    %v4499 = vadd.f32 0.0, %v4498
    %v4500 = vpop.f32.mrb[0].mxu0
    %4501 = vdwg.mxu0
    %v4502 = vadd.f32 %v4408, %v4489
    %v4503 = vadd.f32 %v4409, %v4494
    %v4504 = vadd.f32 %v4410, %v4499
    %v4505 = vlaneseq
    %v4506 = vshrl.u32 %v4505, 7
    %v4507 = vsub.s32 0, %v4506
    %v4508 = vrot.slane %v3576, %v4507
    %v4509 = vadd.f32 %v4502, %v4508
    %v4510 = vadd.f32 %v4503, %v4508
    %v4511 = vadd.f32 %v4504, %v4508
    %v4512 = vmax.f32 %v4509, 0.0
    %v4513 = vmax.f32 %v4510, 0.0
    %v4514 = vmax.f32 %v4511, 0.0
    %4516 = vset.pattern.permute.xlu0 0
    %4517 = vperm.xlu0 %4516, %v3587
    %v4518 = vpop.permute.xlu0 %4517
    %4521 = vset.pattern.permute.xlu0 0
    %4522 = vperm.xlu0 %4521, %v3588
    %v4523 = vpop.permute.xlu0 %4522
    %4526 = vset.pattern.permute.xlu0 0
    %4527 = vperm.xlu0 %4526, %v3589
    %v4528 = vpop.permute.xlu0 %4527
    %v4530 = vmul.f32 %v4512, %v4518
    %v4531 = vmul.f32 %v4513, %v4523
    %v4532 = vmul.f32 %v4514, %v4528
    %vm4533 = vcmask 654336
    %v4534 = vsel %vm4533, %v4530, 0.0
    %v4535 = vsel %vm4533, %v4531, 0.0
    %v4536 = vadd.f32 %v4534, %v4535
    %vm4537 = vcmask 652288
    %v4538 = vsel %vm4537, %v4532, 0.0
    %v4539 = vadd.f32 %v4536, %v4538
    %v4540 = vrot.slane %v4539, 4
    %v4541 = vadd.f32 %v4539, %v4540
    %v4542 = vrot.slane %v4541, 2
    %v4543 = vadd.f32 %v4541, %v4542
    %v4544 = vrot.slane %v4543, 1
    %v4545 = vadd.f32 %v4543, %v4544
    %v4546 = vmul.f32 %v4512, %v4512
    %v4547 = vmul.f32 %v4513, %v4513
    %v4548 = vmul.f32 %v4514, %v4514
    %v4549 = vmul.f32 %v4546, %v4518
    %v4550 = vmul.f32 %v4547, %v4523
    %v4551 = vmul.f32 %v4548, %v4528
    %v4552 = vsel %vm4533, %v4549, 0.0
    %v4553 = vsel %vm4533, %v4550, 0.0
    %v4554 = vadd.f32 %v4552, %v4553
    %v4555 = vsel %vm4537, %v4551, 0.0
    %v4556 = vadd.f32 %v4554, %v4555
    %v4557 = vrot.slane %v4556, 4
    %v4558 = vadd.f32 %v4556, %v4557
    %v4559 = vrot.slane %v4558, 2
    %v4560 = vadd.f32 %v4558, %v4559
    %v4561 = vrot.slane %v4560, 1
    %v4562 = vadd.f32 %v4560, %v4561
    %v4563 = vsel %vm818, %v4545, %v4562
    %v4565 = vsel %vm4533, %v4563, 0
    %4567 = vmatprep.subr.mxu0 0.0
    %4568 = vmatpush1.msra.mxu0 %v3577
    %4569 = vmatprep.subr.mxu0 0.0
    %4570 = vmatpush1.msra.mxu0 %v3578
    %4571 = vmatprep.subr.mxu0 0.0
    %4572 = vmatpush1.msra.mxu0 %v3579
    %4573 = vmatprep.subr.mxu0 0.0
    %4574 = vmatpush1.msra.mxu0 %v3580
    %4575 = vmatprep.subr.mxu0 0.0
    %4576 = vmatpush1.msra.mxu0 %v3581
    %4577 = vmatprep.subr.mxu0 0.0
    %4578 = vmatpush1.msra.mxu0 %v3582
    %4579 = vmatprep.subr.mxu0 0.0
    %4580 = vmatpush1.msra.mxu0 %v3583
    %4581 = vmatprep.subr.mxu0 0.0
    %4582 = vmatpush1.msra.mxu0 %v3584
    %4583 = vmatprep.subr.mxu0 0.0
    %4584 = vmatpush1.msra.mxu0 %v3585
    %4585 = vmatprep.subr.mxu0 0.0
    %4586 = vmatpush1.msra.mxu0 %v3586
    %4587 = vmatprep.subr.mxu0 0.0
    %4588 = vmatpush1.msra.mxu0 0.0
    %4589 = vmatprep.subr.mxu0 0.0
    %4590 = vmatpush1.msra.mxu0 0.0
    %4591 = vmatprep.subr.mxu0 0.0
    %4592 = vmatpush1.msra.mxu0 0.0
    %4593 = vmatprep.subr.mxu0 0.0
    %4594 = vmatpush1.msra.mxu0 0.0
    %4595 = vmatprep.subr.mxu0 0.0
    %4596 = vmatpush1.msra.mxu0 0.0
    %4597 = vmatprep.subr.mxu0 0.0
    %4598 = vmatpush1.msra.mxu0 0.0
    %4599 = vmatprep.subr.mxu0 0.0
    %4600 = vmatpush1.msra.mxu0 0.0
    %4601 = vmatprep.subr.mxu0 0.0
    %4602 = vmatpush1.msra.mxu0 0.0
    %4603 = vmatprep.subr.mxu0 0.0
    %4604 = vmatpush1.msra.mxu0 0.0
    %4605 = vmatprep.subr.mxu0 0.0
    %4606 = vmatpush1.msra.mxu0 0.0
    %4607 = vmatprep.subr.mxu0 0.0
    %4608 = vmatpush1.msra.mxu0 0.0
    %4609 = vmatprep.subr.mxu0 0.0
    %4610 = vmatpush1.msra.mxu0 0.0
    %4611 = vmatprep.subr.mxu0 0.0
    %4612 = vmatpush1.msra.mxu0 0.0
    %4613 = vmatprep.subr.mxu0 0.0
    %4614 = vmatpush1.msra.mxu0 0.0
    %4615 = vmatprep.subr.mxu0 0.0
    %4616 = vmatpush1.msra.mxu0 0.0
    %4617 = vmatprep.subr.mxu0 0.0
    %4618 = vmatpush1.msra.mxu0 0.0
    %4619 = vmatprep.subr.mxu0 0.0
    %4620 = vmatpush1.msra.mxu0 0.0
    %4621 = vmatprep.subr.mxu0 0.0
    %4622 = vmatpush1.msra.mxu0 0.0
    %4623 = vmatprep.subr.mxu0 0.0
    %4624 = vmatpush1.msra.mxu0 0.0
    %4625 = vmatprep.subr.mxu0 0.0
    %4626 = vmatpush1.msra.mxu0 0.0
    %4627 = vmatprep.subr.mxu0 0.0
    %4628 = vmatpush1.msra.mxu0 0.0
    %4629 = vmatprep.subr.mxu0 0.0
    %4630 = vmatpush1.msra.mxu0 0.0
    %4631 = vmatprep.mubr.f32.mxu0 0.0
    %4632 = vmatmul.mubr.f32.gmra.mrb[0].mxu0 %v4565
    %v4633 = vpop.f32.mrb[0].mxu0
    %v4634 = vadd.f32 0.0, %v4633
    %v4635 = vpop.f32.mrb[0].mxu0
    %4636 = vdwg.mxu0
    %v4637 = vmul.f32 %v4634, %v4634
    %v4639 = vrot.slane %v4637, 7
    %v4641 = vsub.f32 %v4634, %v4639
    %v4642 = vmax.f32 %v4641, 0.0
    %v4643 = vadd.f32 %v4642, 1e-05
    %v4644 = vrsqrt.pop %v4643
    %v4645 = vmul.f32 %v3576, %v4644
    %v4647 = vrot.slane %v4645, 1
    %v4649 = vmul.f32 %v4634, %v4647
    %v4651 = vrot.slane %v4649, 6
    %v4653 = vsub.f32 %v3576, %v4651
    %v4654 = vlaneseq
    %v4655 = vshrl.u32 %v4654, 7
    %v4656 = vsub.s32 1, %v4655
    %v4657 = vrot.slane %v4645, %v4656
    %v4658 = vmul.f32 %v4512, %v4657
    %v4659 = vmul.f32 %v4513, %v4657
    %v4660 = vmul.f32 %v4514, %v4657
    %v4661 = vlaneseq
    %v4662 = vshrl.u32 %v4661, 7
    %v4663 = vsub.s32 2, %v4662
    %v4664 = vrot.slane %v4653, %v4663
    %v4665 = vadd.f32 %v4658, %v4664
    %v4666 = vadd.f32 %v4659, %v4664
    %v4667 = vadd.f32 %v4660, %v4664
    %v4671 = vrot.slane %v4665, 1
    %v4672 = vrot.slane %v4666, 1
    %v4673 = vsel %vm1134, %v4671, %v4672
    %v4674 = vrot.slane %v4667, 1
    %v4675 = vsel %vm1134, %v4672, %v4674
    %v4676 = vsel %vm4533, %v4673, 0
    %v4678 = vsel %vm4533, %v4675, 0
    %v4680 = vsel %vm4533, %v4674, 0
    %4682 = vmatprep.subr.mxu0 0.0
    %4683 = vmatpush1.msra.mxu0 %v3600
    %4684 = vmatprep.subr.mxu0 0.0
    %4685 = vmatpush1.msra.mxu0 %v3601
    %4686 = vmatprep.subr.mxu0 0.0
    %4687 = vmatpush1.msra.mxu0 %v3602
    %4688 = vmatprep.subr.mxu0 0.0
    %4689 = vmatpush1.msra.mxu0 %v3603
    %4690 = vmatprep.subr.mxu0 0.0
    %4691 = vmatpush1.msra.mxu0 %v3604
    %4692 = vmatprep.subr.mxu0 0.0
    %4693 = vmatpush1.msra.mxu0 %v3605
    %4694 = vmatprep.subr.mxu0 0.0
    %4695 = vmatpush1.msra.mxu0 %v3606
    %4696 = vmatprep.subr.mxu0 0.0
    %4697 = vmatpush1.msra.mxu0 %v3607
    %4698 = vmatprep.subr.mxu0 0.0
    %4699 = vmatpush1.msra.mxu0 %v3608
    %4700 = vmatprep.subr.mxu0 0.0
    %4701 = vmatpush1.msra.mxu0 %v3609
    %4702 = vmatprep.subr.mxu0 0.0
    %4703 = vmatpush1.msra.mxu0 0.0
    %4704 = vmatprep.subr.mxu0 0.0
    %4705 = vmatpush1.msra.mxu0 0.0
    %4706 = vmatprep.subr.mxu0 0.0
    %4707 = vmatpush1.msra.mxu0 0.0
    %4708 = vmatprep.subr.mxu0 0.0
    %4709 = vmatpush1.msra.mxu0 0.0
    %4710 = vmatprep.subr.mxu0 0.0
    %4711 = vmatpush1.msra.mxu0 0.0
    %4712 = vmatprep.subr.mxu0 0.0
    %4713 = vmatpush1.msra.mxu0 0.0
    %4714 = vmatprep.subr.mxu0 0.0
    %4715 = vmatpush1.msra.mxu0 0.0
    %4716 = vmatprep.subr.mxu0 0.0
    %4717 = vmatpush1.msra.mxu0 0.0
    %4718 = vmatprep.subr.mxu0 0.0
    %4719 = vmatpush1.msra.mxu0 0.0
    %4720 = vmatprep.subr.mxu0 0.0
    %4721 = vmatpush1.msra.mxu0 0.0
    %4722 = vmatprep.subr.mxu0 0.0
    %4723 = vmatpush1.msra.mxu0 0.0
    %4724 = vmatprep.subr.mxu0 0.0
    %4725 = vmatpush1.msra.mxu0 0.0
    %4726 = vmatprep.subr.mxu0 0.0
    %4727 = vmatpush1.msra.mxu0 0.0
    %4728 = vmatprep.subr.mxu0 0.0
    %4729 = vmatpush1.msra.mxu0 0.0
    %4730 = vmatprep.subr.mxu0 0.0
    %4731 = vmatpush1.msra.mxu0 0.0
    %4732 = vmatprep.subr.mxu0 0.0
    %4733 = vmatpush1.msra.mxu0 0.0
    %4734 = vmatprep.subr.mxu0 0.0
    %4735 = vmatpush1.msra.mxu0 0.0
    %4736 = vmatprep.subr.mxu0 0.0
    %4737 = vmatpush1.msra.mxu0 0.0
    %4738 = vmatprep.subr.mxu0 0.0
    %4739 = vmatpush1.msra.mxu0 0.0
    %4740 = vmatprep.subr.mxu0 0.0
    %4741 = vmatpush1.msra.mxu0 0.0
    %4742 = vmatprep.subr.mxu0 0.0
    %4743 = vmatpush1.msra.mxu0 0.0
    %4744 = vmatprep.subr.mxu0 0.0
    %4745 = vmatpush1.msra.mxu0 0.0
    %4746 = vmatprep.mubr.f32.mxu0 0.0
    %4747 = vmatmul.mubr.f32.gmra.mrb[0].mxu0 %v4676
    %v4748 = vpop.f32.mrb[0].mxu0
    %v4749 = vadd.f32 0.0, %v4748
    %v4750 = vpop.f32.mrb[0].mxu0
    %4751 = vmatprep.mubr.f32.mxu0 0.0
    %4752 = vmatmul.mubr.f32.gmra.mrb[0].mxu0 %v4678
    %v4753 = vpop.f32.mrb[0].mxu0
    %v4754 = vadd.f32 0.0, %v4753
    %v4755 = vpop.f32.mrb[0].mxu0
    %4756 = vmatprep.mubr.f32.mxu0 0.0
    %4757 = vmatmul.mubr.f32.gmra.mrb[0].mxu0 %v4680
    %v4758 = vpop.f32.mrb[0].mxu0
    %v4759 = vadd.f32 0.0, %v4758
    %v4760 = vpop.f32.mrb[0].mxu0
    %4761 = vdwg.mxu0
    %v4762 = vsel %vm4533, %v4665, 0
    %v4764 = vsel %vm4533, %v4666, 0
    %v4766 = vsel %vm4533, %v4667, 0
    %4768 = vmatprep.subr.mxu0 0.0
    %4769 = vmatpush1.msra.mxu0 %v3590
    %4770 = vmatprep.subr.mxu0 0.0
    %4771 = vmatpush1.msra.mxu0 %v3591
    %4772 = vmatprep.subr.mxu0 0.0
    %4773 = vmatpush1.msra.mxu0 %v3592
    %4774 = vmatprep.subr.mxu0 0.0
    %4775 = vmatpush1.msra.mxu0 %v3593
    %4776 = vmatprep.subr.mxu0 0.0
    %4777 = vmatpush1.msra.mxu0 %v3594
    %4778 = vmatprep.subr.mxu0 0.0
    %4779 = vmatpush1.msra.mxu0 %v3595
    %4780 = vmatprep.subr.mxu0 0.0
    %4781 = vmatpush1.msra.mxu0 %v3596
    %4782 = vmatprep.subr.mxu0 0.0
    %4783 = vmatpush1.msra.mxu0 %v3597
    %4784 = vmatprep.subr.mxu0 0.0
    %4785 = vmatpush1.msra.mxu0 %v3598
    %4786 = vmatprep.subr.mxu0 0.0
    %4787 = vmatpush1.msra.mxu0 %v3599
    %4788 = vmatprep.subr.mxu0 0.0
    %4789 = vmatpush1.msra.mxu0 0.0
    %4790 = vmatprep.subr.mxu0 0.0
    %4791 = vmatpush1.msra.mxu0 0.0
    %4792 = vmatprep.subr.mxu0 0.0
    %4793 = vmatpush1.msra.mxu0 0.0
    %4794 = vmatprep.subr.mxu0 0.0
    %4795 = vmatpush1.msra.mxu0 0.0
    %4796 = vmatprep.subr.mxu0 0.0
    %4797 = vmatpush1.msra.mxu0 0.0
    %4798 = vmatprep.subr.mxu0 0.0
    %4799 = vmatpush1.msra.mxu0 0.0
    %4800 = vmatprep.subr.mxu0 0.0
    %4801 = vmatpush1.msra.mxu0 0.0
    %4802 = vmatprep.subr.mxu0 0.0
    %4803 = vmatpush1.msra.mxu0 0.0
    %4804 = vmatprep.subr.mxu0 0.0
    %4805 = vmatpush1.msra.mxu0 0.0
    %4806 = vmatprep.subr.mxu0 0.0
    %4807 = vmatpush1.msra.mxu0 0.0
    %4808 = vmatprep.subr.mxu0 0.0
    %4809 = vmatpush1.msra.mxu0 0.0
    %4810 = vmatprep.subr.mxu0 0.0
    %4811 = vmatpush1.msra.mxu0 0.0
    %4812 = vmatprep.subr.mxu0 0.0
    %4813 = vmatpush1.msra.mxu0 0.0
    %4814 = vmatprep.subr.mxu0 0.0
    %4815 = vmatpush1.msra.mxu0 0.0
    %4816 = vmatprep.subr.mxu0 0.0
    %4817 = vmatpush1.msra.mxu0 0.0
    %4818 = vmatprep.subr.mxu0 0.0
    %4819 = vmatpush1.msra.mxu0 0.0
    %4820 = vmatprep.subr.mxu0 0.0
    %4821 = vmatpush1.msra.mxu0 0.0
    %4822 = vmatprep.subr.mxu0 0.0
    %4823 = vmatpush1.msra.mxu0 0.0
    %4824 = vmatprep.subr.mxu0 0.0
    %4825 = vmatpush1.msra.mxu0 0.0
    %4826 = vmatprep.subr.mxu0 0.0
    %4827 = vmatpush1.msra.mxu0 0.0
    %4828 = vmatprep.subr.mxu0 0.0
    %4829 = vmatpush1.msra.mxu0 0.0
    %4830 = vmatprep.subr.mxu0 0.0
    %4831 = vmatpush1.msra.mxu0 0.0
    %4832 = vmatprep.mubr.f32.mxu0 0.0
    %4833 = vmatmul.mubr.f32.gmra.mrb[0].mxu0 %v4762
    %v4834 = vpop.f32.mrb[0].mxu0
    %v4835 = vadd.f32 %v4749, %v4834
    %v4836 = vpop.f32.mrb[0].mxu0
    %4837 = vmatprep.mubr.f32.mxu0 0.0
    %4838 = vmatmul.mubr.f32.gmra.mrb[0].mxu0 %v4764
    %v4839 = vpop.f32.mrb[0].mxu0
    %v4840 = vadd.f32 %v4754, %v4839
    %v4841 = vpop.f32.mrb[0].mxu0
    %4842 = vmatprep.mubr.f32.mxu0 0.0
    %4843 = vmatmul.mubr.f32.gmra.mrb[0].mxu0 %v4766
    %v4844 = vpop.f32.mrb[0].mxu0
    %v4845 = vadd.f32 %v4759, %v4844
    %v4846 = vpop.f32.mrb[0].mxu0
    %4847 = vdwg.mxu0
    %v4848 = vrot.slane %v4665, 2
    %v4849 = vrot.slane %v4666, 2
    %v4850 = vsel %vm1315, %v4848, %v4849
    %v4851 = vrot.slane %v4667, 2
    %v4852 = vsel %vm1315, %v4849, %v4851
    %v4853 = vsel %vm4533, %v4850, 0
    %v4855 = vsel %vm4533, %v4852, 0
    %v4857 = vsel %vm4533, %v4851, 0
    %4859 = vmatprep.subr.mxu0 0.0
    %4860 = vmatpush1.msra.mxu0 %v3610
    %4861 = vmatprep.subr.mxu0 0.0
    %4862 = vmatpush1.msra.mxu0 %v3611
    %4863 = vmatprep.subr.mxu0 0.0
    %4864 = vmatpush1.msra.mxu0 %v3612
    %4865 = vmatprep.subr.mxu0 0.0
    %4866 = vmatpush1.msra.mxu0 %v3613
    %4867 = vmatprep.subr.mxu0 0.0
    %4868 = vmatpush1.msra.mxu0 %v3614
    %4869 = vmatprep.subr.mxu0 0.0
    %4870 = vmatpush1.msra.mxu0 %v3615
    %4871 = vmatprep.subr.mxu0 0.0
    %4872 = vmatpush1.msra.mxu0 %v3616
    %4873 = vmatprep.subr.mxu0 0.0
    %4874 = vmatpush1.msra.mxu0 %v3617
    %4875 = vmatprep.subr.mxu0 0.0
    %4876 = vmatpush1.msra.mxu0 %v3618
    %4877 = vmatprep.subr.mxu0 0.0
    %4878 = vmatpush1.msra.mxu0 %v3619
    %4879 = vmatprep.subr.mxu0 0.0
    %4880 = vmatpush1.msra.mxu0 0.0
    %4881 = vmatprep.subr.mxu0 0.0
    %4882 = vmatpush1.msra.mxu0 0.0
    %4883 = vmatprep.subr.mxu0 0.0
    %4884 = vmatpush1.msra.mxu0 0.0
    %4885 = vmatprep.subr.mxu0 0.0
    %4886 = vmatpush1.msra.mxu0 0.0
    %4887 = vmatprep.subr.mxu0 0.0
    %4888 = vmatpush1.msra.mxu0 0.0
    %4889 = vmatprep.subr.mxu0 0.0
    %4890 = vmatpush1.msra.mxu0 0.0
    %4891 = vmatprep.subr.mxu0 0.0
    %4892 = vmatpush1.msra.mxu0 0.0
    %4893 = vmatprep.subr.mxu0 0.0
    %4894 = vmatpush1.msra.mxu0 0.0
    %4895 = vmatprep.subr.mxu0 0.0
    %4896 = vmatpush1.msra.mxu0 0.0
    %4897 = vmatprep.subr.mxu0 0.0
    %4898 = vmatpush1.msra.mxu0 0.0
    %4899 = vmatprep.subr.mxu0 0.0
    %4900 = vmatpush1.msra.mxu0 0.0
    %4901 = vmatprep.subr.mxu0 0.0
    %4902 = vmatpush1.msra.mxu0 0.0
    %4903 = vmatprep.subr.mxu0 0.0
    %4904 = vmatpush1.msra.mxu0 0.0
    %4905 = vmatprep.subr.mxu0 0.0
    %4906 = vmatpush1.msra.mxu0 0.0
    %4907 = vmatprep.subr.mxu0 0.0
    %4908 = vmatpush1.msra.mxu0 0.0
    %4909 = vmatprep.subr.mxu0 0.0
    %4910 = vmatpush1.msra.mxu0 0.0
    %4911 = vmatprep.subr.mxu0 0.0
    %4912 = vmatpush1.msra.mxu0 0.0
    %4913 = vmatprep.subr.mxu0 0.0
    %4914 = vmatpush1.msra.mxu0 0.0
    %4915 = vmatprep.subr.mxu0 0.0
    %4916 = vmatpush1.msra.mxu0 0.0
    %4917 = vmatprep.subr.mxu0 0.0
    %4918 = vmatpush1.msra.mxu0 0.0
    %4919 = vmatprep.subr.mxu0 0.0
    %4920 = vmatpush1.msra.mxu0 0.0
    %4921 = vmatprep.subr.mxu0 0.0
    %4922 = vmatpush1.msra.mxu0 0.0
    %4923 = vmatprep.mubr.f32.mxu0 0.0
    %4924 = vmatmul.mubr.f32.gmra.mrb[0].mxu0 %v4853
    %v4925 = vpop.f32.mrb[0].mxu0
    %v4926 = vadd.f32 0.0, %v4925
    %v4927 = vpop.f32.mrb[0].mxu0
    %4928 = vmatprep.mubr.f32.mxu0 0.0
    %4929 = vmatmul.mubr.f32.gmra.mrb[0].mxu0 %v4855
    %v4930 = vpop.f32.mrb[0].mxu0
    %v4931 = vadd.f32 0.0, %v4930
    %v4932 = vpop.f32.mrb[0].mxu0
    %4933 = vmatprep.mubr.f32.mxu0 0.0
    %4934 = vmatmul.mubr.f32.gmra.mrb[0].mxu0 %v4857
    %v4935 = vpop.f32.mrb[0].mxu0
    %v4936 = vadd.f32 0.0, %v4935
    %v4937 = vpop.f32.mrb[0].mxu0
    %4938 = vdwg.mxu0
    %v4939 = vadd.f32 %v4835, %v4926
    %v4940 = vadd.f32 %v4840, %v4931
    %v4941 = vadd.f32 %v4845, %v4936
    %v4942 = vlaneseq
    %v4943 = vshrl.u32 %v4942, 7
    %v4944 = vsub.s32 0, %v4943
    %v4945 = vrot.slane %v3620, %v4944
    %v4946 = vadd.f32 %v4939, %v4945
    %v4947 = vadd.f32 %v4940, %v4945
    %v4948 = vadd.f32 %v4941, %v4945
    %v4949 = vmax.f32 %v4946, 0.0
    %v4950 = vmax.f32 %v4947, 0.0
    %v4951 = vmax.f32 %v4948, 0.0
    %4953 = vset.pattern.permute.xlu0 0
    %4954 = vperm.xlu0 %4953, %v3629
    %v4955 = vpop.permute.xlu0 %4954
    %4958 = vset.pattern.permute.xlu0 0
    %4959 = vperm.xlu0 %4958, %v3630
    %v4960 = vpop.permute.xlu0 %4959
    %4963 = vset.pattern.permute.xlu0 0
    %4964 = vperm.xlu0 %4963, %v3631
    %v4965 = vpop.permute.xlu0 %4964
    %v4967 = vmul.f32 %v4949, %v4955
    %v4968 = vmul.f32 %v4950, %v4960
    %v4969 = vmul.f32 %v4951, %v4965
    %v4970 = vsel %vm782, %v4967, 0.0
    %v4971 = vsel %vm782, %v4968, 0.0
    %v4972 = vadd.f32 %v4970, %v4971
    %v4973 = vsel %vm784, %v4969, 0.0
    %v4974 = vadd.f32 %v4972, %v4973
    %v4975 = vrot.slane %v4974, 4
    %v4976 = vadd.f32 %v4974, %v4975
    %v4977 = vrot.slane %v4976, 2
    %v4978 = vadd.f32 %v4976, %v4977
    %v4979 = vrot.slane %v4978, 1
    %v4980 = vadd.f32 %v4978, %v4979
    %v4981 = vmul.f32 %v4949, %v4949
    %v4982 = vmul.f32 %v4950, %v4950
    %v4983 = vmul.f32 %v4951, %v4951
    %v4984 = vmul.f32 %v4981, %v4955
    %v4985 = vmul.f32 %v4982, %v4960
    %v4986 = vmul.f32 %v4983, %v4965
    %v4987 = vsel %vm782, %v4984, 0.0
    %v4988 = vsel %vm782, %v4985, 0.0
    %v4989 = vadd.f32 %v4987, %v4988
    %v4990 = vsel %vm784, %v4986, 0.0
    %v4991 = vadd.f32 %v4989, %v4990
    %v4992 = vrot.slane %v4991, 4
    %v4993 = vadd.f32 %v4991, %v4992
    %v4994 = vrot.slane %v4993, 2
    %v4995 = vadd.f32 %v4993, %v4994
    %v4996 = vrot.slane %v4995, 1
    %v4997 = vadd.f32 %v4995, %v4996
    %v4998 = vsel %vm818, %v4980, %v4997
    %v5000 = vsel %vm782, %v4998, 0
    %5002 = vmatprep.subr.mxu0 0.0
    %5003 = vmatpush1.msra.mxu0 %v3621
    %5004 = vmatprep.subr.mxu0 0.0
    %5005 = vmatpush1.msra.mxu0 %v3622
    %5006 = vmatprep.subr.mxu0 0.0
    %5007 = vmatpush1.msra.mxu0 %v3623
    %5008 = vmatprep.subr.mxu0 0.0
    %5009 = vmatpush1.msra.mxu0 %v3624
    %5010 = vmatprep.subr.mxu0 0.0
    %5011 = vmatpush1.msra.mxu0 %v3625
    %5012 = vmatprep.subr.mxu0 0.0
    %5013 = vmatpush1.msra.mxu0 %v3626
    %5014 = vmatprep.subr.mxu0 0.0
    %5015 = vmatpush1.msra.mxu0 %v3627
    %5016 = vmatprep.subr.mxu0 0.0
    %5017 = vmatpush1.msra.mxu0 %v3628
    %5018 = vmatprep.subr.mxu0 0.0
    %5019 = vmatpush1.msra.mxu0 0.0
    %5020 = vmatprep.subr.mxu0 0.0
    %5021 = vmatpush1.msra.mxu0 0.0
    %5022 = vmatprep.subr.mxu0 0.0
    %5023 = vmatpush1.msra.mxu0 0.0
    %5024 = vmatprep.subr.mxu0 0.0
    %5025 = vmatpush1.msra.mxu0 0.0
    %5026 = vmatprep.subr.mxu0 0.0
    %5027 = vmatpush1.msra.mxu0 0.0
    %5028 = vmatprep.subr.mxu0 0.0
    %5029 = vmatpush1.msra.mxu0 0.0
    %5030 = vmatprep.subr.mxu0 0.0
    %5031 = vmatpush1.msra.mxu0 0.0
    %5032 = vmatprep.subr.mxu0 0.0
    %5033 = vmatpush1.msra.mxu0 0.0
    %5034 = vmatprep.subr.mxu0 0.0
    %5035 = vmatpush1.msra.mxu0 0.0
    %5036 = vmatprep.subr.mxu0 0.0
    %5037 = vmatpush1.msra.mxu0 0.0
    %5038 = vmatprep.subr.mxu0 0.0
    %5039 = vmatpush1.msra.mxu0 0.0
    %5040 = vmatprep.subr.mxu0 0.0
    %5041 = vmatpush1.msra.mxu0 0.0
    %5042 = vmatprep.subr.mxu0 0.0
    %5043 = vmatpush1.msra.mxu0 0.0
    %5044 = vmatprep.subr.mxu0 0.0
    %5045 = vmatpush1.msra.mxu0 0.0
    %5046 = vmatprep.subr.mxu0 0.0
    %5047 = vmatpush1.msra.mxu0 0.0
    %5048 = vmatprep.subr.mxu0 0.0
    %5049 = vmatpush1.msra.mxu0 0.0
    %5050 = vmatprep.subr.mxu0 0.0
    %5051 = vmatpush1.msra.mxu0 0.0
    %5052 = vmatprep.subr.mxu0 0.0
    %5053 = vmatpush1.msra.mxu0 0.0
    %5054 = vmatprep.subr.mxu0 0.0
    %5055 = vmatpush1.msra.mxu0 0.0
    %5056 = vmatprep.subr.mxu0 0.0
    %5057 = vmatpush1.msra.mxu0 0.0
    %5058 = vmatprep.subr.mxu0 0.0
    %5059 = vmatpush1.msra.mxu0 0.0
    %5060 = vmatprep.subr.mxu0 0.0
    %5061 = vmatpush1.msra.mxu0 0.0
    %5062 = vmatprep.subr.mxu0 0.0
    %5063 = vmatpush1.msra.mxu0 0.0
    %5064 = vmatprep.subr.mxu0 0.0
    %5065 = vmatpush1.msra.mxu0 0.0
    %5066 = vmatprep.mubr.f32.mxu0 0.0
    %5067 = vmatmul.mubr.f32.gmra.mrb[0].mxu0 %v5000
    %v5068 = vpop.f32.mrb[0].mxu0
    %v5069 = vadd.f32 0.0, %v5068
    %v5070 = vpop.f32.mrb[0].mxu0
    %5071 = vdwg.mxu0
    %v5072 = vmul.f32 %v5069, %v5069
    %v5074 = vrot.slane %v5072, 7
    %v5076 = vsub.f32 %v5069, %v5074
    %v5077 = vmax.f32 %v5076, 0.0
    %v5078 = vadd.f32 %v5077, 1e-05
    %v5079 = vrsqrt.pop %v5078
    %v5080 = vmul.f32 %v3620, %v5079
    %v5082 = vrot.slane %v5080, 1
    %v5084 = vmul.f32 %v5069, %v5082
    %v5086 = vrot.slane %v5084, 6
    %v5088 = vsub.f32 %v3620, %v5086
    %v5089 = vlaneseq
    %v5090 = vshrl.u32 %v5089, 7
    %v5091 = vsub.s32 1, %v5090
    %v5092 = vrot.slane %v5080, %v5091
    %v5093 = vmul.f32 %v4949, %v5092
    %v5094 = vmul.f32 %v4950, %v5092
    %v5095 = vmul.f32 %v4951, %v5092
    %v5096 = vlaneseq
    %v5097 = vshrl.u32 %v5096, 7
    %v5098 = vsub.s32 2, %v5097
    %v5099 = vrot.slane %v5088, %v5098
    %v5100 = vadd.f32 %v5093, %v5099
    %v5101 = vadd.f32 %v5094, %v5099
    %v5102 = vadd.f32 %v5095, %v5099
    %v5103 = vld [vmem:[%s87] sm:$0xff]
    %v5104 = vld [vmem:[%s87 + $0x8] sm:$0xff]
    %v5105 = vld [vmem:[%s87 + $0x10] sm:$0xff]
    %v5106 = vld [vmem:[%s87 + $0x18] sm:$0xff]
    %v5107 = vld [vmem:[%s87 + $0x20] sm:$0xff]
    %v5108 = vld [vmem:[%s89] sm:$0xff]
    %v5109 = vld [vmem:[%s89 + $0x8] sm:$0xff]
    %v5110 = vld [vmem:[%s89 + $0x10] sm:$0xff]
    %v5111 = vld [vmem:[%s89 + $0x18] sm:$0xff]
    %v5112 = vld [vmem:[%s89 + $0x20] sm:$0xff]
    %v5113 = vld [vmem:[%s91] sm:$0xff]
    %v5114 = vld [vmem:[%s91 + $0x8] sm:$0xff]
    %v5115 = vld [vmem:[%s91 + $0x10] sm:$0xff]
    %v5116 = vld [vmem:[%s91 + $0x18] sm:$0xff]
    %v5117 = vld [vmem:[%s91 + $0x20] sm:$0xff]
    %v5118 = vld [vmem:[%s91 + $0x28] sm:$0xff]
    %v5119 = vld [vmem:[%s91 + $0x30] sm:$0xff]
    %v5120 = vld [vmem:[%s91 + $0x38] sm:$0xff]
    %v5121 = vld [vmem:[%s93] sm:$0x7]
    %v5122 = vld [vmem:[%s95] sm:$0xff]
    %v5123 = vld [vmem:[%s95 + $0x8] sm:$0xff]
    %v5124 = vld [vmem:[%s95 + $0x10] sm:$0xff]
    %v5125 = vld [vmem:[%s95 + $0x18] sm:$0xff]
    %v5126 = vld [vmem:[%s95 + $0x20] sm:$0xff]
    %v5127 = vld [vmem:[%s95 + $0x28] sm:$0xff]
    %v5128 = vld [vmem:[%s95 + $0x30] sm:$0xff]
    %v5129 = vld [vmem:[%s95 + $0x38] sm:$0xff]
    %v5130 = vld [vmem:[%s95 + $0x40] sm:$0xff]
    %v5131 = vld [vmem:[%s95 + $0x48] sm:$0xff]
    %v5132 = vld [vmem:[%s97] sm:$0xff]
    %v5133 = vld [vmem:[%s97 + $0x8] sm:$0xff]
    %v5134 = vld [vmem:[%s97 + $0x10] sm:$0xff]
    %v5135 = vld [vmem:[%s97 + $0x18] sm:$0xff]
    %v5136 = vld [vmem:[%s97 + $0x20] sm:$0xff]
    %v5137 = vld [vmem:[%s97 + $0x28] sm:$0xff]
    %v5138 = vld [vmem:[%s97 + $0x30] sm:$0xff]
    %v5139 = vld [vmem:[%s97 + $0x38] sm:$0xff]
    %v5140 = vld [vmem:[%s97 + $0x40] sm:$0xff]
    %v5141 = vld [vmem:[%s97 + $0x48] sm:$0xff]
    %v5142 = vld [vmem:[%s97 + $0x50] sm:$0xff]
    %v5143 = vld [vmem:[%s97 + $0x58] sm:$0xff]
    %v5144 = vld [vmem:[%s97 + $0x60] sm:$0xff]
    %v5145 = vld [vmem:[%s97 + $0x68] sm:$0xff]
    %v5146 = vld [vmem:[%s97 + $0x70] sm:$0xff]
    %v5147 = vld [vmem:[%s97 + $0x78] sm:$0xff]
    %v5148 = vld [vmem:[%s97 + $0x80] sm:$0xff]
    %v5149 = vld [vmem:[%s97 + $0x88] sm:$0xff]
    %v5150 = vld [vmem:[%s97 + $0x90] sm:$0xff]
    %v5151 = vld [vmem:[%s97 + $0x98] sm:$0xff]
    %v5152 = vld [vmem:[%s97 + $0xa0] sm:$0xff]
    %v5153 = vld [vmem:[%s97 + $0xa8] sm:$0xff]
    %v5154 = vld [vmem:[%s97 + $0xb0] sm:$0xff]
    %v5155 = vld [vmem:[%s97 + $0xb8] sm:$0xff]
    %v5156 = vld [vmem:[%s97 + $0xc0] sm:$0xff]
    %v5157 = vld [vmem:[%s97 + $0xc8] sm:$0xff]
    %v5158 = vld [vmem:[%s97 + $0xd0] sm:$0xff]
    %v5159 = vld [vmem:[%s97 + $0xd8] sm:$0xff]
    %v5160 = vld [vmem:[%s97 + $0xe0] sm:$0xff]
    %v5161 = vld [vmem:[%s97 + $0xe8] sm:$0xff]
    %v5162 = vld [vmem:[%s99] sm:$0xff]
    %v5163 = vld [vmem:[%s99 + $0x8] sm:$0xff]
    %v5164 = vld [vmem:[%s99 + $0x10] sm:$0xff]
    %v5165 = vld [vmem:[%s99 + $0x18] sm:$0xff]
    %v5166 = vld [vmem:[%s99 + $0x20] sm:$0xff]
    %v5167 = vld [vmem:[%s99 + $0x28] sm:$0xff]
    %v5168 = vld [vmem:[%s99 + $0x30] sm:$0xff]
    %v5169 = vld [vmem:[%s99 + $0x38] sm:$0xff]
    %v5170 = vld [vmem:[%s99 + $0x40] sm:$0xff]
    %v5171 = vld [vmem:[%s99 + $0x48] sm:$0xff]
    %v5172 = vld [vmem:[%s99 + $0x50] sm:$0xff]
    %v5173 = vld [vmem:[%s99 + $0x58] sm:$0xff]
    %v5174 = vld [vmem:[%s99 + $0x60] sm:$0xff]
    %v5175 = vld [vmem:[%s99 + $0x68] sm:$0xff]
    %v5176 = vld [vmem:[%s99 + $0x70] sm:$0xff]
    %v5177 = vld [vmem:[%s99 + $0x78] sm:$0xff]
    %v5178 = vld [vmem:[%s99 + $0x80] sm:$0xff]
    %v5179 = vld [vmem:[%s99 + $0x88] sm:$0xff]
    %v5180 = vld [vmem:[%s99 + $0x90] sm:$0xff]
    %v5181 = vld [vmem:[%s99 + $0x98] sm:$0xff]
    %v5182 = vld [vmem:[%s99 + $0xa0] sm:$0xff]
    %v5183 = vld [vmem:[%s99 + $0xa8] sm:$0xff]
    %v5184 = vld [vmem:[%s99 + $0xb0] sm:$0xff]
    %v5185 = vld [vmem:[%s99 + $0xb8] sm:$0xff]
    %v5186 = vld [vmem:[%s99 + $0xc0] sm:$0xff]
    %v5187 = vld [vmem:[%s99 + $0xc8] sm:$0xff]
    %v5188 = vld [vmem:[%s99 + $0xd0] sm:$0xff]
    %v5189 = vld [vmem:[%s99 + $0xd8] sm:$0xff]
    %v5190 = vld [vmem:[%s99 + $0xe0] sm:$0xff]
    %v5191 = vld [vmem:[%s99 + $0xe8] sm:$0xff]
    %v5192 = vld [vmem:[%s101] sm:$0x7]
    %v5193 = vld [vmem:[%s103] sm:$0xff]
    %v5194 = vld [vmem:[%s103 + $0x8] sm:$0xff]
    %v5195 = vld [vmem:[%s103 + $0x10] sm:$0xff]
    %v5196 = vld [vmem:[%s103 + $0x18] sm:$0xff]
    %v5197 = vld [vmem:[%s103 + $0x20] sm:$0xff]
    %v5198 = vld [vmem:[%s103 + $0x28] sm:$0xff]
    %v5199 = vld [vmem:[%s103 + $0x30] sm:$0xff]
    %v5200 = vld [vmem:[%s103 + $0x38] sm:$0xff]
    %v5201 = vld [vmem:[%s103 + $0x40] sm:$0xff]
    %v5202 = vld [vmem:[%s105] sm:$0xff]
    %v5203 = vld [vmem:[%s105 + $0x8] sm:$0xff]
    %v5204 = vld [vmem:[%s105 + $0x10] sm:$0xff]
    %v5205 = vld [vmem:[%s105 + $0x18] sm:$0xff]
    %v5206 = vld [vmem:[%s105 + $0x20] sm:$0x3f]
    %v5207 = vld [vmem:[%s107] sm:$0xff]
    %v5208 = vld [vmem:[%s107 + $0x8] sm:$0xff]
    %v5209 = vld [vmem:[%s107 + $0x10] sm:$0xff]
    %v5210 = vld [vmem:[%s107 + $0x18] sm:$0xff]
    %v5211 = vld [vmem:[%s107 + $0x20] sm:$0xff]
    %v5212 = vld [vmem:[%s107 + $0x28] sm:$0xff]
    %v5213 = vld [vmem:[%s107 + $0x30] sm:$0xff]
    %v5214 = vld [vmem:[%s107 + $0x38] sm:$0xff]
    %v5215 = vld [vmem:[%s107 + $0x40] sm:$0xff]
    %v5216 = vld [vmem:[%s107 + $0x48] sm:$0xff]
    %v5217 = vld [vmem:[%s107 + $0x50] sm:$0xff]
    %v5218 = vld [vmem:[%s107 + $0x58] sm:$0xff]
    %v5219 = vld [vmem:[%s107 + $0x60] sm:$0xff]
    %v5220 = vld [vmem:[%s107 + $0x68] sm:$0xff]
    %v5221 = vld [vmem:[%s107 + $0x70] sm:$0xff]
    %v5222 = vld [vmem:[%s107 + $0x78] sm:$0xff]
    %v5223 = vld [vmem:[%s107 + $0x80] sm:$0xff]
    %v5224 = vld [vmem:[%s107 + $0x88] sm:$0xff]
    %v5225 = vld [vmem:[%s107 + $0x90] sm:$0xff]
    %v5226 = vld [vmem:[%s107 + $0x98] sm:$0xff]
    %v5227 = vld [vmem:[%s107 + $0xa0] sm:$0xff]
    %v5228 = vld [vmem:[%s107 + $0xa8] sm:$0xff]
    %v5229 = vld [vmem:[%s107 + $0xb0] sm:$0xff]
    %v5230 = vld [vmem:[%s107 + $0xb8] sm:$0xff]
    %v5231 = vld [vmem:[%s107 + $0xc0] sm:$0xff]
    %v5232 = vld [vmem:[%s107 + $0xc8] sm:$0xff]
    %v5233 = vld [vmem:[%s107 + $0xd0] sm:$0xff]
    %v5234 = vld [vmem:[%s109] sm:$0x7]
    %v5235 = vld [vmem:[%s111] sm:$0xff]
    %v5236 = vld [vmem:[%s111 + $0x8] sm:$0xff]
    %v5237 = vld [vmem:[%s111 + $0x10] sm:$0xff]
    %v5238 = vld [vmem:[%s111 + $0x18] sm:$0xff]
    %v5239 = vld [vmem:[%s111 + $0x20] sm:$0xff]
    %v5240 = vld [vmem:[%s111 + $0x28] sm:$0xff]
    %v5241 = vld [vmem:[%s111 + $0x30] sm:$0xff]
    %v5242 = vld [vmem:[%s111 + $0x38] sm:$0xff]
    %v5243 = vld [vmem:[%s113] sm:$0xff]
    %v5244 = vld [vmem:[%s113 + $0x8] sm:$0xff]
    %v5245 = vld [vmem:[%s113 + $0x10] sm:$0xff]
    %v5246 = vld [vmem:[%s113 + $0x18] sm:$0xff]
    %v5247 = vld [vmem:[%s113 + $0x20] sm:$0xf]
    %vm5248 = vcmask 162816
    %v5250 = vsel %vm5248, %v5108, 0
    %v5253 = vsel %vm5248, %v5109, 0
    %v5256 = vsel %vm5248, %v5110, 0
    %v5259 = vsel %vm5248, %v5111, 0
    %v5262 = vsel %vm5248, %v5112, 0
    %v5265 = vsel %vm773, %v5102, 0
    %5267 = vmatprep.subr.mxu0 0.0
    %5268 = vmatpush1.msra.mxu0 %v5100
    %5269 = vmatprep.subr.mxu0 0.0
    %5270 = vmatpush1.msra.mxu0 %v5101
    %5271 = vmatprep.subr.mxu0 0.0
    %5272 = vmatpush1.msra.mxu0 %v5265
    %5273 = vmatprep.subr.mxu0 0.0
    %5274 = vmatpush1.msra.mxu0 0.0
    %5275 = vmatprep.subr.mxu0 0.0
    %5276 = vmatpush1.msra.mxu0 0.0
    %5277 = vmatprep.subr.mxu0 0.0
    %5278 = vmatpush1.msra.mxu0 0.0
    %5279 = vmatprep.subr.mxu0 0.0
    %5280 = vmatpush1.msra.mxu0 0.0
    %5281 = vmatprep.subr.mxu0 0.0
    %5282 = vmatpush1.msra.mxu0 0.0
    %5283 = vmatprep.subr.mxu0 0.0
    %5284 = vmatpush1.msra.mxu0 0.0
    %5285 = vmatprep.subr.mxu0 0.0
    %5286 = vmatpush1.msra.mxu0 0.0
    %5287 = vmatprep.subr.mxu0 0.0
    %5288 = vmatpush1.msra.mxu0 0.0
    %5289 = vmatprep.subr.mxu0 0.0
    %5290 = vmatpush1.msra.mxu0 0.0
    %5291 = vmatprep.subr.mxu0 0.0
    %5292 = vmatpush1.msra.mxu0 0.0
    %5293 = vmatprep.subr.mxu0 0.0
    %5294 = vmatpush1.msra.mxu0 0.0
    %5295 = vmatprep.subr.mxu0 0.0
    %5296 = vmatpush1.msra.mxu0 0.0
    %5297 = vmatprep.subr.mxu0 0.0
    %5298 = vmatpush1.msra.mxu0 0.0
    %5299 = vmatprep.subr.mxu0 0.0
    %5300 = vmatpush1.msra.mxu0 0.0
    %5301 = vmatprep.subr.mxu0 0.0
    %5302 = vmatpush1.msra.mxu0 0.0
    %5303 = vmatprep.subr.mxu0 0.0
    %5304 = vmatpush1.msra.mxu0 0.0
    %5305 = vmatprep.subr.mxu0 0.0
    %5306 = vmatpush1.msra.mxu0 0.0
    %5307 = vmatprep.subr.mxu0 0.0
    %5308 = vmatpush1.msra.mxu0 0.0
    %5309 = vmatprep.subr.mxu0 0.0
    %5310 = vmatpush1.msra.mxu0 0.0
    %5311 = vmatprep.subr.mxu0 0.0
    %5312 = vmatpush1.msra.mxu0 0.0
    %5313 = vmatprep.subr.mxu0 0.0
    %5314 = vmatpush1.msra.mxu0 0.0
    %5315 = vmatprep.subr.mxu0 0.0
    %5316 = vmatpush1.msra.mxu0 0.0
    %5317 = vmatprep.subr.mxu0 0.0
    %5318 = vmatpush1.msra.mxu0 0.0
    %5319 = vmatprep.subr.mxu0 0.0
    %5320 = vmatpush1.msra.mxu0 0.0
    %5321 = vmatprep.subr.mxu0 0.0
    %5322 = vmatpush1.msra.mxu0 0.0
    %5323 = vmatprep.subr.mxu0 0.0
    %5324 = vmatpush1.msra.mxu0 0.0
    %5325 = vmatprep.subr.mxu0 0.0
    %5326 = vmatpush1.msra.mxu0 0.0
    %5327 = vmatprep.subr.mxu0 0.0
    %5328 = vmatpush1.msra.mxu0 0.0
    %5329 = vmatprep.subr.mxu0 0.0
    %5330 = vmatpush1.msra.mxu0 0.0
    %5331 = vmatprep.mubr.f32.mxu0 0.0
    %5332 = vmatmul.mubr.f32.gmra.mrb[0].mxu0 %v5250
    %v5333 = vpop.f32.mrb[0].mxu0
    %v5334 = vadd.f32 0.0, %v5333
    %v5335 = vpop.f32.mrb[0].mxu0
    %5336 = vmatprep.mubr.f32.mxu0 0.0
    %5337 = vmatmul.mubr.f32.gmra.mrb[0].mxu0 %v5253
    %v5338 = vpop.f32.mrb[0].mxu0
    %v5339 = vadd.f32 0.0, %v5338
    %v5340 = vpop.f32.mrb[0].mxu0
    %5341 = vmatprep.mubr.f32.mxu0 0.0
    %5342 = vmatmul.mubr.f32.gmra.mrb[0].mxu0 %v5256
    %v5343 = vpop.f32.mrb[0].mxu0
    %v5344 = vadd.f32 0.0, %v5343
    %v5345 = vpop.f32.mrb[0].mxu0
    %5346 = vmatprep.mubr.f32.mxu0 0.0
    %5347 = vmatmul.mubr.f32.gmra.mrb[0].mxu0 %v5259
    %v5348 = vpop.f32.mrb[0].mxu0
    %v5349 = vadd.f32 0.0, %v5348
    %v5350 = vpop.f32.mrb[0].mxu0
    %5351 = vmatprep.mubr.f32.mxu0 0.0
    %5352 = vmatmul.mubr.f32.gmra.mrb[0].mxu0 %v5262
    %v5353 = vpop.f32.mrb[0].mxu0
    %v5354 = vadd.f32 0.0, %v5353
    %v5355 = vpop.f32.mrb[0].mxu0
    %5356 = vdwg.mxu0
    %v5357 = vlaneseq
    %v5358 = vshrl.u32 %v5357, 7
    %v5359 = vsub.s32 0, %v5358
    %v5360 = vrot.slane %v5121, %v5359
    %v5362 = vsel %vm782, %v5334, 0
    %v5365 = vsel %vm782, %v5339, 0
    %v5368 = vsel %vm782, %v5344, 0
    %v5371 = vsel %vm782, %v5349, 0
    %v5374 = vsel %vm782, %v5354, 0
    %5376 = vmatprep.subr.mxu0 0.0
    %5377 = vmatpush1.msra.mxu0 %v5113
    %5378 = vmatprep.subr.mxu0 0.0
    %5379 = vmatpush1.msra.mxu0 %v5114
    %5380 = vmatprep.subr.mxu0 0.0
    %5381 = vmatpush1.msra.mxu0 %v5115
    %5382 = vmatprep.subr.mxu0 0.0
    %5383 = vmatpush1.msra.mxu0 %v5116
    %5384 = vmatprep.subr.mxu0 0.0
    %5385 = vmatpush1.msra.mxu0 %v5117
    %5386 = vmatprep.subr.mxu0 0.0
    %5387 = vmatpush1.msra.mxu0 %v5118
    %5388 = vmatprep.subr.mxu0 0.0
    %5389 = vmatpush1.msra.mxu0 %v5119
    %5390 = vmatprep.subr.mxu0 0.0
    %5391 = vmatpush1.msra.mxu0 %v5120
    %5392 = vmatprep.subr.mxu0 0.0
    %5393 = vmatpush1.msra.mxu0 0.0
    %5394 = vmatprep.subr.mxu0 0.0
    %5395 = vmatpush1.msra.mxu0 0.0
    %5396 = vmatprep.subr.mxu0 0.0
    %5397 = vmatpush1.msra.mxu0 0.0
    %5398 = vmatprep.subr.mxu0 0.0
    %5399 = vmatpush1.msra.mxu0 0.0
    %5400 = vmatprep.subr.mxu0 0.0
    %5401 = vmatpush1.msra.mxu0 0.0
    %5402 = vmatprep.subr.mxu0 0.0
    %5403 = vmatpush1.msra.mxu0 0.0
    %5404 = vmatprep.subr.mxu0 0.0
    %5405 = vmatpush1.msra.mxu0 0.0
    %5406 = vmatprep.subr.mxu0 0.0
    %5407 = vmatpush1.msra.mxu0 0.0
    %5408 = vmatprep.subr.mxu0 0.0
    %5409 = vmatpush1.msra.mxu0 0.0
    %5410 = vmatprep.subr.mxu0 0.0
    %5411 = vmatpush1.msra.mxu0 0.0
    %5412 = vmatprep.subr.mxu0 0.0
    %5413 = vmatpush1.msra.mxu0 0.0
    %5414 = vmatprep.subr.mxu0 0.0
    %5415 = vmatpush1.msra.mxu0 0.0
    %5416 = vmatprep.subr.mxu0 0.0
    %5417 = vmatpush1.msra.mxu0 0.0
    %5418 = vmatprep.subr.mxu0 0.0
    %5419 = vmatpush1.msra.mxu0 0.0
    %5420 = vmatprep.subr.mxu0 0.0
    %5421 = vmatpush1.msra.mxu0 0.0
    %5422 = vmatprep.subr.mxu0 0.0
    %5423 = vmatpush1.msra.mxu0 0.0
    %5424 = vmatprep.subr.mxu0 0.0
    %5425 = vmatpush1.msra.mxu0 0.0
    %5426 = vmatprep.subr.mxu0 0.0
    %5427 = vmatpush1.msra.mxu0 0.0
    %5428 = vmatprep.subr.mxu0 0.0
    %5429 = vmatpush1.msra.mxu0 0.0
    %5430 = vmatprep.subr.mxu0 0.0
    %5431 = vmatpush1.msra.mxu0 0.0
    %5432 = vmatprep.subr.mxu0 0.0
    %5433 = vmatpush1.msra.mxu0 0.0
    %5434 = vmatprep.subr.mxu0 0.0
    %5435 = vmatpush1.msra.mxu0 0.0
    %5436 = vmatprep.subr.mxu0 0.0
    %5437 = vmatpush1.msra.mxu0 0.0
    %5438 = vmatprep.subr.mxu0 0.0
    %5439 = vmatpush1.msra.mxu0 0.0
    %5440 = vmatprep.mubr.f32.mxu0 0.0
    %5441 = vmatmul.mubr.f32.gmra.mrb[0].mxu0 %v5362
    %v5442 = vpop.f32.mrb[0].mxu0
    %v5443 = vadd.f32 %v5360, %v5442
    %v5444 = vpop.f32.mrb[0].mxu0
    %5445 = vmatprep.mubr.f32.mxu0 0.0
    %5446 = vmatmul.mubr.f32.gmra.mrb[0].mxu0 %v5365
    %v5447 = vpop.f32.mrb[0].mxu0
    %v5448 = vadd.f32 %v5360, %v5447
    %v5449 = vpop.f32.mrb[0].mxu0
    %5450 = vmatprep.mubr.f32.mxu0 0.0
    %5451 = vmatmul.mubr.f32.gmra.mrb[0].mxu0 %v5368
    %v5452 = vpop.f32.mrb[0].mxu0
    %v5453 = vadd.f32 %v5360, %v5452
    %v5454 = vpop.f32.mrb[0].mxu0
    %5455 = vmatprep.mubr.f32.mxu0 0.0
    %5456 = vmatmul.mubr.f32.gmra.mrb[0].mxu0 %v5371
    %v5457 = vpop.f32.mrb[0].mxu0
    %v5458 = vadd.f32 %v5360, %v5457
    %v5459 = vpop.f32.mrb[0].mxu0
    %5460 = vmatprep.mubr.f32.mxu0 0.0
    %5461 = vmatmul.mubr.f32.gmra.mrb[0].mxu0 %v5374
    %v5462 = vpop.f32.mrb[0].mxu0
    %v5463 = vadd.f32 %v5360, %v5462
    %v5464 = vpop.f32.mrb[0].mxu0
    %5465 = vdwg.mxu0
    %v5466 = vmax.f32 %v5443, 0.0
    %v5467 = vmax.f32 %v5448, 0.0
    %v5468 = vmax.f32 %v5453, 0.0
    %v5469 = vmax.f32 %v5458, 0.0
    %v5470 = vmax.f32 %v5463, 0.0
    %v5471 = vsel %vm4533, %v5466, 0.0
    %v5472 = vsel %vm4533, %v5467, 0.0
    %v5473 = vadd.f32 %v5471, %v5472
    %v5474 = vsel %vm4533, %v5468, 0.0
    %v5475 = vadd.f32 %v5473, %v5474
    %v5476 = vsel %vm4533, %v5469, 0.0
    %v5477 = vadd.f32 %v5475, %v5476
    %v5478 = vsel %vm4533, %v5470, 0.0
    %v5479 = vadd.f32 %v5477, %v5478
    %v5480 = vrot.slane %v5479, 4
    %v5481 = vadd.f32 %v5479, %v5480
    %v5482 = vrot.slane %v5481, 2
    %v5483 = vadd.f32 %v5481, %v5482
    %v5484 = vrot.slane %v5483, 1
    %v5485 = vadd.f32 %v5483, %v5484
    %v5486 = vmul.f32 %v5466, %v5466
    %v5487 = vmul.f32 %v5467, %v5467
    %v5488 = vmul.f32 %v5468, %v5468
    %v5489 = vmul.f32 %v5469, %v5469
    %v5490 = vmul.f32 %v5470, %v5470
    %v5491 = vsel %vm4533, %v5486, 0.0
    %v5492 = vsel %vm4533, %v5487, 0.0
    %v5493 = vadd.f32 %v5491, %v5492
    %v5494 = vsel %vm4533, %v5488, 0.0
    %v5495 = vadd.f32 %v5493, %v5494
    %v5496 = vsel %vm4533, %v5489, 0.0
    %v5497 = vadd.f32 %v5495, %v5496
    %v5498 = vsel %vm4533, %v5490, 0.0
    %v5499 = vadd.f32 %v5497, %v5498
    %v5500 = vrot.slane %v5499, 4
    %v5501 = vadd.f32 %v5499, %v5500
    %v5502 = vrot.slane %v5501, 2
    %v5503 = vadd.f32 %v5501, %v5502
    %v5504 = vrot.slane %v5503, 1
    %v5505 = vadd.f32 %v5503, %v5504
    %v5506 = vsel %vm818, %v5485, %v5505
    %v5508 = vsel %vm4533, %v5506, 0
    %5510 = vmatprep.subr.mxu0 0.0
    %5511 = vmatpush1.msra.mxu0 %v5122
    %5512 = vmatprep.subr.mxu0 0.0
    %5513 = vmatpush1.msra.mxu0 %v5123
    %5514 = vmatprep.subr.mxu0 0.0
    %5515 = vmatpush1.msra.mxu0 %v5124
    %5516 = vmatprep.subr.mxu0 0.0
    %5517 = vmatpush1.msra.mxu0 %v5125
    %5518 = vmatprep.subr.mxu0 0.0
    %5519 = vmatpush1.msra.mxu0 %v5126
    %5520 = vmatprep.subr.mxu0 0.0
    %5521 = vmatpush1.msra.mxu0 %v5127
    %5522 = vmatprep.subr.mxu0 0.0
    %5523 = vmatpush1.msra.mxu0 %v5128
    %5524 = vmatprep.subr.mxu0 0.0
    %5525 = vmatpush1.msra.mxu0 %v5129
    %5526 = vmatprep.subr.mxu0 0.0
    %5527 = vmatpush1.msra.mxu0 %v5130
    %5528 = vmatprep.subr.mxu0 0.0
    %5529 = vmatpush1.msra.mxu0 %v5131
    %5530 = vmatprep.subr.mxu0 0.0
    %5531 = vmatpush1.msra.mxu0 0.0
    %5532 = vmatprep.subr.mxu0 0.0
    %5533 = vmatpush1.msra.mxu0 0.0
    %5534 = vmatprep.subr.mxu0 0.0
    %5535 = vmatpush1.msra.mxu0 0.0
    %5536 = vmatprep.subr.mxu0 0.0
    %5537 = vmatpush1.msra.mxu0 0.0
    %5538 = vmatprep.subr.mxu0 0.0
    %5539 = vmatpush1.msra.mxu0 0.0
    %5540 = vmatprep.subr.mxu0 0.0
    %5541 = vmatpush1.msra.mxu0 0.0
    %5542 = vmatprep.subr.mxu0 0.0
    %5543 = vmatpush1.msra.mxu0 0.0
    %5544 = vmatprep.subr.mxu0 0.0
    %5545 = vmatpush1.msra.mxu0 0.0
    %5546 = vmatprep.subr.mxu0 0.0
    %5547 = vmatpush1.msra.mxu0 0.0
    %5548 = vmatprep.subr.mxu0 0.0
    %5549 = vmatpush1.msra.mxu0 0.0
    %5550 = vmatprep.subr.mxu0 0.0
    %5551 = vmatpush1.msra.mxu0 0.0
    %5552 = vmatprep.subr.mxu0 0.0
    %5553 = vmatpush1.msra.mxu0 0.0
    %5554 = vmatprep.subr.mxu0 0.0
    %5555 = vmatpush1.msra.mxu0 0.0
    %5556 = vmatprep.subr.mxu0 0.0
    %5557 = vmatpush1.msra.mxu0 0.0
    %5558 = vmatprep.subr.mxu0 0.0
    %5559 = vmatpush1.msra.mxu0 0.0
    %5560 = vmatprep.subr.mxu0 0.0
    %5561 = vmatpush1.msra.mxu0 0.0
    %5562 = vmatprep.subr.mxu0 0.0
    %5563 = vmatpush1.msra.mxu0 0.0
    %5564 = vmatprep.subr.mxu0 0.0
    %5565 = vmatpush1.msra.mxu0 0.0
    %5566 = vmatprep.subr.mxu0 0.0
    %5567 = vmatpush1.msra.mxu0 0.0
    %5568 = vmatprep.subr.mxu0 0.0
    %5569 = vmatpush1.msra.mxu0 0.0
    %5570 = vmatprep.subr.mxu0 0.0
    %5571 = vmatpush1.msra.mxu0 0.0
    %5572 = vmatprep.subr.mxu0 0.0
    %5573 = vmatpush1.msra.mxu0 0.0
    %5574 = vmatprep.mubr.f32.mxu0 0.0
    %5575 = vmatmul.mubr.f32.gmra.mrb[0].mxu0 %v5508
    %v5576 = vpop.f32.mrb[0].mxu0
    %v5577 = vadd.f32 0.0, %v5576
    %v5578 = vpop.f32.mrb[0].mxu0
    %5579 = vdwg.mxu0
    %v5580 = vmul.f32 %v5577, %v5577
    %v5582 = vrot.slane %v5580, 7
    %v5584 = vsub.f32 %v5577, %v5582
    %v5585 = vmax.f32 %v5584, 0.0
    %v5586 = vadd.f32 %v5585, 1e-05
    %v5587 = vrsqrt.pop %v5586
    %v5588 = vmul.f32 %v5121, %v5587
    %v5590 = vrot.slane %v5588, 1
    %v5592 = vmul.f32 %v5577, %v5590
    %v5594 = vrot.slane %v5592, 6
    %v5596 = vsub.f32 %v5121, %v5594
    %v5597 = vlaneseq
    %v5598 = vshrl.u32 %v5597, 7
    %v5599 = vsub.s32 1, %v5598
    %v5600 = vrot.slane %v5588, %v5599
    %v5601 = vmul.f32 %v5466, %v5600
    %v5602 = vmul.f32 %v5467, %v5600
    %v5603 = vmul.f32 %v5468, %v5600
    %v5604 = vmul.f32 %v5469, %v5600
    %v5605 = vmul.f32 %v5470, %v5600
    %v5606 = vlaneseq
    %v5607 = vshrl.u32 %v5606, 7
    %v5608 = vsub.s32 2, %v5607
    %v5609 = vrot.slane %v5596, %v5608
    %v5610 = vadd.f32 %v5601, %v5609
    %v5611 = vadd.f32 %v5602, %v5609
    %v5612 = vadd.f32 %v5603, %v5609
    %v5613 = vadd.f32 %v5604, %v5609
    %v5614 = vadd.f32 %v5605, %v5609
    %v5616 = vsel %vm4533, %v5103, 0
    %v5619 = vsel %vm4533, %v5104, 0
    %v5622 = vsel %vm4533, %v5105, 0
    %v5625 = vsel %vm4533, %v5106, 0
    %v5628 = vsel %vm4533, %v5107, 0
    %5630 = vmatprep.subr.mxu0 0.0
    %5631 = vmatpush1.msra.mxu0 %v5162
    %5632 = vmatprep.subr.mxu0 0.0
    %5633 = vmatpush1.msra.mxu0 %v5163
    %5634 = vmatprep.subr.mxu0 0.0
    %5635 = vmatpush1.msra.mxu0 %v5164
    %5636 = vmatprep.subr.mxu0 0.0
    %5637 = vmatpush1.msra.mxu0 %v5165
    %5638 = vmatprep.subr.mxu0 0.0
    %5639 = vmatpush1.msra.mxu0 %v5166
    %5640 = vmatprep.subr.mxu0 0.0
    %5641 = vmatpush1.msra.mxu0 %v5167
    %5642 = vmatprep.subr.mxu0 0.0
    %5643 = vmatpush1.msra.mxu0 %v5168
    %5644 = vmatprep.subr.mxu0 0.0
    %5645 = vmatpush1.msra.mxu0 %v5169
    %5646 = vmatprep.subr.mxu0 0.0
    %5647 = vmatpush1.msra.mxu0 %v5170
    %5648 = vmatprep.subr.mxu0 0.0
    %5649 = vmatpush1.msra.mxu0 %v5171
    %5650 = vmatprep.subr.mxu0 0.0
    %5651 = vmatpush1.msra.mxu0 0.0
    %5652 = vmatprep.subr.mxu0 0.0
    %5653 = vmatpush1.msra.mxu0 0.0
    %5654 = vmatprep.subr.mxu0 0.0
    %5655 = vmatpush1.msra.mxu0 0.0
    %5656 = vmatprep.subr.mxu0 0.0
    %5657 = vmatpush1.msra.mxu0 0.0
    %5658 = vmatprep.subr.mxu0 0.0
    %5659 = vmatpush1.msra.mxu0 0.0
    %5660 = vmatprep.subr.mxu0 0.0
    %5661 = vmatpush1.msra.mxu0 0.0
    %5662 = vmatprep.subr.mxu0 0.0
    %5663 = vmatpush1.msra.mxu0 0.0
    %5664 = vmatprep.subr.mxu0 0.0
    %5665 = vmatpush1.msra.mxu0 0.0
    %5666 = vmatprep.subr.mxu0 0.0
    %5667 = vmatpush1.msra.mxu0 0.0
    %5668 = vmatprep.subr.mxu0 0.0
    %5669 = vmatpush1.msra.mxu0 0.0
    %5670 = vmatprep.subr.mxu0 0.0
    %5671 = vmatpush1.msra.mxu0 0.0
    %5672 = vmatprep.subr.mxu0 0.0
    %5673 = vmatpush1.msra.mxu0 0.0
    %5674 = vmatprep.subr.mxu0 0.0
    %5675 = vmatpush1.msra.mxu0 0.0
    %5676 = vmatprep.subr.mxu0 0.0
    %5677 = vmatpush1.msra.mxu0 0.0
    %5678 = vmatprep.subr.mxu0 0.0
    %5679 = vmatpush1.msra.mxu0 0.0
    %5680 = vmatprep.subr.mxu0 0.0
    %5681 = vmatpush1.msra.mxu0 0.0
    %5682 = vmatprep.subr.mxu0 0.0
    %5683 = vmatpush1.msra.mxu0 0.0
    %5684 = vmatprep.subr.mxu0 0.0
    %5685 = vmatpush1.msra.mxu0 0.0
    %5686 = vmatprep.subr.mxu0 0.0
    %5687 = vmatpush1.msra.mxu0 0.0
    %5688 = vmatprep.subr.mxu0 0.0
    %5689 = vmatpush1.msra.mxu0 0.0
    %5690 = vmatprep.subr.mxu0 0.0
    %5691 = vmatpush1.msra.mxu0 0.0
    %5692 = vmatprep.subr.mxu0 0.0
    %5693 = vmatpush1.msra.mxu0 0.0
    %5694 = vmatprep.mubr.f32.mxu0 0.0
    %5695 = vmatmul.mubr.f32.gmra.mrb[0].mxu0 %v5616
    %v5696 = vpop.f32.mrb[0].mxu0
    %v5697 = vadd.f32 0.0, %v5696
    %v5698 = vpop.f32.mrb[0].mxu0
    %5699 = vmatprep.mubr.f32.mxu0 0.0
    %5700 = vmatmul.mubr.f32.gmra.mrb[0].mxu0 %v5619
    %v5701 = vpop.f32.mrb[0].mxu0
    %v5702 = vadd.f32 0.0, %v5701
    %v5703 = vpop.f32.mrb[0].mxu0
    %5704 = vmatprep.mubr.f32.mxu0 0.0
    %5705 = vmatmul.mubr.f32.gmra.mrb[0].mxu0 %v5622
    %v5706 = vpop.f32.mrb[0].mxu0
    %v5707 = vadd.f32 0.0, %v5706
    %v5708 = vpop.f32.mrb[0].mxu0
    %5709 = vmatprep.mubr.f32.mxu0 0.0
    %5710 = vmatmul.mubr.f32.gmra.mrb[0].mxu0 %v5625
    %v5711 = vpop.f32.mrb[0].mxu0
    %v5712 = vadd.f32 0.0, %v5711
    %v5713 = vpop.f32.mrb[0].mxu0
    %5714 = vmatprep.mubr.f32.mxu0 0.0
    %5715 = vmatmul.mubr.f32.gmra.mrb[0].mxu0 %v5628
    %v5716 = vpop.f32.mrb[0].mxu0
    %v5717 = vadd.f32 0.0, %v5716
    %v5718 = vpop.f32.mrb[0].mxu0
    %5719 = vdwg.mxu0
    %v5721 = vsel %vm4533, %v5610, 0
    %v5724 = vsel %vm4533, %v5611, 0
    %v5727 = vsel %vm4533, %v5612, 0
    %v5730 = vsel %vm4533, %v5613, 0
    %v5733 = vsel %vm4533, %v5614, 0
    %5735 = vmatprep.subr.mxu0 0.0
    %5736 = vmatpush1.msra.mxu0 %v5132
    %5737 = vmatprep.subr.mxu0 0.0
    %5738 = vmatpush1.msra.mxu0 %v5133
    %5739 = vmatprep.subr.mxu0 0.0
    %5740 = vmatpush1.msra.mxu0 %v5134
    %5741 = vmatprep.subr.mxu0 0.0
    %5742 = vmatpush1.msra.mxu0 %v5135
    %5743 = vmatprep.subr.mxu0 0.0
    %5744 = vmatpush1.msra.mxu0 %v5136
    %5745 = vmatprep.subr.mxu0 0.0
    %5746 = vmatpush1.msra.mxu0 %v5137
    %5747 = vmatprep.subr.mxu0 0.0
    %5748 = vmatpush1.msra.mxu0 %v5138
    %5749 = vmatprep.subr.mxu0 0.0
    %5750 = vmatpush1.msra.mxu0 %v5139
    %5751 = vmatprep.subr.mxu0 0.0
    %5752 = vmatpush1.msra.mxu0 %v5140
    %5753 = vmatprep.subr.mxu0 0.0
    %5754 = vmatpush1.msra.mxu0 %v5141
    %5755 = vmatprep.subr.mxu0 0.0
    %5756 = vmatpush1.msra.mxu0 0.0
    %5757 = vmatprep.subr.mxu0 0.0
    %5758 = vmatpush1.msra.mxu0 0.0
    %5759 = vmatprep.subr.mxu0 0.0
    %5760 = vmatpush1.msra.mxu0 0.0
    %5761 = vmatprep.subr.mxu0 0.0
    %5762 = vmatpush1.msra.mxu0 0.0
    %5763 = vmatprep.subr.mxu0 0.0
    %5764 = vmatpush1.msra.mxu0 0.0
    %5765 = vmatprep.subr.mxu0 0.0
    %5766 = vmatpush1.msra.mxu0 0.0
    %5767 = vmatprep.subr.mxu0 0.0
    %5768 = vmatpush1.msra.mxu0 0.0
    %5769 = vmatprep.subr.mxu0 0.0
    %5770 = vmatpush1.msra.mxu0 0.0
    %5771 = vmatprep.subr.mxu0 0.0
    %5772 = vmatpush1.msra.mxu0 0.0
    %5773 = vmatprep.subr.mxu0 0.0
    %5774 = vmatpush1.msra.mxu0 0.0
    %5775 = vmatprep.subr.mxu0 0.0
    %5776 = vmatpush1.msra.mxu0 0.0
    %5777 = vmatprep.subr.mxu0 0.0
    %5778 = vmatpush1.msra.mxu0 0.0
    %5779 = vmatprep.subr.mxu0 0.0
    %5780 = vmatpush1.msra.mxu0 0.0
    %5781 = vmatprep.subr.mxu0 0.0
    %5782 = vmatpush1.msra.mxu0 0.0
    %5783 = vmatprep.subr.mxu0 0.0
    %5784 = vmatpush1.msra.mxu0 0.0
    %5785 = vmatprep.subr.mxu0 0.0
    %5786 = vmatpush1.msra.mxu0 0.0
    %5787 = vmatprep.subr.mxu0 0.0
    %5788 = vmatpush1.msra.mxu0 0.0
    %5789 = vmatprep.subr.mxu0 0.0
    %5790 = vmatpush1.msra.mxu0 0.0
    %5791 = vmatprep.subr.mxu0 0.0
    %5792 = vmatpush1.msra.mxu0 0.0
    %5793 = vmatprep.subr.mxu0 0.0
    %5794 = vmatpush1.msra.mxu0 0.0
    %5795 = vmatprep.subr.mxu0 0.0
    %5796 = vmatpush1.msra.mxu0 0.0
    %5797 = vmatprep.subr.mxu0 0.0
    %5798 = vmatpush1.msra.mxu0 0.0
    %5799 = vmatprep.mubr.f32.mxu0 0.0
    %5800 = vmatmul.mubr.f32.gmra.mrb[0].mxu0 %v5721
    %v5801 = vpop.f32.mrb[0].mxu0
    %v5802 = vadd.f32 %v5697, %v5801
    %v5803 = vpop.f32.mrb[0].mxu0
    %5804 = vmatprep.mubr.f32.mxu0 0.0
    %5805 = vmatmul.mubr.f32.gmra.mrb[0].mxu0 %v5724
    %v5806 = vpop.f32.mrb[0].mxu0
    %v5807 = vadd.f32 %v5702, %v5806
    %v5808 = vpop.f32.mrb[0].mxu0
    %5809 = vmatprep.mubr.f32.mxu0 0.0
    %5810 = vmatmul.mubr.f32.gmra.mrb[0].mxu0 %v5727
    %v5811 = vpop.f32.mrb[0].mxu0
    %v5812 = vadd.f32 %v5707, %v5811
    %v5813 = vpop.f32.mrb[0].mxu0
    %5814 = vmatprep.mubr.f32.mxu0 0.0
    %5815 = vmatmul.mubr.f32.gmra.mrb[0].mxu0 %v5730
    %v5816 = vpop.f32.mrb[0].mxu0
    %v5817 = vadd.f32 %v5712, %v5816
    %v5818 = vpop.f32.mrb[0].mxu0
    %5819 = vmatprep.mubr.f32.mxu0 0.0
    %5820 = vmatmul.mubr.f32.gmra.mrb[0].mxu0 %v5733
    %v5821 = vpop.f32.mrb[0].mxu0
    %v5822 = vadd.f32 %v5717, %v5821
    %v5823 = vpop.f32.mrb[0].mxu0
    %5824 = vdwg.mxu0
    %v5825 = vrot.slane %v5610, 1
    %v5826 = vrot.slane %v5611, 1
    %v5827 = vsel %vm1134, %v5825, %v5826
    %v5828 = vrot.slane %v5612, 1
    %v5829 = vsel %vm1134, %v5826, %v5828
    %v5830 = vrot.slane %v5613, 1
    %v5831 = vsel %vm1134, %v5828, %v5830
    %v5832 = vrot.slane %v5614, 1
    %v5833 = vsel %vm1134, %v5830, %v5832
    %v5834 = vsel %vm4533, %v5827, 0
    %v5836 = vsel %vm4533, %v5829, 0
    %v5838 = vsel %vm4533, %v5831, 0
    %v5840 = vsel %vm4533, %v5833, 0
    %v5842 = vsel %vm4533, %v5832, 0
    %5844 = vmatprep.subr.mxu0 0.0
    %5845 = vmatpush1.msra.mxu0 %v5142
    %5846 = vmatprep.subr.mxu0 0.0
    %5847 = vmatpush1.msra.mxu0 %v5143
    %5848 = vmatprep.subr.mxu0 0.0
    %5849 = vmatpush1.msra.mxu0 %v5144
    %5850 = vmatprep.subr.mxu0 0.0
    %5851 = vmatpush1.msra.mxu0 %v5145
    %5852 = vmatprep.subr.mxu0 0.0
    %5853 = vmatpush1.msra.mxu0 %v5146
    %5854 = vmatprep.subr.mxu0 0.0
    %5855 = vmatpush1.msra.mxu0 %v5147
    %5856 = vmatprep.subr.mxu0 0.0
    %5857 = vmatpush1.msra.mxu0 %v5148
    %5858 = vmatprep.subr.mxu0 0.0
    %5859 = vmatpush1.msra.mxu0 %v5149
    %5860 = vmatprep.subr.mxu0 0.0
    %5861 = vmatpush1.msra.mxu0 %v5150
    %5862 = vmatprep.subr.mxu0 0.0
    %5863 = vmatpush1.msra.mxu0 %v5151
    %5864 = vmatprep.subr.mxu0 0.0
    %5865 = vmatpush1.msra.mxu0 0.0
    %5866 = vmatprep.subr.mxu0 0.0
    %5867 = vmatpush1.msra.mxu0 0.0
    %5868 = vmatprep.subr.mxu0 0.0
    %5869 = vmatpush1.msra.mxu0 0.0
    %5870 = vmatprep.subr.mxu0 0.0
    %5871 = vmatpush1.msra.mxu0 0.0
    %5872 = vmatprep.subr.mxu0 0.0
    %5873 = vmatpush1.msra.mxu0 0.0
    %5874 = vmatprep.subr.mxu0 0.0
    %5875 = vmatpush1.msra.mxu0 0.0
    %5876 = vmatprep.subr.mxu0 0.0
    %5877 = vmatpush1.msra.mxu0 0.0
    %5878 = vmatprep.subr.mxu0 0.0
    %5879 = vmatpush1.msra.mxu0 0.0
    %5880 = vmatprep.subr.mxu0 0.0
    %5881 = vmatpush1.msra.mxu0 0.0
    %5882 = vmatprep.subr.mxu0 0.0
    %5883 = vmatpush1.msra.mxu0 0.0
    %5884 = vmatprep.subr.mxu0 0.0
    %5885 = vmatpush1.msra.mxu0 0.0
    %5886 = vmatprep.subr.mxu0 0.0
    %5887 = vmatpush1.msra.mxu0 0.0
    %5888 = vmatprep.subr.mxu0 0.0
    %5889 = vmatpush1.msra.mxu0 0.0
    %5890 = vmatprep.subr.mxu0 0.0
    %5891 = vmatpush1.msra.mxu0 0.0
    %5892 = vmatprep.subr.mxu0 0.0
    %5893 = vmatpush1.msra.mxu0 0.0
    %5894 = vmatprep.subr.mxu0 0.0
    %5895 = vmatpush1.msra.mxu0 0.0
    %5896 = vmatprep.subr.mxu0 0.0
    %5897 = vmatpush1.msra.mxu0 0.0
    %5898 = vmatprep.subr.mxu0 0.0
    %5899 = vmatpush1.msra.mxu0 0.0
    %5900 = vmatprep.subr.mxu0 0.0
    %5901 = vmatpush1.msra.mxu0 0.0
    %5902 = vmatprep.subr.mxu0 0.0
    %5903 = vmatpush1.msra.mxu0 0.0
    %5904 = vmatprep.subr.mxu0 0.0
    %5905 = vmatpush1.msra.mxu0 0.0
    %5906 = vmatprep.subr.mxu0 0.0
    %5907 = vmatpush1.msra.mxu0 0.0
    %5908 = vmatprep.mubr.f32.mxu0 0.0
    %5909 = vmatmul.mubr.f32.gmra.mrb[0].mxu0 %v5834
    %v5910 = vpop.f32.mrb[0].mxu0
    %v5911 = vadd.f32 0.0, %v5910
    %v5912 = vpop.f32.mrb[0].mxu0
    %5913 = vmatprep.mubr.f32.mxu0 0.0
    %5914 = vmatmul.mubr.f32.gmra.mrb[0].mxu0 %v5836
    %v5915 = vpop.f32.mrb[0].mxu0
    %v5916 = vadd.f32 0.0, %v5915
    %v5917 = vpop.f32.mrb[0].mxu0
    %5918 = vmatprep.mubr.f32.mxu0 0.0
    %5919 = vmatmul.mubr.f32.gmra.mrb[0].mxu0 %v5838
    %v5920 = vpop.f32.mrb[0].mxu0
    %v5921 = vadd.f32 0.0, %v5920
    %v5922 = vpop.f32.mrb[0].mxu0
    %5923 = vmatprep.mubr.f32.mxu0 0.0
    %5924 = vmatmul.mubr.f32.gmra.mrb[0].mxu0 %v5840
    %v5925 = vpop.f32.mrb[0].mxu0
    %v5926 = vadd.f32 0.0, %v5925
    %v5927 = vpop.f32.mrb[0].mxu0
    %5928 = vmatprep.mubr.f32.mxu0 0.0
    %5929 = vmatmul.mubr.f32.gmra.mrb[0].mxu0 %v5842
    %v5930 = vpop.f32.mrb[0].mxu0
    %v5931 = vadd.f32 0.0, %v5930
    %v5932 = vpop.f32.mrb[0].mxu0
    %5933 = vdwg.mxu0
    %v5934 = vadd.f32 %v5802, %v5911
    %v5935 = vadd.f32 %v5807, %v5916
    %v5936 = vadd.f32 %v5812, %v5921
    %v5937 = vadd.f32 %v5817, %v5926
    %v5938 = vadd.f32 %v5822, %v5931
    %v5939 = vrot.slane %v5103, 1
    %v5940 = vrot.slane %v5104, 1
    %v5941 = vsel %vm1134, %v5939, %v5940
    %v5942 = vrot.slane %v5105, 1
    %v5943 = vsel %vm1134, %v5940, %v5942
    %v5944 = vrot.slane %v5106, 1
    %v5945 = vsel %vm1134, %v5942, %v5944
    %v5946 = vrot.slane %v5107, 1
    %v5947 = vsel %vm1134, %v5944, %v5946
    %v5948 = vsel %vm4533, %v5941, 0
    %v5950 = vsel %vm4533, %v5943, 0
    %v5952 = vsel %vm4533, %v5945, 0
    %v5954 = vsel %vm4533, %v5947, 0
    %v5956 = vsel %vm4533, %v5946, 0
    %5958 = vmatprep.subr.mxu0 0.0
    %5959 = vmatpush1.msra.mxu0 %v5172
    %5960 = vmatprep.subr.mxu0 0.0
    %5961 = vmatpush1.msra.mxu0 %v5173
    %5962 = vmatprep.subr.mxu0 0.0
    %5963 = vmatpush1.msra.mxu0 %v5174
    %5964 = vmatprep.subr.mxu0 0.0
    %5965 = vmatpush1.msra.mxu0 %v5175
    %5966 = vmatprep.subr.mxu0 0.0
    %5967 = vmatpush1.msra.mxu0 %v5176
    %5968 = vmatprep.subr.mxu0 0.0
    %5969 = vmatpush1.msra.mxu0 %v5177
    %5970 = vmatprep.subr.mxu0 0.0
    %5971 = vmatpush1.msra.mxu0 %v5178
    %5972 = vmatprep.subr.mxu0 0.0
    %5973 = vmatpush1.msra.mxu0 %v5179
    %5974 = vmatprep.subr.mxu0 0.0
    %5975 = vmatpush1.msra.mxu0 %v5180
    %5976 = vmatprep.subr.mxu0 0.0
    %5977 = vmatpush1.msra.mxu0 %v5181
    %5978 = vmatprep.subr.mxu0 0.0
    %5979 = vmatpush1.msra.mxu0 0.0
    %5980 = vmatprep.subr.mxu0 0.0
    %5981 = vmatpush1.msra.mxu0 0.0
    %5982 = vmatprep.subr.mxu0 0.0
    %5983 = vmatpush1.msra.mxu0 0.0
    %5984 = vmatprep.subr.mxu0 0.0
    %5985 = vmatpush1.msra.mxu0 0.0
    %5986 = vmatprep.subr.mxu0 0.0
    %5987 = vmatpush1.msra.mxu0 0.0
    %5988 = vmatprep.subr.mxu0 0.0
    %5989 = vmatpush1.msra.mxu0 0.0
    %5990 = vmatprep.subr.mxu0 0.0
    %5991 = vmatpush1.msra.mxu0 0.0
    %5992 = vmatprep.subr.mxu0 0.0
    %5993 = vmatpush1.msra.mxu0 0.0
    %5994 = vmatprep.subr.mxu0 0.0
    %5995 = vmatpush1.msra.mxu0 0.0
    %5996 = vmatprep.subr.mxu0 0.0
    %5997 = vmatpush1.msra.mxu0 0.0
    %5998 = vmatprep.subr.mxu0 0.0
    %5999 = vmatpush1.msra.mxu0 0.0
    %6000 = vmatprep.subr.mxu0 0.0
    %6001 = vmatpush1.msra.mxu0 0.0
    %6002 = vmatprep.subr.mxu0 0.0
    %6003 = vmatpush1.msra.mxu0 0.0
    %6004 = vmatprep.subr.mxu0 0.0
    %6005 = vmatpush1.msra.mxu0 0.0
    %6006 = vmatprep.subr.mxu0 0.0
    %6007 = vmatpush1.msra.mxu0 0.0
    %6008 = vmatprep.subr.mxu0 0.0
    %6009 = vmatpush1.msra.mxu0 0.0
    %6010 = vmatprep.subr.mxu0 0.0
    %6011 = vmatpush1.msra.mxu0 0.0
    %6012 = vmatprep.subr.mxu0 0.0
    %6013 = vmatpush1.msra.mxu0 0.0
    %6014 = vmatprep.subr.mxu0 0.0
    %6015 = vmatpush1.msra.mxu0 0.0
    %6016 = vmatprep.subr.mxu0 0.0
    %6017 = vmatpush1.msra.mxu0 0.0
    %6018 = vmatprep.subr.mxu0 0.0
    %6019 = vmatpush1.msra.mxu0 0.0
    %6020 = vmatprep.subr.mxu0 0.0
    %6021 = vmatpush1.msra.mxu0 0.0
    %6022 = vmatprep.mubr.f32.mxu0 0.0
    %6023 = vmatmul.mubr.f32.gmra.mrb[0].mxu0 %v5948
    %v6024 = vpop.f32.mrb[0].mxu0
    %v6025 = vadd.f32 0.0, %v6024
    %v6026 = vpop.f32.mrb[0].mxu0
    %6027 = vmatprep.mubr.f32.mxu0 0.0
    %6028 = vmatmul.mubr.f32.gmra.mrb[0].mxu0 %v5950
    %v6029 = vpop.f32.mrb[0].mxu0
    %v6030 = vadd.f32 0.0, %v6029
    %v6031 = vpop.f32.mrb[0].mxu0
    %6032 = vmatprep.mubr.f32.mxu0 0.0
    %6033 = vmatmul.mubr.f32.gmra.mrb[0].mxu0 %v5952
    %v6034 = vpop.f32.mrb[0].mxu0
    %v6035 = vadd.f32 0.0, %v6034
    %v6036 = vpop.f32.mrb[0].mxu0
    %6037 = vmatprep.mubr.f32.mxu0 0.0
    %6038 = vmatmul.mubr.f32.gmra.mrb[0].mxu0 %v5954
    %v6039 = vpop.f32.mrb[0].mxu0
    %v6040 = vadd.f32 0.0, %v6039
    %v6041 = vpop.f32.mrb[0].mxu0
    %6042 = vmatprep.mubr.f32.mxu0 0.0
    %6043 = vmatmul.mubr.f32.gmra.mrb[0].mxu0 %v5956
    %v6044 = vpop.f32.mrb[0].mxu0
    %v6045 = vadd.f32 0.0, %v6044
    %v6046 = vpop.f32.mrb[0].mxu0
    %6047 = vdwg.mxu0
    %v6048 = vadd.f32 %v5934, %v6025
    %v6049 = vadd.f32 %v5935, %v6030
    %v6050 = vadd.f32 %v5936, %v6035
    %v6051 = vadd.f32 %v5937, %v6040
    %v6052 = vadd.f32 %v5938, %v6045
    %v6053 = vrot.slane %v5610, 2
    %v6054 = vrot.slane %v5611, 2
    %v6055 = vsel %vm1315, %v6053, %v6054
    %v6056 = vrot.slane %v5612, 2
    %v6057 = vsel %vm1315, %v6054, %v6056
    %v6058 = vrot.slane %v5613, 2
    %v6059 = vsel %vm1315, %v6056, %v6058
    %v6060 = vrot.slane %v5614, 2
    %v6061 = vsel %vm1315, %v6058, %v6060
    %v6062 = vsel %vm4533, %v6055, 0
    %v6064 = vsel %vm4533, %v6057, 0
    %v6066 = vsel %vm4533, %v6059, 0
    %v6068 = vsel %vm4533, %v6061, 0
    %v6070 = vsel %vm4533, %v6060, 0
    %6072 = vmatprep.subr.mxu0 0.0
    %6073 = vmatpush1.msra.mxu0 %v5152
    %6074 = vmatprep.subr.mxu0 0.0
    %6075 = vmatpush1.msra.mxu0 %v5153
    %6076 = vmatprep.subr.mxu0 0.0
    %6077 = vmatpush1.msra.mxu0 %v5154
    %6078 = vmatprep.subr.mxu0 0.0
    %6079 = vmatpush1.msra.mxu0 %v5155
    %6080 = vmatprep.subr.mxu0 0.0
    %6081 = vmatpush1.msra.mxu0 %v5156
    %6082 = vmatprep.subr.mxu0 0.0
    %6083 = vmatpush1.msra.mxu0 %v5157
    %6084 = vmatprep.subr.mxu0 0.0
    %6085 = vmatpush1.msra.mxu0 %v5158
    %6086 = vmatprep.subr.mxu0 0.0
    %6087 = vmatpush1.msra.mxu0 %v5159
    %6088 = vmatprep.subr.mxu0 0.0
    %6089 = vmatpush1.msra.mxu0 %v5160
    %6090 = vmatprep.subr.mxu0 0.0
    %6091 = vmatpush1.msra.mxu0 %v5161
    %6092 = vmatprep.subr.mxu0 0.0
    %6093 = vmatpush1.msra.mxu0 0.0
    %6094 = vmatprep.subr.mxu0 0.0
    %6095 = vmatpush1.msra.mxu0 0.0
    %6096 = vmatprep.subr.mxu0 0.0
    %6097 = vmatpush1.msra.mxu0 0.0
    %6098 = vmatprep.subr.mxu0 0.0
    %6099 = vmatpush1.msra.mxu0 0.0
    %6100 = vmatprep.subr.mxu0 0.0
    %6101 = vmatpush1.msra.mxu0 0.0
    %6102 = vmatprep.subr.mxu0 0.0
    %6103 = vmatpush1.msra.mxu0 0.0
    %6104 = vmatprep.subr.mxu0 0.0
    %6105 = vmatpush1.msra.mxu0 0.0
    %6106 = vmatprep.subr.mxu0 0.0
    %6107 = vmatpush1.msra.mxu0 0.0
    %6108 = vmatprep.subr.mxu0 0.0
    %6109 = vmatpush1.msra.mxu0 0.0
    %6110 = vmatprep.subr.mxu0 0.0
    %6111 = vmatpush1.msra.mxu0 0.0
    %6112 = vmatprep.subr.mxu0 0.0
    %6113 = vmatpush1.msra.mxu0 0.0
    %6114 = vmatprep.subr.mxu0 0.0
    %6115 = vmatpush1.msra.mxu0 0.0
    %6116 = vmatprep.subr.mxu0 0.0
    %6117 = vmatpush1.msra.mxu0 0.0
    %6118 = vmatprep.subr.mxu0 0.0
    %6119 = vmatpush1.msra.mxu0 0.0
    %6120 = vmatprep.subr.mxu0 0.0
    %6121 = vmatpush1.msra.mxu0 0.0
    %6122 = vmatprep.subr.mxu0 0.0
    %6123 = vmatpush1.msra.mxu0 0.0
    %6124 = vmatprep.subr.mxu0 0.0
    %6125 = vmatpush1.msra.mxu0 0.0
    %6126 = vmatprep.subr.mxu0 0.0
    %6127 = vmatpush1.msra.mxu0 0.0
    %6128 = vmatprep.subr.mxu0 0.0
    %6129 = vmatpush1.msra.mxu0 0.0
    %6130 = vmatprep.subr.mxu0 0.0
    %6131 = vmatpush1.msra.mxu0 0.0
    %6132 = vmatprep.subr.mxu0 0.0
    %6133 = vmatpush1.msra.mxu0 0.0
    %6134 = vmatprep.subr.mxu0 0.0
    %6135 = vmatpush1.msra.mxu0 0.0
    %6136 = vmatprep.mubr.f32.mxu0 0.0
    %6137 = vmatmul.mubr.f32.gmra.mrb[0].mxu0 %v6062
    %v6138 = vpop.f32.mrb[0].mxu0
    %v6139 = vadd.f32 0.0, %v6138
    %v6140 = vpop.f32.mrb[0].mxu0
    %6141 = vmatprep.mubr.f32.mxu0 0.0
    %6142 = vmatmul.mubr.f32.gmra.mrb[0].mxu0 %v6064
    %v6143 = vpop.f32.mrb[0].mxu0
    %v6144 = vadd.f32 0.0, %v6143
    %v6145 = vpop.f32.mrb[0].mxu0
    %6146 = vmatprep.mubr.f32.mxu0 0.0
    %6147 = vmatmul.mubr.f32.gmra.mrb[0].mxu0 %v6066
    %v6148 = vpop.f32.mrb[0].mxu0
    %v6149 = vadd.f32 0.0, %v6148
    %v6150 = vpop.f32.mrb[0].mxu0
    %6151 = vmatprep.mubr.f32.mxu0 0.0
    %6152 = vmatmul.mubr.f32.gmra.mrb[0].mxu0 %v6068
    %v6153 = vpop.f32.mrb[0].mxu0
    %v6154 = vadd.f32 0.0, %v6153
    %v6155 = vpop.f32.mrb[0].mxu0
    %6156 = vmatprep.mubr.f32.mxu0 0.0
    %6157 = vmatmul.mubr.f32.gmra.mrb[0].mxu0 %v6070
    %v6158 = vpop.f32.mrb[0].mxu0
    %v6159 = vadd.f32 0.0, %v6158
    %v6160 = vpop.f32.mrb[0].mxu0
    %6161 = vdwg.mxu0
    %v6162 = vadd.f32 %v6048, %v6139
    %v6163 = vadd.f32 %v6049, %v6144
    %v6164 = vadd.f32 %v6050, %v6149
    %v6165 = vadd.f32 %v6051, %v6154
    %v6166 = vadd.f32 %v6052, %v6159
    %v6167 = vrot.slane %v5103, 2
    %v6168 = vrot.slane %v5104, 2
    %v6169 = vsel %vm1315, %v6167, %v6168
    %v6170 = vrot.slane %v5105, 2
    %v6171 = vsel %vm1315, %v6168, %v6170
    %v6172 = vrot.slane %v5106, 2
    %v6173 = vsel %vm1315, %v6170, %v6172
    %v6174 = vrot.slane %v5107, 2
    %v6175 = vsel %vm1315, %v6172, %v6174
    %v6176 = vsel %vm4533, %v6169, 0
    %v6178 = vsel %vm4533, %v6171, 0
    %v6180 = vsel %vm4533, %v6173, 0
    %v6182 = vsel %vm4533, %v6175, 0
    %v6184 = vsel %vm4533, %v6174, 0
    %6186 = vmatprep.subr.mxu0 0.0
    %6187 = vmatpush1.msra.mxu0 %v5182
    %6188 = vmatprep.subr.mxu0 0.0
    %6189 = vmatpush1.msra.mxu0 %v5183
    %6190 = vmatprep.subr.mxu0 0.0
    %6191 = vmatpush1.msra.mxu0 %v5184
    %6192 = vmatprep.subr.mxu0 0.0
    %6193 = vmatpush1.msra.mxu0 %v5185
    %6194 = vmatprep.subr.mxu0 0.0
    %6195 = vmatpush1.msra.mxu0 %v5186
    %6196 = vmatprep.subr.mxu0 0.0
    %6197 = vmatpush1.msra.mxu0 %v5187
    %6198 = vmatprep.subr.mxu0 0.0
    %6199 = vmatpush1.msra.mxu0 %v5188
    %6200 = vmatprep.subr.mxu0 0.0
    %6201 = vmatpush1.msra.mxu0 %v5189
    %6202 = vmatprep.subr.mxu0 0.0
    %6203 = vmatpush1.msra.mxu0 %v5190
    %6204 = vmatprep.subr.mxu0 0.0
    %6205 = vmatpush1.msra.mxu0 %v5191
    %6206 = vmatprep.subr.mxu0 0.0
    %6207 = vmatpush1.msra.mxu0 0.0
    %6208 = vmatprep.subr.mxu0 0.0
    %6209 = vmatpush1.msra.mxu0 0.0
    %6210 = vmatprep.subr.mxu0 0.0
    %6211 = vmatpush1.msra.mxu0 0.0
    %6212 = vmatprep.subr.mxu0 0.0
    %6213 = vmatpush1.msra.mxu0 0.0
    %6214 = vmatprep.subr.mxu0 0.0
    %6215 = vmatpush1.msra.mxu0 0.0
    %6216 = vmatprep.subr.mxu0 0.0
    %6217 = vmatpush1.msra.mxu0 0.0
    %6218 = vmatprep.subr.mxu0 0.0
    %6219 = vmatpush1.msra.mxu0 0.0
    %6220 = vmatprep.subr.mxu0 0.0
    %6221 = vmatpush1.msra.mxu0 0.0
    %6222 = vmatprep.subr.mxu0 0.0
    %6223 = vmatpush1.msra.mxu0 0.0
    %6224 = vmatprep.subr.mxu0 0.0
    %6225 = vmatpush1.msra.mxu0 0.0
    %6226 = vmatprep.subr.mxu0 0.0
    %6227 = vmatpush1.msra.mxu0 0.0
    %6228 = vmatprep.subr.mxu0 0.0
    %6229 = vmatpush1.msra.mxu0 0.0
    %6230 = vmatprep.subr.mxu0 0.0
    %6231 = vmatpush1.msra.mxu0 0.0
    %6232 = vmatprep.subr.mxu0 0.0
    %6233 = vmatpush1.msra.mxu0 0.0
    %6234 = vmatprep.subr.mxu0 0.0
    %6235 = vmatpush1.msra.mxu0 0.0
    %6236 = vmatprep.subr.mxu0 0.0
    %6237 = vmatpush1.msra.mxu0 0.0
    %6238 = vmatprep.subr.mxu0 0.0
    %6239 = vmatpush1.msra.mxu0 0.0
    %6240 = vmatprep.subr.mxu0 0.0
    %6241 = vmatpush1.msra.mxu0 0.0
    %6242 = vmatprep.subr.mxu0 0.0
    %6243 = vmatpush1.msra.mxu0 0.0
    %6244 = vmatprep.subr.mxu0 0.0
    %6245 = vmatpush1.msra.mxu0 0.0
    %6246 = vmatprep.subr.mxu0 0.0
    %6247 = vmatpush1.msra.mxu0 0.0
    %6248 = vmatprep.subr.mxu0 0.0
    %6249 = vmatpush1.msra.mxu0 0.0
    %6250 = vmatprep.mubr.f32.mxu0 0.0
    %6251 = vmatmul.mubr.f32.gmra.mrb[0].mxu0 %v6176
    %v6252 = vpop.f32.mrb[0].mxu0
    %v6253 = vadd.f32 0.0, %v6252
    %v6254 = vpop.f32.mrb[0].mxu0
    %6255 = vmatprep.mubr.f32.mxu0 0.0
    %6256 = vmatmul.mubr.f32.gmra.mrb[0].mxu0 %v6178
    %v6257 = vpop.f32.mrb[0].mxu0
    %v6258 = vadd.f32 0.0, %v6257
    %v6259 = vpop.f32.mrb[0].mxu0
    %6260 = vmatprep.mubr.f32.mxu0 0.0
    %6261 = vmatmul.mubr.f32.gmra.mrb[0].mxu0 %v6180
    %v6262 = vpop.f32.mrb[0].mxu0
    %v6263 = vadd.f32 0.0, %v6262
    %v6264 = vpop.f32.mrb[0].mxu0
    %6265 = vmatprep.mubr.f32.mxu0 0.0
    %6266 = vmatmul.mubr.f32.gmra.mrb[0].mxu0 %v6182
    %v6267 = vpop.f32.mrb[0].mxu0
    %v6268 = vadd.f32 0.0, %v6267
    %v6269 = vpop.f32.mrb[0].mxu0
    %6270 = vmatprep.mubr.f32.mxu0 0.0
    %6271 = vmatmul.mubr.f32.gmra.mrb[0].mxu0 %v6184
    %v6272 = vpop.f32.mrb[0].mxu0
    %v6273 = vadd.f32 0.0, %v6272
    %v6274 = vpop.f32.mrb[0].mxu0
    %6275 = vdwg.mxu0
    %v6276 = vadd.f32 %v6162, %v6253
    %v6277 = vadd.f32 %v6163, %v6258
    %v6278 = vadd.f32 %v6164, %v6263
    %v6279 = vadd.f32 %v6165, %v6268
    %v6280 = vadd.f32 %v6166, %v6273
    %v6281 = vlaneseq
    %v6282 = vshrl.u32 %v6281, 7
    %v6283 = vsub.s32 0, %v6282
    %v6284 = vrot.slane %v5192, %v6283
    %v6285 = vadd.f32 %v6276, %v6284
    %v6286 = vadd.f32 %v6277, %v6284
    %v6287 = vadd.f32 %v6278, %v6284
    %v6288 = vadd.f32 %v6279, %v6284
    %v6289 = vadd.f32 %v6280, %v6284
    %v6290 = vmax.f32 %v6285, 0.0
    %v6291 = vmax.f32 %v6286, 0.0
    %v6292 = vmax.f32 %v6287, 0.0
    %v6293 = vmax.f32 %v6288, 0.0
    %v6294 = vmax.f32 %v6289, 0.0
    %6296 = vset.pattern.permute.xlu0 0
    %6297 = vperm.xlu0 %6296, %v5202
    %v6298 = vpop.permute.xlu0 %6297
    %6301 = vset.pattern.permute.xlu0 0
    %6302 = vperm.xlu0 %6301, %v5203
    %v6303 = vpop.permute.xlu0 %6302
    %6306 = vset.pattern.permute.xlu0 0
    %6307 = vperm.xlu0 %6306, %v5204
    %v6308 = vpop.permute.xlu0 %6307
    %6311 = vset.pattern.permute.xlu0 0
    %6312 = vperm.xlu0 %6311, %v5205
    %v6313 = vpop.permute.xlu0 %6312
    %6316 = vset.pattern.permute.xlu0 0
    %6317 = vperm.xlu0 %6316, %v5206
    %v6318 = vpop.permute.xlu0 %6317
    %v6320 = vmul.f32 %v6290, %v6298
    %v6321 = vmul.f32 %v6291, %v6303
    %v6322 = vmul.f32 %v6292, %v6308
    %v6323 = vmul.f32 %v6293, %v6313
    %v6324 = vmul.f32 %v6294, %v6318
    %vm6325 = vcmask 588800
    %v6326 = vsel %vm6325, %v6320, 0.0
    %v6327 = vsel %vm6325, %v6321, 0.0
    %v6328 = vadd.f32 %v6326, %v6327
    %v6329 = vsel %vm6325, %v6322, 0.0
    %v6330 = vadd.f32 %v6328, %v6329
    %v6331 = vsel %vm6325, %v6323, 0.0
    %v6332 = vadd.f32 %v6330, %v6331
    %vm6333 = vcmask 586752
    %v6334 = vsel %vm6333, %v6324, 0.0
    %v6335 = vadd.f32 %v6332, %v6334
    %v6336 = vrot.slane %v6335, 4
    %v6337 = vadd.f32 %v6335, %v6336
    %v6338 = vrot.slane %v6337, 2
    %v6339 = vadd.f32 %v6337, %v6338
    %v6340 = vrot.slane %v6339, 1
    %v6341 = vadd.f32 %v6339, %v6340
    %v6342 = vmul.f32 %v6290, %v6290
    %v6343 = vmul.f32 %v6291, %v6291
    %v6344 = vmul.f32 %v6292, %v6292
    %v6345 = vmul.f32 %v6293, %v6293
    %v6346 = vmul.f32 %v6294, %v6294
    %v6347 = vmul.f32 %v6342, %v6298
    %v6348 = vmul.f32 %v6343, %v6303
    %v6349 = vmul.f32 %v6344, %v6308
    %v6350 = vmul.f32 %v6345, %v6313
    %v6351 = vmul.f32 %v6346, %v6318
    %v6352 = vsel %vm6325, %v6347, 0.0
    %v6353 = vsel %vm6325, %v6348, 0.0
    %v6354 = vadd.f32 %v6352, %v6353
    %v6355 = vsel %vm6325, %v6349, 0.0
    %v6356 = vadd.f32 %v6354, %v6355
    %v6357 = vsel %vm6325, %v6350, 0.0
    %v6358 = vadd.f32 %v6356, %v6357
    %v6359 = vsel %vm6333, %v6351, 0.0
    %v6360 = vadd.f32 %v6358, %v6359
    %v6361 = vrot.slane %v6360, 4
    %v6362 = vadd.f32 %v6360, %v6361
    %v6363 = vrot.slane %v6362, 2
    %v6364 = vadd.f32 %v6362, %v6363
    %v6365 = vrot.slane %v6364, 1
    %v6366 = vadd.f32 %v6364, %v6365
    %v6367 = vsel %vm818, %v6341, %v6366
    %v6369 = vsel %vm6325, %v6367, 0
    %6371 = vmatprep.subr.mxu0 0.0
    %6372 = vmatpush1.msra.mxu0 %v5193
    %6373 = vmatprep.subr.mxu0 0.0
    %6374 = vmatpush1.msra.mxu0 %v5194
    %6375 = vmatprep.subr.mxu0 0.0
    %6376 = vmatpush1.msra.mxu0 %v5195
    %6377 = vmatprep.subr.mxu0 0.0
    %6378 = vmatpush1.msra.mxu0 %v5196
    %6379 = vmatprep.subr.mxu0 0.0
    %6380 = vmatpush1.msra.mxu0 %v5197
    %6381 = vmatprep.subr.mxu0 0.0
    %6382 = vmatpush1.msra.mxu0 %v5198
    %6383 = vmatprep.subr.mxu0 0.0
    %6384 = vmatpush1.msra.mxu0 %v5199
    %6385 = vmatprep.subr.mxu0 0.0
    %6386 = vmatpush1.msra.mxu0 %v5200
    %6387 = vmatprep.subr.mxu0 0.0
    %6388 = vmatpush1.msra.mxu0 %v5201
    %6389 = vmatprep.subr.mxu0 0.0
    %6390 = vmatpush1.msra.mxu0 0.0
    %6391 = vmatprep.subr.mxu0 0.0
    %6392 = vmatpush1.msra.mxu0 0.0
    %6393 = vmatprep.subr.mxu0 0.0
    %6394 = vmatpush1.msra.mxu0 0.0
    %6395 = vmatprep.subr.mxu0 0.0
    %6396 = vmatpush1.msra.mxu0 0.0
    %6397 = vmatprep.subr.mxu0 0.0
    %6398 = vmatpush1.msra.mxu0 0.0
    %6399 = vmatprep.subr.mxu0 0.0
    %6400 = vmatpush1.msra.mxu0 0.0
    %6401 = vmatprep.subr.mxu0 0.0
    %6402 = vmatpush1.msra.mxu0 0.0
    %6403 = vmatprep.subr.mxu0 0.0
    %6404 = vmatpush1.msra.mxu0 0.0
    %6405 = vmatprep.subr.mxu0 0.0
    %6406 = vmatpush1.msra.mxu0 0.0
    %6407 = vmatprep.subr.mxu0 0.0
    %6408 = vmatpush1.msra.mxu0 0.0
    %6409 = vmatprep.subr.mxu0 0.0
    %6410 = vmatpush1.msra.mxu0 0.0
    %6411 = vmatprep.subr.mxu0 0.0
    %6412 = vmatpush1.msra.mxu0 0.0
    %6413 = vmatprep.subr.mxu0 0.0
    %6414 = vmatpush1.msra.mxu0 0.0
    %6415 = vmatprep.subr.mxu0 0.0
    %6416 = vmatpush1.msra.mxu0 0.0
    %6417 = vmatprep.subr.mxu0 0.0
    %6418 = vmatpush1.msra.mxu0 0.0
    %6419 = vmatprep.subr.mxu0 0.0
    %6420 = vmatpush1.msra.mxu0 0.0
    %6421 = vmatprep.subr.mxu0 0.0
    %6422 = vmatpush1.msra.mxu0 0.0
    %6423 = vmatprep.subr.mxu0 0.0
    %6424 = vmatpush1.msra.mxu0 0.0
    %6425 = vmatprep.subr.mxu0 0.0
    %6426 = vmatpush1.msra.mxu0 0.0
    %6427 = vmatprep.subr.mxu0 0.0
    %6428 = vmatpush1.msra.mxu0 0.0
    %6429 = vmatprep.subr.mxu0 0.0
    %6430 = vmatpush1.msra.mxu0 0.0
    %6431 = vmatprep.subr.mxu0 0.0
    %6432 = vmatpush1.msra.mxu0 0.0
    %6433 = vmatprep.subr.mxu0 0.0
    %6434 = vmatpush1.msra.mxu0 0.0
    %6435 = vmatprep.mubr.f32.mxu0 0.0
    %6436 = vmatmul.mubr.f32.gmra.mrb[0].mxu0 %v6369
    %v6437 = vpop.f32.mrb[0].mxu0
    %v6438 = vadd.f32 0.0, %v6437
    %v6439 = vpop.f32.mrb[0].mxu0
    %6440 = vdwg.mxu0
    %v6441 = vmul.f32 %v6438, %v6438
    %v6443 = vrot.slane %v6441, 7
    %v6445 = vsub.f32 %v6438, %v6443
    %v6446 = vmax.f32 %v6445, 0.0
    %v6447 = vadd.f32 %v6446, 1e-05
    %v6448 = vrsqrt.pop %v6447
    %v6449 = vmul.f32 %v5192, %v6448
    %v6451 = vrot.slane %v6449, 1
    %v6453 = vmul.f32 %v6438, %v6451
    %v6455 = vrot.slane %v6453, 6
    %v6457 = vsub.f32 %v5192, %v6455
    %v6458 = vlaneseq
    %v6459 = vshrl.u32 %v6458, 7
    %v6460 = vsub.s32 1, %v6459
    %v6461 = vrot.slane %v6449, %v6460
    %v6462 = vmul.f32 %v6290, %v6461
    %v6463 = vmul.f32 %v6291, %v6461
    %v6464 = vmul.f32 %v6292, %v6461
    %v6465 = vmul.f32 %v6293, %v6461
    %v6466 = vmul.f32 %v6294, %v6461
    %v6467 = vlaneseq
    %v6468 = vshrl.u32 %v6467, 7
    %v6469 = vsub.s32 2, %v6468
    %v6470 = vrot.slane %v6457, %v6469
    %v6471 = vadd.f32 %v6462, %v6470
    %v6472 = vadd.f32 %v6463, %v6470
    %v6473 = vadd.f32 %v6464, %v6470
    %v6474 = vadd.f32 %v6465, %v6470
    %v6475 = vadd.f32 %v6466, %v6470
    %v6481 = vrot.slane %v6471, 1
    %v6482 = vrot.slane %v6472, 1
    %v6483 = vsel %vm1134, %v6481, %v6482
    %v6484 = vrot.slane %v6473, 1
    %v6485 = vsel %vm1134, %v6482, %v6484
    %v6486 = vrot.slane %v6474, 1
    %v6487 = vsel %vm1134, %v6484, %v6486
    %v6488 = vrot.slane %v6475, 1
    %v6489 = vsel %vm1134, %v6486, %v6488
    %v6490 = vsel %vm6325, %v6483, 0
    %v6492 = vsel %vm6325, %v6485, 0
    %v6494 = vsel %vm6325, %v6487, 0
    %v6496 = vsel %vm6325, %v6489, 0
    %v6498 = vsel %vm6325, %v6488, 0
    %6500 = vmatprep.subr.mxu0 0.0
    %6501 = vmatpush1.msra.mxu0 %v5216
    %6502 = vmatprep.subr.mxu0 0.0
    %6503 = vmatpush1.msra.mxu0 %v5217
    %6504 = vmatprep.subr.mxu0 0.0
    %6505 = vmatpush1.msra.mxu0 %v5218
    %6506 = vmatprep.subr.mxu0 0.0
    %6507 = vmatpush1.msra.mxu0 %v5219
    %6508 = vmatprep.subr.mxu0 0.0
    %6509 = vmatpush1.msra.mxu0 %v5220
    %6510 = vmatprep.subr.mxu0 0.0
    %6511 = vmatpush1.msra.mxu0 %v5221
    %6512 = vmatprep.subr.mxu0 0.0
    %6513 = vmatpush1.msra.mxu0 %v5222
    %6514 = vmatprep.subr.mxu0 0.0
    %6515 = vmatpush1.msra.mxu0 %v5223
    %6516 = vmatprep.subr.mxu0 0.0
    %6517 = vmatpush1.msra.mxu0 %v5224
    %6518 = vmatprep.subr.mxu0 0.0
    %6519 = vmatpush1.msra.mxu0 0.0
    %6520 = vmatprep.subr.mxu0 0.0
    %6521 = vmatpush1.msra.mxu0 0.0
    %6522 = vmatprep.subr.mxu0 0.0
    %6523 = vmatpush1.msra.mxu0 0.0
    %6524 = vmatprep.subr.mxu0 0.0
    %6525 = vmatpush1.msra.mxu0 0.0
    %6526 = vmatprep.subr.mxu0 0.0
    %6527 = vmatpush1.msra.mxu0 0.0
    %6528 = vmatprep.subr.mxu0 0.0
    %6529 = vmatpush1.msra.mxu0 0.0
    %6530 = vmatprep.subr.mxu0 0.0
    %6531 = vmatpush1.msra.mxu0 0.0
    %6532 = vmatprep.subr.mxu0 0.0
    %6533 = vmatpush1.msra.mxu0 0.0
    %6534 = vmatprep.subr.mxu0 0.0
    %6535 = vmatpush1.msra.mxu0 0.0
    %6536 = vmatprep.subr.mxu0 0.0
    %6537 = vmatpush1.msra.mxu0 0.0
    %6538 = vmatprep.subr.mxu0 0.0
    %6539 = vmatpush1.msra.mxu0 0.0
    %6540 = vmatprep.subr.mxu0 0.0
    %6541 = vmatpush1.msra.mxu0 0.0
    %6542 = vmatprep.subr.mxu0 0.0
    %6543 = vmatpush1.msra.mxu0 0.0
    %6544 = vmatprep.subr.mxu0 0.0
    %6545 = vmatpush1.msra.mxu0 0.0
    %6546 = vmatprep.subr.mxu0 0.0
    %6547 = vmatpush1.msra.mxu0 0.0
    %6548 = vmatprep.subr.mxu0 0.0
    %6549 = vmatpush1.msra.mxu0 0.0
    %6550 = vmatprep.subr.mxu0 0.0
    %6551 = vmatpush1.msra.mxu0 0.0
    %6552 = vmatprep.subr.mxu0 0.0
    %6553 = vmatpush1.msra.mxu0 0.0
    %6554 = vmatprep.subr.mxu0 0.0
    %6555 = vmatpush1.msra.mxu0 0.0
    %6556 = vmatprep.subr.mxu0 0.0
    %6557 = vmatpush1.msra.mxu0 0.0
    %6558 = vmatprep.subr.mxu0 0.0
    %6559 = vmatpush1.msra.mxu0 0.0
    %6560 = vmatprep.subr.mxu0 0.0
    %6561 = vmatpush1.msra.mxu0 0.0
    %6562 = vmatprep.subr.mxu0 0.0
    %6563 = vmatpush1.msra.mxu0 0.0
    %6564 = vmatprep.mubr.f32.mxu0 0.0
    %6565 = vmatmul.mubr.f32.gmra.mrb[0].mxu0 %v6490
    %v6566 = vpop.f32.mrb[0].mxu0
    %v6567 = vadd.f32 0.0, %v6566
    %v6568 = vpop.f32.mrb[0].mxu0
    %6569 = vmatprep.mubr.f32.mxu0 0.0
    %6570 = vmatmul.mubr.f32.gmra.mrb[0].mxu0 %v6492
    %v6571 = vpop.f32.mrb[0].mxu0
    %v6572 = vadd.f32 0.0, %v6571
    %v6573 = vpop.f32.mrb[0].mxu0
    %6574 = vmatprep.mubr.f32.mxu0 0.0
    %6575 = vmatmul.mubr.f32.gmra.mrb[0].mxu0 %v6494
    %v6576 = vpop.f32.mrb[0].mxu0
    %v6577 = vadd.f32 0.0, %v6576
    %v6578 = vpop.f32.mrb[0].mxu0
    %6579 = vmatprep.mubr.f32.mxu0 0.0
    %6580 = vmatmul.mubr.f32.gmra.mrb[0].mxu0 %v6496
    %v6581 = vpop.f32.mrb[0].mxu0
    %v6582 = vadd.f32 0.0, %v6581
    %v6583 = vpop.f32.mrb[0].mxu0
    %6584 = vmatprep.mubr.f32.mxu0 0.0
    %6585 = vmatmul.mubr.f32.gmra.mrb[0].mxu0 %v6498
    %v6586 = vpop.f32.mrb[0].mxu0
    %v6587 = vadd.f32 0.0, %v6586
    %v6588 = vpop.f32.mrb[0].mxu0
    %6589 = vdwg.mxu0
    %v6590 = vsel %vm6325, %v6471, 0
    %v6592 = vsel %vm6325, %v6472, 0
    %v6594 = vsel %vm6325, %v6473, 0
    %v6596 = vsel %vm6325, %v6474, 0
    %v6598 = vsel %vm6325, %v6475, 0
    %6600 = vmatprep.subr.mxu0 0.0
    %6601 = vmatpush1.msra.mxu0 %v5207
    %6602 = vmatprep.subr.mxu0 0.0
    %6603 = vmatpush1.msra.mxu0 %v5208
    %6604 = vmatprep.subr.mxu0 0.0
    %6605 = vmatpush1.msra.mxu0 %v5209
    %6606 = vmatprep.subr.mxu0 0.0
    %6607 = vmatpush1.msra.mxu0 %v5210
    %6608 = vmatprep.subr.mxu0 0.0
    %6609 = vmatpush1.msra.mxu0 %v5211
    %6610 = vmatprep.subr.mxu0 0.0
    %6611 = vmatpush1.msra.mxu0 %v5212
    %6612 = vmatprep.subr.mxu0 0.0
    %6613 = vmatpush1.msra.mxu0 %v5213
    %6614 = vmatprep.subr.mxu0 0.0
    %6615 = vmatpush1.msra.mxu0 %v5214
    %6616 = vmatprep.subr.mxu0 0.0
    %6617 = vmatpush1.msra.mxu0 %v5215
    %6618 = vmatprep.subr.mxu0 0.0
    %6619 = vmatpush1.msra.mxu0 0.0
    %6620 = vmatprep.subr.mxu0 0.0
    %6621 = vmatpush1.msra.mxu0 0.0
    %6622 = vmatprep.subr.mxu0 0.0
    %6623 = vmatpush1.msra.mxu0 0.0
    %6624 = vmatprep.subr.mxu0 0.0
    %6625 = vmatpush1.msra.mxu0 0.0
    %6626 = vmatprep.subr.mxu0 0.0
    %6627 = vmatpush1.msra.mxu0 0.0
    %6628 = vmatprep.subr.mxu0 0.0
    %6629 = vmatpush1.msra.mxu0 0.0
    %6630 = vmatprep.subr.mxu0 0.0
    %6631 = vmatpush1.msra.mxu0 0.0
    %6632 = vmatprep.subr.mxu0 0.0
    %6633 = vmatpush1.msra.mxu0 0.0
    %6634 = vmatprep.subr.mxu0 0.0
    %6635 = vmatpush1.msra.mxu0 0.0
    %6636 = vmatprep.subr.mxu0 0.0
    %6637 = vmatpush1.msra.mxu0 0.0
    %6638 = vmatprep.subr.mxu0 0.0
    %6639 = vmatpush1.msra.mxu0 0.0
    %6640 = vmatprep.subr.mxu0 0.0
    %6641 = vmatpush1.msra.mxu0 0.0
    %6642 = vmatprep.subr.mxu0 0.0
    %6643 = vmatpush1.msra.mxu0 0.0
    %6644 = vmatprep.subr.mxu0 0.0
    %6645 = vmatpush1.msra.mxu0 0.0
    %6646 = vmatprep.subr.mxu0 0.0
    %6647 = vmatpush1.msra.mxu0 0.0
    %6648 = vmatprep.subr.mxu0 0.0
    %6649 = vmatpush1.msra.mxu0 0.0
    %6650 = vmatprep.subr.mxu0 0.0
    %6651 = vmatpush1.msra.mxu0 0.0
    %6652 = vmatprep.subr.mxu0 0.0
    %6653 = vmatpush1.msra.mxu0 0.0
    %6654 = vmatprep.subr.mxu0 0.0
    %6655 = vmatpush1.msra.mxu0 0.0
    %6656 = vmatprep.subr.mxu0 0.0
    %6657 = vmatpush1.msra.mxu0 0.0
    %6658 = vmatprep.subr.mxu0 0.0
    %6659 = vmatpush1.msra.mxu0 0.0
    %6660 = vmatprep.subr.mxu0 0.0
    %6661 = vmatpush1.msra.mxu0 0.0
    %6662 = vmatprep.subr.mxu0 0.0
    %6663 = vmatpush1.msra.mxu0 0.0
    %6664 = vmatprep.mubr.f32.mxu0 0.0
    %6665 = vmatmul.mubr.f32.gmra.mrb[0].mxu0 %v6590
    %v6666 = vpop.f32.mrb[0].mxu0
    %v6667 = vadd.f32 %v6567, %v6666
    %v6668 = vpop.f32.mrb[0].mxu0
    %6669 = vmatprep.mubr.f32.mxu0 0.0
    %6670 = vmatmul.mubr.f32.gmra.mrb[0].mxu0 %v6592
    %v6671 = vpop.f32.mrb[0].mxu0
    %v6672 = vadd.f32 %v6572, %v6671
    %v6673 = vpop.f32.mrb[0].mxu0
    %6674 = vmatprep.mubr.f32.mxu0 0.0
    %6675 = vmatmul.mubr.f32.gmra.mrb[0].mxu0 %v6594
    %v6676 = vpop.f32.mrb[0].mxu0
    %v6677 = vadd.f32 %v6577, %v6676
    %v6678 = vpop.f32.mrb[0].mxu0
    %6679 = vmatprep.mubr.f32.mxu0 0.0
    %6680 = vmatmul.mubr.f32.gmra.mrb[0].mxu0 %v6596
    %v6681 = vpop.f32.mrb[0].mxu0
    %v6682 = vadd.f32 %v6582, %v6681
    %v6683 = vpop.f32.mrb[0].mxu0
    %6684 = vmatprep.mubr.f32.mxu0 0.0
    %6685 = vmatmul.mubr.f32.gmra.mrb[0].mxu0 %v6598
    %v6686 = vpop.f32.mrb[0].mxu0
    %v6687 = vadd.f32 %v6587, %v6686
    %v6688 = vpop.f32.mrb[0].mxu0
    %6689 = vdwg.mxu0
    %v6690 = vrot.slane %v6471, 2
    %v6691 = vrot.slane %v6472, 2
    %v6692 = vsel %vm1315, %v6690, %v6691
    %v6693 = vrot.slane %v6473, 2
    %v6694 = vsel %vm1315, %v6691, %v6693
    %v6695 = vrot.slane %v6474, 2
    %v6696 = vsel %vm1315, %v6693, %v6695
    %v6697 = vrot.slane %v6475, 2
    %v6698 = vsel %vm1315, %v6695, %v6697
    %v6699 = vsel %vm6325, %v6692, 0
    %v6701 = vsel %vm6325, %v6694, 0
    %v6703 = vsel %vm6325, %v6696, 0
    %v6705 = vsel %vm6325, %v6698, 0
    %v6707 = vsel %vm6325, %v6697, 0
    %6709 = vmatprep.subr.mxu0 0.0
    %6710 = vmatpush1.msra.mxu0 %v5225
    %6711 = vmatprep.subr.mxu0 0.0
    %6712 = vmatpush1.msra.mxu0 %v5226
    %6713 = vmatprep.subr.mxu0 0.0
    %6714 = vmatpush1.msra.mxu0 %v5227
    %6715 = vmatprep.subr.mxu0 0.0
    %6716 = vmatpush1.msra.mxu0 %v5228
    %6717 = vmatprep.subr.mxu0 0.0
    %6718 = vmatpush1.msra.mxu0 %v5229
    %6719 = vmatprep.subr.mxu0 0.0
    %6720 = vmatpush1.msra.mxu0 %v5230
    %6721 = vmatprep.subr.mxu0 0.0
    %6722 = vmatpush1.msra.mxu0 %v5231
    %6723 = vmatprep.subr.mxu0 0.0
    %6724 = vmatpush1.msra.mxu0 %v5232
    %6725 = vmatprep.subr.mxu0 0.0
    %6726 = vmatpush1.msra.mxu0 %v5233
    %6727 = vmatprep.subr.mxu0 0.0
    %6728 = vmatpush1.msra.mxu0 0.0
    %6729 = vmatprep.subr.mxu0 0.0
    %6730 = vmatpush1.msra.mxu0 0.0
    %6731 = vmatprep.subr.mxu0 0.0
    %6732 = vmatpush1.msra.mxu0 0.0
    %6733 = vmatprep.subr.mxu0 0.0
    %6734 = vmatpush1.msra.mxu0 0.0
    %6735 = vmatprep.subr.mxu0 0.0
    %6736 = vmatpush1.msra.mxu0 0.0
    %6737 = vmatprep.subr.mxu0 0.0
    %6738 = vmatpush1.msra.mxu0 0.0
    %6739 = vmatprep.subr.mxu0 0.0
    %6740 = vmatpush1.msra.mxu0 0.0
    %6741 = vmatprep.subr.mxu0 0.0
    %6742 = vmatpush1.msra.mxu0 0.0
    %6743 = vmatprep.subr.mxu0 0.0
    %6744 = vmatpush1.msra.mxu0 0.0
    %6745 = vmatprep.subr.mxu0 0.0
    %6746 = vmatpush1.msra.mxu0 0.0
    %6747 = vmatprep.subr.mxu0 0.0
    %6748 = vmatpush1.msra.mxu0 0.0
    %6749 = vmatprep.subr.mxu0 0.0
    %6750 = vmatpush1.msra.mxu0 0.0
    %6751 = vmatprep.subr.mxu0 0.0
    %6752 = vmatpush1.msra.mxu0 0.0
    %6753 = vmatprep.subr.mxu0 0.0
    %6754 = vmatpush1.msra.mxu0 0.0
    %6755 = vmatprep.subr.mxu0 0.0
    %6756 = vmatpush1.msra.mxu0 0.0
    %6757 = vmatprep.subr.mxu0 0.0
    %6758 = vmatpush1.msra.mxu0 0.0
    %6759 = vmatprep.subr.mxu0 0.0
    %6760 = vmatpush1.msra.mxu0 0.0
    %6761 = vmatprep.subr.mxu0 0.0
    %6762 = vmatpush1.msra.mxu0 0.0
    %6763 = vmatprep.subr.mxu0 0.0
    %6764 = vmatpush1.msra.mxu0 0.0
    %6765 = vmatprep.subr.mxu0 0.0
    %6766 = vmatpush1.msra.mxu0 0.0
    %6767 = vmatprep.subr.mxu0 0.0
    %6768 = vmatpush1.msra.mxu0 0.0
    %6769 = vmatprep.subr.mxu0 0.0
    %6770 = vmatpush1.msra.mxu0 0.0
    %6771 = vmatprep.subr.mxu0 0.0
    %6772 = vmatpush1.msra.mxu0 0.0
    %6773 = vmatprep.mubr.f32.mxu0 0.0
    %6774 = vmatmul.mubr.f32.gmra.mrb[0].mxu0 %v6699
    %v6775 = vpop.f32.mrb[0].mxu0
    %v6776 = vadd.f32 0.0, %v6775
    %v6777 = vpop.f32.mrb[0].mxu0
    %6778 = vmatprep.mubr.f32.mxu0 0.0
    %6779 = vmatmul.mubr.f32.gmra.mrb[0].mxu0 %v6701
    %v6780 = vpop.f32.mrb[0].mxu0
    %v6781 = vadd.f32 0.0, %v6780
    %v6782 = vpop.f32.mrb[0].mxu0
    %6783 = vmatprep.mubr.f32.mxu0 0.0
    %6784 = vmatmul.mubr.f32.gmra.mrb[0].mxu0 %v6703
    %v6785 = vpop.f32.mrb[0].mxu0
    %v6786 = vadd.f32 0.0, %v6785
    %v6787 = vpop.f32.mrb[0].mxu0
    %6788 = vmatprep.mubr.f32.mxu0 0.0
    %6789 = vmatmul.mubr.f32.gmra.mrb[0].mxu0 %v6705
    %v6790 = vpop.f32.mrb[0].mxu0
    %v6791 = vadd.f32 0.0, %v6790
    %v6792 = vpop.f32.mrb[0].mxu0
    %6793 = vmatprep.mubr.f32.mxu0 0.0
    %6794 = vmatmul.mubr.f32.gmra.mrb[0].mxu0 %v6707
    %v6795 = vpop.f32.mrb[0].mxu0
    %v6796 = vadd.f32 0.0, %v6795
    %v6797 = vpop.f32.mrb[0].mxu0
    %6798 = vdwg.mxu0
    %v6799 = vadd.f32 %v6667, %v6776
    %v6800 = vadd.f32 %v6672, %v6781
    %v6801 = vadd.f32 %v6677, %v6786
    %v6802 = vadd.f32 %v6682, %v6791
    %v6803 = vadd.f32 %v6687, %v6796
    %v6804 = vlaneseq
    %v6805 = vshrl.u32 %v6804, 7
    %v6806 = vsub.s32 0, %v6805
    %v6807 = vrot.slane %v5234, %v6806
    %v6808 = vadd.f32 %v6799, %v6807
    %v6809 = vadd.f32 %v6800, %v6807
    %v6810 = vadd.f32 %v6801, %v6807
    %v6811 = vadd.f32 %v6802, %v6807
    %v6812 = vadd.f32 %v6803, %v6807
    %v6813 = vmax.f32 %v6808, 0.0
    %v6814 = vmax.f32 %v6809, 0.0
    %v6815 = vmax.f32 %v6810, 0.0
    %v6816 = vmax.f32 %v6811, 0.0
    %v6817 = vmax.f32 %v6812, 0.0
    %6819 = vset.pattern.permute.xlu0 0
    %6820 = vperm.xlu0 %6819, %v5243
    %v6821 = vpop.permute.xlu0 %6820
    %6824 = vset.pattern.permute.xlu0 0
    %6825 = vperm.xlu0 %6824, %v5244
    %v6826 = vpop.permute.xlu0 %6825
    %6829 = vset.pattern.permute.xlu0 0
    %6830 = vperm.xlu0 %6829, %v5245
    %v6831 = vpop.permute.xlu0 %6830
    %6834 = vset.pattern.permute.xlu0 0
    %6835 = vperm.xlu0 %6834, %v5246
    %v6836 = vpop.permute.xlu0 %6835
    %6839 = vset.pattern.permute.xlu0 0
    %6840 = vperm.xlu0 %6839, %v5247
    %v6841 = vpop.permute.xlu0 %6840
    %v6843 = vmul.f32 %v6813, %v6821
    %v6844 = vmul.f32 %v6814, %v6826
    %v6845 = vmul.f32 %v6815, %v6831
    %v6846 = vmul.f32 %v6816, %v6836
    %v6847 = vmul.f32 %v6817, %v6841
    %v6848 = vsel %vm782, %v6843, 0.0
    %v6849 = vsel %vm782, %v6844, 0.0
    %v6850 = vadd.f32 %v6848, %v6849
    %v6851 = vsel %vm782, %v6845, 0.0
    %v6852 = vadd.f32 %v6850, %v6851
    %v6853 = vsel %vm782, %v6846, 0.0
    %v6854 = vadd.f32 %v6852, %v6853
    %v6855 = vsel %vm784, %v6847, 0.0
    %v6856 = vadd.f32 %v6854, %v6855
    %v6857 = vrot.slane %v6856, 4
    %v6858 = vadd.f32 %v6856, %v6857
    %v6859 = vrot.slane %v6858, 2
    %v6860 = vadd.f32 %v6858, %v6859
    %v6861 = vrot.slane %v6860, 1
    %v6862 = vadd.f32 %v6860, %v6861
    %v6863 = vmul.f32 %v6813, %v6813
    %v6864 = vmul.f32 %v6814, %v6814
    %v6865 = vmul.f32 %v6815, %v6815
    %v6866 = vmul.f32 %v6816, %v6816
    %v6867 = vmul.f32 %v6817, %v6817
    %v6868 = vmul.f32 %v6863, %v6821
    %v6869 = vmul.f32 %v6864, %v6826
    %v6870 = vmul.f32 %v6865, %v6831
    %v6871 = vmul.f32 %v6866, %v6836
    %v6872 = vmul.f32 %v6867, %v6841
    %v6873 = vsel %vm782, %v6868, 0.0
    %v6874 = vsel %vm782, %v6869, 0.0
    %v6875 = vadd.f32 %v6873, %v6874
    %v6876 = vsel %vm782, %v6870, 0.0
    %v6877 = vadd.f32 %v6875, %v6876
    %v6878 = vsel %vm782, %v6871, 0.0
    %v6879 = vadd.f32 %v6877, %v6878
    %v6880 = vsel %vm784, %v6872, 0.0
    %v6881 = vadd.f32 %v6879, %v6880
    %v6882 = vrot.slane %v6881, 4
    %v6883 = vadd.f32 %v6881, %v6882
    %v6884 = vrot.slane %v6883, 2
    %v6885 = vadd.f32 %v6883, %v6884
    %v6886 = vrot.slane %v6885, 1
    %v6887 = vadd.f32 %v6885, %v6886
    %v6888 = vsel %vm818, %v6862, %v6887
    %v6890 = vsel %vm782, %v6888, 0
    %6892 = vmatprep.subr.mxu0 0.0
    %6893 = vmatpush1.msra.mxu0 %v5235
    %6894 = vmatprep.subr.mxu0 0.0
    %6895 = vmatpush1.msra.mxu0 %v5236
    %6896 = vmatprep.subr.mxu0 0.0
    %6897 = vmatpush1.msra.mxu0 %v5237
    %6898 = vmatprep.subr.mxu0 0.0
    %6899 = vmatpush1.msra.mxu0 %v5238
    %6900 = vmatprep.subr.mxu0 0.0
    %6901 = vmatpush1.msra.mxu0 %v5239
    %6902 = vmatprep.subr.mxu0 0.0
    %6903 = vmatpush1.msra.mxu0 %v5240
    %6904 = vmatprep.subr.mxu0 0.0
    %6905 = vmatpush1.msra.mxu0 %v5241
    %6906 = vmatprep.subr.mxu0 0.0
    %6907 = vmatpush1.msra.mxu0 %v5242
    %6908 = vmatprep.subr.mxu0 0.0
    %6909 = vmatpush1.msra.mxu0 0.0
    %6910 = vmatprep.subr.mxu0 0.0
    %6911 = vmatpush1.msra.mxu0 0.0
    %6912 = vmatprep.subr.mxu0 0.0
    %6913 = vmatpush1.msra.mxu0 0.0
    %6914 = vmatprep.subr.mxu0 0.0
    %6915 = vmatpush1.msra.mxu0 0.0
    %6916 = vmatprep.subr.mxu0 0.0
    %6917 = vmatpush1.msra.mxu0 0.0
    %6918 = vmatprep.subr.mxu0 0.0
    %6919 = vmatpush1.msra.mxu0 0.0
    %6920 = vmatprep.subr.mxu0 0.0
    %6921 = vmatpush1.msra.mxu0 0.0
    %6922 = vmatprep.subr.mxu0 0.0
    %6923 = vmatpush1.msra.mxu0 0.0
    %6924 = vmatprep.subr.mxu0 0.0
    %6925 = vmatpush1.msra.mxu0 0.0
    %6926 = vmatprep.subr.mxu0 0.0
    %6927 = vmatpush1.msra.mxu0 0.0
    %6928 = vmatprep.subr.mxu0 0.0
    %6929 = vmatpush1.msra.mxu0 0.0
    %6930 = vmatprep.subr.mxu0 0.0
    %6931 = vmatpush1.msra.mxu0 0.0
    %6932 = vmatprep.subr.mxu0 0.0
    %6933 = vmatpush1.msra.mxu0 0.0
    %6934 = vmatprep.subr.mxu0 0.0
    %6935 = vmatpush1.msra.mxu0 0.0
    %6936 = vmatprep.subr.mxu0 0.0
    %6937 = vmatpush1.msra.mxu0 0.0
    %6938 = vmatprep.subr.mxu0 0.0
    %6939 = vmatpush1.msra.mxu0 0.0
    %6940 = vmatprep.subr.mxu0 0.0
    %6941 = vmatpush1.msra.mxu0 0.0
    %6942 = vmatprep.subr.mxu0 0.0
    %6943 = vmatpush1.msra.mxu0 0.0
    %6944 = vmatprep.subr.mxu0 0.0
    %6945 = vmatpush1.msra.mxu0 0.0
    %6946 = vmatprep.subr.mxu0 0.0
    %6947 = vmatpush1.msra.mxu0 0.0
    %6948 = vmatprep.subr.mxu0 0.0
    %6949 = vmatpush1.msra.mxu0 0.0
    %6950 = vmatprep.subr.mxu0 0.0
    %6951 = vmatpush1.msra.mxu0 0.0
    %6952 = vmatprep.subr.mxu0 0.0
    %6953 = vmatpush1.msra.mxu0 0.0
    %6954 = vmatprep.subr.mxu0 0.0
    %6955 = vmatpush1.msra.mxu0 0.0
    %6956 = vmatprep.mubr.f32.mxu0 0.0
    %6957 = vmatmul.mubr.f32.gmra.mrb[0].mxu0 %v6890
    %v6958 = vpop.f32.mrb[0].mxu0
    %v6959 = vadd.f32 0.0, %v6958
    %v6960 = vpop.f32.mrb[0].mxu0
    %6961 = vdwg.mxu0
    %v6962 = vmul.f32 %v6959, %v6959
    %v6964 = vrot.slane %v6962, 7
    %v6966 = vsub.f32 %v6959, %v6964
    %v6967 = vmax.f32 %v6966, 0.0
    %v6968 = vadd.f32 %v6967, 1e-05
    %v6969 = vrsqrt.pop %v6968
    %v6970 = vmul.f32 %v5234, %v6969
    %v6972 = vrot.slane %v6970, 1
    %v6974 = vmul.f32 %v6959, %v6972
    %v6976 = vrot.slane %v6974, 6
    %v6978 = vsub.f32 %v5234, %v6976
    %v6979 = vlaneseq
    %v6980 = vshrl.u32 %v6979, 7
    %v6981 = vsub.s32 1, %v6980
    %v6982 = vrot.slane %v6970, %v6981
    %v6983 = vmul.f32 %v6813, %v6982
    %v6984 = vmul.f32 %v6814, %v6982
    %v6985 = vmul.f32 %v6815, %v6982
    %v6986 = vmul.f32 %v6816, %v6982
    %v6987 = vmul.f32 %v6817, %v6982
    %v6988 = vlaneseq
    %v6989 = vshrl.u32 %v6988, 7
    %v6990 = vsub.s32 2, %v6989
    %v6991 = vrot.slane %v6978, %v6990
    %v6992 = vadd.f32 %v6983, %v6991
    %v6993 = vadd.f32 %v6984, %v6991
    %v6994 = vadd.f32 %v6985, %v6991
    %v6995 = vadd.f32 %v6986, %v6991
    %v6996 = vadd.f32 %v6987, %v6991
    %v6997 = vld [vmem:[%s115] sm:$0xff]
    %v6998 = vld [vmem:[%s115 + $0x8] sm:$0xff]
    %v6999 = vld [vmem:[%s115 + $0x10] sm:$0xff]
    %v7000 = vld [vmem:[%s115 + $0x18] sm:$0xff]
    %v7001 = vld [vmem:[%s115 + $0x20] sm:$0xff]
    %v7002 = vld [vmem:[%s115 + $0x28] sm:$0xff]
    %v7003 = vld [vmem:[%s117] sm:$0xff]
    %v7004 = vld [vmem:[%s117 + $0x8] sm:$0xff]
    %v7005 = vld [vmem:[%s117 + $0x10] sm:$0xff]
    %v7006 = vld [vmem:[%s117 + $0x18] sm:$0xff]
    %v7007 = vld [vmem:[%s117 + $0x20] sm:$0xff]
    %v7008 = vld [vmem:[%s117 + $0x28] sm:$0xff]
    %v7009 = vld [vmem:[%s117 + $0x30] sm:$0xff]
    %v7010 = vld [vmem:[%s117 + $0x38] sm:$0xff]
    %v7011 = vld [vmem:[%s119] sm:$0x1]
    %vm7012 = vcmask 293888
    %v7014 = vsel %vm7012, %v6997, 0
    %v7017 = vsel %vm7012, %v6998, 0
    %v7020 = vsel %vm7012, %v6999, 0
    %v7023 = vsel %vm7012, %v7000, 0
    %v7026 = vsel %vm7012, %v7001, 0
    %v7029 = vsel %vm7012, %v7002, 0
    %v7032 = vsel %vm773, %v6996, 0
    %7034 = vmatprep.subr.mxu0 0.0
    %7035 = vmatpush1.msra.mxu0 %v6992
    %7036 = vmatprep.subr.mxu0 0.0
    %7037 = vmatpush1.msra.mxu0 %v6993
    %7038 = vmatprep.subr.mxu0 0.0
    %7039 = vmatpush1.msra.mxu0 %v6994
    %7040 = vmatprep.subr.mxu0 0.0
    %7041 = vmatpush1.msra.mxu0 %v6995
    %7042 = vmatprep.subr.mxu0 0.0
    %7043 = vmatpush1.msra.mxu0 %v7032
    %7044 = vmatprep.subr.mxu0 0.0
    %7045 = vmatpush1.msra.mxu0 0.0
    %7046 = vmatprep.subr.mxu0 0.0
    %7047 = vmatpush1.msra.mxu0 0.0
    %7048 = vmatprep.subr.mxu0 0.0
    %7049 = vmatpush1.msra.mxu0 0.0
    %7050 = vmatprep.subr.mxu0 0.0
    %7051 = vmatpush1.msra.mxu0 0.0
    %7052 = vmatprep.subr.mxu0 0.0
    %7053 = vmatpush1.msra.mxu0 0.0
    %7054 = vmatprep.subr.mxu0 0.0
    %7055 = vmatpush1.msra.mxu0 0.0
    %7056 = vmatprep.subr.mxu0 0.0
    %7057 = vmatpush1.msra.mxu0 0.0
    %7058 = vmatprep.subr.mxu0 0.0
    %7059 = vmatpush1.msra.mxu0 0.0
    %7060 = vmatprep.subr.mxu0 0.0
    %7061 = vmatpush1.msra.mxu0 0.0
    %7062 = vmatprep.subr.mxu0 0.0
    %7063 = vmatpush1.msra.mxu0 0.0
    %7064 = vmatprep.subr.mxu0 0.0
    %7065 = vmatpush1.msra.mxu0 0.0
    %7066 = vmatprep.subr.mxu0 0.0
    %7067 = vmatpush1.msra.mxu0 0.0
    %7068 = vmatprep.subr.mxu0 0.0
    %7069 = vmatpush1.msra.mxu0 0.0
    %7070 = vmatprep.subr.mxu0 0.0
    %7071 = vmatpush1.msra.mxu0 0.0
    %7072 = vmatprep.subr.mxu0 0.0
    %7073 = vmatpush1.msra.mxu0 0.0
    %7074 = vmatprep.subr.mxu0 0.0
    %7075 = vmatpush1.msra.mxu0 0.0
    %7076 = vmatprep.subr.mxu0 0.0
    %7077 = vmatpush1.msra.mxu0 0.0
    %7078 = vmatprep.subr.mxu0 0.0
    %7079 = vmatpush1.msra.mxu0 0.0
    %7080 = vmatprep.subr.mxu0 0.0
    %7081 = vmatpush1.msra.mxu0 0.0
    %7082 = vmatprep.subr.mxu0 0.0
    %7083 = vmatpush1.msra.mxu0 0.0
    %7084 = vmatprep.subr.mxu0 0.0
    %7085 = vmatpush1.msra.mxu0 0.0
    %7086 = vmatprep.subr.mxu0 0.0
    %7087 = vmatpush1.msra.mxu0 0.0
    %7088 = vmatprep.subr.mxu0 0.0
    %7089 = vmatpush1.msra.mxu0 0.0
    %7090 = vmatprep.subr.mxu0 0.0
    %7091 = vmatpush1.msra.mxu0 0.0
    %7092 = vmatprep.subr.mxu0 0.0
    %7093 = vmatpush1.msra.mxu0 0.0
    %7094 = vmatprep.subr.mxu0 0.0
    %7095 = vmatpush1.msra.mxu0 0.0
    %7096 = vmatprep.subr.mxu0 0.0
    %7097 = vmatpush1.msra.mxu0 0.0
    %7098 = vmatprep.mubr.f32.mxu0 0.0
    %7099 = vmatmul.mubr.f32.gmra.mrb[0].mxu0 %v7014
    %v7100 = vpop.f32.mrb[0].mxu0
    %v7101 = vadd.f32 0.0, %v7100
    %v7102 = vpop.f32.mrb[0].mxu0
    %7103 = vmatprep.mubr.f32.mxu0 0.0
    %7104 = vmatmul.mubr.f32.gmra.mrb[0].mxu0 %v7017
    %v7105 = vpop.f32.mrb[0].mxu0
    %v7106 = vadd.f32 0.0, %v7105
    %v7107 = vpop.f32.mrb[0].mxu0
    %7108 = vmatprep.mubr.f32.mxu0 0.0
    %7109 = vmatmul.mubr.f32.gmra.mrb[0].mxu0 %v7020
    %v7110 = vpop.f32.mrb[0].mxu0
    %v7111 = vadd.f32 0.0, %v7110
    %v7112 = vpop.f32.mrb[0].mxu0
    %7113 = vmatprep.mubr.f32.mxu0 0.0
    %7114 = vmatmul.mubr.f32.gmra.mrb[0].mxu0 %v7023
    %v7115 = vpop.f32.mrb[0].mxu0
    %v7116 = vadd.f32 0.0, %v7115
    %v7117 = vpop.f32.mrb[0].mxu0
    %7118 = vmatprep.mubr.f32.mxu0 0.0
    %7119 = vmatmul.mubr.f32.gmra.mrb[0].mxu0 %v7026
    %v7120 = vpop.f32.mrb[0].mxu0
    %v7121 = vadd.f32 0.0, %v7120
    %v7122 = vpop.f32.mrb[0].mxu0
    %7123 = vmatprep.mubr.f32.mxu0 0.0
    %7124 = vmatmul.mubr.f32.gmra.mrb[0].mxu0 %v7029
    %v7125 = vpop.f32.mrb[0].mxu0
    %v7126 = vadd.f32 0.0, %v7125
    %v7127 = vpop.f32.mrb[0].mxu0
    %7128 = vdwg.mxu0
    %v7130 = vlaneseq
    %v7131 = vshrl.u32 %v7130, 7
    %v7132 = vsub.s32 0, %v7131
    %v7133 = vrot.slane %v7011, %v7132
    %v7136 = vsel %vm782, %v7101, 0
    %v7139 = vsel %vm782, %v7106, 0
    %v7142 = vsel %vm782, %v7111, 0
    %v7145 = vsel %vm782, %v7116, 0
    %v7148 = vsel %vm782, %v7121, 0
    %v7151 = vsel %vm782, %v7126, 0
    %7153 = vmatprep.subr.mxu0 0.0
    %7154 = vmatpush1.msra.mxu0 %v7003
    %7155 = vmatprep.subr.mxu0 0.0
    %7156 = vmatpush1.msra.mxu0 %v7004
    %7157 = vmatprep.subr.mxu0 0.0
    %7158 = vmatpush1.msra.mxu0 %v7005
    %7159 = vmatprep.subr.mxu0 0.0
    %7160 = vmatpush1.msra.mxu0 %v7006
    %7161 = vmatprep.subr.mxu0 0.0
    %7162 = vmatpush1.msra.mxu0 %v7007
    %7163 = vmatprep.subr.mxu0 0.0
    %7164 = vmatpush1.msra.mxu0 %v7008
    %7165 = vmatprep.subr.mxu0 0.0
    %7166 = vmatpush1.msra.mxu0 %v7009
    %7167 = vmatprep.subr.mxu0 0.0
    %7168 = vmatpush1.msra.mxu0 %v7010
    %7169 = vmatprep.subr.mxu0 0.0
    %7170 = vmatpush1.msra.mxu0 0.0
    %7171 = vmatprep.subr.mxu0 0.0
    %7172 = vmatpush1.msra.mxu0 0.0
    %7173 = vmatprep.subr.mxu0 0.0
    %7174 = vmatpush1.msra.mxu0 0.0
    %7175 = vmatprep.subr.mxu0 0.0
    %7176 = vmatpush1.msra.mxu0 0.0
    %7177 = vmatprep.subr.mxu0 0.0
    %7178 = vmatpush1.msra.mxu0 0.0
    %7179 = vmatprep.subr.mxu0 0.0
    %7180 = vmatpush1.msra.mxu0 0.0
    %7181 = vmatprep.subr.mxu0 0.0
    %7182 = vmatpush1.msra.mxu0 0.0
    %7183 = vmatprep.subr.mxu0 0.0
    %7184 = vmatpush1.msra.mxu0 0.0
    %7185 = vmatprep.subr.mxu0 0.0
    %7186 = vmatpush1.msra.mxu0 0.0
    %7187 = vmatprep.subr.mxu0 0.0
    %7188 = vmatpush1.msra.mxu0 0.0
    %7189 = vmatprep.subr.mxu0 0.0
    %7190 = vmatpush1.msra.mxu0 0.0
    %7191 = vmatprep.subr.mxu0 0.0
    %7192 = vmatpush1.msra.mxu0 0.0
    %7193 = vmatprep.subr.mxu0 0.0
    %7194 = vmatpush1.msra.mxu0 0.0
    %7195 = vmatprep.subr.mxu0 0.0
    %7196 = vmatpush1.msra.mxu0 0.0
    %7197 = vmatprep.subr.mxu0 0.0
    %7198 = vmatpush1.msra.mxu0 0.0
    %7199 = vmatprep.subr.mxu0 0.0
    %7200 = vmatpush1.msra.mxu0 0.0
    %7201 = vmatprep.subr.mxu0 0.0
    %7202 = vmatpush1.msra.mxu0 0.0
    %7203 = vmatprep.subr.mxu0 0.0
    %7204 = vmatpush1.msra.mxu0 0.0
    %7205 = vmatprep.subr.mxu0 0.0
    %7206 = vmatpush1.msra.mxu0 0.0
    %7207 = vmatprep.subr.mxu0 0.0
    %7208 = vmatpush1.msra.mxu0 0.0
    %7209 = vmatprep.subr.mxu0 0.0
    %7210 = vmatpush1.msra.mxu0 0.0
    %7211 = vmatprep.subr.mxu0 0.0
    %7212 = vmatpush1.msra.mxu0 0.0
    %7213 = vmatprep.subr.mxu0 0.0
    %7214 = vmatpush1.msra.mxu0 0.0
    %7215 = vmatprep.subr.mxu0 0.0
    %7216 = vmatpush1.msra.mxu0 0.0
    %7217 = vmatprep.mubr.f32.mxu0 0.0
    %7218 = vmatmul.mubr.f32.gmra.mrb[0].mxu0 %v7136
    %v7219 = vpop.f32.mrb[0].mxu0
    %v7220 = vadd.f32 %v7133, %v7219
    %v7221 = vpop.f32.mrb[0].mxu0
    %7222 = vmatprep.mubr.f32.mxu0 0.0
    %7223 = vmatmul.mubr.f32.gmra.mrb[0].mxu0 %v7139
    %v7224 = vpop.f32.mrb[0].mxu0
    %v7225 = vadd.f32 %v7133, %v7224
    %v7226 = vpop.f32.mrb[0].mxu0
    %7227 = vmatprep.mubr.f32.mxu0 0.0
    %7228 = vmatmul.mubr.f32.gmra.mrb[0].mxu0 %v7142
    %v7229 = vpop.f32.mrb[0].mxu0
    %v7230 = vadd.f32 %v7133, %v7229
    %v7231 = vpop.f32.mrb[0].mxu0
    %7232 = vmatprep.mubr.f32.mxu0 0.0
    %7233 = vmatmul.mubr.f32.gmra.mrb[0].mxu0 %v7145
    %v7234 = vpop.f32.mrb[0].mxu0
    %v7235 = vadd.f32 %v7133, %v7234
    %v7236 = vpop.f32.mrb[0].mxu0
    %7237 = vmatprep.mubr.f32.mxu0 0.0
    %7238 = vmatmul.mubr.f32.gmra.mrb[0].mxu0 %v7148
    %v7239 = vpop.f32.mrb[0].mxu0
    %v7240 = vadd.f32 %v7133, %v7239
    %v7241 = vpop.f32.mrb[0].mxu0
    %7242 = vmatprep.mubr.f32.mxu0 0.0
    %7243 = vmatmul.mubr.f32.gmra.mrb[0].mxu0 %v7151
    %v7244 = vpop.f32.mrb[0].mxu0
    %v7245 = vadd.f32 %v7133, %v7244
    %v7246 = vpop.f32.mrb[0].mxu0
    %7247 = vdwg.mxu0
    %v7248 = vxor.u32 %v7220, 2147483648
    %v7249 = vxor.u32 %v7225, 2147483648
    %v7250 = vxor.u32 %v7230, 2147483648
    %v7251 = vxor.u32 %v7235, 2147483648
    %v7252 = vxor.u32 %v7240, 2147483648
    %v7253 = vxor.u32 %v7245, 2147483648
    %v7254 = vmul.f32 %v7248, 1.442695
    %v7255 = vpow.pop %v7254
    %v7256 = vmul.f32 %v7249, 1.442695
    %v7257 = vpow.pop %v7256
    %v7258 = vmul.f32 %v7250, 1.442695
    %v7259 = vpow.pop %v7258
    %v7260 = vmul.f32 %v7251, 1.442695
    %v7261 = vpow.pop %v7260
    %v7262 = vmul.f32 %v7252, 1.442695
    %v7263 = vpow.pop %v7262
    %v7264 = vmul.f32 %v7253, 1.442695
    %v7265 = vpow.pop %v7264
    %v7266 = vadd.f32 %v7255, 1.0
    %v7267 = vadd.f32 %v7257, 1.0
    %v7268 = vadd.f32 %v7259, 1.0
    %v7269 = vadd.f32 %v7261, 1.0
    %v7270 = vadd.f32 %v7263, 1.0
    %v7271 = vadd.f32 %v7265, 1.0
    %v7272 = vrcp.pop %v7266
    %v7273 = vmul.f32 1.0, %v7272
    %v7274 = vrcp.pop %v7267
    %v7275 = vmul.f32 1.0, %v7274
    %v7276 = vrcp.pop %v7268
    %v7277 = vmul.f32 1.0, %v7276
    %v7278 = vrcp.pop %v7269
    %v7279 = vmul.f32 1.0, %v7278
    %v7280 = vrcp.pop %v7270
    %v7281 = vmul.f32 1.0, %v7280
    %v7282 = vrcp.pop %v7271
    %v7283 = vmul.f32 1.0, %v7282
    %vm7284 = vcmask 195584
    %7285 = vst.msk [vmem:[#allocation2] sm:$0xff] %vm7284, %v7273
    %7286 = vst.msk [vmem:[#allocation2 + $0x8] sm:$0xff] %vm7284, %v7275
    %7287 = vst.msk [vmem:[#allocation2 + $0x10] sm:$0xff] %vm7284, %v7277
    %7288 = vst.msk [vmem:[#allocation2 + $0x18] sm:$0xff] %vm7284, %v7279
    %7289 = vst.msk [vmem:[#allocation2 + $0x20] sm:$0xff] %vm7284, %v7281
    %7290 = vst.msk [vmem:[#allocation2 + $0x28] sm:$0xff] %vm7284, %v7283
    // Predicated region
    $region242: #{decoder_forward.1} parent=1 // pred_check
      _
    $region243: #{decoder_forward.1} parent=1 // pred_check_branch
      %7292 = sbr.rel (0) target = $region245
    $region244: #{decoder_forward.1} parent=1 // pred_region
      %s7294 = ssub.s32 768, 768
      %7295 = vsyncadd [#allocation3], %s7294
      %s7296 = sshll.u32 [#allocation2], 4
      %s7297 = int_to_ptr.vmem [resolvable:$true] %s7296
      %7302 = dma.vmem_to_hbm [thread:$0]  %s7297, 768, %s121, [#allocation3], 128, 128, 8
    $region245: #{decoder_forward.1} parent=1 // pred_fallthru
      _
    // Predicated region
    $region246: #{decoder_forward.1} parent=1 // pred_check
      _
    $region247: #{decoder_forward.1} parent=1 // pred_check_branch
      %7304 = sbr.rel (0) target = $region249
    $region248: #{decoder_forward.1} parent=1 // pred_region
      %7305 = dma.done [#allocation3], 768
    $region249: #{decoder_forward.1} parent=1 // pred_fallthru
      _
    %7306 = vsyncpa [#allocation3], 1

</llo_original>
